<compile_context>
chip_gen: v7x
topology: tpu7x:2x2x1
jax: 0.10.0
libtpu: 0.0.40
codegen_flags: <defaults>
</compile_context>

<pallas_src>
import math

import jax
import jax.numpy as jnp
from jax import lax
from jax.experimental import pallas as pl
from jax.experimental.pallas import tpu as pltpu  # noqa: F401  (imported per task template)

# ----------------------------- configuration ---------------------------------
BATCH = 2
IMG_H, IMG_W = 40, 5          # scaled down from (660, 5); IMG_W == PATCH by construction
PATCH = 5
NUM_PATCHES = (IMG_H // PATCH) * (IMG_W // PATCH)   # 8  (conv out-channels)
SPATIAL = NUM_PATCHES                               # 8  (conv spatial size)
D_MODEL = SPATIAL                                   # MUSE d_model
DIM = NUM_PATCHES                                   # transformer dim
MUSE_H, MUSE_DK, MUSE_DV = 8, D_MODEL, D_MODEL
HDK = MUSE_H * MUSE_DK                              # 64
HDV = MUSE_H * MUSE_DV                              # 64
DEPTH = 2
HEADS = 2
DIM_HEAD = 4
INNER = HEADS * DIM_HEAD                            # 8
MLP_DIM = 16
NUM_CLASSES = 3

_F32 = jnp.float32


# ------------------------------ fused kernel ----------------------------------


def _vit_fused_kernel(
    # ---- inputs ----
    patches_ref,            # (B, SPATIAL, PATCH*PATCH)
    patch_w_ref,            # (NUM_PATCHES, PATCH*PATCH)    conv weight, row = out-channel
    patch_b_ref,            # (1, NUM_PATCHES)
    muse_qkv_w_ref,         # (D_MODEL, 2*HDK + HDV)        concat of fc_q/fc_k/fc_v (x @ W form)
    muse_qkv_b_ref,         # (1, 2*HDK + HDV)
    muse_o_w_ref,           # (D_MODEL, HDV)                fc_o weight (PyTorch layout, used as x @ W^T)
    muse_o_b_ref,           # (1, D_MODEL)
    c3_dw_ref,              # (3, HDV)                      depthwise k=3 weight (tap-major)
    c3_db_ref,              # (1, HDV)
    c5_dw_ref,              # (5, HDV)
    c5_db_ref,              # (1, HDV)
    pw_cat_ref,             # (D_MODEL, 3*HDV)   [dy0*pw1 | dy1*pw3 | dy2*pw5]  (used as x @ W^T)
    pb_comb_ref,            # (1, D_MODEL)       dy-weighted pointwise bias
    cls_ref,                # (1, DIM)
    pos_ref,                # (NUM_PATCHES + 1, DIM)
    ln1_g_ref, ln1_b_ref,   # (DEPTH, 1, DIM)
    qkv_w_ref,              # (DEPTH, DIM, 3*INNER)         to_qkv, bias=False
    out_w_ref,              # (DEPTH, INNER, DIM)
    out_b_ref,              # (DEPTH, 1, DIM)
    ln2_g_ref, ln2_b_ref,   # (DEPTH, 1, DIM)
    ff1_w_ref,              # (DEPTH, DIM, MLP_DIM)
    ff1_b_ref,              # (DEPTH, 1, MLP_DIM)
    ff2_w_ref,              # (DEPTH, MLP_DIM, DIM)
    ff2_b_ref,              # (DEPTH, 1, DIM)
    hln_g_ref, hln_b_ref,   # (1, DIM)
    head_w_ref,             # (DIM, NUM_CLASSES)
    head_b_ref,             # (1, NUM_CLASSES)
    # ---- outputs ----
    logits_ref,             # (B, 1, NUM_CLASSES)
    a_ref,                  # (B, 1, DIM)
    visual2_ref,            # (B, NUM_PATCHES, D_MODEL)
):
    B = patches_ref.shape[0]
    muse_scale = 1.0 / math.sqrt(MUSE_DK)
    attn_scale = DIM_HEAD ** -0.5

    def matmul_nt(a, b):
        # a: (m, k), b: (n, k) -> a @ b.T  (standard "transposed-rhs" MXU form)
        return lax.dot_general(a, b, (((1,), (1,)), ((), ())),
                               preferred_element_type=_F32)

    # (8, 8) identity built from 2-D iotas; used for exact small transposes via
    # the MXU (out[i, j] = sum_k I[i, k] * x[j, k] = x[j, i]).
    row = lax.broadcasted_iota(jnp.int32, (NUM_PATCHES, NUM_PATCHES), 0)
    col = lax.broadcasted_iota(jnp.int32, (NUM_PATCHES, NUM_PATCHES), 1)
    eye8 = jnp.where(row == col, 1.0, 0.0).astype(_F32)

    def t2d(x):                      # transpose of an (m, NUM_PATCHES) block
        return matmul_nt(eye8, x)

    def layernorm(x, g, b):
        mu = jnp.mean(x, axis=-1, keepdims=True)
        var = jnp.mean(jnp.square(x - mu), axis=-1, keepdims=True)
        return (x - mu) * lax.rsqrt(var + 1e-5) * g + b

    def softmax_rows(s):
        s = s - jnp.max(s, axis=-1, keepdims=True)
        e = jnp.exp(s)
        return e * pl.reciprocal(jnp.sum(e, axis=-1, keepdims=True), approx=True)

    def gelu(y):                      # exact (erf) GELU, matching torch.nn.GELU()
        return 0.5 * y * (1.0 + lax.erf(y * 0.7071067811865476))

    def depthwise_tok(v_tok, w_tap, b_row, k):
        # 'same'-padded per-channel Conv1d in token-major layout.
        # v_tok: (L, C), w_tap: (k, C), b_row: (1, C) -> (L, C)
        L, C = v_tok.shape
        pad = k // 2
        z = jnp.zeros((pad, C), _F32)
        vp = jnp.concatenate([z, v_tok, z], axis=0)
        out = jnp.zeros((L, C), _F32)
        for t in range(k):            # static shift-and-accumulate
            out = out + vp[t:t + L, :] * w_tap[t:t + 1, :]
        return out + b_row

    for b in range(B):
        # ---- patch embedding: Conv2d(1, NUM_PATCHES, k=5, s=5) as matmul ------
        pat = patches_ref[b]                                       # (SPATIAL, 25)
        emb = matmul_nt(pat, patch_w_ref[...]) + patch_b_ref[...]  # (SPATIAL, C)
        x = t2d(emb)                                # 'b c (h w)' -> (nq=C, d_model=SPATIAL)

        # ---- MUSEAttention(x, x, x) ------------------------------------------
        qkv = jnp.dot(x, muse_qkv_w_ref[...],
                      preferred_element_type=_F32) + muse_qkv_b_ref[...]  # (nq, 192)
        q_all = qkv[:, :HDK]
        k_all = qkv[:, HDK:2 * HDK]
        v_all = qkv[:, 2 * HDK:]                    # == v2^T  (token-major)

        head_out = []
        for h in range(MUSE_H):
            qh = q_all[:, h * MUSE_DK:(h + 1) * MUSE_DK]
            kh = k_all[:, h * MUSE_DK:(h + 1) * MUSE_DK]
            vh = v_all[:, h * MUSE_DV:(h + 1) * MUSE_DV]
            s = matmul_nt(qh, kh) * muse_scale
            # TODO(synk): nn.Dropout(0.1) after softmax treated as inference-mode identity.
            head_out.append(jnp.dot(softmax_rows(s), vh, preferred_element_type=_F32))
        att = jnp.concatenate(head_out, axis=1)                    # (nq, HDV)
        out1 = matmul_nt(att, muse_o_w_ref[...]) + muse_o_b_ref[...]   # fc_o

        # conv branch (k=1 depthwise is Identity); dy already folded into pw_cat.
        d3 = depthwise_tok(v_all, c3_dw_ref[...], c3_db_ref[...], 3)
        d5 = depthwise_tok(v_all, c5_dw_ref[...], c5_db_ref[...], 5)
        d_cat = jnp.concatenate([v_all, d3, d5], axis=1)           # (nq, 3*HDV)
        out2 = matmul_nt(d_cat, pw_cat_ref[...]) + pb_comb_ref[...]

        x_muse = out1 + out2                                       # (nq, d_model)
        visual2_ref[b] = x_muse

        # ---- ViT: 'b r p -> b p r', cls token, positional embedding ----------
        toks = t2d(x_muse)                                         # (d_model, DIM)
        xt = jnp.concatenate([cls_ref[...], toks], axis=0) + pos_ref[...]   # (n+1, DIM)

        # ---- transformer (PreNorm Attention / PreNorm FeedForward) -----------
        for l in range(DEPTH):
            y = layernorm(xt, ln1_g_ref[l], ln1_b_ref[l])
            qkv_t = jnp.dot(y, qkv_w_ref[l], preferred_element_type=_F32)   # (n, 3*INNER)
            hs = []
            for h in range(HEADS):
                qh = qkv_t[:, h * DIM_HEAD:(h + 1) * DIM_HEAD]
                kh = qkv_t[:, INNER + h * DIM_HEAD:INNER + (h + 1) * DIM_HEAD]
                vh = qkv_t[:, 2 * INNER + h * DIM_HEAD:2 * INNER + (h + 1) * DIM_HEAD]
                s = matmul_nt(qh, kh) * attn_scale
                hs.append(jnp.dot(softmax_rows(s), vh, preferred_element_type=_F32))
            att_t = jnp.concatenate(hs, axis=1)                    # (n, INNER)
            att_t = jnp.dot(att_t, out_w_ref[l],
                            preferred_element_type=_F32) + out_b_ref[l]
            xt = xt + att_t

            y = layernorm(xt, ln2_g_ref[l], ln2_b_ref[l])
            hid = gelu(jnp.dot(y, ff1_w_ref[l],
                               preferred_element_type=_F32) + ff1_b_ref[l])
            ff = jnp.dot(hid, ff2_w_ref[l],
                         preferred_element_type=_F32) + ff2_b_ref[l]
            xt = xt + ff

        # ---- cls pooling + mlp head ------------------------------------------
        pooled = xt[0:1, :]                                        # (1, DIM)
        a_ref[b] = pooled
        hln = layernorm(pooled, hln_g_ref[...], hln_b_ref[...])
        logits_ref[b] = jnp.dot(hln, head_w_ref[...],
                                preferred_element_type=_F32) + head_b_ref[...]


# ------------------------------ parameters ------------------------------------


def init_params(key):
    ks = iter(jax.random.split(key, 64))

    def nrm(shape, std=0.05):
        return jax.random.normal(next(ks), shape, _F32) * std

    zeros = lambda *s: jnp.zeros(s, _F32)
    ones = lambda *s: jnp.ones(s, _F32)

    p = {}
    # patch embedding: Conv2d(1, NUM_PATCHES, kernel=5, stride=5)
    p["patch_w"] = nrm((NUM_PATCHES, 1, PATCH, PATCH))
    p["patch_b"] = zeros(NUM_PATCHES)

    # MUSEAttention (init_weights: Linear std=0.001, bias 0)
    p["muse_q_w"] = nrm((D_MODEL, HDK), 0.001); p["muse_q_b"] = zeros(HDK)
    p["muse_k_w"] = nrm((D_MODEL, HDK), 0.001); p["muse_k_b"] = zeros(HDK)
    p["muse_v_w"] = nrm((D_MODEL, HDV), 0.001); p["muse_v_b"] = zeros(HDV)
    p["muse_o_w"] = nrm((HDV, D_MODEL), 0.001); p["muse_o_b"] = zeros(D_MODEL)
    for k in (3, 5):                               # k=1 depthwise is nn.Identity (no params)
        p[f"c{k}_dw"] = nrm((HDV, k))
        p[f"c{k}_db"] = zeros(HDV)
    for k in (1, 3, 5):
        p[f"c{k}_pw"] = nrm((D_MODEL, HDV))
        p[f"c{k}_pb"] = zeros(D_MODEL)
    p["muse_dy"] = ones(3)

    # ViT embedding
    p["pos"] = nrm((1, NUM_PATCHES + 1, DIM), 1.0)
    p["cls"] = nrm((1, 1, DIM), 1.0)

    # transformer layers
    layers = []
    for _ in range(DEPTH):
        layers.append({
            "ln1_g": ones(DIM), "ln1_b": zeros(DIM),
            "qkv_w": nrm((DIM, 3 * INNER)),                      # to_qkv: bias=False
            "out_w": nrm((INNER, DIM)), "out_b": zeros(DIM),
            "ln2_g": ones(DIM), "ln2_b": zeros(DIM),
            "ff1_w": nrm((DIM, MLP_DIM)), "ff1_b": zeros(MLP_DIM),
            "ff2_w": nrm((MLP_DIM, DIM)), "ff2_b": zeros(DIM),
        })
    p["layers"] = layers

    # mlp head
    p["head_ln_g"] = ones(DIM); p["head_ln_b"] = zeros(DIM)
    p["head_w"] = nrm((DIM, NUM_CLASSES)); p["head_b"] = zeros(NUM_CLASSES)
    return p


# ------------------------------ forward pass ----------------------------------


def vit_forward(params, img):
    """img: NCHW (B, 1, IMG_H, IMG_W). Returns (logits, a, visual2)."""
    B = img.shape[0]

    # Conv2d(1, NUM_PATCHES, k=5, s=5): since IMG_W == PATCH, patch extraction is
    # a contiguous (view-like) reshape -- no transpose, no extra HBM copy.
    patches = img.reshape(B, SPATIAL, PATCH * PATCH)

    patch_w = params["patch_w"].reshape(NUM_PATCHES, PATCH * PATCH)   # (8, 25)
    patch_b = params["patch_b"].reshape(1, NUM_PATCHES)

    # one concatenated projection for MUSE q/k/v
    muse_qkv_w = jnp.concatenate(
        [params["muse_q_w"], params["muse_k_w"], params["muse_v_w"]], axis=1)
    muse_qkv_b = jnp.concatenate(
        [params["muse_q_b"], params["muse_k_b"], params["muse_v_b"]]).reshape(1, -1)
    muse_o_w = params["muse_o_w"].T                                   # (D_MODEL, HDV)
    muse_o_b = params["muse_o_b"].reshape(1, D_MODEL)

    # conv branch: fold dy = softmax(dy_paras) into the stacked pointwise weights/bias
    dy = jax.nn.softmax(params["muse_dy"])
    pw_cat = jnp.concatenate([dy[0] * params["c1_pw"],
                              dy[1] * params["c3_pw"],
                              dy[2] * params["c5_pw"]], axis=1)       # (D_MODEL, 3*HDV)
    pb_comb = (dy[0] * params["c1_pb"] + dy[1] * params["c3_pb"]
               + dy[2] * params["c5_pb"]).reshape(1, D_MODEL)
    c3_dw = params["c3_dw"].T                                         # (3, HDV)
    c3_db = params["c3_db"].reshape(1, HDV)
    c5_dw = params["c5_dw"].T                                         # (5, HDV)
    c5_db = params["c5_db"].reshape(1, HDV)

    cls_tok = params["cls"].reshape(1, DIM)
    pos = params["pos"].reshape(NUM_PATCHES + 1, DIM)

    L = params["layers"]
    stk = lambda name: jnp.stack([lp[name] for lp in L])
    ln1_g = stk("ln1_g").reshape(DEPTH, 1, DIM)
    ln1_b = stk("ln1_b").reshape(DEPTH, 1, DIM)
    qkv_w = stk("qkv_w")                                              # (DEPTH, DIM, 3*INNER)
    out_w = stk("out_w")                                              # (DEPTH, INNER, DIM)
    out_b = stk("out_b").reshape(DEPTH, 1, DIM)
    ln2_g = stk("ln2_g").reshape(DEPTH, 1, DIM)
    ln2_b = stk("ln2_b").reshape(DEPTH, 1, DIM)
    ff1_w = stk("ff1_w")                                              # (DEPTH, DIM, MLP_DIM)
    ff1_b = stk("ff1_b").reshape(DEPTH, 1, MLP_DIM)
    ff2_w = stk("ff2_w")                                              # (DEPTH, MLP_DIM, DIM)
    ff2_b = stk("ff2_b").reshape(DEPTH, 1, DIM)

    hln_g = params["head_ln_g"].reshape(1, DIM)
    hln_b = params["head_ln_b"].reshape(1, DIM)
    head_w = params["head_w"]                                         # (DIM, NUM_CLASSES)
    head_b = params["head_b"].reshape(1, NUM_CLASSES)

    logits3, a3, visual2 = pl.pallas_call(
        _vit_fused_kernel,
        out_shape=(
            jax.ShapeDtypeStruct((B, 1, NUM_CLASSES), _F32),
            jax.ShapeDtypeStruct((B, 1, DIM), _F32),
            jax.ShapeDtypeStruct((B, NUM_PATCHES, D_MODEL), _F32),
        ),
    )(patches, patch_w, patch_b,
      muse_qkv_w, muse_qkv_b, muse_o_w, muse_o_b,
      c3_dw, c3_db, c5_dw, c5_db, pw_cat, pb_comb,
      cls_tok, pos,
      ln1_g, ln1_b, qkv_w, out_w, out_b, ln2_g, ln2_b, ff1_w, ff1_b, ff2_w, ff2_b,
      hln_g, hln_b, head_w, head_b)

    return logits3.reshape(B, NUM_CLASSES), a3.reshape(B, DIM), visual2


# ---------------------------------- main ---------------------------------------

if __name__ == "__main__":
    key = jax.random.PRNGKey(0)
    pkey, xkey = jax.random.split(key)
    params = init_params(pkey)
    img = jax.random.normal(xkey, (BATCH, 1, IMG_H, IMG_W), _F32)

    logits, a, visual2 = jax.jit(vit_forward)(params, img)
    jax.block_until_ready((logits, a, visual2))

    assert logits.shape == (BATCH, NUM_CLASSES)
    assert a.shape == (BATCH, DIM)
    assert visual2.shape == (BATCH, NUM_PATCHES, D_MODEL)
    print("KERNEL_OK")
</pallas_src>

<mosaic_0001>
module attributes {stable_mosaic.version = 11 : i64} {
  func.func @_vit_fused_kernel(%arg0: memref<2x8x25xf32, #tpu.memory_space<vmem>>, %arg1: memref<8x25xf32, #tpu.memory_space<vmem>>, %arg2: memref<1x8xf32, #tpu.memory_space<vmem>>, %arg3: memref<8x192xf32, #tpu.memory_space<vmem>>, %arg4: memref<1x192xf32, #tpu.memory_space<vmem>>, %arg5: memref<8x64xf32, #tpu.memory_space<vmem>>, %arg6: memref<1x8xf32, #tpu.memory_space<vmem>>, %arg7: memref<3x64xf32, #tpu.memory_space<vmem>>, %arg8: memref<1x64xf32, #tpu.memory_space<vmem>>, %arg9: memref<5x64xf32, #tpu.memory_space<vmem>>, %arg10: memref<1x64xf32, #tpu.memory_space<vmem>>, %arg11: memref<8x192xf32, #tpu.memory_space<vmem>>, %arg12: memref<1x8xf32, #tpu.memory_space<vmem>>, %arg13: memref<1x8xf32, #tpu.memory_space<vmem>>, %arg14: memref<9x8xf32, #tpu.memory_space<vmem>>, %arg15: memref<2x1x8xf32, #tpu.memory_space<vmem>>, %arg16: memref<2x1x8xf32, #tpu.memory_space<vmem>>, %arg17: memref<2x8x24xf32, #tpu.memory_space<vmem>>, %arg18: memref<2x8x8xf32, #tpu.memory_space<vmem>>, %arg19: memref<2x1x8xf32, #tpu.memory_space<vmem>>, %arg20: memref<2x1x8xf32, #tpu.memory_space<vmem>>, %arg21: memref<2x1x8xf32, #tpu.memory_space<vmem>>, %arg22: memref<2x8x16xf32, #tpu.memory_space<vmem>>, %arg23: memref<2x1x16xf32, #tpu.memory_space<vmem>>, %arg24: memref<2x16x8xf32, #tpu.memory_space<vmem>>, %arg25: memref<2x1x8xf32, #tpu.memory_space<vmem>>, %arg26: memref<1x8xf32, #tpu.memory_space<vmem>>, %arg27: memref<1x8xf32, #tpu.memory_space<vmem>>, %arg28: memref<8x3xf32, #tpu.memory_space<vmem>>, %arg29: memref<1x3xf32, #tpu.memory_space<vmem>>, %arg30: memref<2x1x3xf32, #tpu.memory_space<vmem>>, %arg31: memref<2x1x8xf32, #tpu.memory_space<vmem>>, %arg32: memref<2x8x8xf32, #tpu.memory_space<vmem>>) attributes {dimension_semantics = [], scalar_prefetch = 0 : i64, scratch_operands = 0 : i64, tpu.core_type = #tpu.core_type<tc>} {
    %0 = tpu.iota {dimensions = array<i32: 0>} : vector<8x8xi32>
    %1 = tpu.iota {dimensions = array<i32: 1>} : vector<8x8xi32>
    %2 = arith.cmpi eq, %0, %1 : vector<8x8xi32>
    %cst = arith.constant 1.000000e+00 : f32
    %cst_0 = arith.constant 0.000000e+00 : f32
    %3 = vector.broadcast %cst : f32 to vector<8x8xf32>
    %4 = vector.broadcast %cst_0 : f32 to vector<8x8xf32>
    %5 = arith.select %2, %3, %4 : vector<8x8xi1>, vector<8x8xf32>
    %c0 = arith.constant 0 : index
    %c0_1 = arith.constant 0 : index
    %c0_2 = arith.constant 0 : index
    %6 = vector.load %arg0[%c0, %c0_1, %c0_2] : memref<2x8x25xf32, #tpu.memory_space<vmem>>, vector<1x8x25xf32>
    %7 = vector.shape_cast %6 : vector<1x8x25xf32> to vector<8x25xf32>
    %c0_3 = arith.constant 0 : index
    %c0_4 = arith.constant 0 : index
    %8 = vector.load %arg1[%c0_3, %c0_4] : memref<8x25xf32, #tpu.memory_space<vmem>>, vector<8x25xf32>
    %cst_5 = arith.constant dense<0.000000e+00> : vector<8x8xf32>
    %9 = tpu.matmul %7, %8, %cst_5 {dimension_numbers = #tpu.dot_dimension_numbers<[1], [1], [0], [0], [0, 0, 1, 0], [], []>} : vector<8x25xf32>, vector<8x25xf32>, vector<8x8xf32> -> vector<8x8xf32>
    %c0_6 = arith.constant 0 : index
    %c0_7 = arith.constant 0 : index
    %10 = vector.load %arg2[%c0_6, %c0_7] : memref<1x8xf32, #tpu.memory_space<vmem>>, vector<1x8xf32>
    %11 = vector.broadcast %10 : vector<1x8xf32> to vector<8x8xf32>
    %12 = arith.addf %9, %11 : vector<8x8xf32>
    %cst_8 = arith.constant dense<0.000000e+00> : vector<8x8xf32>
    %13 = tpu.matmul %5, %12, %cst_8 {dimension_numbers = #tpu.dot_dimension_numbers<[1], [1], [0], [0], [0, 0, 1, 0], [], []>} : vector<8x8xf32>, vector<8x8xf32>, vector<8x8xf32> -> vector<8x8xf32>
    %c0_9 = arith.constant 0 : index
    %c0_10 = arith.constant 0 : index
    %14 = vector.load %arg3[%c0_9, %c0_10] : memref<8x192xf32, #tpu.memory_space<vmem>>, vector<8x192xf32>
    %cst_11 = arith.constant dense<0.000000e+00> : vector<8x192xf32>
    %15 = tpu.matmul %13, %14, %cst_11 {dimension_numbers = #tpu.dot_dimension_numbers<[1], [0], [0], [1], [0, 0, 1, 1], [], []>} : vector<8x8xf32>, vector<8x192xf32>, vector<8x192xf32> -> vector<8x192xf32>
    %c0_12 = arith.constant 0 : index
    %c0_13 = arith.constant 0 : index
    %16 = vector.load %arg4[%c0_12, %c0_13] : memref<1x192xf32, #tpu.memory_space<vmem>>, vector<1x192xf32>
    %17 = vector.broadcast %16 : vector<1x192xf32> to vector<8x192xf32>
    %18 = arith.addf %15, %17 : vector<8x192xf32>
    %19 = vector.extract_strided_slice %18 {offsets = [0, 0], sizes = [8, 64], strides = [1, 1]} : vector<8x192xf32> to vector<8x64xf32>
    %20 = vector.extract_strided_slice %18 {offsets = [0, 64], sizes = [8, 64], strides = [1, 1]} : vector<8x192xf32> to vector<8x64xf32>
    %21 = vector.extract_strided_slice %18 {offsets = [0, 128], sizes = [8, 64], strides = [1, 1]} : vector<8x192xf32> to vector<8x64xf32>
    %22 = vector.extract_strided_slice %19 {offsets = [0, 0], sizes = [8, 8], strides = [1, 1]} : vector<8x64xf32> to vector<8x8xf32>
    %23 = vector.extract_strided_slice %20 {offsets = [0, 0], sizes = [8, 8], strides = [1, 1]} : vector<8x64xf32> to vector<8x8xf32>
    %24 = vector.extract_strided_slice %21 {offsets = [0, 0], sizes = [8, 8], strides = [1, 1]} : vector<8x64xf32> to vector<8x8xf32>
    %cst_14 = arith.constant dense<0.000000e+00> : vector<8x8xf32>
    %25 = tpu.matmul %22, %23, %cst_14 {dimension_numbers = #tpu.dot_dimension_numbers<[1], [1], [0], [0], [0, 0, 1, 0], [], []>} : vector<8x8xf32>, vector<8x8xf32>, vector<8x8xf32> -> vector<8x8xf32>
    %cst_15 = arith.constant 0.353553385 : f32
    %26 = vector.broadcast %cst_15 : f32 to vector<8x8xf32>
    %27 = arith.mulf %25, %26 : vector<8x8xf32>
    %cst_16 = arith.constant dense<0xFF800000> : vector<8xf32>
    %28 = vector.multi_reduction <maximumf>, %27, %cst_16 [1] : vector<8x8xf32> to vector<8xf32>
    %29 = vector.shape_cast %28 : vector<8xf32> to vector<8x1xf32>
    %30 = vector.broadcast %29 : vector<8x1xf32> to vector<8x8xf32>
    %31 = arith.subf %27, %30 : vector<8x8xf32>
    %32 = math.exp %31 : vector<8x8xf32>
    %cst_17 = arith.constant dense<0.000000e+00> : vector<8xf32>
    %33 = vector.multi_reduction <add>, %32, %cst_17 [1] : vector<8x8xf32> to vector<8xf32>
    %34 = vector.shape_cast %33 : vector<8xf32> to vector<8x1xf32>
    %35 = tpu.reciprocal %34 {approx = true} : vector<8x1xf32> -> vector<8x1xf32>
    %36 = vector.broadcast %35 : vector<8x1xf32> to vector<8x8xf32>
    %37 = arith.mulf %32, %36 : vector<8x8xf32>
    %cst_18 = arith.constant dense<0.000000e+00> : vector<8x8xf32>
    %38 = tpu.matmul %37, %24, %cst_18 {dimension_numbers = #tpu.dot_dimension_numbers<[1], [0], [0], [1], [0, 0, 1, 1], [], []>} : vector<8x8xf32>, vector<8x8xf32>, vector<8x8xf32> -> vector<8x8xf32>
    %39 = vector.extract_strided_slice %19 {offsets = [0, 8], sizes = [8, 8], strides = [1, 1]} : vector<8x64xf32> to vector<8x8xf32>
    %40 = vector.extract_strided_slice %20 {offsets = [0, 8], sizes = [8, 8], strides = [1, 1]} : vector<8x64xf32> to vector<8x8xf32>
    %41 = vector.extract_strided_slice %21 {offsets = [0, 8], sizes = [8, 8], strides = [1, 1]} : vector<8x64xf32> to vector<8x8xf32>
    %cst_19 = arith.constant dense<0.000000e+00> : vector<8x8xf32>
    %42 = tpu.matmul %39, %40, %cst_19 {dimension_numbers = #tpu.dot_dimension_numbers<[1], [1], [0], [0], [0, 0, 1, 0], [], []>} : vector<8x8xf32>, vector<8x8xf32>, vector<8x8xf32> -> vector<8x8xf32>
    %cst_20 = arith.constant 0.353553385 : f32
    %43 = vector.broadcast %cst_20 : f32 to vector<8x8xf32>
    %44 = arith.mulf %42, %43 : vector<8x8xf32>
    %cst_21 = arith.constant dense<0xFF800000> : vector<8xf32>
    %45 = vector.multi_reduction <maximumf>, %44, %cst_21 [1] : vector<8x8xf32> to vector<8xf32>
    %46 = vector.shape_cast %45 : vector<8xf32> to vector<8x1xf32>
    %47 = vector.broadcast %46 : vector<8x1xf32> to vector<8x8xf32>
    %48 = arith.subf %44, %47 : vector<8x8xf32>
    %49 = math.exp %48 : vector<8x8xf32>
    %cst_22 = arith.constant dense<0.000000e+00> : vector<8xf32>
    %50 = vector.multi_reduction <add>, %49, %cst_22 [1] : vector<8x8xf32> to vector<8xf32>
    %51 = vector.shape_cast %50 : vector<8xf32> to vector<8x1xf32>
    %52 = tpu.reciprocal %51 {approx = true} : vector<8x1xf32> -> vector<8x1xf32>
    %53 = vector.broadcast %52 : vector<8x1xf32> to vector<8x8xf32>
    %54 = arith.mulf %49, %53 : vector<8x8xf32>
    %cst_23 = arith.constant dense<0.000000e+00> : vector<8x8xf32>
    %55 = tpu.matmul %54, %41, %cst_23 {dimension_numbers = #tpu.dot_dimension_numbers<[1], [0], [0], [1], [0, 0, 1, 1], [], []>} : vector<8x8xf32>, vector<8x8xf32>, vector<8x8xf32> -> vector<8x8xf32>
    %56 = vector.extract_strided_slice %19 {offsets = [0, 16], sizes = [8, 8], strides = [1, 1]} : vector<8x64xf32> to vector<8x8xf32>
    %57 = vector.extract_strided_slice %20 {offsets = [0, 16], sizes = [8, 8], strides = [1, 1]} : vector<8x64xf32> to vector<8x8xf32>
    %58 = vector.extract_strided_slice %21 {offsets = [0, 16], sizes = [8, 8], strides = [1, 1]} : vector<8x64xf32> to vector<8x8xf32>
    %cst_24 = arith.constant dense<0.000000e+00> : vector<8x8xf32>
    %59 = tpu.matmul %56, %57, %cst_24 {dimension_numbers = #tpu.dot_dimension_numbers<[1], [1], [0], [0], [0, 0, 1, 0], [], []>} : vector<8x8xf32>, vector<8x8xf32>, vector<8x8xf32> -> vector<8x8xf32>
    %cst_25 = arith.constant 0.353553385 : f32
    %60 = vector.broadcast %cst_25 : f32 to vector<8x8xf32>
    %61 = arith.mulf %59, %60 : vector<8x8xf32>
    %cst_26 = arith.constant dense<0xFF800000> : vector<8xf32>
    %62 = vector.multi_reduction <maximumf>, %61, %cst_26 [1] : vector<8x8xf32> to vector<8xf32>
    %63 = vector.shape_cast %62 : vector<8xf32> to vector<8x1xf32>
    %64 = vector.broadcast %63 : vector<8x1xf32> to vector<8x8xf32>
    %65 = arith.subf %61, %64 : vector<8x8xf32>
    %66 = math.exp %65 : vector<8x8xf32>
    %cst_27 = arith.constant dense<0.000000e+00> : vector<8xf32>
    %67 = vector.multi_reduction <add>, %66, %cst_27 [1] : vector<8x8xf32> to vector<8xf32>
    %68 = vector.shape_cast %67 : vector<8xf32> to vector<8x1xf32>
    %69 = tpu.reciprocal %68 {approx = true} : vector<8x1xf32> -> vector<8x1xf32>
    %70 = vector.broadcast %69 : vector<8x1xf32> to vector<8x8xf32>
    %71 = arith.mulf %66, %70 : vector<8x8xf32>
    %cst_28 = arith.constant dense<0.000000e+00> : vector<8x8xf32>
    %72 = tpu.matmul %71, %58, %cst_28 {dimension_numbers = #tpu.dot_dimension_numbers<[1], [0], [0], [1], [0, 0, 1, 1], [], []>} : vector<8x8xf32>, vector<8x8xf32>, vector<8x8xf32> -> vector<8x8xf32>
    %73 = vector.extract_strided_slice %19 {offsets = [0, 24], sizes = [8, 8], strides = [1, 1]} : vector<8x64xf32> to vector<8x8xf32>
    %74 = vector.extract_strided_slice %20 {offsets = [0, 24], sizes = [8, 8], strides = [1, 1]} : vector<8x64xf32> to vector<8x8xf32>
    %75 = vector.extract_strided_slice %21 {offsets = [0, 24], sizes = [8, 8], strides = [1, 1]} : vector<8x64xf32> to vector<8x8xf32>
    %cst_29 = arith.constant dense<0.000000e+00> : vector<8x8xf32>
    %76 = tpu.matmul %73, %74, %cst_29 {dimension_numbers = #tpu.dot_dimension_numbers<[1], [1], [0], [0], [0, 0, 1, 0], [], []>} : vector<8x8xf32>, vector<8x8xf32>, vector<8x8xf32> -> vector<8x8xf32>
    %cst_30 = arith.constant 0.353553385 : f32
    %77 = vector.broadcast %cst_30 : f32 to vector<8x8xf32>
    %78 = arith.mulf %76, %77 : vector<8x8xf32>
    %cst_31 = arith.constant dense<0xFF800000> : vector<8xf32>
    %79 = vector.multi_reduction <maximumf>, %78, %cst_31 [1] : vector<8x8xf32> to vector<8xf32>
    %80 = vector.shape_cast %79 : vector<8xf32> to vector<8x1xf32>
    %81 = vector.broadcast %80 : vector<8x1xf32> to vector<8x8xf32>
    %82 = arith.subf %78, %81 : vector<8x8xf32>
    %83 = math.exp %82 : vector<8x8xf32>
    %cst_32 = arith.constant dense<0.000000e+00> : vector<8xf32>
    %84 = vector.multi_reduction <add>, %83, %cst_32 [1] : vector<8x8xf32> to vector<8xf32>
    %85 = vector.shape_cast %84 : vector<8xf32> to vector<8x1xf32>
    %86 = tpu.reciprocal %85 {approx = true} : vector<8x1xf32> -> vector<8x1xf32>
    %87 = vector.broadcast %86 : vector<8x1xf32> to vector<8x8xf32>
    %88 = arith.mulf %83, %87 : vector<8x8xf32>
    %cst_33 = arith.constant dense<0.000000e+00> : vector<8x8xf32>
    %89 = tpu.matmul %88, %75, %cst_33 {dimension_numbers = #tpu.dot_dimension_numbers<[1], [0], [0], [1], [0, 0, 1, 1], [], []>} : vector<8x8xf32>, vector<8x8xf32>, vector<8x8xf32> -> vector<8x8xf32>
    %90 = vector.extract_strided_slice %19 {offsets = [0, 32], sizes = [8, 8], strides = [1, 1]} : vector<8x64xf32> to vector<8x8xf32>
    %91 = vector.extract_strided_slice %20 {offsets = [0, 32], sizes = [8, 8], strides = [1, 1]} : vector<8x64xf32> to vector<8x8xf32>
    %92 = vector.extract_strided_slice %21 {offsets = [0, 32], sizes = [8, 8], strides = [1, 1]} : vector<8x64xf32> to vector<8x8xf32>
    %cst_34 = arith.constant dense<0.000000e+00> : vector<8x8xf32>
    %93 = tpu.matmul %90, %91, %cst_34 {dimension_numbers = #tpu.dot_dimension_numbers<[1], [1], [0], [0], [0, 0, 1, 0], [], []>} : vector<8x8xf32>, vector<8x8xf32>, vector<8x8xf32> -> vector<8x8xf32>
    %cst_35 = arith.constant 0.353553385 : f32
    %94 = vector.broadcast %cst_35 : f32 to vector<8x8xf32>
    %95 = arith.mulf %93, %94 : vector<8x8xf32>
    %cst_36 = arith.constant dense<0xFF800000> : vector<8xf32>
    %96 = vector.multi_reduction <maximumf>, %95, %cst_36 [1] : vector<8x8xf32> to vector<8xf32>
    %97 = vector.shape_cast %96 : vector<8xf32> to vector<8x1xf32>
    %98 = vector.broadcast %97 : vector<8x1xf32> to vector<8x8xf32>
    %99 = arith.subf %95, %98 : vector<8x8xf32>
    %100 = math.exp %99 : vector<8x8xf32>
    %cst_37 = arith.constant dense<0.000000e+00> : vector<8xf32>
    %101 = vector.multi_reduction <add>, %100, %cst_37 [1] : vector<8x8xf32> to vector<8xf32>
    %102 = vector.shape_cast %101 : vector<8xf32> to vector<8x1xf32>
    %103 = tpu.reciprocal %102 {approx = true} : vector<8x1xf32> -> vector<8x1xf32>
    %104 = vector.broadcast %103 : vector<8x1xf32> to vector<8x8xf32>
    %105 = arith.mulf %100, %104 : vector<8x8xf32>
    %cst_38 = arith.constant dense<0.000000e+00> : vector<8x8xf32>
    %106 = tpu.matmul %105, %92, %cst_38 {dimension_numbers = #tpu.dot_dimension_numbers<[1], [0], [0], [1], [0, 0, 1, 1], [], []>} : vector<8x8xf32>, vector<8x8xf32>, vector<8x8xf32> -> vector<8x8xf32>
    %107 = vector.extract_strided_slice %19 {offsets = [0, 40], sizes = [8, 8], strides = [1, 1]} : vector<8x64xf32> to vector<8x8xf32>
    %108 = vector.extract_strided_slice %20 {offsets = [0, 40], sizes = [8, 8], strides = [1, 1]} : vector<8x64xf32> to vector<8x8xf32>
    %109 = vector.extract_strided_slice %21 {offsets = [0, 40], sizes = [8, 8], strides = [1, 1]} : vector<8x64xf32> to vector<8x8xf32>
    %cst_39 = arith.constant dense<0.000000e+00> : vector<8x8xf32>
    %110 = tpu.matmul %107, %108, %cst_39 {dimension_numbers = #tpu.dot_dimension_numbers<[1], [1], [0], [0], [0, 0, 1, 0], [], []>} : vector<8x8xf32>, vector<8x8xf32>, vector<8x8xf32> -> vector<8x8xf32>
    %cst_40 = arith.constant 0.353553385 : f32
    %111 = vector.broadcast %cst_40 : f32 to vector<8x8xf32>
    %112 = arith.mulf %110, %111 : vector<8x8xf32>
    %cst_41 = arith.constant dense<0xFF800000> : vector<8xf32>
    %113 = vector.multi_reduction <maximumf>, %112, %cst_41 [1] : vector<8x8xf32> to vector<8xf32>
    %114 = vector.shape_cast %113 : vector<8xf32> to vector<8x1xf32>
    %115 = vector.broadcast %114 : vector<8x1xf32> to vector<8x8xf32>
    %116 = arith.subf %112, %115 : vector<8x8xf32>
    %117 = math.exp %116 : vector<8x8xf32>
    %cst_42 = arith.constant dense<0.000000e+00> : vector<8xf32>
    %118 = vector.multi_reduction <add>, %117, %cst_42 [1] : vector<8x8xf32> to vector<8xf32>
    %119 = vector.shape_cast %118 : vector<8xf32> to vector<8x1xf32>
    %120 = tpu.reciprocal %119 {approx = true} : vector<8x1xf32> -> vector<8x1xf32>
    %121 = vector.broadcast %120 : vector<8x1xf32> to vector<8x8xf32>
    %122 = arith.mulf %117, %121 : vector<8x8xf32>
    %cst_43 = arith.constant dense<0.000000e+00> : vector<8x8xf32>
    %123 = tpu.matmul %122, %109, %cst_43 {dimension_numbers = #tpu.dot_dimension_numbers<[1], [0], [0], [1], [0, 0, 1, 1], [], []>} : vector<8x8xf32>, vector<8x8xf32>, vector<8x8xf32> -> vector<8x8xf32>
    %124 = vector.extract_strided_slice %19 {offsets = [0, 48], sizes = [8, 8], strides = [1, 1]} : vector<8x64xf32> to vector<8x8xf32>
    %125 = vector.extract_strided_slice %20 {offsets = [0, 48], sizes = [8, 8], strides = [1, 1]} : vector<8x64xf32> to vector<8x8xf32>
    %126 = vector.extract_strided_slice %21 {offsets = [0, 48], sizes = [8, 8], strides = [1, 1]} : vector<8x64xf32> to vector<8x8xf32>
    %cst_44 = arith.constant dense<0.000000e+00> : vector<8x8xf32>
    %127 = tpu.matmul %124, %125, %cst_44 {dimension_numbers = #tpu.dot_dimension_numbers<[1], [1], [0], [0], [0, 0, 1, 0], [], []>} : vector<8x8xf32>, vector<8x8xf32>, vector<8x8xf32> -> vector<8x8xf32>
    %cst_45 = arith.constant 0.353553385 : f32
    %128 = vector.broadcast %cst_45 : f32 to vector<8x8xf32>
    %129 = arith.mulf %127, %128 : vector<8x8xf32>
    %cst_46 = arith.constant dense<0xFF800000> : vector<8xf32>
    %130 = vector.multi_reduction <maximumf>, %129, %cst_46 [1] : vector<8x8xf32> to vector<8xf32>
    %131 = vector.shape_cast %130 : vector<8xf32> to vector<8x1xf32>
    %132 = vector.broadcast %131 : vector<8x1xf32> to vector<8x8xf32>
    %133 = arith.subf %129, %132 : vector<8x8xf32>
    %134 = math.exp %133 : vector<8x8xf32>
    %cst_47 = arith.constant dense<0.000000e+00> : vector<8xf32>
    %135 = vector.multi_reduction <add>, %134, %cst_47 [1] : vector<8x8xf32> to vector<8xf32>
    %136 = vector.shape_cast %135 : vector<8xf32> to vector<8x1xf32>
    %137 = tpu.reciprocal %136 {approx = true} : vector<8x1xf32> -> vector<8x1xf32>
    %138 = vector.broadcast %137 : vector<8x1xf32> to vector<8x8xf32>
    %139 = arith.mulf %134, %138 : vector<8x8xf32>
    %cst_48 = arith.constant dense<0.000000e+00> : vector<8x8xf32>
    %140 = tpu.matmul %139, %126, %cst_48 {dimension_numbers = #tpu.dot_dimension_numbers<[1], [0], [0], [1], [0, 0, 1, 1], [], []>} : vector<8x8xf32>, vector<8x8xf32>, vector<8x8xf32> -> vector<8x8xf32>
    %141 = vector.extract_strided_slice %19 {offsets = [0, 56], sizes = [8, 8], strides = [1, 1]} : vector<8x64xf32> to vector<8x8xf32>
    %142 = vector.extract_strided_slice %20 {offsets = [0, 56], sizes = [8, 8], strides = [1, 1]} : vector<8x64xf32> to vector<8x8xf32>
    %143 = vector.extract_strided_slice %21 {offsets = [0, 56], sizes = [8, 8], strides = [1, 1]} : vector<8x64xf32> to vector<8x8xf32>
    %cst_49 = arith.constant dense<0.000000e+00> : vector<8x8xf32>
    %144 = tpu.matmul %141, %142, %cst_49 {dimension_numbers = #tpu.dot_dimension_numbers<[1], [1], [0], [0], [0, 0, 1, 0], [], []>} : vector<8x8xf32>, vector<8x8xf32>, vector<8x8xf32> -> vector<8x8xf32>
    %cst_50 = arith.constant 0.353553385 : f32
    %145 = vector.broadcast %cst_50 : f32 to vector<8x8xf32>
    %146 = arith.mulf %144, %145 : vector<8x8xf32>
    %cst_51 = arith.constant dense<0xFF800000> : vector<8xf32>
    %147 = vector.multi_reduction <maximumf>, %146, %cst_51 [1] : vector<8x8xf32> to vector<8xf32>
    %148 = vector.shape_cast %147 : vector<8xf32> to vector<8x1xf32>
    %149 = vector.broadcast %148 : vector<8x1xf32> to vector<8x8xf32>
    %150 = arith.subf %146, %149 : vector<8x8xf32>
    %151 = math.exp %150 : vector<8x8xf32>
    %cst_52 = arith.constant dense<0.000000e+00> : vector<8xf32>
    %152 = vector.multi_reduction <add>, %151, %cst_52 [1] : vector<8x8xf32> to vector<8xf32>
    %153 = vector.shape_cast %152 : vector<8xf32> to vector<8x1xf32>
    %154 = tpu.reciprocal %153 {approx = true} : vector<8x1xf32> -> vector<8x1xf32>
    %155 = vector.broadcast %154 : vector<8x1xf32> to vector<8x8xf32>
    %156 = arith.mulf %151, %155 : vector<8x8xf32>
    %cst_53 = arith.constant dense<0.000000e+00> : vector<8x8xf32>
    %157 = tpu.matmul %156, %143, %cst_53 {dimension_numbers = #tpu.dot_dimension_numbers<[1], [0], [0], [1], [0, 0, 1, 1], [], []>} : vector<8x8xf32>, vector<8x8xf32>, vector<8x8xf32> -> vector<8x8xf32>
    %158 = tpu.concatenate %38, %55, %72, %89, %106, %123, %140, %157 in 1 : vector<8x8xf32>, vector<8x8xf32>, vector<8x8xf32>, vector<8x8xf32>, vector<8x8xf32>, vector<8x8xf32>, vector<8x8xf32>, vector<8x8xf32> -> vector<8x64xf32>
    %c0_54 = arith.constant 0 : index
    %c0_55 = arith.constant 0 : index
    %159 = vector.load %arg5[%c0_54, %c0_55] : memref<8x64xf32, #tpu.memory_space<vmem>>, vector<8x64xf32>
    %cst_56 = arith.constant dense<0.000000e+00> : vector<8x8xf32>
    %160 = tpu.matmul %158, %159, %cst_56 {dimension_numbers = #tpu.dot_dimension_numbers<[1], [1], [0], [0], [0, 0, 1, 0], [], []>} : vector<8x64xf32>, vector<8x64xf32>, vector<8x8xf32> -> vector<8x8xf32>
    %c0_57 = arith.constant 0 : index
    %c0_58 = arith.constant 0 : index
    %161 = vector.load %arg6[%c0_57, %c0_58] : memref<1x8xf32, #tpu.memory_space<vmem>>, vector<1x8xf32>
    %162 = vector.broadcast %161 : vector<1x8xf32> to vector<8x8xf32>
    %163 = arith.addf %160, %162 : vector<8x8xf32>
    %c0_59 = arith.constant 0 : index
    %c0_60 = arith.constant 0 : index
    %164 = vector.load %arg7[%c0_59, %c0_60] : memref<3x64xf32, #tpu.memory_space<vmem>>, vector<3x64xf32>
    %c0_61 = arith.constant 0 : index
    %c0_62 = arith.constant 0 : index
    %165 = vector.load %arg8[%c0_61, %c0_62] : memref<1x64xf32, #tpu.memory_space<vmem>>, vector<1x64xf32>
    %cst_63 = arith.constant 0.000000e+00 : f32
    %166 = vector.broadcast %cst_63 : f32 to vector<1x64xf32>
    %167 = tpu.concatenate %166, %21, %166 in 0 : vector<1x64xf32>, vector<8x64xf32>, vector<1x64xf32> -> vector<10x64xf32>
    %cst_64 = arith.constant 0.000000e+00 : f32
    %168 = vector.broadcast %cst_64 : f32 to vector<8x64xf32>
    %169 = vector.extract_strided_slice %167 {offsets = [0, 0], sizes = [8, 64], strides = [1, 1]} : vector<10x64xf32> to vector<8x64xf32>
    %170 = vector.extract_strided_slice %164 {offsets = [0, 0], sizes = [1, 64], strides = [1, 1]} : vector<3x64xf32> to vector<1x64xf32>
    %171 = vector.broadcast %170 : vector<1x64xf32> to vector<8x64xf32>
    %172 = arith.mulf %169, %171 : vector<8x64xf32>
    %173 = arith.addf %168, %172 : vector<8x64xf32>
    %174 = vector.extract_strided_slice %167 {offsets = [1, 0], sizes = [8, 64], strides = [1, 1]} : vector<10x64xf32> to vector<8x64xf32>
    %175 = vector.extract_strided_slice %164 {offsets = [1, 0], sizes = [1, 64], strides = [1, 1]} : vector<3x64xf32> to vector<1x64xf32>
    %176 = vector.broadcast %175 : vector<1x64xf32> to vector<8x64xf32>
    %177 = arith.mulf %174, %176 : vector<8x64xf32>
    %178 = arith.addf %173, %177 : vector<8x64xf32>
    %179 = vector.extract_strided_slice %167 {offsets = [2, 0], sizes = [8, 64], strides = [1, 1]} : vector<10x64xf32> to vector<8x64xf32>
    %180 = vector.extract_strided_slice %164 {offsets = [2, 0], sizes = [1, 64], strides = [1, 1]} : vector<3x64xf32> to vector<1x64xf32>
    %181 = vector.broadcast %180 : vector<1x64xf32> to vector<8x64xf32>
    %182 = arith.mulf %179, %181 : vector<8x64xf32>
    %183 = arith.addf %178, %182 : vector<8x64xf32>
    %184 = vector.broadcast %165 : vector<1x64xf32> to vector<8x64xf32>
    %185 = arith.addf %183, %184 : vector<8x64xf32>
    %c0_65 = arith.constant 0 : index
    %c0_66 = arith.constant 0 : index
    %186 = vector.load %arg9[%c0_65, %c0_66] : memref<5x64xf32, #tpu.memory_space<vmem>>, vector<5x64xf32>
    %c0_67 = arith.constant 0 : index
    %c0_68 = arith.constant 0 : index
    %187 = vector.load %arg10[%c0_67, %c0_68] : memref<1x64xf32, #tpu.memory_space<vmem>>, vector<1x64xf32>
    %cst_69 = arith.constant 0.000000e+00 : f32
    %188 = vector.broadcast %cst_69 : f32 to vector<2x64xf32>
    %189 = tpu.concatenate %188, %21, %188 in 0 : vector<2x64xf32>, vector<8x64xf32>, vector<2x64xf32> -> vector<12x64xf32>
    %cst_70 = arith.constant 0.000000e+00 : f32
    %190 = vector.broadcast %cst_70 : f32 to vector<8x64xf32>
    %191 = vector.extract_strided_slice %189 {offsets = [0, 0], sizes = [8, 64], strides = [1, 1]} : vector<12x64xf32> to vector<8x64xf32>
    %192 = vector.extract_strided_slice %186 {offsets = [0, 0], sizes = [1, 64], strides = [1, 1]} : vector<5x64xf32> to vector<1x64xf32>
    %193 = vector.broadcast %192 : vector<1x64xf32> to vector<8x64xf32>
    %194 = arith.mulf %191, %193 : vector<8x64xf32>
    %195 = arith.addf %190, %194 : vector<8x64xf32>
    %196 = vector.extract_strided_slice %189 {offsets = [1, 0], sizes = [8, 64], strides = [1, 1]} : vector<12x64xf32> to vector<8x64xf32>
    %197 = vector.extract_strided_slice %186 {offsets = [1, 0], sizes = [1, 64], strides = [1, 1]} : vector<5x64xf32> to vector<1x64xf32>
    %198 = vector.broadcast %197 : vector<1x64xf32> to vector<8x64xf32>
    %199 = arith.mulf %196, %198 : vector<8x64xf32>
    %200 = arith.addf %195, %199 : vector<8x64xf32>
    %201 = vector.extract_strided_slice %189 {offsets = [2, 0], sizes = [8, 64], strides = [1, 1]} : vector<12x64xf32> to vector<8x64xf32>
    %202 = vector.extract_strided_slice %186 {offsets = [2, 0], sizes = [1, 64], strides = [1, 1]} : vector<5x64xf32> to vector<1x64xf32>
    %203 = vector.broadcast %202 : vector<1x64xf32> to vector<8x64xf32>
    %204 = arith.mulf %201, %203 : vector<8x64xf32>
    %205 = arith.addf %200, %204 : vector<8x64xf32>
    %206 = vector.extract_strided_slice %189 {offsets = [3, 0], sizes = [8, 64], strides = [1, 1]} : vector<12x64xf32> to vector<8x64xf32>
    %207 = vector.extract_strided_slice %186 {offsets = [3, 0], sizes = [1, 64], strides = [1, 1]} : vector<5x64xf32> to vector<1x64xf32>
    %208 = vector.broadcast %207 : vector<1x64xf32> to vector<8x64xf32>
    %209 = arith.mulf %206, %208 : vector<8x64xf32>
    %210 = arith.addf %205, %209 : vector<8x64xf32>
    %211 = vector.extract_strided_slice %189 {offsets = [4, 0], sizes = [8, 64], strides = [1, 1]} : vector<12x64xf32> to vector<8x64xf32>
    %212 = vector.extract_strided_slice %186 {offsets = [4, 0], sizes = [1, 64], strides = [1, 1]} : vector<5x64xf32> to vector<1x64xf32>
    %213 = vector.broadcast %212 : vector<1x64xf32> to vector<8x64xf32>
    %214 = arith.mulf %211, %213 : vector<8x64xf32>
    %215 = arith.addf %210, %214 : vector<8x64xf32>
    %216 = vector.broadcast %187 : vector<1x64xf32> to vector<8x64xf32>
    %217 = arith.addf %215, %216 : vector<8x64xf32>
    %218 = tpu.concatenate %21, %185, %217 in 1 : vector<8x64xf32>, vector<8x64xf32>, vector<8x64xf32> -> vector<8x192xf32>
    %c0_71 = arith.constant 0 : index
    %c0_72 = arith.constant 0 : index
    %219 = vector.load %arg11[%c0_71, %c0_72] : memref<8x192xf32, #tpu.memory_space<vmem>>, vector<8x192xf32>
    %cst_73 = arith.constant dense<0.000000e+00> : vector<8x8xf32>
    %220 = tpu.matmul %218, %219, %cst_73 {dimension_numbers = #tpu.dot_dimension_numbers<[1], [1], [0], [0], [0, 0, 1, 0], [], []>} : vector<8x192xf32>, vector<8x192xf32>, vector<8x8xf32> -> vector<8x8xf32>
    %c0_74 = arith.constant 0 : index
    %c0_75 = arith.constant 0 : index
    %221 = vector.load %arg12[%c0_74, %c0_75] : memref<1x8xf32, #tpu.memory_space<vmem>>, vector<1x8xf32>
    %222 = vector.broadcast %221 : vector<1x8xf32> to vector<8x8xf32>
    %223 = arith.addf %220, %222 : vector<8x8xf32>
    %224 = arith.addf %163, %223 : vector<8x8xf32>
    %c0_76 = arith.constant 0 : index
    %c0_77 = arith.constant 0 : index
    %c0_78 = arith.constant 0 : index
    %225 = vector.load %arg32[%c0_76, %c0_77, %c0_78] : memref<2x8x8xf32, #tpu.memory_space<vmem>>, vector<1x8x8xf32>
    %226 = vector.shape_cast %225 : vector<1x8x8xf32> to vector<8x8xf32>
    %227 = vector.shape_cast %224 : vector<8x8xf32> to vector<1x8x8xf32>
    tpu.vector_store %arg32[%c0_76, %c0_77, %c0_78], %227 {strides = array<i32>} : memref<2x8x8xf32, #tpu.memory_space<vmem>>, vector<1x8x8xf32>,
    %cst_79 = arith.constant dense<0.000000e+00> : vector<8x8xf32>
    %228 = tpu.matmul %5, %224, %cst_79 {dimension_numbers = #tpu.dot_dimension_numbers<[1], [1], [0], [0], [0, 0, 1, 0], [], []>} : vector<8x8xf32>, vector<8x8xf32>, vector<8x8xf32> -> vector<8x8xf32>
    %c0_80 = arith.constant 0 : index
    %c0_81 = arith.constant 0 : index
    %229 = vector.load %arg13[%c0_80, %c0_81] : memref<1x8xf32, #tpu.memory_space<vmem>>, vector<1x8xf32>
    %230 = tpu.concatenate %229, %228 in 0 : vector<1x8xf32>, vector<8x8xf32> -> vector<9x8xf32>
    %c0_82 = arith.constant 0 : index
    %c0_83 = arith.constant 0 : index
    %231 = vector.load %arg14[%c0_82, %c0_83] : memref<9x8xf32, #tpu.memory_space<vmem>>, vector<9x8xf32>
    %232 = arith.addf %230, %231 : vector<9x8xf32>
    %c0_84 = arith.constant 0 : index
    %c0_85 = arith.constant 0 : index
    %c0_86 = arith.constant 0 : index
    %233 = vector.load %arg15[%c0_84, %c0_85, %c0_86] : memref<2x1x8xf32, #tpu.memory_space<vmem>>, vector<1x1x8xf32>
    %234 = vector.shape_cast %233 : vector<1x1x8xf32> to vector<1x8xf32>
    %c0_87 = arith.constant 0 : index
    %c0_88 = arith.constant 0 : index
    %c0_89 = arith.constant 0 : index
    %235 = vector.load %arg16[%c0_87, %c0_88, %c0_89] : memref<2x1x8xf32, #tpu.memory_space<vmem>>, vector<1x1x8xf32>
    %236 = vector.shape_cast %235 : vector<1x1x8xf32> to vector<1x8xf32>
    %cst_90 = arith.constant dense<0.000000e+00> : vector<9xf32>
    %237 = vector.multi_reduction <add>, %232, %cst_90 [1] : vector<9x8xf32> to vector<9xf32>
    %238 = vector.shape_cast %237 : vector<9xf32> to vector<9x1xf32>
    %cst_91 = arith.constant 8.000000e+00 : f32
    %239 = vector.broadcast %cst_91 : f32 to vector<9x1xf32>
    %240 = arith.divf %238, %239 : vector<9x1xf32>
    %241 = vector.broadcast %240 : vector<9x1xf32> to vector<9x8xf32>
    %242 = arith.subf %232, %241 : vector<9x8xf32>
    %243 = arith.mulf %242, %242 : vector<9x8xf32>
    %cst_92 = arith.constant dense<0.000000e+00> : vector<9xf32>
    %244 = vector.multi_reduction <add>, %243, %cst_92 [1] : vector<9x8xf32> to vector<9xf32>
    %245 = vector.shape_cast %244 : vector<9xf32> to vector<9x1xf32>
    %cst_93 = arith.constant 8.000000e+00 : f32
    %246 = vector.broadcast %cst_93 : f32 to vector<9x1xf32>
    %247 = arith.divf %245, %246 : vector<9x1xf32>
    %248 = vector.broadcast %240 : vector<9x1xf32> to vector<9x8xf32>
    %249 = arith.subf %232, %248 : vector<9x8xf32>
    %cst_94 = arith.constant 9.99999974E-6 : f32
    %250 = vector.broadcast %cst_94 : f32 to vector<9x1xf32>
    %251 = arith.addf %247, %250 : vector<9x1xf32>
    %252 = math.rsqrt %251 : vector<9x1xf32>
    %253 = vector.broadcast %252 : vector<9x1xf32> to vector<9x8xf32>
    %254 = arith.mulf %249, %253 : vector<9x8xf32>
    %255 = vector.broadcast %234 : vector<1x8xf32> to vector<9x8xf32>
    %256 = arith.mulf %254, %255 : vector<9x8xf32>
    %257 = vector.broadcast %236 : vector<1x8xf32> to vector<9x8xf32>
    %258 = arith.addf %256, %257 : vector<9x8xf32>
    %c0_95 = arith.constant 0 : index
    %c0_96 = arith.constant 0 : index
    %c0_97 = arith.constant 0 : index
    %259 = vector.load %arg17[%c0_95, %c0_96, %c0_97] : memref<2x8x24xf32, #tpu.memory_space<vmem>>, vector<1x8x24xf32>
    %260 = vector.shape_cast %259 : vector<1x8x24xf32> to vector<8x24xf32>
    %cst_98 = arith.constant dense<0.000000e+00> : vector<9x24xf32>
    %261 = tpu.matmul %258, %260, %cst_98 {dimension_numbers = #tpu.dot_dimension_numbers<[1], [0], [0], [1], [0, 0, 1, 1], [], []>} : vector<9x8xf32>, vector<8x24xf32>, vector<9x24xf32> -> vector<9x24xf32>
    %262 = vector.extract_strided_slice %261 {offsets = [0, 0], sizes = [9, 4], strides = [1, 1]} : vector<9x24xf32> to vector<9x4xf32>
    %263 = vector.extract_strided_slice %261 {offsets = [0, 8], sizes = [9, 4], strides = [1, 1]} : vector<9x24xf32> to vector<9x4xf32>
    %264 = vector.extract_strided_slice %261 {offsets = [0, 16], sizes = [9, 4], strides = [1, 1]} : vector<9x24xf32> to vector<9x4xf32>
    %cst_99 = arith.constant dense<0.000000e+00> : vector<9x9xf32>
    %265 = tpu.matmul %262, %263, %cst_99 {dimension_numbers = #tpu.dot_dimension_numbers<[1], [1], [0], [0], [0, 0, 1, 0], [], []>} : vector<9x4xf32>, vector<9x4xf32>, vector<9x9xf32> -> vector<9x9xf32>
    %cst_100 = arith.constant 5.000000e-01 : f32
    %266 = vector.broadcast %cst_100 : f32 to vector<9x9xf32>
    %267 = arith.mulf %265, %266 : vector<9x9xf32>
    %cst_101 = arith.constant dense<0xFF800000> : vector<9xf32>
    %268 = vector.multi_reduction <maximumf>, %267, %cst_101 [1] : vector<9x9xf32> to vector<9xf32>
    %269 = vector.shape_cast %268 : vector<9xf32> to vector<9x1xf32>
    %270 = vector.broadcast %269 : vector<9x1xf32> to vector<9x9xf32>
    %271 = arith.subf %267, %270 : vector<9x9xf32>
    %272 = math.exp %271 : vector<9x9xf32>
    %cst_102 = arith.constant dense<0.000000e+00> : vector<9xf32>
    %273 = vector.multi_reduction <add>, %272, %cst_102 [1] : vector<9x9xf32> to vector<9xf32>
    %274 = vector.shape_cast %273 : vector<9xf32> to vector<9x1xf32>
    %275 = tpu.reciprocal %274 {approx = true} : vector<9x1xf32> -> vector<9x1xf32>
    %276 = vector.broadcast %275 : vector<9x1xf32> to vector<9x9xf32>
    %277 = arith.mulf %272, %276 : vector<9x9xf32>
    %cst_103 = arith.constant dense<0.000000e+00> : vector<9x4xf32>
    %278 = tpu.matmul %277, %264, %cst_103 {dimension_numbers = #tpu.dot_dimension_numbers<[1], [0], [0], [1], [0, 0, 1, 1], [], []>} : vector<9x9xf32>, vector<9x4xf32>, vector<9x4xf32> -> vector<9x4xf32>
    %279 = vector.extract_strided_slice %261 {offsets = [0, 4], sizes = [9, 4], strides = [1, 1]} : vector<9x24xf32> to vector<9x4xf32>
    %280 = vector.extract_strided_slice %261 {offsets = [0, 12], sizes = [9, 4], strides = [1, 1]} : vector<9x24xf32> to vector<9x4xf32>
    %281 = vector.extract_strided_slice %261 {offsets = [0, 20], sizes = [9, 4], strides = [1, 1]} : vector<9x24xf32> to vector<9x4xf32>
    %cst_104 = arith.constant dense<0.000000e+00> : vector<9x9xf32>
    %282 = tpu.matmul %279, %280, %cst_104 {dimension_numbers = #tpu.dot_dimension_numbers<[1], [1], [0], [0], [0, 0, 1, 0], [], []>} : vector<9x4xf32>, vector<9x4xf32>, vector<9x9xf32> -> vector<9x9xf32>
    %cst_105 = arith.constant 5.000000e-01 : f32
    %283 = vector.broadcast %cst_105 : f32 to vector<9x9xf32>
    %284 = arith.mulf %282, %283 : vector<9x9xf32>
    %cst_106 = arith.constant dense<0xFF800000> : vector<9xf32>
    %285 = vector.multi_reduction <maximumf>, %284, %cst_106 [1] : vector<9x9xf32> to vector<9xf32>
    %286 = vector.shape_cast %285 : vector<9xf32> to vector<9x1xf32>
    %287 = vector.broadcast %286 : vector<9x1xf32> to vector<9x9xf32>
    %288 = arith.subf %284, %287 : vector<9x9xf32>
    %289 = math.exp %288 : vector<9x9xf32>
    %cst_107 = arith.constant dense<0.000000e+00> : vector<9xf32>
    %290 = vector.multi_reduction <add>, %289, %cst_107 [1] : vector<9x9xf32> to vector<9xf32>
    %291 = vector.shape_cast %290 : vector<9xf32> to vector<9x1xf32>
    %292 = tpu.reciprocal %291 {approx = true} : vector<9x1xf32> -> vector<9x1xf32>
    %293 = vector.broadcast %292 : vector<9x1xf32> to vector<9x9xf32>
    %294 = arith.mulf %289, %293 : vector<9x9xf32>
    %cst_108 = arith.constant dense<0.000000e+00> : vector<9x4xf32>
    %295 = tpu.matmul %294, %281, %cst_108 {dimension_numbers = #tpu.dot_dimension_numbers<[1], [0], [0], [1], [0, 0, 1, 1], [], []>} : vector<9x9xf32>, vector<9x4xf32>, vector<9x4xf32> -> vector<9x4xf32>
    %296 = tpu.concatenate %278, %295 in 1 : vector<9x4xf32>, vector<9x4xf32> -> vector<9x8xf32>
    %c0_109 = arith.constant 0 : index
    %c0_110 = arith.constant 0 : index
    %c0_111 = arith.constant 0 : index
    %297 = vector.load %arg18[%c0_109, %c0_110, %c0_111] : memref<2x8x8xf32, #tpu.memory_space<vmem>>, vector<1x8x8xf32>
    %298 = vector.shape_cast %297 : vector<1x8x8xf32> to vector<8x8xf32>
    %cst_112 = arith.constant dense<0.000000e+00> : vector<9x8xf32>
    %299 = tpu.matmul %296, %298, %cst_112 {dimension_numbers = #tpu.dot_dimension_numbers<[1], [0], [0], [1], [0, 0, 1, 1], [], []>} : vector<9x8xf32>, vector<8x8xf32>, vector<9x8xf32> -> vector<9x8xf32>
    %c0_113 = arith.constant 0 : index
    %c0_114 = arith.constant 0 : index
    %c0_115 = arith.constant 0 : index
    %300 = vector.load %arg19[%c0_113, %c0_114, %c0_115] : memref<2x1x8xf32, #tpu.memory_space<vmem>>, vector<1x1x8xf32>
    %301 = vector.shape_cast %300 : vector<1x1x8xf32> to vector<1x8xf32>
    %302 = vector.broadcast %301 : vector<1x8xf32> to vector<9x8xf32>
    %303 = arith.addf %299, %302 : vector<9x8xf32>
    %304 = arith.addf %232, %303 : vector<9x8xf32>
    %c0_116 = arith.constant 0 : index
    %c0_117 = arith.constant 0 : index
    %c0_118 = arith.constant 0 : index
    %305 = vector.load %arg20[%c0_116, %c0_117, %c0_118] : memref<2x1x8xf32, #tpu.memory_space<vmem>>, vector<1x1x8xf32>
    %306 = vector.shape_cast %305 : vector<1x1x8xf32> to vector<1x8xf32>
    %c0_119 = arith.constant 0 : index
    %c0_120 = arith.constant 0 : index
    %c0_121 = arith.constant 0 : index
    %307 = vector.load %arg21[%c0_119, %c0_120, %c0_121] : memref<2x1x8xf32, #tpu.memory_space<vmem>>, vector<1x1x8xf32>
    %308 = vector.shape_cast %307 : vector<1x1x8xf32> to vector<1x8xf32>
    %cst_122 = arith.constant dense<0.000000e+00> : vector<9xf32>
    %309 = vector.multi_reduction <add>, %304, %cst_122 [1] : vector<9x8xf32> to vector<9xf32>
    %310 = vector.shape_cast %309 : vector<9xf32> to vector<9x1xf32>
    %cst_123 = arith.constant 8.000000e+00 : f32
    %311 = vector.broadcast %cst_123 : f32 to vector<9x1xf32>
    %312 = arith.divf %310, %311 : vector<9x1xf32>
    %313 = vector.broadcast %312 : vector<9x1xf32> to vector<9x8xf32>
    %314 = arith.subf %304, %313 : vector<9x8xf32>
    %315 = arith.mulf %314, %314 : vector<9x8xf32>
    %cst_124 = arith.constant dense<0.000000e+00> : vector<9xf32>
    %316 = vector.multi_reduction <add>, %315, %cst_124 [1] : vector<9x8xf32> to vector<9xf32>
    %317 = vector.shape_cast %316 : vector<9xf32> to vector<9x1xf32>
    %cst_125 = arith.constant 8.000000e+00 : f32
    %318 = vector.broadcast %cst_125 : f32 to vector<9x1xf32>
    %319 = arith.divf %317, %318 : vector<9x1xf32>
    %320 = vector.broadcast %312 : vector<9x1xf32> to vector<9x8xf32>
    %321 = arith.subf %304, %320 : vector<9x8xf32>
    %cst_126 = arith.constant 9.99999974E-6 : f32
    %322 = vector.broadcast %cst_126 : f32 to vector<9x1xf32>
    %323 = arith.addf %319, %322 : vector<9x1xf32>
    %324 = math.rsqrt %323 : vector<9x1xf32>
    %325 = vector.broadcast %324 : vector<9x1xf32> to vector<9x8xf32>
    %326 = arith.mulf %321, %325 : vector<9x8xf32>
    %327 = vector.broadcast %306 : vector<1x8xf32> to vector<9x8xf32>
    %328 = arith.mulf %326, %327 : vector<9x8xf32>
    %329 = vector.broadcast %308 : vector<1x8xf32> to vector<9x8xf32>
    %330 = arith.addf %328, %329 : vector<9x8xf32>
    %c0_127 = arith.constant 0 : index
    %c0_128 = arith.constant 0 : index
    %c0_129 = arith.constant 0 : index
    %331 = vector.load %arg22[%c0_127, %c0_128, %c0_129] : memref<2x8x16xf32, #tpu.memory_space<vmem>>, vector<1x8x16xf32>
    %332 = vector.shape_cast %331 : vector<1x8x16xf32> to vector<8x16xf32>
    %cst_130 = arith.constant dense<0.000000e+00> : vector<9x16xf32>
    %333 = tpu.matmul %330, %332, %cst_130 {dimension_numbers = #tpu.dot_dimension_numbers<[1], [0], [0], [1], [0, 0, 1, 1], [], []>} : vector<9x8xf32>, vector<8x16xf32>, vector<9x16xf32> -> vector<9x16xf32>
    %c0_131 = arith.constant 0 : index
    %c0_132 = arith.constant 0 : index
    %c0_133 = arith.constant 0 : index
    %334 = vector.load %arg23[%c0_131, %c0_132, %c0_133] : memref<2x1x16xf32, #tpu.memory_space<vmem>>, vector<1x1x16xf32>
    %335 = vector.shape_cast %334 : vector<1x1x16xf32> to vector<1x16xf32>
    %336 = vector.broadcast %335 : vector<1x16xf32> to vector<9x16xf32>
    %337 = arith.addf %333, %336 : vector<9x16xf32>
    %cst_134 = arith.constant 5.000000e-01 : f32
    %338 = vector.broadcast %cst_134 : f32 to vector<9x16xf32>
    %339 = arith.mulf %338, %337 : vector<9x16xf32>
    %cst_135 = arith.constant 0.707106769 : f32
    %340 = vector.broadcast %cst_135 : f32 to vector<9x16xf32>
    %341 = arith.mulf %337, %340 : vector<9x16xf32>
    %342 = math.erf %341 : vector<9x16xf32>
    %cst_136 = arith.constant 1.000000e+00 : f32
    %343 = vector.broadcast %cst_136 : f32 to vector<9x16xf32>
    %344 = arith.addf %343, %342 : vector<9x16xf32>
    %345 = arith.mulf %339, %344 : vector<9x16xf32>
    %c0_137 = arith.constant 0 : index
    %c0_138 = arith.constant 0 : index
    %c0_139 = arith.constant 0 : index
    %346 = vector.load %arg24[%c0_137, %c0_138, %c0_139] : memref<2x16x8xf32, #tpu.memory_space<vmem>>, vector<1x16x8xf32>
    %347 = vector.shape_cast %346 : vector<1x16x8xf32> to vector<16x8xf32>
    %cst_140 = arith.constant dense<0.000000e+00> : vector<9x8xf32>
    %348 = tpu.matmul %345, %347, %cst_140 {dimension_numbers = #tpu.dot_dimension_numbers<[1], [0], [0], [1], [0, 0, 1, 1], [], []>} : vector<9x16xf32>, vector<16x8xf32>, vector<9x8xf32> -> vector<9x8xf32>
    %c0_141 = arith.constant 0 : index
    %c0_142 = arith.constant 0 : index
    %c0_143 = arith.constant 0 : index
    %349 = vector.load %arg25[%c0_141, %c0_142, %c0_143] : memref<2x1x8xf32, #tpu.memory_space<vmem>>, vector<1x1x8xf32>
    %350 = vector.shape_cast %349 : vector<1x1x8xf32> to vector<1x8xf32>
    %351 = vector.broadcast %350 : vector<1x8xf32> to vector<9x8xf32>
    %352 = arith.addf %348, %351 : vector<9x8xf32>
    %353 = arith.addf %304, %352 : vector<9x8xf32>
    %c1 = arith.constant 1 : index
    %c0_144 = arith.constant 0 : index
    %c0_145 = arith.constant 0 : index
    %354 = vector.load %arg15[%c1, %c0_144, %c0_145] : memref<2x1x8xf32, #tpu.memory_space<vmem>>, vector<1x1x8xf32>
    %355 = vector.shape_cast %354 : vector<1x1x8xf32> to vector<1x8xf32>
    %c1_146 = arith.constant 1 : index
    %c0_147 = arith.constant 0 : index
    %c0_148 = arith.constant 0 : index
    %356 = vector.load %arg16[%c1_146, %c0_147, %c0_148] : memref<2x1x8xf32, #tpu.memory_space<vmem>>, vector<1x1x8xf32>
    %357 = vector.shape_cast %356 : vector<1x1x8xf32> to vector<1x8xf32>
    %cst_149 = arith.constant dense<0.000000e+00> : vector<9xf32>
    %358 = vector.multi_reduction <add>, %353, %cst_149 [1] : vector<9x8xf32> to vector<9xf32>
    %359 = vector.shape_cast %358 : vector<9xf32> to vector<9x1xf32>
    %cst_150 = arith.constant 8.000000e+00 : f32
    %360 = vector.broadcast %cst_150 : f32 to vector<9x1xf32>
    %361 = arith.divf %359, %360 : vector<9x1xf32>
    %362 = vector.broadcast %361 : vector<9x1xf32> to vector<9x8xf32>
    %363 = arith.subf %353, %362 : vector<9x8xf32>
    %364 = arith.mulf %363, %363 : vector<9x8xf32>
    %cst_151 = arith.constant dense<0.000000e+00> : vector<9xf32>
    %365 = vector.multi_reduction <add>, %364, %cst_151 [1] : vector<9x8xf32> to vector<9xf32>
    %366 = vector.shape_cast %365 : vector<9xf32> to vector<9x1xf32>
    %cst_152 = arith.constant 8.000000e+00 : f32
    %367 = vector.broadcast %cst_152 : f32 to vector<9x1xf32>
    %368 = arith.divf %366, %367 : vector<9x1xf32>
    %369 = vector.broadcast %361 : vector<9x1xf32> to vector<9x8xf32>
    %370 = arith.subf %353, %369 : vector<9x8xf32>
    %cst_153 = arith.constant 9.99999974E-6 : f32
    %371 = vector.broadcast %cst_153 : f32 to vector<9x1xf32>
    %372 = arith.addf %368, %371 : vector<9x1xf32>
    %373 = math.rsqrt %372 : vector<9x1xf32>
    %374 = vector.broadcast %373 : vector<9x1xf32> to vector<9x8xf32>
    %375 = arith.mulf %370, %374 : vector<9x8xf32>
    %376 = vector.broadcast %355 : vector<1x8xf32> to vector<9x8xf32>
    %377 = arith.mulf %375, %376 : vector<9x8xf32>
    %378 = vector.broadcast %357 : vector<1x8xf32> to vector<9x8xf32>
    %379 = arith.addf %377, %378 : vector<9x8xf32>
    %c1_154 = arith.constant 1 : index
    %c0_155 = arith.constant 0 : index
    %c0_156 = arith.constant 0 : index
    %380 = vector.load %arg17[%c1_154, %c0_155, %c0_156] : memref<2x8x24xf32, #tpu.memory_space<vmem>>, vector<1x8x24xf32>
    %381 = vector.shape_cast %380 : vector<1x8x24xf32> to vector<8x24xf32>
    %cst_157 = arith.constant dense<0.000000e+00> : vector<9x24xf32>
    %382 = tpu.matmul %379, %381, %cst_157 {dimension_numbers = #tpu.dot_dimension_numbers<[1], [0], [0], [1], [0, 0, 1, 1], [], []>} : vector<9x8xf32>, vector<8x24xf32>, vector<9x24xf32> -> vector<9x24xf32>
    %383 = vector.extract_strided_slice %382 {offsets = [0, 0], sizes = [9, 4], strides = [1, 1]} : vector<9x24xf32> to vector<9x4xf32>
    %384 = vector.extract_strided_slice %382 {offsets = [0, 8], sizes = [9, 4], strides = [1, 1]} : vector<9x24xf32> to vector<9x4xf32>
    %385 = vector.extract_strided_slice %382 {offsets = [0, 16], sizes = [9, 4], strides = [1, 1]} : vector<9x24xf32> to vector<9x4xf32>
    %cst_158 = arith.constant dense<0.000000e+00> : vector<9x9xf32>
    %386 = tpu.matmul %383, %384, %cst_158 {dimension_numbers = #tpu.dot_dimension_numbers<[1], [1], [0], [0], [0, 0, 1, 0], [], []>} : vector<9x4xf32>, vector<9x4xf32>, vector<9x9xf32> -> vector<9x9xf32>
    %cst_159 = arith.constant 5.000000e-01 : f32
    %387 = vector.broadcast %cst_159 : f32 to vector<9x9xf32>
    %388 = arith.mulf %386, %387 : vector<9x9xf32>
    %cst_160 = arith.constant dense<0xFF800000> : vector<9xf32>
    %389 = vector.multi_reduction <maximumf>, %388, %cst_160 [1] : vector<9x9xf32> to vector<9xf32>
    %390 = vector.shape_cast %389 : vector<9xf32> to vector<9x1xf32>
    %391 = vector.broadcast %390 : vector<9x1xf32> to vector<9x9xf32>
    %392 = arith.subf %388, %391 : vector<9x9xf32>
    %393 = math.exp %392 : vector<9x9xf32>
    %cst_161 = arith.constant dense<0.000000e+00> : vector<9xf32>
    %394 = vector.multi_reduction <add>, %393, %cst_161 [1] : vector<9x9xf32> to vector<9xf32>
    %395 = vector.shape_cast %394 : vector<9xf32> to vector<9x1xf32>
    %396 = tpu.reciprocal %395 {approx = true} : vector<9x1xf32> -> vector<9x1xf32>
    %397 = vector.broadcast %396 : vector<9x1xf32> to vector<9x9xf32>
    %398 = arith.mulf %393, %397 : vector<9x9xf32>
    %cst_162 = arith.constant dense<0.000000e+00> : vector<9x4xf32>
    %399 = tpu.matmul %398, %385, %cst_162 {dimension_numbers = #tpu.dot_dimension_numbers<[1], [0], [0], [1], [0, 0, 1, 1], [], []>} : vector<9x9xf32>, vector<9x4xf32>, vector<9x4xf32> -> vector<9x4xf32>
    %400 = vector.extract_strided_slice %382 {offsets = [0, 4], sizes = [9, 4], strides = [1, 1]} : vector<9x24xf32> to vector<9x4xf32>
    %401 = vector.extract_strided_slice %382 {offsets = [0, 12], sizes = [9, 4], strides = [1, 1]} : vector<9x24xf32> to vector<9x4xf32>
    %402 = vector.extract_strided_slice %382 {offsets = [0, 20], sizes = [9, 4], strides = [1, 1]} : vector<9x24xf32> to vector<9x4xf32>
    %cst_163 = arith.constant dense<0.000000e+00> : vector<9x9xf32>
    %403 = tpu.matmul %400, %401, %cst_163 {dimension_numbers = #tpu.dot_dimension_numbers<[1], [1], [0], [0], [0, 0, 1, 0], [], []>} : vector<9x4xf32>, vector<9x4xf32>, vector<9x9xf32> -> vector<9x9xf32>
    %cst_164 = arith.constant 5.000000e-01 : f32
    %404 = vector.broadcast %cst_164 : f32 to vector<9x9xf32>
    %405 = arith.mulf %403, %404 : vector<9x9xf32>
    %cst_165 = arith.constant dense<0xFF800000> : vector<9xf32>
    %406 = vector.multi_reduction <maximumf>, %405, %cst_165 [1] : vector<9x9xf32> to vector<9xf32>
    %407 = vector.shape_cast %406 : vector<9xf32> to vector<9x1xf32>
    %408 = vector.broadcast %407 : vector<9x1xf32> to vector<9x9xf32>
    %409 = arith.subf %405, %408 : vector<9x9xf32>
    %410 = math.exp %409 : vector<9x9xf32>
    %cst_166 = arith.constant dense<0.000000e+00> : vector<9xf32>
    %411 = vector.multi_reduction <add>, %410, %cst_166 [1] : vector<9x9xf32> to vector<9xf32>
    %412 = vector.shape_cast %411 : vector<9xf32> to vector<9x1xf32>
    %413 = tpu.reciprocal %412 {approx = true} : vector<9x1xf32> -> vector<9x1xf32>
    %414 = vector.broadcast %413 : vector<9x1xf32> to vector<9x9xf32>
    %415 = arith.mulf %410, %414 : vector<9x9xf32>
    %cst_167 = arith.constant dense<0.000000e+00> : vector<9x4xf32>
    %416 = tpu.matmul %415, %402, %cst_167 {dimension_numbers = #tpu.dot_dimension_numbers<[1], [0], [0], [1], [0, 0, 1, 1], [], []>} : vector<9x9xf32>, vector<9x4xf32>, vector<9x4xf32> -> vector<9x4xf32>
    %417 = tpu.concatenate %399, %416 in 1 : vector<9x4xf32>, vector<9x4xf32> -> vector<9x8xf32>
    %c1_168 = arith.constant 1 : index
    %c0_169 = arith.constant 0 : index
    %c0_170 = arith.constant 0 : index
    %418 = vector.load %arg18[%c1_168, %c0_169, %c0_170] : memref<2x8x8xf32, #tpu.memory_space<vmem>>, vector<1x8x8xf32>
    %419 = vector.shape_cast %418 : vector<1x8x8xf32> to vector<8x8xf32>
    %cst_171 = arith.constant dense<0.000000e+00> : vector<9x8xf32>
    %420 = tpu.matmul %417, %419, %cst_171 {dimension_numbers = #tpu.dot_dimension_numbers<[1], [0], [0], [1], [0, 0, 1, 1], [], []>} : vector<9x8xf32>, vector<8x8xf32>, vector<9x8xf32> -> vector<9x8xf32>
    %c1_172 = arith.constant 1 : index
    %c0_173 = arith.constant 0 : index
    %c0_174 = arith.constant 0 : index
    %421 = vector.load %arg19[%c1_172, %c0_173, %c0_174] : memref<2x1x8xf32, #tpu.memory_space<vmem>>, vector<1x1x8xf32>
    %422 = vector.shape_cast %421 : vector<1x1x8xf32> to vector<1x8xf32>
    %423 = vector.broadcast %422 : vector<1x8xf32> to vector<9x8xf32>
    %424 = arith.addf %420, %423 : vector<9x8xf32>
    %425 = arith.addf %353, %424 : vector<9x8xf32>
    %c1_175 = arith.constant 1 : index
    %c0_176 = arith.constant 0 : index
    %c0_177 = arith.constant 0 : index
    %426 = vector.load %arg20[%c1_175, %c0_176, %c0_177] : memref<2x1x8xf32, #tpu.memory_space<vmem>>, vector<1x1x8xf32>
    %427 = vector.shape_cast %426 : vector<1x1x8xf32> to vector<1x8xf32>
    %c1_178 = arith.constant 1 : index
    %c0_179 = arith.constant 0 : index
    %c0_180 = arith.constant 0 : index
    %428 = vector.load %arg21[%c1_178, %c0_179, %c0_180] : memref<2x1x8xf32, #tpu.memory_space<vmem>>, vector<1x1x8xf32>
    %429 = vector.shape_cast %428 : vector<1x1x8xf32> to vector<1x8xf32>
    %cst_181 = arith.constant dense<0.000000e+00> : vector<9xf32>
    %430 = vector.multi_reduction <add>, %425, %cst_181 [1] : vector<9x8xf32> to vector<9xf32>
    %431 = vector.shape_cast %430 : vector<9xf32> to vector<9x1xf32>
    %cst_182 = arith.constant 8.000000e+00 : f32
    %432 = vector.broadcast %cst_182 : f32 to vector<9x1xf32>
    %433 = arith.divf %431, %432 : vector<9x1xf32>
    %434 = vector.broadcast %433 : vector<9x1xf32> to vector<9x8xf32>
    %435 = arith.subf %425, %434 : vector<9x8xf32>
    %436 = arith.mulf %435, %435 : vector<9x8xf32>
    %cst_183 = arith.constant dense<0.000000e+00> : vector<9xf32>
    %437 = vector.multi_reduction <add>, %436, %cst_183 [1] : vector<9x8xf32> to vector<9xf32>
    %438 = vector.shape_cast %437 : vector<9xf32> to vector<9x1xf32>
    %cst_184 = arith.constant 8.000000e+00 : f32
    %439 = vector.broadcast %cst_184 : f32 to vector<9x1xf32>
    %440 = arith.divf %438, %439 : vector<9x1xf32>
    %441 = vector.broadcast %433 : vector<9x1xf32> to vector<9x8xf32>
    %442 = arith.subf %425, %441 : vector<9x8xf32>
    %cst_185 = arith.constant 9.99999974E-6 : f32
    %443 = vector.broadcast %cst_185 : f32 to vector<9x1xf32>
    %444 = arith.addf %440, %443 : vector<9x1xf32>
    %445 = math.rsqrt %444 : vector<9x1xf32>
    %446 = vector.broadcast %445 : vector<9x1xf32> to vector<9x8xf32>
    %447 = arith.mulf %442, %446 : vector<9x8xf32>
    %448 = vector.broadcast %427 : vector<1x8xf32> to vector<9x8xf32>
    %449 = arith.mulf %447, %448 : vector<9x8xf32>
    %450 = vector.broadcast %429 : vector<1x8xf32> to vector<9x8xf32>
    %451 = arith.addf %449, %450 : vector<9x8xf32>
    %c1_186 = arith.constant 1 : index
    %c0_187 = arith.constant 0 : index
    %c0_188 = arith.constant 0 : index
    %452 = vector.load %arg22[%c1_186, %c0_187, %c0_188] : memref<2x8x16xf32, #tpu.memory_space<vmem>>, vector<1x8x16xf32>
    %453 = vector.shape_cast %452 : vector<1x8x16xf32> to vector<8x16xf32>
    %cst_189 = arith.constant dense<0.000000e+00> : vector<9x16xf32>
    %454 = tpu.matmul %451, %453, %cst_189 {dimension_numbers = #tpu.dot_dimension_numbers<[1], [0], [0], [1], [0, 0, 1, 1], [], []>} : vector<9x8xf32>, vector<8x16xf32>, vector<9x16xf32> -> vector<9x16xf32>
    %c1_190 = arith.constant 1 : index
    %c0_191 = arith.constant 0 : index
    %c0_192 = arith.constant 0 : index
    %455 = vector.load %arg23[%c1_190, %c0_191, %c0_192] : memref<2x1x16xf32, #tpu.memory_space<vmem>>, vector<1x1x16xf32>
    %456 = vector.shape_cast %455 : vector<1x1x16xf32> to vector<1x16xf32>
    %457 = vector.broadcast %456 : vector<1x16xf32> to vector<9x16xf32>
    %458 = arith.addf %454, %457 : vector<9x16xf32>
    %cst_193 = arith.constant 5.000000e-01 : f32
    %459 = vector.broadcast %cst_193 : f32 to vector<9x16xf32>
    %460 = arith.mulf %459, %458 : vector<9x16xf32>
    %cst_194 = arith.constant 0.707106769 : f32
    %461 = vector.broadcast %cst_194 : f32 to vector<9x16xf32>
    %462 = arith.mulf %458, %461 : vector<9x16xf32>
    %463 = math.erf %462 : vector<9x16xf32>
    %cst_195 = arith.constant 1.000000e+00 : f32
    %464 = vector.broadcast %cst_195 : f32 to vector<9x16xf32>
    %465 = arith.addf %464, %463 : vector<9x16xf32>
    %466 = arith.mulf %460, %465 : vector<9x16xf32>
    %c1_196 = arith.constant 1 : index
    %c0_197 = arith.constant 0 : index
    %c0_198 = arith.constant 0 : index
    %467 = vector.load %arg24[%c1_196, %c0_197, %c0_198] : memref<2x16x8xf32, #tpu.memory_space<vmem>>, vector<1x16x8xf32>
    %468 = vector.shape_cast %467 : vector<1x16x8xf32> to vector<16x8xf32>
    %cst_199 = arith.constant dense<0.000000e+00> : vector<9x8xf32>
    %469 = tpu.matmul %466, %468, %cst_199 {dimension_numbers = #tpu.dot_dimension_numbers<[1], [0], [0], [1], [0, 0, 1, 1], [], []>} : vector<9x16xf32>, vector<16x8xf32>, vector<9x8xf32> -> vector<9x8xf32>
    %c1_200 = arith.constant 1 : index
    %c0_201 = arith.constant 0 : index
    %c0_202 = arith.constant 0 : index
    %470 = vector.load %arg25[%c1_200, %c0_201, %c0_202] : memref<2x1x8xf32, #tpu.memory_space<vmem>>, vector<1x1x8xf32>
    %471 = vector.shape_cast %470 : vector<1x1x8xf32> to vector<1x8xf32>
    %472 = vector.broadcast %471 : vector<1x8xf32> to vector<9x8xf32>
    %473 = arith.addf %469, %472 : vector<9x8xf32>
    %474 = arith.addf %425, %473 : vector<9x8xf32>
    %475 = vector.extract_strided_slice %474 {offsets = [0, 0], sizes = [1, 8], strides = [1, 1]} : vector<9x8xf32> to vector<1x8xf32>
    %c0_203 = arith.constant 0 : index
    %c0_204 = arith.constant 0 : index
    %c0_205 = arith.constant 0 : index
    %476 = vector.load %arg31[%c0_203, %c0_204, %c0_205] : memref<2x1x8xf32, #tpu.memory_space<vmem>>, vector<1x1x8xf32>
    %477 = vector.shape_cast %476 : vector<1x1x8xf32> to vector<1x8xf32>
    %478 = vector.shape_cast %475 : vector<1x8xf32> to vector<1x1x8xf32>
    tpu.vector_store %arg31[%c0_203, %c0_204, %c0_205], %478 {strides = array<i32>} : memref<2x1x8xf32, #tpu.memory_space<vmem>>, vector<1x1x8xf32>,
    %c0_206 = arith.constant 0 : index
    %c0_207 = arith.constant 0 : index
    %479 = vector.load %arg26[%c0_206, %c0_207] : memref<1x8xf32, #tpu.memory_space<vmem>>, vector<1x8xf32>
    %c0_208 = arith.constant 0 : index
    %c0_209 = arith.constant 0 : index
    %480 = vector.load %arg27[%c0_208, %c0_209] : memref<1x8xf32, #tpu.memory_space<vmem>>, vector<1x8xf32>
    %cst_210 = arith.constant dense<0.000000e+00> : vector<1xf32>
    %481 = vector.multi_reduction <add>, %475, %cst_210 [1] : vector<1x8xf32> to vector<1xf32>
    %482 = vector.shape_cast %481 : vector<1xf32> to vector<1x1xf32>
    %cst_211 = arith.constant 8.000000e+00 : f32
    %483 = vector.broadcast %cst_211 : f32 to vector<1x1xf32>
    %484 = arith.divf %482, %483 : vector<1x1xf32>
    %485 = vector.broadcast %484 : vector<1x1xf32> to vector<1x8xf32>
    %486 = arith.subf %475, %485 : vector<1x8xf32>
    %487 = arith.mulf %486, %486 : vector<1x8xf32>
    %cst_212 = arith.constant dense<0.000000e+00> : vector<1xf32>
    %488 = vector.multi_reduction <add>, %487, %cst_212 [1] : vector<1x8xf32> to vector<1xf32>
    %489 = vector.shape_cast %488 : vector<1xf32> to vector<1x1xf32>
    %cst_213 = arith.constant 8.000000e+00 : f32
    %490 = vector.broadcast %cst_213 : f32 to vector<1x1xf32>
    %491 = arith.divf %489, %490 : vector<1x1xf32>
    %492 = vector.broadcast %484 : vector<1x1xf32> to vector<1x8xf32>
    %493 = arith.subf %475, %492 : vector<1x8xf32>
    %cst_214 = arith.constant 9.99999974E-6 : f32
    %494 = vector.broadcast %cst_214 : f32 to vector<1x1xf32>
    %495 = arith.addf %491, %494 : vector<1x1xf32>
    %496 = math.rsqrt %495 : vector<1x1xf32>
    %497 = vector.broadcast %496 : vector<1x1xf32> to vector<1x8xf32>
    %498 = arith.mulf %493, %497 : vector<1x8xf32>
    %499 = arith.mulf %498, %479 : vector<1x8xf32>
    %500 = arith.addf %499, %480 : vector<1x8xf32>
    %c0_215 = arith.constant 0 : index
    %c0_216 = arith.constant 0 : index
    %501 = vector.load %arg28[%c0_215, %c0_216] : memref<8x3xf32, #tpu.memory_space<vmem>>, vector<8x3xf32>
    %cst_217 = arith.constant dense<0.000000e+00> : vector<1x3xf32>
    %502 = tpu.matmul %500, %501, %cst_217 {dimension_numbers = #tpu.dot_dimension_numbers<[1], [0], [0], [1], [0, 0, 1, 1], [], []>} : vector<1x8xf32>, vector<8x3xf32>, vector<1x3xf32> -> vector<1x3xf32>
    %c0_218 = arith.constant 0 : index
    %c0_219 = arith.constant 0 : index
    %503 = vector.load %arg29[%c0_218, %c0_219] : memref<1x3xf32, #tpu.memory_space<vmem>>, vector<1x3xf32>
    %504 = arith.addf %502, %503 : vector<1x3xf32>
    %c0_220 = arith.constant 0 : index
    %c0_221 = arith.constant 0 : index
    %c0_222 = arith.constant 0 : index
    %505 = vector.load %arg30[%c0_220, %c0_221, %c0_222] : memref<2x1x3xf32, #tpu.memory_space<vmem>>, vector<1x1x3xf32>
    %506 = vector.shape_cast %505 : vector<1x1x3xf32> to vector<1x3xf32>
    %507 = vector.shape_cast %504 : vector<1x3xf32> to vector<1x1x3xf32>
    tpu.vector_store %arg30[%c0_220, %c0_221, %c0_222], %507 {strides = array<i32>} : memref<2x1x3xf32, #tpu.memory_space<vmem>>, vector<1x1x3xf32>,
    %c1_223 = arith.constant 1 : index
    %c0_224 = arith.constant 0 : index
    %c0_225 = arith.constant 0 : index
    %508 = vector.load %arg0[%c1_223, %c0_224, %c0_225] : memref<2x8x25xf32, #tpu.memory_space<vmem>>, vector<1x8x25xf32>
    %509 = vector.shape_cast %508 : vector<1x8x25xf32> to vector<8x25xf32>
    %c0_226 = arith.constant 0 : index
    %c0_227 = arith.constant 0 : index
    %510 = vector.load %arg1[%c0_226, %c0_227] : memref<8x25xf32, #tpu.memory_space<vmem>>, vector<8x25xf32>
    %cst_228 = arith.constant dense<0.000000e+00> : vector<8x8xf32>
    %511 = tpu.matmul %509, %510, %cst_228 {dimension_numbers = #tpu.dot_dimension_numbers<[1], [1], [0], [0], [0, 0, 1, 0], [], []>} : vector<8x25xf32>, vector<8x25xf32>, vector<8x8xf32> -> vector<8x8xf32>
    %c0_229 = arith.constant 0 : index
    %c0_230 = arith.constant 0 : index
    %512 = vector.load %arg2[%c0_229, %c0_230] : memref<1x8xf32, #tpu.memory_space<vmem>>, vector<1x8xf32>
    %513 = vector.broadcast %512 : vector<1x8xf32> to vector<8x8xf32>
    %514 = arith.addf %511, %513 : vector<8x8xf32>
    %cst_231 = arith.constant dense<0.000000e+00> : vector<8x8xf32>
    %515 = tpu.matmul %5, %514, %cst_231 {dimension_numbers = #tpu.dot_dimension_numbers<[1], [1], [0], [0], [0, 0, 1, 0], [], []>} : vector<8x8xf32>, vector<8x8xf32>, vector<8x8xf32> -> vector<8x8xf32>
    %c0_232 = arith.constant 0 : index
    %c0_233 = arith.constant 0 : index
    %516 = vector.load %arg3[%c0_232, %c0_233] : memref<8x192xf32, #tpu.memory_space<vmem>>, vector<8x192xf32>
    %cst_234 = arith.constant dense<0.000000e+00> : vector<8x192xf32>
    %517 = tpu.matmul %515, %516, %cst_234 {dimension_numbers = #tpu.dot_dimension_numbers<[1], [0], [0], [1], [0, 0, 1, 1], [], []>} : vector<8x8xf32>, vector<8x192xf32>, vector<8x192xf32> -> vector<8x192xf32>
    %c0_235 = arith.constant 0 : index
    %c0_236 = arith.constant 0 : index
    %518 = vector.load %arg4[%c0_235, %c0_236] : memref<1x192xf32, #tpu.memory_space<vmem>>, vector<1x192xf32>
    %519 = vector.broadcast %518 : vector<1x192xf32> to vector<8x192xf32>
    %520 = arith.addf %517, %519 : vector<8x192xf32>
    %521 = vector.extract_strided_slice %520 {offsets = [0, 0], sizes = [8, 64], strides = [1, 1]} : vector<8x192xf32> to vector<8x64xf32>
    %522 = vector.extract_strided_slice %520 {offsets = [0, 64], sizes = [8, 64], strides = [1, 1]} : vector<8x192xf32> to vector<8x64xf32>
    %523 = vector.extract_strided_slice %520 {offsets = [0, 128], sizes = [8, 64], strides = [1, 1]} : vector<8x192xf32> to vector<8x64xf32>
    %524 = vector.extract_strided_slice %521 {offsets = [0, 0], sizes = [8, 8], strides = [1, 1]} : vector<8x64xf32> to vector<8x8xf32>
    %525 = vector.extract_strided_slice %522 {offsets = [0, 0], sizes = [8, 8], strides = [1, 1]} : vector<8x64xf32> to vector<8x8xf32>
    %526 = vector.extract_strided_slice %523 {offsets = [0, 0], sizes = [8, 8], strides = [1, 1]} : vector<8x64xf32> to vector<8x8xf32>
    %cst_237 = arith.constant dense<0.000000e+00> : vector<8x8xf32>
    %527 = tpu.matmul %524, %525, %cst_237 {dimension_numbers = #tpu.dot_dimension_numbers<[1], [1], [0], [0], [0, 0, 1, 0], [], []>} : vector<8x8xf32>, vector<8x8xf32>, vector<8x8xf32> -> vector<8x8xf32>
    %cst_238 = arith.constant 0.353553385 : f32
    %528 = vector.broadcast %cst_238 : f32 to vector<8x8xf32>
    %529 = arith.mulf %527, %528 : vector<8x8xf32>
    %cst_239 = arith.constant dense<0xFF800000> : vector<8xf32>
    %530 = vector.multi_reduction <maximumf>, %529, %cst_239 [1] : vector<8x8xf32> to vector<8xf32>
    %531 = vector.shape_cast %530 : vector<8xf32> to vector<8x1xf32>
    %532 = vector.broadcast %531 : vector<8x1xf32> to vector<8x8xf32>
    %533 = arith.subf %529, %532 : vector<8x8xf32>
    %534 = math.exp %533 : vector<8x8xf32>
    %cst_240 = arith.constant dense<0.000000e+00> : vector<8xf32>
    %535 = vector.multi_reduction <add>, %534, %cst_240 [1] : vector<8x8xf32> to vector<8xf32>
    %536 = vector.shape_cast %535 : vector<8xf32> to vector<8x1xf32>
    %537 = tpu.reciprocal %536 {approx = true} : vector<8x1xf32> -> vector<8x1xf32>
    %538 = vector.broadcast %537 : vector<8x1xf32> to vector<8x8xf32>
    %539 = arith.mulf %534, %538 : vector<8x8xf32>
    %cst_241 = arith.constant dense<0.000000e+00> : vector<8x8xf32>
    %540 = tpu.matmul %539, %526, %cst_241 {dimension_numbers = #tpu.dot_dimension_numbers<[1], [0], [0], [1], [0, 0, 1, 1], [], []>} : vector<8x8xf32>, vector<8x8xf32>, vector<8x8xf32> -> vector<8x8xf32>
    %541 = vector.extract_strided_slice %521 {offsets = [0, 8], sizes = [8, 8], strides = [1, 1]} : vector<8x64xf32> to vector<8x8xf32>
    %542 = vector.extract_strided_slice %522 {offsets = [0, 8], sizes = [8, 8], strides = [1, 1]} : vector<8x64xf32> to vector<8x8xf32>
    %543 = vector.extract_strided_slice %523 {offsets = [0, 8], sizes = [8, 8], strides = [1, 1]} : vector<8x64xf32> to vector<8x8xf32>
    %cst_242 = arith.constant dense<0.000000e+00> : vector<8x8xf32>
    %544 = tpu.matmul %541, %542, %cst_242 {dimension_numbers = #tpu.dot_dimension_numbers<[1], [1], [0], [0], [0, 0, 1, 0], [], []>} : vector<8x8xf32>, vector<8x8xf32>, vector<8x8xf32> -> vector<8x8xf32>
    %cst_243 = arith.constant 0.353553385 : f32
    %545 = vector.broadcast %cst_243 : f32 to vector<8x8xf32>
    %546 = arith.mulf %544, %545 : vector<8x8xf32>
    %cst_244 = arith.constant dense<0xFF800000> : vector<8xf32>
    %547 = vector.multi_reduction <maximumf>, %546, %cst_244 [1] : vector<8x8xf32> to vector<8xf32>
    %548 = vector.shape_cast %547 : vector<8xf32> to vector<8x1xf32>
    %549 = vector.broadcast %548 : vector<8x1xf32> to vector<8x8xf32>
    %550 = arith.subf %546, %549 : vector<8x8xf32>
    %551 = math.exp %550 : vector<8x8xf32>
    %cst_245 = arith.constant dense<0.000000e+00> : vector<8xf32>
    %552 = vector.multi_reduction <add>, %551, %cst_245 [1] : vector<8x8xf32> to vector<8xf32>
    %553 = vector.shape_cast %552 : vector<8xf32> to vector<8x1xf32>
    %554 = tpu.reciprocal %553 {approx = true} : vector<8x1xf32> -> vector<8x1xf32>
    %555 = vector.broadcast %554 : vector<8x1xf32> to vector<8x8xf32>
    %556 = arith.mulf %551, %555 : vector<8x8xf32>
    %cst_246 = arith.constant dense<0.000000e+00> : vector<8x8xf32>
    %557 = tpu.matmul %556, %543, %cst_246 {dimension_numbers = #tpu.dot_dimension_numbers<[1], [0], [0], [1], [0, 0, 1, 1], [], []>} : vector<8x8xf32>, vector<8x8xf32>, vector<8x8xf32> -> vector<8x8xf32>
    %558 = vector.extract_strided_slice %521 {offsets = [0, 16], sizes = [8, 8], strides = [1, 1]} : vector<8x64xf32> to vector<8x8xf32>
    %559 = vector.extract_strided_slice %522 {offsets = [0, 16], sizes = [8, 8], strides = [1, 1]} : vector<8x64xf32> to vector<8x8xf32>
    %560 = vector.extract_strided_slice %523 {offsets = [0, 16], sizes = [8, 8], strides = [1, 1]} : vector<8x64xf32> to vector<8x8xf32>
    %cst_247 = arith.constant dense<0.000000e+00> : vector<8x8xf32>
    %561 = tpu.matmul %558, %559, %cst_247 {dimension_numbers = #tpu.dot_dimension_numbers<[1], [1], [0], [0], [0, 0, 1, 0], [], []>} : vector<8x8xf32>, vector<8x8xf32>, vector<8x8xf32> -> vector<8x8xf32>
    %cst_248 = arith.constant 0.353553385 : f32
    %562 = vector.broadcast %cst_248 : f32 to vector<8x8xf32>
    %563 = arith.mulf %561, %562 : vector<8x8xf32>
    %cst_249 = arith.constant dense<0xFF800000> : vector<8xf32>
    %564 = vector.multi_reduction <maximumf>, %563, %cst_249 [1] : vector<8x8xf32> to vector<8xf32>
    %565 = vector.shape_cast %564 : vector<8xf32> to vector<8x1xf32>
    %566 = vector.broadcast %565 : vector<8x1xf32> to vector<8x8xf32>
    %567 = arith.subf %563, %566 : vector<8x8xf32>
    %568 = math.exp %567 : vector<8x8xf32>
    %cst_250 = arith.constant dense<0.000000e+00> : vector<8xf32>
    %569 = vector.multi_reduction <add>, %568, %cst_250 [1] : vector<8x8xf32> to vector<8xf32>
    %570 = vector.shape_cast %569 : vector<8xf32> to vector<8x1xf32>
    %571 = tpu.reciprocal %570 {approx = true} : vector<8x1xf32> -> vector<8x1xf32>
    %572 = vector.broadcast %571 : vector<8x1xf32> to vector<8x8xf32>
    %573 = arith.mulf %568, %572 : vector<8x8xf32>
    %cst_251 = arith.constant dense<0.000000e+00> : vector<8x8xf32>
    %574 = tpu.matmul %573, %560, %cst_251 {dimension_numbers = #tpu.dot_dimension_numbers<[1], [0], [0], [1], [0, 0, 1, 1], [], []>} : vector<8x8xf32>, vector<8x8xf32>, vector<8x8xf32> -> vector<8x8xf32>
    %575 = vector.extract_strided_slice %521 {offsets = [0, 24], sizes = [8, 8], strides = [1, 1]} : vector<8x64xf32> to vector<8x8xf32>
    %576 = vector.extract_strided_slice %522 {offsets = [0, 24], sizes = [8, 8], strides = [1, 1]} : vector<8x64xf32> to vector<8x8xf32>
    %577 = vector.extract_strided_slice %523 {offsets = [0, 24], sizes = [8, 8], strides = [1, 1]} : vector<8x64xf32> to vector<8x8xf32>
    %cst_252 = arith.constant dense<0.000000e+00> : vector<8x8xf32>
    %578 = tpu.matmul %575, %576, %cst_252 {dimension_numbers = #tpu.dot_dimension_numbers<[1], [1], [0], [0], [0, 0, 1, 0], [], []>} : vector<8x8xf32>, vector<8x8xf32>, vector<8x8xf32> -> vector<8x8xf32>
    %cst_253 = arith.constant 0.353553385 : f32
    %579 = vector.broadcast %cst_253 : f32 to vector<8x8xf32>
    %580 = arith.mulf %578, %579 : vector<8x8xf32>
    %cst_254 = arith.constant dense<0xFF800000> : vector<8xf32>
    %581 = vector.multi_reduction <maximumf>, %580, %cst_254 [1] : vector<8x8xf32> to vector<8xf32>
    %582 = vector.shape_cast %581 : vector<8xf32> to vector<8x1xf32>
    %583 = vector.broadcast %582 : vector<8x1xf32> to vector<8x8xf32>
    %584 = arith.subf %580, %583 : vector<8x8xf32>
    %585 = math.exp %584 : vector<8x8xf32>
    %cst_255 = arith.constant dense<0.000000e+00> : vector<8xf32>
    %586 = vector.multi_reduction <add>, %585, %cst_255 [1] : vector<8x8xf32> to vector<8xf32>
    %587 = vector.shape_cast %586 : vector<8xf32> to vector<8x1xf32>
    %588 = tpu.reciprocal %587 {approx = true} : vector<8x1xf32> -> vector<8x1xf32>
    %589 = vector.broadcast %588 : vector<8x1xf32> to vector<8x8xf32>
    %590 = arith.mulf %585, %589 : vector<8x8xf32>
    %cst_256 = arith.constant dense<0.000000e+00> : vector<8x8xf32>
    %591 = tpu.matmul %590, %577, %cst_256 {dimension_numbers = #tpu.dot_dimension_numbers<[1], [0], [0], [1], [0, 0, 1, 1], [], []>} : vector<8x8xf32>, vector<8x8xf32>, vector<8x8xf32> -> vector<8x8xf32>
    %592 = vector.extract_strided_slice %521 {offsets = [0, 32], sizes = [8, 8], strides = [1, 1]} : vector<8x64xf32> to vector<8x8xf32>
    %593 = vector.extract_strided_slice %522 {offsets = [0, 32], sizes = [8, 8], strides = [1, 1]} : vector<8x64xf32> to vector<8x8xf32>
    %594 = vector.extract_strided_slice %523 {offsets = [0, 32], sizes = [8, 8], strides = [1, 1]} : vector<8x64xf32> to vector<8x8xf32>
    %cst_257 = arith.constant dense<0.000000e+00> : vector<8x8xf32>
    %595 = tpu.matmul %592, %593, %cst_257 {dimension_numbers = #tpu.dot_dimension_numbers<[1], [1], [0], [0], [0, 0, 1, 0], [], []>} : vector<8x8xf32>, vector<8x8xf32>, vector<8x8xf32> -> vector<8x8xf32>
    %cst_258 = arith.constant 0.353553385 : f32
    %596 = vector.broadcast %cst_258 : f32 to vector<8x8xf32>
    %597 = arith.mulf %595, %596 : vector<8x8xf32>
    %cst_259 = arith.constant dense<0xFF800000> : vector<8xf32>
    %598 = vector.multi_reduction <maximumf>, %597, %cst_259 [1] : vector<8x8xf32> to vector<8xf32>
    %599 = vector.shape_cast %598 : vector<8xf32> to vector<8x1xf32>
    %600 = vector.broadcast %599 : vector<8x1xf32> to vector<8x8xf32>
    %601 = arith.subf %597, %600 : vector<8x8xf32>
    %602 = math.exp %601 : vector<8x8xf32>
    %cst_260 = arith.constant dense<0.000000e+00> : vector<8xf32>
    %603 = vector.multi_reduction <add>, %602, %cst_260 [1] : vector<8x8xf32> to vector<8xf32>
    %604 = vector.shape_cast %603 : vector<8xf32> to vector<8x1xf32>
    %605 = tpu.reciprocal %604 {approx = true} : vector<8x1xf32> -> vector<8x1xf32>
    %606 = vector.broadcast %605 : vector<8x1xf32> to vector<8x8xf32>
    %607 = arith.mulf %602, %606 : vector<8x8xf32>
    %cst_261 = arith.constant dense<0.000000e+00> : vector<8x8xf32>
    %608 = tpu.matmul %607, %594, %cst_261 {dimension_numbers = #tpu.dot_dimension_numbers<[1], [0], [0], [1], [0, 0, 1, 1], [], []>} : vector<8x8xf32>, vector<8x8xf32>, vector<8x8xf32> -> vector<8x8xf32>
    %609 = vector.extract_strided_slice %521 {offsets = [0, 40], sizes = [8, 8], strides = [1, 1]} : vector<8x64xf32> to vector<8x8xf32>
    %610 = vector.extract_strided_slice %522 {offsets = [0, 40], sizes = [8, 8], strides = [1, 1]} : vector<8x64xf32> to vector<8x8xf32>
    %611 = vector.extract_strided_slice %523 {offsets = [0, 40], sizes = [8, 8], strides = [1, 1]} : vector<8x64xf32> to vector<8x8xf32>
    %cst_262 = arith.constant dense<0.000000e+00> : vector<8x8xf32>
    %612 = tpu.matmul %609, %610, %cst_262 {dimension_numbers = #tpu.dot_dimension_numbers<[1], [1], [0], [0], [0, 0, 1, 0], [], []>} : vector<8x8xf32>, vector<8x8xf32>, vector<8x8xf32> -> vector<8x8xf32>
    %cst_263 = arith.constant 0.353553385 : f32
    %613 = vector.broadcast %cst_263 : f32 to vector<8x8xf32>
    %614 = arith.mulf %612, %613 : vector<8x8xf32>
    %cst_264 = arith.constant dense<0xFF800000> : vector<8xf32>
    %615 = vector.multi_reduction <maximumf>, %614, %cst_264 [1] : vector<8x8xf32> to vector<8xf32>
    %616 = vector.shape_cast %615 : vector<8xf32> to vector<8x1xf32>
    %617 = vector.broadcast %616 : vector<8x1xf32> to vector<8x8xf32>
    %618 = arith.subf %614, %617 : vector<8x8xf32>
    %619 = math.exp %618 : vector<8x8xf32>
    %cst_265 = arith.constant dense<0.000000e+00> : vector<8xf32>
    %620 = vector.multi_reduction <add>, %619, %cst_265 [1] : vector<8x8xf32> to vector<8xf32>
    %621 = vector.shape_cast %620 : vector<8xf32> to vector<8x1xf32>
    %622 = tpu.reciprocal %621 {approx = true} : vector<8x1xf32> -> vector<8x1xf32>
    %623 = vector.broadcast %622 : vector<8x1xf32> to vector<8x8xf32>
    %624 = arith.mulf %619, %623 : vector<8x8xf32>
    %cst_266 = arith.constant dense<0.000000e+00> : vector<8x8xf32>
    %625 = tpu.matmul %624, %611, %cst_266 {dimension_numbers = #tpu.dot_dimension_numbers<[1], [0], [0], [1], [0, 0, 1, 1], [], []>} : vector<8x8xf32>, vector<8x8xf32>, vector<8x8xf32> -> vector<8x8xf32>
    %626 = vector.extract_strided_slice %521 {offsets = [0, 48], sizes = [8, 8], strides = [1, 1]} : vector<8x64xf32> to vector<8x8xf32>
    %627 = vector.extract_strided_slice %522 {offsets = [0, 48], sizes = [8, 8], strides = [1, 1]} : vector<8x64xf32> to vector<8x8xf32>
    %628 = vector.extract_strided_slice %523 {offsets = [0, 48], sizes = [8, 8], strides = [1, 1]} : vector<8x64xf32> to vector<8x8xf32>
    %cst_267 = arith.constant dense<0.000000e+00> : vector<8x8xf32>
    %629 = tpu.matmul %626, %627, %cst_267 {dimension_numbers = #tpu.dot_dimension_numbers<[1], [1], [0], [0], [0, 0, 1, 0], [], []>} : vector<8x8xf32>, vector<8x8xf32>, vector<8x8xf32> -> vector<8x8xf32>
    %cst_268 = arith.constant 0.353553385 : f32
    %630 = vector.broadcast %cst_268 : f32 to vector<8x8xf32>
    %631 = arith.mulf %629, %630 : vector<8x8xf32>
    %cst_269 = arith.constant dense<0xFF800000> : vector<8xf32>
    %632 = vector.multi_reduction <maximumf>, %631, %cst_269 [1] : vector<8x8xf32> to vector<8xf32>
    %633 = vector.shape_cast %632 : vector<8xf32> to vector<8x1xf32>
    %634 = vector.broadcast %633 : vector<8x1xf32> to vector<8x8xf32>
    %635 = arith.subf %631, %634 : vector<8x8xf32>
    %636 = math.exp %635 : vector<8x8xf32>
    %cst_270 = arith.constant dense<0.000000e+00> : vector<8xf32>
    %637 = vector.multi_reduction <add>, %636, %cst_270 [1] : vector<8x8xf32> to vector<8xf32>
    %638 = vector.shape_cast %637 : vector<8xf32> to vector<8x1xf32>
    %639 = tpu.reciprocal %638 {approx = true} : vector<8x1xf32> -> vector<8x1xf32>
    %640 = vector.broadcast %639 : vector<8x1xf32> to vector<8x8xf32>
    %641 = arith.mulf %636, %640 : vector<8x8xf32>
    %cst_271 = arith.constant dense<0.000000e+00> : vector<8x8xf32>
    %642 = tpu.matmul %641, %628, %cst_271 {dimension_numbers = #tpu.dot_dimension_numbers<[1], [0], [0], [1], [0, 0, 1, 1], [], []>} : vector<8x8xf32>, vector<8x8xf32>, vector<8x8xf32> -> vector<8x8xf32>
    %643 = vector.extract_strided_slice %521 {offsets = [0, 56], sizes = [8, 8], strides = [1, 1]} : vector<8x64xf32> to vector<8x8xf32>
    %644 = vector.extract_strided_slice %522 {offsets = [0, 56], sizes = [8, 8], strides = [1, 1]} : vector<8x64xf32> to vector<8x8xf32>
    %645 = vector.extract_strided_slice %523 {offsets = [0, 56], sizes = [8, 8], strides = [1, 1]} : vector<8x64xf32> to vector<8x8xf32>
    %cst_272 = arith.constant dense<0.000000e+00> : vector<8x8xf32>
    %646 = tpu.matmul %643, %644, %cst_272 {dimension_numbers = #tpu.dot_dimension_numbers<[1], [1], [0], [0], [0, 0, 1, 0], [], []>} : vector<8x8xf32>, vector<8x8xf32>, vector<8x8xf32> -> vector<8x8xf32>
    %cst_273 = arith.constant 0.353553385 : f32
    %647 = vector.broadcast %cst_273 : f32 to vector<8x8xf32>
    %648 = arith.mulf %646, %647 : vector<8x8xf32>
    %cst_274 = arith.constant dense<0xFF800000> : vector<8xf32>
    %649 = vector.multi_reduction <maximumf>, %648, %cst_274 [1] : vector<8x8xf32> to vector<8xf32>
    %650 = vector.shape_cast %649 : vector<8xf32> to vector<8x1xf32>
    %651 = vector.broadcast %650 : vector<8x1xf32> to vector<8x8xf32>
    %652 = arith.subf %648, %651 : vector<8x8xf32>
    %653 = math.exp %652 : vector<8x8xf32>
    %cst_275 = arith.constant dense<0.000000e+00> : vector<8xf32>
    %654 = vector.multi_reduction <add>, %653, %cst_275 [1] : vector<8x8xf32> to vector<8xf32>
    %655 = vector.shape_cast %654 : vector<8xf32> to vector<8x1xf32>
    %656 = tpu.reciprocal %655 {approx = true} : vector<8x1xf32> -> vector<8x1xf32>
    %657 = vector.broadcast %656 : vector<8x1xf32> to vector<8x8xf32>
    %658 = arith.mulf %653, %657 : vector<8x8xf32>
    %cst_276 = arith.constant dense<0.000000e+00> : vector<8x8xf32>
    %659 = tpu.matmul %658, %645, %cst_276 {dimension_numbers = #tpu.dot_dimension_numbers<[1], [0], [0], [1], [0, 0, 1, 1], [], []>} : vector<8x8xf32>, vector<8x8xf32>, vector<8x8xf32> -> vector<8x8xf32>
    %660 = tpu.concatenate %540, %557, %574, %591, %608, %625, %642, %659 in 1 : vector<8x8xf32>, vector<8x8xf32>, vector<8x8xf32>, vector<8x8xf32>, vector<8x8xf32>, vector<8x8xf32>, vector<8x8xf32>, vector<8x8xf32> -> vector<8x64xf32>
    %c0_277 = arith.constant 0 : index
    %c0_278 = arith.constant 0 : index
    %661 = vector.load %arg5[%c0_277, %c0_278] : memref<8x64xf32, #tpu.memory_space<vmem>>, vector<8x64xf32>
    %cst_279 = arith.constant dense<0.000000e+00> : vector<8x8xf32>
    %662 = tpu.matmul %660, %661, %cst_279 {dimension_numbers = #tpu.dot_dimension_numbers<[1], [1], [0], [0], [0, 0, 1, 0], [], []>} : vector<8x64xf32>, vector<8x64xf32>, vector<8x8xf32> -> vector<8x8xf32>
    %c0_280 = arith.constant 0 : index
    %c0_281 = arith.constant 0 : index
    %663 = vector.load %arg6[%c0_280, %c0_281] : memref<1x8xf32, #tpu.memory_space<vmem>>, vector<1x8xf32>
    %664 = vector.broadcast %663 : vector<1x8xf32> to vector<8x8xf32>
    %665 = arith.addf %662, %664 : vector<8x8xf32>
    %c0_282 = arith.constant 0 : index
    %c0_283 = arith.constant 0 : index
    %666 = vector.load %arg7[%c0_282, %c0_283] : memref<3x64xf32, #tpu.memory_space<vmem>>, vector<3x64xf32>
    %c0_284 = arith.constant 0 : index
    %c0_285 = arith.constant 0 : index
    %667 = vector.load %arg8[%c0_284, %c0_285] : memref<1x64xf32, #tpu.memory_space<vmem>>, vector<1x64xf32>
    %cst_286 = arith.constant 0.000000e+00 : f32
    %668 = vector.broadcast %cst_286 : f32 to vector<1x64xf32>
    %669 = tpu.concatenate %668, %523, %668 in 0 : vector<1x64xf32>, vector<8x64xf32>, vector<1x64xf32> -> vector<10x64xf32>
    %cst_287 = arith.constant 0.000000e+00 : f32
    %670 = vector.broadcast %cst_287 : f32 to vector<8x64xf32>
    %671 = vector.extract_strided_slice %669 {offsets = [0, 0], sizes = [8, 64], strides = [1, 1]} : vector<10x64xf32> to vector<8x64xf32>
    %672 = vector.extract_strided_slice %666 {offsets = [0, 0], sizes = [1, 64], strides = [1, 1]} : vector<3x64xf32> to vector<1x64xf32>
    %673 = vector.broadcast %672 : vector<1x64xf32> to vector<8x64xf32>
    %674 = arith.mulf %671, %673 : vector<8x64xf32>
    %675 = arith.addf %670, %674 : vector<8x64xf32>
    %676 = vector.extract_strided_slice %669 {offsets = [1, 0], sizes = [8, 64], strides = [1, 1]} : vector<10x64xf32> to vector<8x64xf32>
    %677 = vector.extract_strided_slice %666 {offsets = [1, 0], sizes = [1, 64], strides = [1, 1]} : vector<3x64xf32> to vector<1x64xf32>
    %678 = vector.broadcast %677 : vector<1x64xf32> to vector<8x64xf32>
    %679 = arith.mulf %676, %678 : vector<8x64xf32>
    %680 = arith.addf %675, %679 : vector<8x64xf32>
    %681 = vector.extract_strided_slice %669 {offsets = [2, 0], sizes = [8, 64], strides = [1, 1]} : vector<10x64xf32> to vector<8x64xf32>
    %682 = vector.extract_strided_slice %666 {offsets = [2, 0], sizes = [1, 64], strides = [1, 1]} : vector<3x64xf32> to vector<1x64xf32>
    %683 = vector.broadcast %682 : vector<1x64xf32> to vector<8x64xf32>
    %684 = arith.mulf %681, %683 : vector<8x64xf32>
    %685 = arith.addf %680, %684 : vector<8x64xf32>
    %686 = vector.broadcast %667 : vector<1x64xf32> to vector<8x64xf32>
    %687 = arith.addf %685, %686 : vector<8x64xf32>
    %c0_288 = arith.constant 0 : index
    %c0_289 = arith.constant 0 : index
    %688 = vector.load %arg9[%c0_288, %c0_289] : memref<5x64xf32, #tpu.memory_space<vmem>>, vector<5x64xf32>
    %c0_290 = arith.constant 0 : index
    %c0_291 = arith.constant 0 : index
    %689 = vector.load %arg10[%c0_290, %c0_291] : memref<1x64xf32, #tpu.memory_space<vmem>>, vector<1x64xf32>
    %cst_292 = arith.constant 0.000000e+00 : f32
    %690 = vector.broadcast %cst_292 : f32 to vector<2x64xf32>
    %691 = tpu.concatenate %690, %523, %690 in 0 : vector<2x64xf32>, vector<8x64xf32>, vector<2x64xf32> -> vector<12x64xf32>
    %cst_293 = arith.constant 0.000000e+00 : f32
    %692 = vector.broadcast %cst_293 : f32 to vector<8x64xf32>
    %693 = vector.extract_strided_slice %691 {offsets = [0, 0], sizes = [8, 64], strides = [1, 1]} : vector<12x64xf32> to vector<8x64xf32>
    %694 = vector.extract_strided_slice %688 {offsets = [0, 0], sizes = [1, 64], strides = [1, 1]} : vector<5x64xf32> to vector<1x64xf32>
    %695 = vector.broadcast %694 : vector<1x64xf32> to vector<8x64xf32>
    %696 = arith.mulf %693, %695 : vector<8x64xf32>
    %697 = arith.addf %692, %696 : vector<8x64xf32>
    %698 = vector.extract_strided_slice %691 {offsets = [1, 0], sizes = [8, 64], strides = [1, 1]} : vector<12x64xf32> to vector<8x64xf32>
    %699 = vector.extract_strided_slice %688 {offsets = [1, 0], sizes = [1, 64], strides = [1, 1]} : vector<5x64xf32> to vector<1x64xf32>
    %700 = vector.broadcast %699 : vector<1x64xf32> to vector<8x64xf32>
    %701 = arith.mulf %698, %700 : vector<8x64xf32>
    %702 = arith.addf %697, %701 : vector<8x64xf32>
    %703 = vector.extract_strided_slice %691 {offsets = [2, 0], sizes = [8, 64], strides = [1, 1]} : vector<12x64xf32> to vector<8x64xf32>
    %704 = vector.extract_strided_slice %688 {offsets = [2, 0], sizes = [1, 64], strides = [1, 1]} : vector<5x64xf32> to vector<1x64xf32>
    %705 = vector.broadcast %704 : vector<1x64xf32> to vector<8x64xf32>
    %706 = arith.mulf %703, %705 : vector<8x64xf32>
    %707 = arith.addf %702, %706 : vector<8x64xf32>
    %708 = vector.extract_strided_slice %691 {offsets = [3, 0], sizes = [8, 64], strides = [1, 1]} : vector<12x64xf32> to vector<8x64xf32>
    %709 = vector.extract_strided_slice %688 {offsets = [3, 0], sizes = [1, 64], strides = [1, 1]} : vector<5x64xf32> to vector<1x64xf32>
    %710 = vector.broadcast %709 : vector<1x64xf32> to vector<8x64xf32>
    %711 = arith.mulf %708, %710 : vector<8x64xf32>
    %712 = arith.addf %707, %711 : vector<8x64xf32>
    %713 = vector.extract_strided_slice %691 {offsets = [4, 0], sizes = [8, 64], strides = [1, 1]} : vector<12x64xf32> to vector<8x64xf32>
    %714 = vector.extract_strided_slice %688 {offsets = [4, 0], sizes = [1, 64], strides = [1, 1]} : vector<5x64xf32> to vector<1x64xf32>
    %715 = vector.broadcast %714 : vector<1x64xf32> to vector<8x64xf32>
    %716 = arith.mulf %713, %715 : vector<8x64xf32>
    %717 = arith.addf %712, %716 : vector<8x64xf32>
    %718 = vector.broadcast %689 : vector<1x64xf32> to vector<8x64xf32>
    %719 = arith.addf %717, %718 : vector<8x64xf32>
    %720 = tpu.concatenate %523, %687, %719 in 1 : vector<8x64xf32>, vector<8x64xf32>, vector<8x64xf32> -> vector<8x192xf32>
    %c0_294 = arith.constant 0 : index
    %c0_295 = arith.constant 0 : index
    %721 = vector.load %arg11[%c0_294, %c0_295] : memref<8x192xf32, #tpu.memory_space<vmem>>, vector<8x192xf32>
    %cst_296 = arith.constant dense<0.000000e+00> : vector<8x8xf32>
    %722 = tpu.matmul %720, %721, %cst_296 {dimension_numbers = #tpu.dot_dimension_numbers<[1], [1], [0], [0], [0, 0, 1, 0], [], []>} : vector<8x192xf32>, vector<8x192xf32>, vector<8x8xf32> -> vector<8x8xf32>
    %c0_297 = arith.constant 0 : index
    %c0_298 = arith.constant 0 : index
    %723 = vector.load %arg12[%c0_297, %c0_298] : memref<1x8xf32, #tpu.memory_space<vmem>>, vector<1x8xf32>
    %724 = vector.broadcast %723 : vector<1x8xf32> to vector<8x8xf32>
    %725 = arith.addf %722, %724 : vector<8x8xf32>
    %726 = arith.addf %665, %725 : vector<8x8xf32>
    %c1_299 = arith.constant 1 : index
    %c0_300 = arith.constant 0 : index
    %c0_301 = arith.constant 0 : index
    %727 = vector.load %arg32[%c1_299, %c0_300, %c0_301] : memref<2x8x8xf32, #tpu.memory_space<vmem>>, vector<1x8x8xf32>
    %728 = vector.shape_cast %727 : vector<1x8x8xf32> to vector<8x8xf32>
    %729 = vector.shape_cast %726 : vector<8x8xf32> to vector<1x8x8xf32>
    tpu.vector_store %arg32[%c1_299, %c0_300, %c0_301], %729 {strides = array<i32>} : memref<2x8x8xf32, #tpu.memory_space<vmem>>, vector<1x8x8xf32>,
    %cst_302 = arith.constant dense<0.000000e+00> : vector<8x8xf32>
    %730 = tpu.matmul %5, %726, %cst_302 {dimension_numbers = #tpu.dot_dimension_numbers<[1], [1], [0], [0], [0, 0, 1, 0], [], []>} : vector<8x8xf32>, vector<8x8xf32>, vector<8x8xf32> -> vector<8x8xf32>
    %c0_303 = arith.constant 0 : index
    %c0_304 = arith.constant 0 : index
    %731 = vector.load %arg13[%c0_303, %c0_304] : memref<1x8xf32, #tpu.memory_space<vmem>>, vector<1x8xf32>
    %732 = tpu.concatenate %731, %730 in 0 : vector<1x8xf32>, vector<8x8xf32> -> vector<9x8xf32>
    %c0_305 = arith.constant 0 : index
    %c0_306 = arith.constant 0 : index
    %733 = vector.load %arg14[%c0_305, %c0_306] : memref<9x8xf32, #tpu.memory_space<vmem>>, vector<9x8xf32>
    %734 = arith.addf %732, %733 : vector<9x8xf32>
    %c0_307 = arith.constant 0 : index
    %c0_308 = arith.constant 0 : index
    %c0_309 = arith.constant 0 : index
    %735 = vector.load %arg15[%c0_307, %c0_308, %c0_309] : memref<2x1x8xf32, #tpu.memory_space<vmem>>, vector<1x1x8xf32>
    %736 = vector.shape_cast %735 : vector<1x1x8xf32> to vector<1x8xf32>
    %c0_310 = arith.constant 0 : index
    %c0_311 = arith.constant 0 : index
    %c0_312 = arith.constant 0 : index
    %737 = vector.load %arg16[%c0_310, %c0_311, %c0_312] : memref<2x1x8xf32, #tpu.memory_space<vmem>>, vector<1x1x8xf32>
    %738 = vector.shape_cast %737 : vector<1x1x8xf32> to vector<1x8xf32>
    %cst_313 = arith.constant dense<0.000000e+00> : vector<9xf32>
    %739 = vector.multi_reduction <add>, %734, %cst_313 [1] : vector<9x8xf32> to vector<9xf32>
    %740 = vector.shape_cast %739 : vector<9xf32> to vector<9x1xf32>
    %cst_314 = arith.constant 8.000000e+00 : f32
    %741 = vector.broadcast %cst_314 : f32 to vector<9x1xf32>
    %742 = arith.divf %740, %741 : vector<9x1xf32>
    %743 = vector.broadcast %742 : vector<9x1xf32> to vector<9x8xf32>
    %744 = arith.subf %734, %743 : vector<9x8xf32>
    %745 = arith.mulf %744, %744 : vector<9x8xf32>
    %cst_315 = arith.constant dense<0.000000e+00> : vector<9xf32>
    %746 = vector.multi_reduction <add>, %745, %cst_315 [1] : vector<9x8xf32> to vector<9xf32>
    %747 = vector.shape_cast %746 : vector<9xf32> to vector<9x1xf32>
    %cst_316 = arith.constant 8.000000e+00 : f32
    %748 = vector.broadcast %cst_316 : f32 to vector<9x1xf32>
    %749 = arith.divf %747, %748 : vector<9x1xf32>
    %750 = vector.broadcast %742 : vector<9x1xf32> to vector<9x8xf32>
    %751 = arith.subf %734, %750 : vector<9x8xf32>
    %cst_317 = arith.constant 9.99999974E-6 : f32
    %752 = vector.broadcast %cst_317 : f32 to vector<9x1xf32>
    %753 = arith.addf %749, %752 : vector<9x1xf32>
    %754 = math.rsqrt %753 : vector<9x1xf32>
    %755 = vector.broadcast %754 : vector<9x1xf32> to vector<9x8xf32>
    %756 = arith.mulf %751, %755 : vector<9x8xf32>
    %757 = vector.broadcast %736 : vector<1x8xf32> to vector<9x8xf32>
    %758 = arith.mulf %756, %757 : vector<9x8xf32>
    %759 = vector.broadcast %738 : vector<1x8xf32> to vector<9x8xf32>
    %760 = arith.addf %758, %759 : vector<9x8xf32>
    %c0_318 = arith.constant 0 : index
    %c0_319 = arith.constant 0 : index
    %c0_320 = arith.constant 0 : index
    %761 = vector.load %arg17[%c0_318, %c0_319, %c0_320] : memref<2x8x24xf32, #tpu.memory_space<vmem>>, vector<1x8x24xf32>
    %762 = vector.shape_cast %761 : vector<1x8x24xf32> to vector<8x24xf32>
    %cst_321 = arith.constant dense<0.000000e+00> : vector<9x24xf32>
    %763 = tpu.matmul %760, %762, %cst_321 {dimension_numbers = #tpu.dot_dimension_numbers<[1], [0], [0], [1], [0, 0, 1, 1], [], []>} : vector<9x8xf32>, vector<8x24xf32>, vector<9x24xf32> -> vector<9x24xf32>
    %764 = vector.extract_strided_slice %763 {offsets = [0, 0], sizes = [9, 4], strides = [1, 1]} : vector<9x24xf32> to vector<9x4xf32>
    %765 = vector.extract_strided_slice %763 {offsets = [0, 8], sizes = [9, 4], strides = [1, 1]} : vector<9x24xf32> to vector<9x4xf32>
    %766 = vector.extract_strided_slice %763 {offsets = [0, 16], sizes = [9, 4], strides = [1, 1]} : vector<9x24xf32> to vector<9x4xf32>
    %cst_322 = arith.constant dense<0.000000e+00> : vector<9x9xf32>
    %767 = tpu.matmul %764, %765, %cst_322 {dimension_numbers = #tpu.dot_dimension_numbers<[1], [1], [0], [0], [0, 0, 1, 0], [], []>} : vector<9x4xf32>, vector<9x4xf32>, vector<9x9xf32> -> vector<9x9xf32>
    %cst_323 = arith.constant 5.000000e-01 : f32
    %768 = vector.broadcast %cst_323 : f32 to vector<9x9xf32>
    %769 = arith.mulf %767, %768 : vector<9x9xf32>
    %cst_324 = arith.constant dense<0xFF800000> : vector<9xf32>
    %770 = vector.multi_reduction <maximumf>, %769, %cst_324 [1] : vector<9x9xf32> to vector<9xf32>
    %771 = vector.shape_cast %770 : vector<9xf32> to vector<9x1xf32>
    %772 = vector.broadcast %771 : vector<9x1xf32> to vector<9x9xf32>
    %773 = arith.subf %769, %772 : vector<9x9xf32>
    %774 = math.exp %773 : vector<9x9xf32>
    %cst_325 = arith.constant dense<0.000000e+00> : vector<9xf32>
    %775 = vector.multi_reduction <add>, %774, %cst_325 [1] : vector<9x9xf32> to vector<9xf32>
    %776 = vector.shape_cast %775 : vector<9xf32> to vector<9x1xf32>
    %777 = tpu.reciprocal %776 {approx = true} : vector<9x1xf32> -> vector<9x1xf32>
    %778 = vector.broadcast %777 : vector<9x1xf32> to vector<9x9xf32>
    %779 = arith.mulf %774, %778 : vector<9x9xf32>
    %cst_326 = arith.constant dense<0.000000e+00> : vector<9x4xf32>
    %780 = tpu.matmul %779, %766, %cst_326 {dimension_numbers = #tpu.dot_dimension_numbers<[1], [0], [0], [1], [0, 0, 1, 1], [], []>} : vector<9x9xf32>, vector<9x4xf32>, vector<9x4xf32> -> vector<9x4xf32>
    %781 = vector.extract_strided_slice %763 {offsets = [0, 4], sizes = [9, 4], strides = [1, 1]} : vector<9x24xf32> to vector<9x4xf32>
    %782 = vector.extract_strided_slice %763 {offsets = [0, 12], sizes = [9, 4], strides = [1, 1]} : vector<9x24xf32> to vector<9x4xf32>
    %783 = vector.extract_strided_slice %763 {offsets = [0, 20], sizes = [9, 4], strides = [1, 1]} : vector<9x24xf32> to vector<9x4xf32>
    %cst_327 = arith.constant dense<0.000000e+00> : vector<9x9xf32>
    %784 = tpu.matmul %781, %782, %cst_327 {dimension_numbers = #tpu.dot_dimension_numbers<[1], [1], [0], [0], [0, 0, 1, 0], [], []>} : vector<9x4xf32>, vector<9x4xf32>, vector<9x9xf32> -> vector<9x9xf32>
    %cst_328 = arith.constant 5.000000e-01 : f32
    %785 = vector.broadcast %cst_328 : f32 to vector<9x9xf32>
    %786 = arith.mulf %784, %785 : vector<9x9xf32>
    %cst_329 = arith.constant dense<0xFF800000> : vector<9xf32>
    %787 = vector.multi_reduction <maximumf>, %786, %cst_329 [1] : vector<9x9xf32> to vector<9xf32>
    %788 = vector.shape_cast %787 : vector<9xf32> to vector<9x1xf32>
    %789 = vector.broadcast %788 : vector<9x1xf32> to vector<9x9xf32>
    %790 = arith.subf %786, %789 : vector<9x9xf32>
    %791 = math.exp %790 : vector<9x9xf32>
    %cst_330 = arith.constant dense<0.000000e+00> : vector<9xf32>
    %792 = vector.multi_reduction <add>, %791, %cst_330 [1] : vector<9x9xf32> to vector<9xf32>
    %793 = vector.shape_cast %792 : vector<9xf32> to vector<9x1xf32>
    %794 = tpu.reciprocal %793 {approx = true} : vector<9x1xf32> -> vector<9x1xf32>
    %795 = vector.broadcast %794 : vector<9x1xf32> to vector<9x9xf32>
    %796 = arith.mulf %791, %795 : vector<9x9xf32>
    %cst_331 = arith.constant dense<0.000000e+00> : vector<9x4xf32>
    %797 = tpu.matmul %796, %783, %cst_331 {dimension_numbers = #tpu.dot_dimension_numbers<[1], [0], [0], [1], [0, 0, 1, 1], [], []>} : vector<9x9xf32>, vector<9x4xf32>, vector<9x4xf32> -> vector<9x4xf32>
    %798 = tpu.concatenate %780, %797 in 1 : vector<9x4xf32>, vector<9x4xf32> -> vector<9x8xf32>
    %c0_332 = arith.constant 0 : index
    %c0_333 = arith.constant 0 : index
    %c0_334 = arith.constant 0 : index
    %799 = vector.load %arg18[%c0_332, %c0_333, %c0_334] : memref<2x8x8xf32, #tpu.memory_space<vmem>>, vector<1x8x8xf32>
    %800 = vector.shape_cast %799 : vector<1x8x8xf32> to vector<8x8xf32>
    %cst_335 = arith.constant dense<0.000000e+00> : vector<9x8xf32>
    %801 = tpu.matmul %798, %800, %cst_335 {dimension_numbers = #tpu.dot_dimension_numbers<[1], [0], [0], [1], [0, 0, 1, 1], [], []>} : vector<9x8xf32>, vector<8x8xf32>, vector<9x8xf32> -> vector<9x8xf32>
    %c0_336 = arith.constant 0 : index
    %c0_337 = arith.constant 0 : index
    %c0_338 = arith.constant 0 : index
    %802 = vector.load %arg19[%c0_336, %c0_337, %c0_338] : memref<2x1x8xf32, #tpu.memory_space<vmem>>, vector<1x1x8xf32>
    %803 = vector.shape_cast %802 : vector<1x1x8xf32> to vector<1x8xf32>
    %804 = vector.broadcast %803 : vector<1x8xf32> to vector<9x8xf32>
    %805 = arith.addf %801, %804 : vector<9x8xf32>
    %806 = arith.addf %734, %805 : vector<9x8xf32>
    %c0_339 = arith.constant 0 : index
    %c0_340 = arith.constant 0 : index
    %c0_341 = arith.constant 0 : index
    %807 = vector.load %arg20[%c0_339, %c0_340, %c0_341] : memref<2x1x8xf32, #tpu.memory_space<vmem>>, vector<1x1x8xf32>
    %808 = vector.shape_cast %807 : vector<1x1x8xf32> to vector<1x8xf32>
    %c0_342 = arith.constant 0 : index
    %c0_343 = arith.constant 0 : index
    %c0_344 = arith.constant 0 : index
    %809 = vector.load %arg21[%c0_342, %c0_343, %c0_344] : memref<2x1x8xf32, #tpu.memory_space<vmem>>, vector<1x1x8xf32>
    %810 = vector.shape_cast %809 : vector<1x1x8xf32> to vector<1x8xf32>
    %cst_345 = arith.constant dense<0.000000e+00> : vector<9xf32>
    %811 = vector.multi_reduction <add>, %806, %cst_345 [1] : vector<9x8xf32> to vector<9xf32>
    %812 = vector.shape_cast %811 : vector<9xf32> to vector<9x1xf32>
    %cst_346 = arith.constant 8.000000e+00 : f32
    %813 = vector.broadcast %cst_346 : f32 to vector<9x1xf32>
    %814 = arith.divf %812, %813 : vector<9x1xf32>
    %815 = vector.broadcast %814 : vector<9x1xf32> to vector<9x8xf32>
    %816 = arith.subf %806, %815 : vector<9x8xf32>
    %817 = arith.mulf %816, %816 : vector<9x8xf32>
    %cst_347 = arith.constant dense<0.000000e+00> : vector<9xf32>
    %818 = vector.multi_reduction <add>, %817, %cst_347 [1] : vector<9x8xf32> to vector<9xf32>
    %819 = vector.shape_cast %818 : vector<9xf32> to vector<9x1xf32>
    %cst_348 = arith.constant 8.000000e+00 : f32
    %820 = vector.broadcast %cst_348 : f32 to vector<9x1xf32>
    %821 = arith.divf %819, %820 : vector<9x1xf32>
    %822 = vector.broadcast %814 : vector<9x1xf32> to vector<9x8xf32>
    %823 = arith.subf %806, %822 : vector<9x8xf32>
    %cst_349 = arith.constant 9.99999974E-6 : f32
    %824 = vector.broadcast %cst_349 : f32 to vector<9x1xf32>
    %825 = arith.addf %821, %824 : vector<9x1xf32>
    %826 = math.rsqrt %825 : vector<9x1xf32>
    %827 = vector.broadcast %826 : vector<9x1xf32> to vector<9x8xf32>
    %828 = arith.mulf %823, %827 : vector<9x8xf32>
    %829 = vector.broadcast %808 : vector<1x8xf32> to vector<9x8xf32>
    %830 = arith.mulf %828, %829 : vector<9x8xf32>
    %831 = vector.broadcast %810 : vector<1x8xf32> to vector<9x8xf32>
    %832 = arith.addf %830, %831 : vector<9x8xf32>
    %c0_350 = arith.constant 0 : index
    %c0_351 = arith.constant 0 : index
    %c0_352 = arith.constant 0 : index
    %833 = vector.load %arg22[%c0_350, %c0_351, %c0_352] : memref<2x8x16xf32, #tpu.memory_space<vmem>>, vector<1x8x16xf32>
    %834 = vector.shape_cast %833 : vector<1x8x16xf32> to vector<8x16xf32>
    %cst_353 = arith.constant dense<0.000000e+00> : vector<9x16xf32>
    %835 = tpu.matmul %832, %834, %cst_353 {dimension_numbers = #tpu.dot_dimension_numbers<[1], [0], [0], [1], [0, 0, 1, 1], [], []>} : vector<9x8xf32>, vector<8x16xf32>, vector<9x16xf32> -> vector<9x16xf32>
    %c0_354 = arith.constant 0 : index
    %c0_355 = arith.constant 0 : index
    %c0_356 = arith.constant 0 : index
    %836 = vector.load %arg23[%c0_354, %c0_355, %c0_356] : memref<2x1x16xf32, #tpu.memory_space<vmem>>, vector<1x1x16xf32>
    %837 = vector.shape_cast %836 : vector<1x1x16xf32> to vector<1x16xf32>
    %838 = vector.broadcast %837 : vector<1x16xf32> to vector<9x16xf32>
    %839 = arith.addf %835, %838 : vector<9x16xf32>
    %cst_357 = arith.constant 5.000000e-01 : f32
    %840 = vector.broadcast %cst_357 : f32 to vector<9x16xf32>
    %841 = arith.mulf %840, %839 : vector<9x16xf32>
    %cst_358 = arith.constant 0.707106769 : f32
    %842 = vector.broadcast %cst_358 : f32 to vector<9x16xf32>
    %843 = arith.mulf %839, %842 : vector<9x16xf32>
    %844 = math.erf %843 : vector<9x16xf32>
    %cst_359 = arith.constant 1.000000e+00 : f32
    %845 = vector.broadcast %cst_359 : f32 to vector<9x16xf32>
    %846 = arith.addf %845, %844 : vector<9x16xf32>
    %847 = arith.mulf %841, %846 : vector<9x16xf32>
    %c0_360 = arith.constant 0 : index
    %c0_361 = arith.constant 0 : index
    %c0_362 = arith.constant 0 : index
    %848 = vector.load %arg24[%c0_360, %c0_361, %c0_362] : memref<2x16x8xf32, #tpu.memory_space<vmem>>, vector<1x16x8xf32>
    %849 = vector.shape_cast %848 : vector<1x16x8xf32> to vector<16x8xf32>
    %cst_363 = arith.constant dense<0.000000e+00> : vector<9x8xf32>
    %850 = tpu.matmul %847, %849, %cst_363 {dimension_numbers = #tpu.dot_dimension_numbers<[1], [0], [0], [1], [0, 0, 1, 1], [], []>} : vector<9x16xf32>, vector<16x8xf32>, vector<9x8xf32> -> vector<9x8xf32>
    %c0_364 = arith.constant 0 : index
    %c0_365 = arith.constant 0 : index
    %c0_366 = arith.constant 0 : index
    %851 = vector.load %arg25[%c0_364, %c0_365, %c0_366] : memref<2x1x8xf32, #tpu.memory_space<vmem>>, vector<1x1x8xf32>
    %852 = vector.shape_cast %851 : vector<1x1x8xf32> to vector<1x8xf32>
    %853 = vector.broadcast %852 : vector<1x8xf32> to vector<9x8xf32>
    %854 = arith.addf %850, %853 : vector<9x8xf32>
    %855 = arith.addf %806, %854 : vector<9x8xf32>
    %c1_367 = arith.constant 1 : index
    %c0_368 = arith.constant 0 : index
    %c0_369 = arith.constant 0 : index
    %856 = vector.load %arg15[%c1_367, %c0_368, %c0_369] : memref<2x1x8xf32, #tpu.memory_space<vmem>>, vector<1x1x8xf32>
    %857 = vector.shape_cast %856 : vector<1x1x8xf32> to vector<1x8xf32>
    %c1_370 = arith.constant 1 : index
    %c0_371 = arith.constant 0 : index
    %c0_372 = arith.constant 0 : index
    %858 = vector.load %arg16[%c1_370, %c0_371, %c0_372] : memref<2x1x8xf32, #tpu.memory_space<vmem>>, vector<1x1x8xf32>
    %859 = vector.shape_cast %858 : vector<1x1x8xf32> to vector<1x8xf32>
    %cst_373 = arith.constant dense<0.000000e+00> : vector<9xf32>
    %860 = vector.multi_reduction <add>, %855, %cst_373 [1] : vector<9x8xf32> to vector<9xf32>
    %861 = vector.shape_cast %860 : vector<9xf32> to vector<9x1xf32>
    %cst_374 = arith.constant 8.000000e+00 : f32
    %862 = vector.broadcast %cst_374 : f32 to vector<9x1xf32>
    %863 = arith.divf %861, %862 : vector<9x1xf32>
    %864 = vector.broadcast %863 : vector<9x1xf32> to vector<9x8xf32>
    %865 = arith.subf %855, %864 : vector<9x8xf32>
    %866 = arith.mulf %865, %865 : vector<9x8xf32>
    %cst_375 = arith.constant dense<0.000000e+00> : vector<9xf32>
    %867 = vector.multi_reduction <add>, %866, %cst_375 [1] : vector<9x8xf32> to vector<9xf32>
    %868 = vector.shape_cast %867 : vector<9xf32> to vector<9x1xf32>
    %cst_376 = arith.constant 8.000000e+00 : f32
    %869 = vector.broadcast %cst_376 : f32 to vector<9x1xf32>
    %870 = arith.divf %868, %869 : vector<9x1xf32>
    %871 = vector.broadcast %863 : vector<9x1xf32> to vector<9x8xf32>
    %872 = arith.subf %855, %871 : vector<9x8xf32>
    %cst_377 = arith.constant 9.99999974E-6 : f32
    %873 = vector.broadcast %cst_377 : f32 to vector<9x1xf32>
    %874 = arith.addf %870, %873 : vector<9x1xf32>
    %875 = math.rsqrt %874 : vector<9x1xf32>
    %876 = vector.broadcast %875 : vector<9x1xf32> to vector<9x8xf32>
    %877 = arith.mulf %872, %876 : vector<9x8xf32>
    %878 = vector.broadcast %857 : vector<1x8xf32> to vector<9x8xf32>
    %879 = arith.mulf %877, %878 : vector<9x8xf32>
    %880 = vector.broadcast %859 : vector<1x8xf32> to vector<9x8xf32>
    %881 = arith.addf %879, %880 : vector<9x8xf32>
    %c1_378 = arith.constant 1 : index
    %c0_379 = arith.constant 0 : index
    %c0_380 = arith.constant 0 : index
    %882 = vector.load %arg17[%c1_378, %c0_379, %c0_380] : memref<2x8x24xf32, #tpu.memory_space<vmem>>, vector<1x8x24xf32>
    %883 = vector.shape_cast %882 : vector<1x8x24xf32> to vector<8x24xf32>
    %cst_381 = arith.constant dense<0.000000e+00> : vector<9x24xf32>
    %884 = tpu.matmul %881, %883, %cst_381 {dimension_numbers = #tpu.dot_dimension_numbers<[1], [0], [0], [1], [0, 0, 1, 1], [], []>} : vector<9x8xf32>, vector<8x24xf32>, vector<9x24xf32> -> vector<9x24xf32>
    %885 = vector.extract_strided_slice %884 {offsets = [0, 0], sizes = [9, 4], strides = [1, 1]} : vector<9x24xf32> to vector<9x4xf32>
    %886 = vector.extract_strided_slice %884 {offsets = [0, 8], sizes = [9, 4], strides = [1, 1]} : vector<9x24xf32> to vector<9x4xf32>
    %887 = vector.extract_strided_slice %884 {offsets = [0, 16], sizes = [9, 4], strides = [1, 1]} : vector<9x24xf32> to vector<9x4xf32>
    %cst_382 = arith.constant dense<0.000000e+00> : vector<9x9xf32>
    %888 = tpu.matmul %885, %886, %cst_382 {dimension_numbers = #tpu.dot_dimension_numbers<[1], [1], [0], [0], [0, 0, 1, 0], [], []>} : vector<9x4xf32>, vector<9x4xf32>, vector<9x9xf32> -> vector<9x9xf32>
    %cst_383 = arith.constant 5.000000e-01 : f32
    %889 = vector.broadcast %cst_383 : f32 to vector<9x9xf32>
    %890 = arith.mulf %888, %889 : vector<9x9xf32>
    %cst_384 = arith.constant dense<0xFF800000> : vector<9xf32>
    %891 = vector.multi_reduction <maximumf>, %890, %cst_384 [1] : vector<9x9xf32> to vector<9xf32>
    %892 = vector.shape_cast %891 : vector<9xf32> to vector<9x1xf32>
    %893 = vector.broadcast %892 : vector<9x1xf32> to vector<9x9xf32>
    %894 = arith.subf %890, %893 : vector<9x9xf32>
    %895 = math.exp %894 : vector<9x9xf32>
    %cst_385 = arith.constant dense<0.000000e+00> : vector<9xf32>
    %896 = vector.multi_reduction <add>, %895, %cst_385 [1] : vector<9x9xf32> to vector<9xf32>
    %897 = vector.shape_cast %896 : vector<9xf32> to vector<9x1xf32>
    %898 = tpu.reciprocal %897 {approx = true} : vector<9x1xf32> -> vector<9x1xf32>
    %899 = vector.broadcast %898 : vector<9x1xf32> to vector<9x9xf32>
    %900 = arith.mulf %895, %899 : vector<9x9xf32>
    %cst_386 = arith.constant dense<0.000000e+00> : vector<9x4xf32>
    %901 = tpu.matmul %900, %887, %cst_386 {dimension_numbers = #tpu.dot_dimension_numbers<[1], [0], [0], [1], [0, 0, 1, 1], [], []>} : vector<9x9xf32>, vector<9x4xf32>, vector<9x4xf32> -> vector<9x4xf32>
    %902 = vector.extract_strided_slice %884 {offsets = [0, 4], sizes = [9, 4], strides = [1, 1]} : vector<9x24xf32> to vector<9x4xf32>
    %903 = vector.extract_strided_slice %884 {offsets = [0, 12], sizes = [9, 4], strides = [1, 1]} : vector<9x24xf32> to vector<9x4xf32>
    %904 = vector.extract_strided_slice %884 {offsets = [0, 20], sizes = [9, 4], strides = [1, 1]} : vector<9x24xf32> to vector<9x4xf32>
    %cst_387 = arith.constant dense<0.000000e+00> : vector<9x9xf32>
    %905 = tpu.matmul %902, %903, %cst_387 {dimension_numbers = #tpu.dot_dimension_numbers<[1], [1], [0], [0], [0, 0, 1, 0], [], []>} : vector<9x4xf32>, vector<9x4xf32>, vector<9x9xf32> -> vector<9x9xf32>
    %cst_388 = arith.constant 5.000000e-01 : f32
    %906 = vector.broadcast %cst_388 : f32 to vector<9x9xf32>
    %907 = arith.mulf %905, %906 : vector<9x9xf32>
    %cst_389 = arith.constant dense<0xFF800000> : vector<9xf32>
    %908 = vector.multi_reduction <maximumf>, %907, %cst_389 [1] : vector<9x9xf32> to vector<9xf32>
    %909 = vector.shape_cast %908 : vector<9xf32> to vector<9x1xf32>
    %910 = vector.broadcast %909 : vector<9x1xf32> to vector<9x9xf32>
    %911 = arith.subf %907, %910 : vector<9x9xf32>
    %912 = math.exp %911 : vector<9x9xf32>
    %cst_390 = arith.constant dense<0.000000e+00> : vector<9xf32>
    %913 = vector.multi_reduction <add>, %912, %cst_390 [1] : vector<9x9xf32> to vector<9xf32>
    %914 = vector.shape_cast %913 : vector<9xf32> to vector<9x1xf32>
    %915 = tpu.reciprocal %914 {approx = true} : vector<9x1xf32> -> vector<9x1xf32>
    %916 = vector.broadcast %915 : vector<9x1xf32> to vector<9x9xf32>
    %917 = arith.mulf %912, %916 : vector<9x9xf32>
    %cst_391 = arith.constant dense<0.000000e+00> : vector<9x4xf32>
    %918 = tpu.matmul %917, %904, %cst_391 {dimension_numbers = #tpu.dot_dimension_numbers<[1], [0], [0], [1], [0, 0, 1, 1], [], []>} : vector<9x9xf32>, vector<9x4xf32>, vector<9x4xf32> -> vector<9x4xf32>
    %919 = tpu.concatenate %901, %918 in 1 : vector<9x4xf32>, vector<9x4xf32> -> vector<9x8xf32>
    %c1_392 = arith.constant 1 : index
    %c0_393 = arith.constant 0 : index
    %c0_394 = arith.constant 0 : index
    %920 = vector.load %arg18[%c1_392, %c0_393, %c0_394] : memref<2x8x8xf32, #tpu.memory_space<vmem>>, vector<1x8x8xf32>
    %921 = vector.shape_cast %920 : vector<1x8x8xf32> to vector<8x8xf32>
    %cst_395 = arith.constant dense<0.000000e+00> : vector<9x8xf32>
    %922 = tpu.matmul %919, %921, %cst_395 {dimension_numbers = #tpu.dot_dimension_numbers<[1], [0], [0], [1], [0, 0, 1, 1], [], []>} : vector<9x8xf32>, vector<8x8xf32>, vector<9x8xf32> -> vector<9x8xf32>
    %c1_396 = arith.constant 1 : index
    %c0_397 = arith.constant 0 : index
    %c0_398 = arith.constant 0 : index
    %923 = vector.load %arg19[%c1_396, %c0_397, %c0_398] : memref<2x1x8xf32, #tpu.memory_space<vmem>>, vector<1x1x8xf32>
    %924 = vector.shape_cast %923 : vector<1x1x8xf32> to vector<1x8xf32>
    %925 = vector.broadcast %924 : vector<1x8xf32> to vector<9x8xf32>
    %926 = arith.addf %922, %925 : vector<9x8xf32>
    %927 = arith.addf %855, %926 : vector<9x8xf32>
    %c1_399 = arith.constant 1 : index
    %c0_400 = arith.constant 0 : index
    %c0_401 = arith.constant 0 : index
    %928 = vector.load %arg20[%c1_399, %c0_400, %c0_401] : memref<2x1x8xf32, #tpu.memory_space<vmem>>, vector<1x1x8xf32>
    %929 = vector.shape_cast %928 : vector<1x1x8xf32> to vector<1x8xf32>
    %c1_402 = arith.constant 1 : index
    %c0_403 = arith.constant 0 : index
    %c0_404 = arith.constant 0 : index
    %930 = vector.load %arg21[%c1_402, %c0_403, %c0_404] : memref<2x1x8xf32, #tpu.memory_space<vmem>>, vector<1x1x8xf32>
    %931 = vector.shape_cast %930 : vector<1x1x8xf32> to vector<1x8xf32>
    %cst_405 = arith.constant dense<0.000000e+00> : vector<9xf32>
    %932 = vector.multi_reduction <add>, %927, %cst_405 [1] : vector<9x8xf32> to vector<9xf32>
    %933 = vector.shape_cast %932 : vector<9xf32> to vector<9x1xf32>
    %cst_406 = arith.constant 8.000000e+00 : f32
    %934 = vector.broadcast %cst_406 : f32 to vector<9x1xf32>
    %935 = arith.divf %933, %934 : vector<9x1xf32>
    %936 = vector.broadcast %935 : vector<9x1xf32> to vector<9x8xf32>
    %937 = arith.subf %927, %936 : vector<9x8xf32>
    %938 = arith.mulf %937, %937 : vector<9x8xf32>
    %cst_407 = arith.constant dense<0.000000e+00> : vector<9xf32>
    %939 = vector.multi_reduction <add>, %938, %cst_407 [1] : vector<9x8xf32> to vector<9xf32>
    %940 = vector.shape_cast %939 : vector<9xf32> to vector<9x1xf32>
    %cst_408 = arith.constant 8.000000e+00 : f32
    %941 = vector.broadcast %cst_408 : f32 to vector<9x1xf32>
    %942 = arith.divf %940, %941 : vector<9x1xf32>
    %943 = vector.broadcast %935 : vector<9x1xf32> to vector<9x8xf32>
    %944 = arith.subf %927, %943 : vector<9x8xf32>
    %cst_409 = arith.constant 9.99999974E-6 : f32
    %945 = vector.broadcast %cst_409 : f32 to vector<9x1xf32>
    %946 = arith.addf %942, %945 : vector<9x1xf32>
    %947 = math.rsqrt %946 : vector<9x1xf32>
    %948 = vector.broadcast %947 : vector<9x1xf32> to vector<9x8xf32>
    %949 = arith.mulf %944, %948 : vector<9x8xf32>
    %950 = vector.broadcast %929 : vector<1x8xf32> to vector<9x8xf32>
    %951 = arith.mulf %949, %950 : vector<9x8xf32>
    %952 = vector.broadcast %931 : vector<1x8xf32> to vector<9x8xf32>
    %953 = arith.addf %951, %952 : vector<9x8xf32>
    %c1_410 = arith.constant 1 : index
    %c0_411 = arith.constant 0 : index
    %c0_412 = arith.constant 0 : index
    %954 = vector.load %arg22[%c1_410, %c0_411, %c0_412] : memref<2x8x16xf32, #tpu.memory_space<vmem>>, vector<1x8x16xf32>
    %955 = vector.shape_cast %954 : vector<1x8x16xf32> to vector<8x16xf32>
    %cst_413 = arith.constant dense<0.000000e+00> : vector<9x16xf32>
    %956 = tpu.matmul %953, %955, %cst_413 {dimension_numbers = #tpu.dot_dimension_numbers<[1], [0], [0], [1], [0, 0, 1, 1], [], []>} : vector<9x8xf32>, vector<8x16xf32>, vector<9x16xf32> -> vector<9x16xf32>
    %c1_414 = arith.constant 1 : index
    %c0_415 = arith.constant 0 : index
    %c0_416 = arith.constant 0 : index
    %957 = vector.load %arg23[%c1_414, %c0_415, %c0_416] : memref<2x1x16xf32, #tpu.memory_space<vmem>>, vector<1x1x16xf32>
    %958 = vector.shape_cast %957 : vector<1x1x16xf32> to vector<1x16xf32>
    %959 = vector.broadcast %958 : vector<1x16xf32> to vector<9x16xf32>
    %960 = arith.addf %956, %959 : vector<9x16xf32>
    %cst_417 = arith.constant 5.000000e-01 : f32
    %961 = vector.broadcast %cst_417 : f32 to vector<9x16xf32>
    %962 = arith.mulf %961, %960 : vector<9x16xf32>
    %cst_418 = arith.constant 0.707106769 : f32
    %963 = vector.broadcast %cst_418 : f32 to vector<9x16xf32>
    %964 = arith.mulf %960, %963 : vector<9x16xf32>
    %965 = math.erf %964 : vector<9x16xf32>
    %cst_419 = arith.constant 1.000000e+00 : f32
    %966 = vector.broadcast %cst_419 : f32 to vector<9x16xf32>
    %967 = arith.addf %966, %965 : vector<9x16xf32>
    %968 = arith.mulf %962, %967 : vector<9x16xf32>
    %c1_420 = arith.constant 1 : index
    %c0_421 = arith.constant 0 : index
    %c0_422 = arith.constant 0 : index
    %969 = vector.load %arg24[%c1_420, %c0_421, %c0_422] : memref<2x16x8xf32, #tpu.memory_space<vmem>>, vector<1x16x8xf32>
    %970 = vector.shape_cast %969 : vector<1x16x8xf32> to vector<16x8xf32>
    %cst_423 = arith.constant dense<0.000000e+00> : vector<9x8xf32>
    %971 = tpu.matmul %968, %970, %cst_423 {dimension_numbers = #tpu.dot_dimension_numbers<[1], [0], [0], [1], [0, 0, 1, 1], [], []>} : vector<9x16xf32>, vector<16x8xf32>, vector<9x8xf32> -> vector<9x8xf32>
    %c1_424 = arith.constant 1 : index
    %c0_425 = arith.constant 0 : index
    %c0_426 = arith.constant 0 : index
    %972 = vector.load %arg25[%c1_424, %c0_425, %c0_426] : memref<2x1x8xf32, #tpu.memory_space<vmem>>, vector<1x1x8xf32>
    %973 = vector.shape_cast %972 : vector<1x1x8xf32> to vector<1x8xf32>
    %974 = vector.broadcast %973 : vector<1x8xf32> to vector<9x8xf32>
    %975 = arith.addf %971, %974 : vector<9x8xf32>
    %976 = arith.addf %927, %975 : vector<9x8xf32>
    %977 = vector.extract_strided_slice %976 {offsets = [0, 0], sizes = [1, 8], strides = [1, 1]} : vector<9x8xf32> to vector<1x8xf32>
    %c1_427 = arith.constant 1 : index
    %c0_428 = arith.constant 0 : index
    %c0_429 = arith.constant 0 : index
    %978 = vector.load %arg31[%c1_427, %c0_428, %c0_429] : memref<2x1x8xf32, #tpu.memory_space<vmem>>, vector<1x1x8xf32>
    %979 = vector.shape_cast %978 : vector<1x1x8xf32> to vector<1x8xf32>
    %980 = vector.shape_cast %977 : vector<1x8xf32> to vector<1x1x8xf32>
    tpu.vector_store %arg31[%c1_427, %c0_428, %c0_429], %980 {strides = array<i32>} : memref<2x1x8xf32, #tpu.memory_space<vmem>>, vector<1x1x8xf32>,
    %c0_430 = arith.constant 0 : index
    %c0_431 = arith.constant 0 : index
    %981 = vector.load %arg26[%c0_430, %c0_431] : memref<1x8xf32, #tpu.memory_space<vmem>>, vector<1x8xf32>
    %c0_432 = arith.constant 0 : index
    %c0_433 = arith.constant 0 : index
    %982 = vector.load %arg27[%c0_432, %c0_433] : memref<1x8xf32, #tpu.memory_space<vmem>>, vector<1x8xf32>
    %cst_434 = arith.constant dense<0.000000e+00> : vector<1xf32>
    %983 = vector.multi_reduction <add>, %977, %cst_434 [1] : vector<1x8xf32> to vector<1xf32>
    %984 = vector.shape_cast %983 : vector<1xf32> to vector<1x1xf32>
    %cst_435 = arith.constant 8.000000e+00 : f32
    %985 = vector.broadcast %cst_435 : f32 to vector<1x1xf32>
    %986 = arith.divf %984, %985 : vector<1x1xf32>
    %987 = vector.broadcast %986 : vector<1x1xf32> to vector<1x8xf32>
    %988 = arith.subf %977, %987 : vector<1x8xf32>
    %989 = arith.mulf %988, %988 : vector<1x8xf32>
    %cst_436 = arith.constant dense<0.000000e+00> : vector<1xf32>
    %990 = vector.multi_reduction <add>, %989, %cst_436 [1] : vector<1x8xf32> to vector<1xf32>
    %991 = vector.shape_cast %990 : vector<1xf32> to vector<1x1xf32>
    %cst_437 = arith.constant 8.000000e+00 : f32
    %992 = vector.broadcast %cst_437 : f32 to vector<1x1xf32>
    %993 = arith.divf %991, %992 : vector<1x1xf32>
    %994 = vector.broadcast %986 : vector<1x1xf32> to vector<1x8xf32>
    %995 = arith.subf %977, %994 : vector<1x8xf32>
    %cst_438 = arith.constant 9.99999974E-6 : f32
    %996 = vector.broadcast %cst_438 : f32 to vector<1x1xf32>
    %997 = arith.addf %993, %996 : vector<1x1xf32>
    %998 = math.rsqrt %997 : vector<1x1xf32>
    %999 = vector.broadcast %998 : vector<1x1xf32> to vector<1x8xf32>
    %1000 = arith.mulf %995, %999 : vector<1x8xf32>
    %1001 = arith.mulf %1000, %981 : vector<1x8xf32>
    %1002 = arith.addf %1001, %982 : vector<1x8xf32>
    %c0_439 = arith.constant 0 : index
    %c0_440 = arith.constant 0 : index
    %1003 = vector.load %arg28[%c0_439, %c0_440] : memref<8x3xf32, #tpu.memory_space<vmem>>, vector<8x3xf32>
    %cst_441 = arith.constant dense<0.000000e+00> : vector<1x3xf32>
    %1004 = tpu.matmul %1002, %1003, %cst_441 {dimension_numbers = #tpu.dot_dimension_numbers<[1], [0], [0], [1], [0, 0, 1, 1], [], []>} : vector<1x8xf32>, vector<8x3xf32>, vector<1x3xf32> -> vector<1x3xf32>
    %c0_442 = arith.constant 0 : index
    %c0_443 = arith.constant 0 : index
    %1005 = vector.load %arg29[%c0_442, %c0_443] : memref<1x3xf32, #tpu.memory_space<vmem>>, vector<1x3xf32>
    %1006 = arith.addf %1004, %1005 : vector<1x3xf32>
    %c1_444 = arith.constant 1 : index
    %c0_445 = arith.constant 0 : index
    %c0_446 = arith.constant 0 : index
    %1007 = vector.load %arg30[%c1_444, %c0_445, %c0_446] : memref<2x1x3xf32, #tpu.memory_space<vmem>>, vector<1x1x3xf32>
    %1008 = vector.shape_cast %1007 : vector<1x1x3xf32> to vector<1x3xf32>
    %1009 = vector.shape_cast %1006 : vector<1x3xf32> to vector<1x1x3xf32>
    tpu.vector_store %arg30[%c1_444, %c0_445, %c0_446], %1009 {strides = array<i32>} : memref<2x1x3xf32, #tpu.memory_space<vmem>>, vector<1x1x3xf32>,
    return
  }
}

</mosaic_0001>

<llo_original>
// kernel: vit_forward.1
$region0: #{vit_forward.1}
  #allocation0 [shape = 'u32[]', space=smem, size = 0x4, offset = 0x4, fixed_abs, tag = 'smem constant byte address 0x4 - core index']
  #allocation1 [shape = 'u32[144,128]{1,0:T(1,128)}', space=vmem, size = 0x12000, scoped, tag = 'internal scratch']
  %s0 = inlined_call_operand.smem [shape: u32[33], index: -1, kind: input, shape index: {}]
  %s1 = sld [smem:[%s0]]
  %s2 = scalar_lea.smem %s0, 1
  %s3 = sld [smem:[%s2]]
  %s4 = scalar_lea.smem %s0, 2
  %s5 = sld [smem:[%s4]]
  %s6 = scalar_lea.smem %s0, 3
  %s7 = sld [smem:[%s6]]
  %s8 = scalar_lea.smem %s0, 4
  %s9 = sld [smem:[%s8]]
  %s10 = scalar_lea.smem %s0, 5
  %s11 = sld [smem:[%s10]]
  %s12 = scalar_lea.smem %s0, 6
  %s13 = sld [smem:[%s12]]
  %s14 = scalar_lea.smem %s0, 7
  %s15 = sld [smem:[%s14]]
  %s16 = scalar_lea.smem %s0, 8
  %s17 = sld [smem:[%s16]]
  %s18 = scalar_lea.smem %s0, 9
  %s19 = sld [smem:[%s18]]
  %s20 = scalar_lea.smem %s0, 10
  %s21 = sld [smem:[%s20]]
  %s22 = scalar_lea.smem %s0, 11
  %s23 = sld [smem:[%s22]]
  %s24 = scalar_lea.smem %s0, 12
  %s25 = sld [smem:[%s24]]
  %s26 = scalar_lea.smem %s0, 13
  %s27 = sld [smem:[%s26]]
  %s28 = scalar_lea.smem %s0, 14
  %s29 = sld [smem:[%s28]]
  %s30 = scalar_lea.smem %s0, 15
  %s31 = sld [smem:[%s30]]
  %s32 = scalar_lea.smem %s0, 16
  %s33 = sld [smem:[%s32]]
  %s34 = scalar_lea.smem %s0, 17
  %s35 = sld [smem:[%s34]]
  %s36 = scalar_lea.smem %s0, 18
  %s37 = sld [smem:[%s36]]
  %s38 = scalar_lea.smem %s0, 19
  %s39 = sld [smem:[%s38]]
  %s40 = scalar_lea.smem %s0, 20
  %s41 = sld [smem:[%s40]]
  %s42 = scalar_lea.smem %s0, 21
  %s43 = sld [smem:[%s42]]
  %s44 = scalar_lea.smem %s0, 22
  %s45 = sld [smem:[%s44]]
  %s46 = scalar_lea.smem %s0, 23
  %s47 = sld [smem:[%s46]]
  %s48 = scalar_lea.smem %s0, 24
  %s49 = sld [smem:[%s48]]
  %s50 = scalar_lea.smem %s0, 25
  %s51 = sld [smem:[%s50]]
  %s52 = scalar_lea.smem %s0, 26
  %s53 = sld [smem:[%s52]]
  %s54 = scalar_lea.smem %s0, 27
  %s55 = sld [smem:[%s54]]
  %s56 = scalar_lea.smem %s0, 28
  %s57 = sld [smem:[%s56]]
  %s58 = scalar_lea.smem %s0, 29
  %s59 = sld [smem:[%s58]]
  %s60 = scalar_lea.smem %s0, 30
  %s61 = sld [smem:[%s60]]
  %s62 = scalar_lea.smem %s0, 31
  %s63 = sld [smem:[%s62]]
  %s64 = scalar_lea.smem %s0, 32
  %s65 = sld [smem:[%s64]]
  %66 = xla_tuple %s61, %s63, %s65
  %s67 = sld [smem:[#allocation0]]
  $region146: #{vit_forward.1} parent=0
    _
  %s69 = ssub.s32 1, %s67
  %s70 = scalar_select 0, %s69, %s67
  $region1: #{vit_forward.1} parent=0
    #allocation2 [shape = 'u8[1024]{0}', space=vmem, size = 0x400, scoped, tag = 'output window, operand 0, single buffered']
    #allocation3 [shape = 's32[1]{0}', space=sflag, size = 0x4, scoped, tag = 'scoped memory for vit_forward.1']
    #allocation4 [shape = 'u8[1024]{0}', space=vmem, size = 0x400, scoped, tag = 'output window, operand 1, single buffered']
    #allocation5 [shape = 's32[1]{0}', space=sflag, size = 0x4, scoped, tag = 'scoped memory for vit_forward.1']
    #allocation6 [shape = 'u8[8192]{0}', space=vmem, size = 0x2000, scoped, tag = 'output window, operand 2, single buffered']
    %71 = vsyncpa [#allocation3], 0
    %72 = vsyncpa [#allocation5], 0
    // Predicated region
    $region2: #{vit_forward.1} parent=1 // pred_check
      _
    $region3: #{vit_forward.1} parent=1 // pred_check_branch
      %74 = sbr.rel (0) target = $region5
    $region4: #{vit_forward.1} parent=1 // pred_region
      _
    $region5: #{vit_forward.1} parent=1 // pred_fallthru
      _
    // Predicated region
    $region6: #{vit_forward.1} parent=1 // pred_check
      _
    $region7: #{vit_forward.1} parent=1 // pred_check_branch
      %76 = sbr.rel (0) target = $region9
    $region8: #{vit_forward.1} parent=1 // pred_region
      _
    $region9: #{vit_forward.1} parent=1 // pred_fallthru
      _
    // Predicated region
    $region10: #{vit_forward.1} parent=1 // pred_check
      _
    $region11: #{vit_forward.1} parent=1 // pred_check_branch
      %78 = sbr.rel (0) target = $region13
    $region12: #{vit_forward.1} parent=1 // pred_region
      _
    $region13: #{vit_forward.1} parent=1 // pred_fallthru
      _
    // Predicated region
    $region14: #{vit_forward.1} parent=1 // pred_check
      _
    $region15: #{vit_forward.1} parent=1 // pred_check_branch
      %80 = sbr.rel (0) target = $region17
    $region16: #{vit_forward.1} parent=1 // pred_region
      _
    $region17: #{vit_forward.1} parent=1 // pred_fallthru
      _
    // Predicated region
    $region18: #{vit_forward.1} parent=1 // pred_check
      _
    $region19: #{vit_forward.1} parent=1 // pred_check_branch
      %82 = sbr.rel (0) target = $region21
    $region20: #{vit_forward.1} parent=1 // pred_region
      _
    $region21: #{vit_forward.1} parent=1 // pred_fallthru
      _
    // Predicated region
    $region22: #{vit_forward.1} parent=1 // pred_check
      _
    $region23: #{vit_forward.1} parent=1 // pred_check_branch
      %84 = sbr.rel (0) target = $region25
    $region24: #{vit_forward.1} parent=1 // pred_region
      _
    $region25: #{vit_forward.1} parent=1 // pred_fallthru
      _
    // Predicated region
    $region26: #{vit_forward.1} parent=1 // pred_check
      _
    $region27: #{vit_forward.1} parent=1 // pred_check_branch
      %86 = sbr.rel (0) target = $region29
    $region28: #{vit_forward.1} parent=1 // pred_region
      _
    $region29: #{vit_forward.1} parent=1 // pred_fallthru
      _
    // Predicated region
    $region30: #{vit_forward.1} parent=1 // pred_check
      _
    $region31: #{vit_forward.1} parent=1 // pred_check_branch
      %88 = sbr.rel (0) target = $region33
    $region32: #{vit_forward.1} parent=1 // pred_region
      _
    $region33: #{vit_forward.1} parent=1 // pred_fallthru
      _
    // Predicated region
    $region34: #{vit_forward.1} parent=1 // pred_check
      _
    $region35: #{vit_forward.1} parent=1 // pred_check_branch
      %90 = sbr.rel (0) target = $region37
    $region36: #{vit_forward.1} parent=1 // pred_region
      _
    $region37: #{vit_forward.1} parent=1 // pred_fallthru
      _
    // Predicated region
    $region38: #{vit_forward.1} parent=1 // pred_check
      _
    $region39: #{vit_forward.1} parent=1 // pred_check_branch
      %92 = sbr.rel (0) target = $region41
    $region40: #{vit_forward.1} parent=1 // pred_region
      _
    $region41: #{vit_forward.1} parent=1 // pred_fallthru
      _
    // Predicated region
    $region42: #{vit_forward.1} parent=1 // pred_check
      _
    $region43: #{vit_forward.1} parent=1 // pred_check_branch
      %94 = sbr.rel (0) target = $region45
    $region44: #{vit_forward.1} parent=1 // pred_region
      _
    $region45: #{vit_forward.1} parent=1 // pred_fallthru
      _
    // Predicated region
    $region46: #{vit_forward.1} parent=1 // pred_check
      _
    $region47: #{vit_forward.1} parent=1 // pred_check_branch
      %96 = sbr.rel (0) target = $region49
    $region48: #{vit_forward.1} parent=1 // pred_region
      _
    $region49: #{vit_forward.1} parent=1 // pred_fallthru
      _
    // Predicated region
    $region50: #{vit_forward.1} parent=1 // pred_check
      _
    $region51: #{vit_forward.1} parent=1 // pred_check_branch
      %98 = sbr.rel (0) target = $region53
    $region52: #{vit_forward.1} parent=1 // pred_region
      _
    $region53: #{vit_forward.1} parent=1 // pred_fallthru
      _
    // Predicated region
    $region54: #{vit_forward.1} parent=1 // pred_check
      _
    $region55: #{vit_forward.1} parent=1 // pred_check_branch
      %100 = sbr.rel (0) target = $region57
    $region56: #{vit_forward.1} parent=1 // pred_region
      _
    $region57: #{vit_forward.1} parent=1 // pred_fallthru
      _
    // Predicated region
    $region58: #{vit_forward.1} parent=1 // pred_check
      _
    $region59: #{vit_forward.1} parent=1 // pred_check_branch
      %102 = sbr.rel (0) target = $region61
    $region60: #{vit_forward.1} parent=1 // pred_region
      _
    $region61: #{vit_forward.1} parent=1 // pred_fallthru
      _
    // Predicated region
    $region62: #{vit_forward.1} parent=1 // pred_check
      _
    $region63: #{vit_forward.1} parent=1 // pred_check_branch
      %104 = sbr.rel (0) target = $region65
    $region64: #{vit_forward.1} parent=1 // pred_region
      _
    $region65: #{vit_forward.1} parent=1 // pred_fallthru
      _
    // Predicated region
    $region66: #{vit_forward.1} parent=1 // pred_check
      _
    $region67: #{vit_forward.1} parent=1 // pred_check_branch
      %106 = sbr.rel (0) target = $region69
    $region68: #{vit_forward.1} parent=1 // pred_region
      _
    $region69: #{vit_forward.1} parent=1 // pred_fallthru
      _
    // Predicated region
    $region70: #{vit_forward.1} parent=1 // pred_check
      _
    $region71: #{vit_forward.1} parent=1 // pred_check_branch
      %108 = sbr.rel (0) target = $region73
    $region72: #{vit_forward.1} parent=1 // pred_region
      _
    $region73: #{vit_forward.1} parent=1 // pred_fallthru
      _
    // Predicated region
    $region74: #{vit_forward.1} parent=1 // pred_check
      _
    $region75: #{vit_forward.1} parent=1 // pred_check_branch
      %110 = sbr.rel (0) target = $region77
    $region76: #{vit_forward.1} parent=1 // pred_region
      _
    $region77: #{vit_forward.1} parent=1 // pred_fallthru
      _
    // Predicated region
    $region78: #{vit_forward.1} parent=1 // pred_check
      _
    $region79: #{vit_forward.1} parent=1 // pred_check_branch
      %112 = sbr.rel (0) target = $region81
    $region80: #{vit_forward.1} parent=1 // pred_region
      _
    $region81: #{vit_forward.1} parent=1 // pred_fallthru
      _
    // Predicated region
    $region82: #{vit_forward.1} parent=1 // pred_check
      _
    $region83: #{vit_forward.1} parent=1 // pred_check_branch
      %114 = sbr.rel (0) target = $region85
    $region84: #{vit_forward.1} parent=1 // pred_region
      _
    $region85: #{vit_forward.1} parent=1 // pred_fallthru
      _
    // Predicated region
    $region86: #{vit_forward.1} parent=1 // pred_check
      _
    $region87: #{vit_forward.1} parent=1 // pred_check_branch
      %116 = sbr.rel (0) target = $region89
    $region88: #{vit_forward.1} parent=1 // pred_region
      _
    $region89: #{vit_forward.1} parent=1 // pred_fallthru
      _
    // Predicated region
    $region90: #{vit_forward.1} parent=1 // pred_check
      _
    $region91: #{vit_forward.1} parent=1 // pred_check_branch
      %118 = sbr.rel (0) target = $region93
    $region92: #{vit_forward.1} parent=1 // pred_region
      _
    $region93: #{vit_forward.1} parent=1 // pred_fallthru
      _
    // Predicated region
    $region94: #{vit_forward.1} parent=1 // pred_check
      _
    $region95: #{vit_forward.1} parent=1 // pred_check_branch
      %120 = sbr.rel (0) target = $region97
    $region96: #{vit_forward.1} parent=1 // pred_region
      _
    $region97: #{vit_forward.1} parent=1 // pred_fallthru
      _
    // Predicated region
    $region98: #{vit_forward.1} parent=1 // pred_check
      _
    $region99: #{vit_forward.1} parent=1 // pred_check_branch
      %122 = sbr.rel (0) target = $region101
    $region100: #{vit_forward.1} parent=1 // pred_region
      _
    $region101: #{vit_forward.1} parent=1 // pred_fallthru
      _
    // Predicated region
    $region102: #{vit_forward.1} parent=1 // pred_check
      _
    $region103: #{vit_forward.1} parent=1 // pred_check_branch
      %124 = sbr.rel (0) target = $region105
    $region104: #{vit_forward.1} parent=1 // pred_region
      _
    $region105: #{vit_forward.1} parent=1 // pred_fallthru
      _
    // Predicated region
    $region106: #{vit_forward.1} parent=1 // pred_check
      _
    $region107: #{vit_forward.1} parent=1 // pred_check_branch
      %126 = sbr.rel (0) target = $region109
    $region108: #{vit_forward.1} parent=1 // pred_region
      _
    $region109: #{vit_forward.1} parent=1 // pred_fallthru
      _
    // Predicated region
    $region110: #{vit_forward.1} parent=1 // pred_check
      _
    $region111: #{vit_forward.1} parent=1 // pred_check_branch
      %128 = sbr.rel (0) target = $region113
    $region112: #{vit_forward.1} parent=1 // pred_region
      _
    $region113: #{vit_forward.1} parent=1 // pred_fallthru
      _
    // Predicated region
    $region114: #{vit_forward.1} parent=1 // pred_check
      _
    $region115: #{vit_forward.1} parent=1 // pred_check_branch
      %130 = sbr.rel (0) target = $region117
    $region116: #{vit_forward.1} parent=1 // pred_region
      _
    $region117: #{vit_forward.1} parent=1 // pred_fallthru
      _
    // Predicated region
    $region118: #{vit_forward.1} parent=1 // pred_check
      _
    $region119: #{vit_forward.1} parent=1 // pred_check_branch
      %132 = sbr.rel (0) target = $region121
    $region120: #{vit_forward.1} parent=1 // pred_region
      _
    $region121: #{vit_forward.1} parent=1 // pred_fallthru
      _
    %v133 = vlaneseq
    %v134 = vshrl.u32 %v133, 7
    %v135 = vlaneseq
    %v136 = vand.u32 %v135, 127
    %vm137 = vcmp.eq.s32.totalorder %v134, %v136
    %v138 = vsel %vm137, 1.0, 0.0
    %v139 = vld [vmem:[%s1] sm:$0xff]
    %v140 = vld [vmem:[%s3] sm:$0xff]
    %v141 = vld [vmem:[%s5] sm:$0x1]
    %v143 = vlaneseq
    %v144 = vshrl.u32 %v143, 7
    %v145 = vsub.s32 0, %v144
    %v146 = vrot.slane %v141, %v145
    %vm148 = vcmask 203776
    %v150 = vsel %vm148, %v139, 0
    %v153 = vsel %vm148, %v140, 0
    %155 = vmatprep.subr.mxu0 0.0
    %156 = vmatpush1.xpose.msra.mxu0 %v153
    %157 = vmatprep.subr.mxu0 0.0
    %158 = vmatpush1.xpose.msra.mxu0 0.0
    %159 = vmatprep.subr.mxu0 0.0
    %160 = vmatpush1.xpose.msra.mxu0 0.0
    %161 = vmatprep.subr.mxu0 0.0
    %162 = vmatpush1.xpose.msra.mxu0 0.0
    %163 = vmatprep.subr.mxu0 0.0
    %164 = vmatpush1.xpose.msra.mxu0 0.0
    %165 = vmatprep.subr.mxu0 0.0
    %166 = vmatpush1.xpose.msra.mxu0 0.0
    %167 = vmatprep.subr.mxu0 0.0
    %168 = vmatpush1.xpose.msra.mxu0 0.0
    %169 = vmatprep.subr.mxu0 0.0
    %170 = vmatpush1.xpose.msra.mxu0 0.0
    %171 = vmatprep.subr.mxu0 0.0
    %172 = vmatpush1.xpose.msra.mxu0 0.0
    %173 = vmatprep.subr.mxu0 0.0
    %174 = vmatpush1.xpose.msra.mxu0 0.0
    %175 = vmatprep.subr.mxu0 0.0
    %176 = vmatpush1.xpose.msra.mxu0 0.0
    %177 = vmatprep.subr.mxu0 0.0
    %178 = vmatpush1.xpose.msra.mxu0 0.0
    %179 = vmatprep.subr.mxu0 0.0
    %180 = vmatpush1.xpose.msra.mxu0 0.0
    %181 = vmatprep.subr.mxu0 0.0
    %182 = vmatpush1.xpose.msra.mxu0 0.0
    %183 = vmatprep.subr.mxu0 0.0
    %184 = vmatpush1.xpose.msra.mxu0 0.0
    %185 = vmatprep.subr.mxu0 0.0
    %186 = vmatpush1.xpose.msra.mxu0 0.0
    %187 = vmatprep.subr.mxu0 0.0
    %188 = vmatpush1.xpose.msra.mxu0 0.0
    %189 = vmatprep.subr.mxu0 0.0
    %190 = vmatpush1.xpose.msra.mxu0 0.0
    %191 = vmatprep.subr.mxu0 0.0
    %192 = vmatpush1.xpose.msra.mxu0 0.0
    %193 = vmatprep.subr.mxu0 0.0
    %194 = vmatpush1.xpose.msra.mxu0 0.0
    %195 = vmatprep.subr.mxu0 0.0
    %196 = vmatpush1.xpose.msra.mxu0 0.0
    %197 = vmatprep.subr.mxu0 0.0
    %198 = vmatpush1.xpose.msra.mxu0 0.0
    %199 = vmatprep.subr.mxu0 0.0
    %200 = vmatpush1.xpose.msra.mxu0 0.0
    %201 = vmatprep.subr.mxu0 0.0
    %202 = vmatpush1.xpose.msra.mxu0 0.0
    %203 = vmatprep.subr.mxu0 0.0
    %204 = vmatpush1.xpose.msra.mxu0 0.0
    %205 = vmatprep.subr.mxu0 0.0
    %206 = vmatpush1.xpose.msra.mxu0 0.0
    %207 = vmatprep.subr.mxu0 0.0
    %208 = vmatpush1.xpose.msra.mxu0 0.0
    %209 = vmatprep.subr.mxu0 0.0
    %210 = vmatpush1.xpose.msra.mxu0 0.0
    %211 = vmatprep.subr.mxu0 0.0
    %212 = vmatpush1.xpose.msra.mxu0 0.0
    %213 = vmatprep.subr.mxu0 0.0
    %214 = vmatpush1.xpose.msra.mxu0 0.0
    %215 = vmatprep.subr.mxu0 0.0
    %216 = vmatpush1.xpose.msra.mxu0 0.0
    %217 = vmatprep.subr.mxu0 0.0
    %218 = vmatpush1.xpose.msra.mxu0 0.0
    %219 = vmatprep.mubr.f32.mxu0 0.0
    %220 = vmatmul.mubr.f32.gmra.mrb[0].mxu0 %v150
    %v221 = vpop.f32.mrb[0].mxu0
    %v222 = vadd.f32 %v146, %v221
    %v223 = vpop.f32.mrb[0].mxu0
    %224 = vdwg.mxu0
    %vm225 = vcmask 64512
    %v227 = vsel %vm225, %v138, 0
    %v230 = vsel %vm225, %v222, 0
    %232 = vmatprep.subr.mxu0 0.0
    %233 = vmatpush1.xpose.msra.mxu0 %v230
    %234 = vmatprep.subr.mxu0 0.0
    %235 = vmatpush1.xpose.msra.mxu0 0.0
    %236 = vmatprep.subr.mxu0 0.0
    %237 = vmatpush1.xpose.msra.mxu0 0.0
    %238 = vmatprep.subr.mxu0 0.0
    %239 = vmatpush1.xpose.msra.mxu0 0.0
    %240 = vmatprep.subr.mxu0 0.0
    %241 = vmatpush1.xpose.msra.mxu0 0.0
    %242 = vmatprep.subr.mxu0 0.0
    %243 = vmatpush1.xpose.msra.mxu0 0.0
    %244 = vmatprep.subr.mxu0 0.0
    %245 = vmatpush1.xpose.msra.mxu0 0.0
    %246 = vmatprep.subr.mxu0 0.0
    %247 = vmatpush1.xpose.msra.mxu0 0.0
    %248 = vmatprep.subr.mxu0 0.0
    %249 = vmatpush1.xpose.msra.mxu0 0.0
    %250 = vmatprep.subr.mxu0 0.0
    %251 = vmatpush1.xpose.msra.mxu0 0.0
    %252 = vmatprep.subr.mxu0 0.0
    %253 = vmatpush1.xpose.msra.mxu0 0.0
    %254 = vmatprep.subr.mxu0 0.0
    %255 = vmatpush1.xpose.msra.mxu0 0.0
    %256 = vmatprep.subr.mxu0 0.0
    %257 = vmatpush1.xpose.msra.mxu0 0.0
    %258 = vmatprep.subr.mxu0 0.0
    %259 = vmatpush1.xpose.msra.mxu0 0.0
    %260 = vmatprep.subr.mxu0 0.0
    %261 = vmatpush1.xpose.msra.mxu0 0.0
    %262 = vmatprep.subr.mxu0 0.0
    %263 = vmatpush1.xpose.msra.mxu0 0.0
    %264 = vmatprep.subr.mxu0 0.0
    %265 = vmatpush1.xpose.msra.mxu0 0.0
    %266 = vmatprep.subr.mxu0 0.0
    %267 = vmatpush1.xpose.msra.mxu0 0.0
    %268 = vmatprep.subr.mxu0 0.0
    %269 = vmatpush1.xpose.msra.mxu0 0.0
    %270 = vmatprep.subr.mxu0 0.0
    %271 = vmatpush1.xpose.msra.mxu0 0.0
    %272 = vmatprep.subr.mxu0 0.0
    %273 = vmatpush1.xpose.msra.mxu0 0.0
    %274 = vmatprep.subr.mxu0 0.0
    %275 = vmatpush1.xpose.msra.mxu0 0.0
    %276 = vmatprep.subr.mxu0 0.0
    %277 = vmatpush1.xpose.msra.mxu0 0.0
    %278 = vmatprep.subr.mxu0 0.0
    %279 = vmatpush1.xpose.msra.mxu0 0.0
    %280 = vmatprep.subr.mxu0 0.0
    %281 = vmatpush1.xpose.msra.mxu0 0.0
    %282 = vmatprep.subr.mxu0 0.0
    %283 = vmatpush1.xpose.msra.mxu0 0.0
    %284 = vmatprep.subr.mxu0 0.0
    %285 = vmatpush1.xpose.msra.mxu0 0.0
    %286 = vmatprep.subr.mxu0 0.0
    %287 = vmatpush1.xpose.msra.mxu0 0.0
    %288 = vmatprep.subr.mxu0 0.0
    %289 = vmatpush1.xpose.msra.mxu0 0.0
    %290 = vmatprep.subr.mxu0 0.0
    %291 = vmatpush1.xpose.msra.mxu0 0.0
    %292 = vmatprep.subr.mxu0 0.0
    %293 = vmatpush1.xpose.msra.mxu0 0.0
    %294 = vmatprep.subr.mxu0 0.0
    %295 = vmatpush1.xpose.msra.mxu0 0.0
    %296 = vmatprep.mubr.f32.mxu0 0.0
    %297 = vmatmul.mubr.f32.gmra.mrb[0].mxu0 %v227
    %v298 = vpop.f32.mrb[0].mxu0
    %v299 = vadd.f32 0.0, %v298
    %v300 = vpop.f32.mrb[0].mxu0
    %301 = vdwg.mxu0
    %v302 = vld [vmem:[%s7] sm:$0xff]
    %v303 = vld [vmem:[%s7 + $0x8] sm:$0xff]
    %v304 = vld [vmem:[%s9] sm:$0x3]
    %v306 = vlaneseq
    %v307 = vshrl.u32 %v306, 7
    %v308 = vsub.s32 0, %v307
    %v309 = vrot.slane %v304, %v308
    %v310 = vlaneseq
    %v311 = vshrl.u32 %v310, 7
    %v312 = vsub.s32 1, %v311
    %v313 = vrot.slane %v304, %v312
    %v317 = vsel %vm225, %v299, 0
    %319 = vmatprep.subr.mxu0 %v303
    %320 = vmatpush1.msra.mxu0 %v302
    %321 = vmatprep.subr.mxu0 0.0
    %322 = vmatpush1.msra.mxu0 0.0
    %323 = vmatprep.subr.mxu0 0.0
    %324 = vmatpush1.msra.mxu0 0.0
    %325 = vmatprep.subr.mxu0 0.0
    %326 = vmatpush1.msra.mxu0 0.0
    %327 = vmatprep.subr.mxu0 0.0
    %328 = vmatpush1.msra.mxu0 0.0
    %329 = vmatprep.subr.mxu0 0.0
    %330 = vmatpush1.msra.mxu0 0.0
    %331 = vmatprep.subr.mxu0 0.0
    %332 = vmatpush1.msra.mxu0 0.0
    %333 = vmatprep.subr.mxu0 0.0
    %334 = vmatpush1.msra.mxu0 0.0
    %335 = vmatprep.subr.mxu0 0.0
    %336 = vmatpush1.msra.mxu0 0.0
    %337 = vmatprep.subr.mxu0 0.0
    %338 = vmatpush1.msra.mxu0 0.0
    %339 = vmatprep.subr.mxu0 0.0
    %340 = vmatpush1.msra.mxu0 0.0
    %341 = vmatprep.subr.mxu0 0.0
    %342 = vmatpush1.msra.mxu0 0.0
    %343 = vmatprep.subr.mxu0 0.0
    %344 = vmatpush1.msra.mxu0 0.0
    %345 = vmatprep.subr.mxu0 0.0
    %346 = vmatpush1.msra.mxu0 0.0
    %347 = vmatprep.subr.mxu0 0.0
    %348 = vmatpush1.msra.mxu0 0.0
    %349 = vmatprep.subr.mxu0 0.0
    %350 = vmatpush1.msra.mxu0 0.0
    %351 = vmatprep.subr.mxu0 0.0
    %352 = vmatpush1.msra.mxu0 0.0
    %353 = vmatprep.subr.mxu0 0.0
    %354 = vmatpush1.msra.mxu0 0.0
    %355 = vmatprep.subr.mxu0 0.0
    %356 = vmatpush1.msra.mxu0 0.0
    %357 = vmatprep.subr.mxu0 0.0
    %358 = vmatpush1.msra.mxu0 0.0
    %359 = vmatprep.subr.mxu0 0.0
    %360 = vmatpush1.msra.mxu0 0.0
    %361 = vmatprep.subr.mxu0 0.0
    %362 = vmatpush1.msra.mxu0 0.0
    %363 = vmatprep.subr.mxu0 0.0
    %364 = vmatpush1.msra.mxu0 0.0
    %365 = vmatprep.subr.mxu0 0.0
    %366 = vmatpush1.msra.mxu0 0.0
    %367 = vmatprep.subr.mxu0 0.0
    %368 = vmatpush1.msra.mxu0 0.0
    %369 = vmatprep.subr.mxu0 0.0
    %370 = vmatpush1.msra.mxu0 0.0
    %371 = vmatprep.subr.mxu0 0.0
    %372 = vmatpush1.msra.mxu0 0.0
    %373 = vmatprep.subr.mxu0 0.0
    %374 = vmatpush1.msra.mxu0 0.0
    %375 = vmatprep.subr.mxu0 0.0
    %376 = vmatpush1.msra.mxu0 0.0
    %377 = vmatprep.subr.mxu0 0.0
    %378 = vmatpush1.msra.mxu0 0.0
    %379 = vmatprep.subr.mxu0 0.0
    %380 = vmatpush1.msra.mxu0 0.0
    %381 = vmatprep.subr.mxu0 0.0
    %382 = vmatpush1.msra.mxu0 0.0
    %383 = vmatprep.mubr.f32.mxu0 0.0
    %384 = vmatmul.mubr.f32.gmra.mrb[0].mxu0 %v317
    %v385 = vpop.f32.mrb[0].mxu0
    %v386 = vadd.f32 %v309, %v385
    %v387 = vpop.f32.mrb[0].mxu0
    %v388 = vadd.f32 %v313, %v387
    %389 = vdwg.mxu0
    %391 = vrot.lane.b32.xlu0 %v386, 64
    %v392 = vpop.permute.xlu0 %391
    %v393 = vsel %vm225, %v386, 0
    %v395 = vsel %vm225, %v392, 0
    %397 = vmatprep.subr.mxu0 0.0
    %398 = vmatpush1.xpose.msra.mxu0 %v395
    %399 = vmatprep.subr.mxu0 0.0
    %400 = vmatpush1.xpose.msra.mxu0 0.0
    %401 = vmatprep.subr.mxu0 0.0
    %402 = vmatpush1.xpose.msra.mxu0 0.0
    %403 = vmatprep.subr.mxu0 0.0
    %404 = vmatpush1.xpose.msra.mxu0 0.0
    %405 = vmatprep.subr.mxu0 0.0
    %406 = vmatpush1.xpose.msra.mxu0 0.0
    %407 = vmatprep.subr.mxu0 0.0
    %408 = vmatpush1.xpose.msra.mxu0 0.0
    %409 = vmatprep.subr.mxu0 0.0
    %410 = vmatpush1.xpose.msra.mxu0 0.0
    %411 = vmatprep.subr.mxu0 0.0
    %412 = vmatpush1.xpose.msra.mxu0 0.0
    %413 = vmatprep.subr.mxu0 0.0
    %414 = vmatpush1.xpose.msra.mxu0 0.0
    %415 = vmatprep.subr.mxu0 0.0
    %416 = vmatpush1.xpose.msra.mxu0 0.0
    %417 = vmatprep.subr.mxu0 0.0
    %418 = vmatpush1.xpose.msra.mxu0 0.0
    %419 = vmatprep.subr.mxu0 0.0
    %420 = vmatpush1.xpose.msra.mxu0 0.0
    %421 = vmatprep.subr.mxu0 0.0
    %422 = vmatpush1.xpose.msra.mxu0 0.0
    %423 = vmatprep.subr.mxu0 0.0
    %424 = vmatpush1.xpose.msra.mxu0 0.0
    %425 = vmatprep.subr.mxu0 0.0
    %426 = vmatpush1.xpose.msra.mxu0 0.0
    %427 = vmatprep.subr.mxu0 0.0
    %428 = vmatpush1.xpose.msra.mxu0 0.0
    %429 = vmatprep.subr.mxu0 0.0
    %430 = vmatpush1.xpose.msra.mxu0 0.0
    %431 = vmatprep.subr.mxu0 0.0
    %432 = vmatpush1.xpose.msra.mxu0 0.0
    %433 = vmatprep.subr.mxu0 0.0
    %434 = vmatpush1.xpose.msra.mxu0 0.0
    %435 = vmatprep.subr.mxu0 0.0
    %436 = vmatpush1.xpose.msra.mxu0 0.0
    %437 = vmatprep.subr.mxu0 0.0
    %438 = vmatpush1.xpose.msra.mxu0 0.0
    %439 = vmatprep.subr.mxu0 0.0
    %440 = vmatpush1.xpose.msra.mxu0 0.0
    %441 = vmatprep.subr.mxu0 0.0
    %442 = vmatpush1.xpose.msra.mxu0 0.0
    %443 = vmatprep.subr.mxu0 0.0
    %444 = vmatpush1.xpose.msra.mxu0 0.0
    %445 = vmatprep.subr.mxu0 0.0
    %446 = vmatpush1.xpose.msra.mxu0 0.0
    %447 = vmatprep.subr.mxu0 0.0
    %448 = vmatpush1.xpose.msra.mxu0 0.0
    %449 = vmatprep.subr.mxu0 0.0
    %450 = vmatpush1.xpose.msra.mxu0 0.0
    %451 = vmatprep.subr.mxu0 0.0
    %452 = vmatpush1.xpose.msra.mxu0 0.0
    %453 = vmatprep.subr.mxu0 0.0
    %454 = vmatpush1.xpose.msra.mxu0 0.0
    %455 = vmatprep.subr.mxu0 0.0
    %456 = vmatpush1.xpose.msra.mxu0 0.0
    %457 = vmatprep.subr.mxu0 0.0
    %458 = vmatpush1.xpose.msra.mxu0 0.0
    %459 = vmatprep.subr.mxu0 0.0
    %460 = vmatpush1.xpose.msra.mxu0 0.0
    %461 = vmatprep.mubr.f32.mxu0 0.0
    %462 = vmatmul.mubr.f32.gmra.mrb[0].mxu0 %v393
    %v463 = vpop.f32.mrb[0].mxu0
    %v464 = vadd.f32 0.0, %v463
    %v465 = vpop.f32.mrb[0].mxu0
    %466 = vdwg.mxu0
    %v467 = vmul.f32 %v464, 0.35355338
    %v468 = vsel %vm225, %v467, -inf
    %469 = vmax.xlane.f32.xlu0 %v468
    %v470 = vpop.xlane.xlu0 %469
    %v471 = vsub.f32 %v467, %v470
    %v472 = vmul.f32 %v471, 1.442695
    %v473 = vpow.pop %v472
    %v474 = vsel %vm225, %v473, 0.0
    %475 = vadd.xlane.f32.xlu0 %v474
    %v476 = vpop.xlane.xlu0 %475
    %v477 = vrcp.pop %v476
    %v478 = vmul.f32 %v473, %v477
    %v480 = vsel %vm225, %v478, 0
    %482 = vmatprep.subr.mxu0 0.0
    %483 = vmatpush1.msra.mxu0 %v388
    %484 = vmatprep.subr.mxu0 0.0
    %485 = vmatpush1.msra.mxu0 0.0
    %486 = vmatprep.subr.mxu0 0.0
    %487 = vmatpush1.msra.mxu0 0.0
    %488 = vmatprep.subr.mxu0 0.0
    %489 = vmatpush1.msra.mxu0 0.0
    %490 = vmatprep.subr.mxu0 0.0
    %491 = vmatpush1.msra.mxu0 0.0
    %492 = vmatprep.subr.mxu0 0.0
    %493 = vmatpush1.msra.mxu0 0.0
    %494 = vmatprep.subr.mxu0 0.0
    %495 = vmatpush1.msra.mxu0 0.0
    %496 = vmatprep.subr.mxu0 0.0
    %497 = vmatpush1.msra.mxu0 0.0
    %498 = vmatprep.subr.mxu0 0.0
    %499 = vmatpush1.msra.mxu0 0.0
    %500 = vmatprep.subr.mxu0 0.0
    %501 = vmatpush1.msra.mxu0 0.0
    %502 = vmatprep.subr.mxu0 0.0
    %503 = vmatpush1.msra.mxu0 0.0
    %504 = vmatprep.subr.mxu0 0.0
    %505 = vmatpush1.msra.mxu0 0.0
    %506 = vmatprep.subr.mxu0 0.0
    %507 = vmatpush1.msra.mxu0 0.0
    %508 = vmatprep.subr.mxu0 0.0
    %509 = vmatpush1.msra.mxu0 0.0
    %510 = vmatprep.subr.mxu0 0.0
    %511 = vmatpush1.msra.mxu0 0.0
    %512 = vmatprep.subr.mxu0 0.0
    %513 = vmatpush1.msra.mxu0 0.0
    %514 = vmatprep.subr.mxu0 0.0
    %515 = vmatpush1.msra.mxu0 0.0
    %516 = vmatprep.subr.mxu0 0.0
    %517 = vmatpush1.msra.mxu0 0.0
    %518 = vmatprep.subr.mxu0 0.0
    %519 = vmatpush1.msra.mxu0 0.0
    %520 = vmatprep.subr.mxu0 0.0
    %521 = vmatpush1.msra.mxu0 0.0
    %522 = vmatprep.subr.mxu0 0.0
    %523 = vmatpush1.msra.mxu0 0.0
    %524 = vmatprep.subr.mxu0 0.0
    %525 = vmatpush1.msra.mxu0 0.0
    %526 = vmatprep.subr.mxu0 0.0
    %527 = vmatpush1.msra.mxu0 0.0
    %528 = vmatprep.subr.mxu0 0.0
    %529 = vmatpush1.msra.mxu0 0.0
    %530 = vmatprep.subr.mxu0 0.0
    %531 = vmatpush1.msra.mxu0 0.0
    %532 = vmatprep.subr.mxu0 0.0
    %533 = vmatpush1.msra.mxu0 0.0
    %534 = vmatprep.subr.mxu0 0.0
    %535 = vmatpush1.msra.mxu0 0.0
    %536 = vmatprep.subr.mxu0 0.0
    %537 = vmatpush1.msra.mxu0 0.0
    %538 = vmatprep.subr.mxu0 0.0
    %539 = vmatpush1.msra.mxu0 0.0
    %540 = vmatprep.subr.mxu0 0.0
    %541 = vmatpush1.msra.mxu0 0.0
    %542 = vmatprep.subr.mxu0 0.0
    %543 = vmatpush1.msra.mxu0 0.0
    %544 = vmatprep.subr.mxu0 0.0
    %545 = vmatpush1.msra.mxu0 0.0
    %546 = vmatprep.mubr.f32.mxu0 0.0
    %547 = vmatmul.mubr.f32.gmra.mrb[0].mxu0 %v480
    %v548 = vpop.f32.mrb[0].mxu0
    %v549 = vadd.f32 0.0, %v548
    %v550 = vpop.f32.mrb[0].mxu0
    %551 = vdwg.mxu0
    %552 = vrot.lane.b32.xlu0 %v386, 120
    %v553 = vpop.permute.xlu0 %552
    %554 = vrot.lane.b32.xlu0 %v386, 56
    %v555 = vpop.permute.xlu0 %554
    %v556 = vsel %vm225, %v553, 0
    %v558 = vsel %vm225, %v555, 0
    %560 = vmatprep.subr.mxu0 0.0
    %561 = vmatpush1.xpose.msra.mxu0 %v558
    %562 = vmatprep.subr.mxu0 0.0
    %563 = vmatpush1.xpose.msra.mxu0 0.0
    %564 = vmatprep.subr.mxu0 0.0
    %565 = vmatpush1.xpose.msra.mxu0 0.0
    %566 = vmatprep.subr.mxu0 0.0
    %567 = vmatpush1.xpose.msra.mxu0 0.0
    %568 = vmatprep.subr.mxu0 0.0
    %569 = vmatpush1.xpose.msra.mxu0 0.0
    %570 = vmatprep.subr.mxu0 0.0
    %571 = vmatpush1.xpose.msra.mxu0 0.0
    %572 = vmatprep.subr.mxu0 0.0
    %573 = vmatpush1.xpose.msra.mxu0 0.0
    %574 = vmatprep.subr.mxu0 0.0
    %575 = vmatpush1.xpose.msra.mxu0 0.0
    %576 = vmatprep.subr.mxu0 0.0
    %577 = vmatpush1.xpose.msra.mxu0 0.0
    %578 = vmatprep.subr.mxu0 0.0
    %579 = vmatpush1.xpose.msra.mxu0 0.0
    %580 = vmatprep.subr.mxu0 0.0
    %581 = vmatpush1.xpose.msra.mxu0 0.0
    %582 = vmatprep.subr.mxu0 0.0
    %583 = vmatpush1.xpose.msra.mxu0 0.0
    %584 = vmatprep.subr.mxu0 0.0
    %585 = vmatpush1.xpose.msra.mxu0 0.0
    %586 = vmatprep.subr.mxu0 0.0
    %587 = vmatpush1.xpose.msra.mxu0 0.0
    %588 = vmatprep.subr.mxu0 0.0
    %589 = vmatpush1.xpose.msra.mxu0 0.0
    %590 = vmatprep.subr.mxu0 0.0
    %591 = vmatpush1.xpose.msra.mxu0 0.0
    %592 = vmatprep.subr.mxu0 0.0
    %593 = vmatpush1.xpose.msra.mxu0 0.0
    %594 = vmatprep.subr.mxu0 0.0
    %595 = vmatpush1.xpose.msra.mxu0 0.0
    %596 = vmatprep.subr.mxu0 0.0
    %597 = vmatpush1.xpose.msra.mxu0 0.0
    %598 = vmatprep.subr.mxu0 0.0
    %599 = vmatpush1.xpose.msra.mxu0 0.0
    %600 = vmatprep.subr.mxu0 0.0
    %601 = vmatpush1.xpose.msra.mxu0 0.0
    %602 = vmatprep.subr.mxu0 0.0
    %603 = vmatpush1.xpose.msra.mxu0 0.0
    %604 = vmatprep.subr.mxu0 0.0
    %605 = vmatpush1.xpose.msra.mxu0 0.0
    %606 = vmatprep.subr.mxu0 0.0
    %607 = vmatpush1.xpose.msra.mxu0 0.0
    %608 = vmatprep.subr.mxu0 0.0
    %609 = vmatpush1.xpose.msra.mxu0 0.0
    %610 = vmatprep.subr.mxu0 0.0
    %611 = vmatpush1.xpose.msra.mxu0 0.0
    %612 = vmatprep.subr.mxu0 0.0
    %613 = vmatpush1.xpose.msra.mxu0 0.0
    %614 = vmatprep.subr.mxu0 0.0
    %615 = vmatpush1.xpose.msra.mxu0 0.0
    %616 = vmatprep.subr.mxu0 0.0
    %617 = vmatpush1.xpose.msra.mxu0 0.0
    %618 = vmatprep.subr.mxu0 0.0
    %619 = vmatpush1.xpose.msra.mxu0 0.0
    %620 = vmatprep.subr.mxu0 0.0
    %621 = vmatpush1.xpose.msra.mxu0 0.0
    %622 = vmatprep.subr.mxu0 0.0
    %623 = vmatpush1.xpose.msra.mxu0 0.0
    %624 = vmatprep.mubr.f32.mxu0 0.0
    %625 = vmatmul.mubr.f32.gmra.mrb[0].mxu0 %v556
    %v626 = vpop.f32.mrb[0].mxu0
    %v627 = vadd.f32 0.0, %v626
    %v628 = vpop.f32.mrb[0].mxu0
    %629 = vdwg.mxu0
    %v630 = vmul.f32 %v627, 0.35355338
    %v631 = vsel %vm225, %v630, -inf
    %632 = vmax.xlane.f32.xlu0 %v631
    %v633 = vpop.xlane.xlu0 %632
    %v634 = vsub.f32 %v630, %v633
    %v635 = vmul.f32 %v634, 1.442695
    %v636 = vpow.pop %v635
    %v637 = vsel %vm225, %v636, 0.0
    %638 = vadd.xlane.f32.xlu0 %v637
    %v639 = vpop.xlane.xlu0 %638
    %v640 = vrcp.pop %v639
    %v641 = vmul.f32 %v636, %v640
    %643 = vrot.lane.b32.xlu0 %v388, 120
    %v644 = vpop.permute.xlu0 %643
    %v647 = vsel %vm225, %v641, 0
    %649 = vmatprep.subr.mxu0 0.0
    %650 = vmatpush1.msra.mxu0 %v644
    %651 = vmatprep.subr.mxu0 0.0
    %652 = vmatpush1.msra.mxu0 0.0
    %653 = vmatprep.subr.mxu0 0.0
    %654 = vmatpush1.msra.mxu0 0.0
    %655 = vmatprep.subr.mxu0 0.0
    %656 = vmatpush1.msra.mxu0 0.0
    %657 = vmatprep.subr.mxu0 0.0
    %658 = vmatpush1.msra.mxu0 0.0
    %659 = vmatprep.subr.mxu0 0.0
    %660 = vmatpush1.msra.mxu0 0.0
    %661 = vmatprep.subr.mxu0 0.0
    %662 = vmatpush1.msra.mxu0 0.0
    %663 = vmatprep.subr.mxu0 0.0
    %664 = vmatpush1.msra.mxu0 0.0
    %665 = vmatprep.subr.mxu0 0.0
    %666 = vmatpush1.msra.mxu0 0.0
    %667 = vmatprep.subr.mxu0 0.0
    %668 = vmatpush1.msra.mxu0 0.0
    %669 = vmatprep.subr.mxu0 0.0
    %670 = vmatpush1.msra.mxu0 0.0
    %671 = vmatprep.subr.mxu0 0.0
    %672 = vmatpush1.msra.mxu0 0.0
    %673 = vmatprep.subr.mxu0 0.0
    %674 = vmatpush1.msra.mxu0 0.0
    %675 = vmatprep.subr.mxu0 0.0
    %676 = vmatpush1.msra.mxu0 0.0
    %677 = vmatprep.subr.mxu0 0.0
    %678 = vmatpush1.msra.mxu0 0.0
    %679 = vmatprep.subr.mxu0 0.0
    %680 = vmatpush1.msra.mxu0 0.0
    %681 = vmatprep.subr.mxu0 0.0
    %682 = vmatpush1.msra.mxu0 0.0
    %683 = vmatprep.subr.mxu0 0.0
    %684 = vmatpush1.msra.mxu0 0.0
    %685 = vmatprep.subr.mxu0 0.0
    %686 = vmatpush1.msra.mxu0 0.0
    %687 = vmatprep.subr.mxu0 0.0
    %688 = vmatpush1.msra.mxu0 0.0
    %689 = vmatprep.subr.mxu0 0.0
    %690 = vmatpush1.msra.mxu0 0.0
    %691 = vmatprep.subr.mxu0 0.0
    %692 = vmatpush1.msra.mxu0 0.0
    %693 = vmatprep.subr.mxu0 0.0
    %694 = vmatpush1.msra.mxu0 0.0
    %695 = vmatprep.subr.mxu0 0.0
    %696 = vmatpush1.msra.mxu0 0.0
    %697 = vmatprep.subr.mxu0 0.0
    %698 = vmatpush1.msra.mxu0 0.0
    %699 = vmatprep.subr.mxu0 0.0
    %700 = vmatpush1.msra.mxu0 0.0
    %701 = vmatprep.subr.mxu0 0.0
    %702 = vmatpush1.msra.mxu0 0.0
    %703 = vmatprep.subr.mxu0 0.0
    %704 = vmatpush1.msra.mxu0 0.0
    %705 = vmatprep.subr.mxu0 0.0
    %706 = vmatpush1.msra.mxu0 0.0
    %707 = vmatprep.subr.mxu0 0.0
    %708 = vmatpush1.msra.mxu0 0.0
    %709 = vmatprep.subr.mxu0 0.0
    %710 = vmatpush1.msra.mxu0 0.0
    %711 = vmatprep.subr.mxu0 0.0
    %712 = vmatpush1.msra.mxu0 0.0
    %713 = vmatprep.mubr.f32.mxu0 0.0
    %714 = vmatmul.mubr.f32.gmra.mrb[0].mxu0 %v647
    %v715 = vpop.f32.mrb[0].mxu0
    %v716 = vadd.f32 0.0, %v715
    %v717 = vpop.f32.mrb[0].mxu0
    %718 = vdwg.mxu0
    %719 = vrot.lane.b32.xlu0 %v386, 112
    %v720 = vpop.permute.xlu0 %719
    %721 = vrot.lane.b32.xlu0 %v386, 48
    %v722 = vpop.permute.xlu0 %721
    %v723 = vsel %vm225, %v720, 0
    %v725 = vsel %vm225, %v722, 0
    %727 = vmatprep.subr.mxu0 0.0
    %728 = vmatpush1.xpose.msra.mxu0 %v725
    %729 = vmatprep.subr.mxu0 0.0
    %730 = vmatpush1.xpose.msra.mxu0 0.0
    %731 = vmatprep.subr.mxu0 0.0
    %732 = vmatpush1.xpose.msra.mxu0 0.0
    %733 = vmatprep.subr.mxu0 0.0
    %734 = vmatpush1.xpose.msra.mxu0 0.0
    %735 = vmatprep.subr.mxu0 0.0
    %736 = vmatpush1.xpose.msra.mxu0 0.0
    %737 = vmatprep.subr.mxu0 0.0
    %738 = vmatpush1.xpose.msra.mxu0 0.0
    %739 = vmatprep.subr.mxu0 0.0
    %740 = vmatpush1.xpose.msra.mxu0 0.0
    %741 = vmatprep.subr.mxu0 0.0
    %742 = vmatpush1.xpose.msra.mxu0 0.0
    %743 = vmatprep.subr.mxu0 0.0
    %744 = vmatpush1.xpose.msra.mxu0 0.0
    %745 = vmatprep.subr.mxu0 0.0
    %746 = vmatpush1.xpose.msra.mxu0 0.0
    %747 = vmatprep.subr.mxu0 0.0
    %748 = vmatpush1.xpose.msra.mxu0 0.0
    %749 = vmatprep.subr.mxu0 0.0
    %750 = vmatpush1.xpose.msra.mxu0 0.0
    %751 = vmatprep.subr.mxu0 0.0
    %752 = vmatpush1.xpose.msra.mxu0 0.0
    %753 = vmatprep.subr.mxu0 0.0
    %754 = vmatpush1.xpose.msra.mxu0 0.0
    %755 = vmatprep.subr.mxu0 0.0
    %756 = vmatpush1.xpose.msra.mxu0 0.0
    %757 = vmatprep.subr.mxu0 0.0
    %758 = vmatpush1.xpose.msra.mxu0 0.0
    %759 = vmatprep.subr.mxu0 0.0
    %760 = vmatpush1.xpose.msra.mxu0 0.0
    %761 = vmatprep.subr.mxu0 0.0
    %762 = vmatpush1.xpose.msra.mxu0 0.0
    %763 = vmatprep.subr.mxu0 0.0
    %764 = vmatpush1.xpose.msra.mxu0 0.0
    %765 = vmatprep.subr.mxu0 0.0
    %766 = vmatpush1.xpose.msra.mxu0 0.0
    %767 = vmatprep.subr.mxu0 0.0
    %768 = vmatpush1.xpose.msra.mxu0 0.0
    %769 = vmatprep.subr.mxu0 0.0
    %770 = vmatpush1.xpose.msra.mxu0 0.0
    %771 = vmatprep.subr.mxu0 0.0
    %772 = vmatpush1.xpose.msra.mxu0 0.0
    %773 = vmatprep.subr.mxu0 0.0
    %774 = vmatpush1.xpose.msra.mxu0 0.0
    %775 = vmatprep.subr.mxu0 0.0
    %776 = vmatpush1.xpose.msra.mxu0 0.0
    %777 = vmatprep.subr.mxu0 0.0
    %778 = vmatpush1.xpose.msra.mxu0 0.0
    %779 = vmatprep.subr.mxu0 0.0
    %780 = vmatpush1.xpose.msra.mxu0 0.0
    %781 = vmatprep.subr.mxu0 0.0
    %782 = vmatpush1.xpose.msra.mxu0 0.0
    %783 = vmatprep.subr.mxu0 0.0
    %784 = vmatpush1.xpose.msra.mxu0 0.0
    %785 = vmatprep.subr.mxu0 0.0
    %786 = vmatpush1.xpose.msra.mxu0 0.0
    %787 = vmatprep.subr.mxu0 0.0
    %788 = vmatpush1.xpose.msra.mxu0 0.0
    %789 = vmatprep.subr.mxu0 0.0
    %790 = vmatpush1.xpose.msra.mxu0 0.0
    %791 = vmatprep.mubr.f32.mxu0 0.0
    %792 = vmatmul.mubr.f32.gmra.mrb[0].mxu0 %v723
    %v793 = vpop.f32.mrb[0].mxu0
    %v794 = vadd.f32 0.0, %v793
    %v795 = vpop.f32.mrb[0].mxu0
    %796 = vdwg.mxu0
    %v797 = vmul.f32 %v794, 0.35355338
    %v798 = vsel %vm225, %v797, -inf
    %799 = vmax.xlane.f32.xlu0 %v798
    %v800 = vpop.xlane.xlu0 %799
    %v801 = vsub.f32 %v797, %v800
    %v802 = vmul.f32 %v801, 1.442695
    %v803 = vpow.pop %v802
    %v804 = vsel %vm225, %v803, 0.0
    %805 = vadd.xlane.f32.xlu0 %v804
    %v806 = vpop.xlane.xlu0 %805
    %v807 = vrcp.pop %v806
    %v808 = vmul.f32 %v803, %v807
    %809 = vrot.lane.b32.xlu0 %v388, 112
    %v810 = vpop.permute.xlu0 %809
    %v813 = vsel %vm225, %v808, 0
    %815 = vmatprep.subr.mxu0 0.0
    %816 = vmatpush1.msra.mxu0 %v810
    %817 = vmatprep.subr.mxu0 0.0
    %818 = vmatpush1.msra.mxu0 0.0
    %819 = vmatprep.subr.mxu0 0.0
    %820 = vmatpush1.msra.mxu0 0.0
    %821 = vmatprep.subr.mxu0 0.0
    %822 = vmatpush1.msra.mxu0 0.0
    %823 = vmatprep.subr.mxu0 0.0
    %824 = vmatpush1.msra.mxu0 0.0
    %825 = vmatprep.subr.mxu0 0.0
    %826 = vmatpush1.msra.mxu0 0.0
    %827 = vmatprep.subr.mxu0 0.0
    %828 = vmatpush1.msra.mxu0 0.0
    %829 = vmatprep.subr.mxu0 0.0
    %830 = vmatpush1.msra.mxu0 0.0
    %831 = vmatprep.subr.mxu0 0.0
    %832 = vmatpush1.msra.mxu0 0.0
    %833 = vmatprep.subr.mxu0 0.0
    %834 = vmatpush1.msra.mxu0 0.0
    %835 = vmatprep.subr.mxu0 0.0
    %836 = vmatpush1.msra.mxu0 0.0
    %837 = vmatprep.subr.mxu0 0.0
    %838 = vmatpush1.msra.mxu0 0.0
    %839 = vmatprep.subr.mxu0 0.0
    %840 = vmatpush1.msra.mxu0 0.0
    %841 = vmatprep.subr.mxu0 0.0
    %842 = vmatpush1.msra.mxu0 0.0
    %843 = vmatprep.subr.mxu0 0.0
    %844 = vmatpush1.msra.mxu0 0.0
    %845 = vmatprep.subr.mxu0 0.0
    %846 = vmatpush1.msra.mxu0 0.0
    %847 = vmatprep.subr.mxu0 0.0
    %848 = vmatpush1.msra.mxu0 0.0
    %849 = vmatprep.subr.mxu0 0.0
    %850 = vmatpush1.msra.mxu0 0.0
    %851 = vmatprep.subr.mxu0 0.0
    %852 = vmatpush1.msra.mxu0 0.0
    %853 = vmatprep.subr.mxu0 0.0
    %854 = vmatpush1.msra.mxu0 0.0
    %855 = vmatprep.subr.mxu0 0.0
    %856 = vmatpush1.msra.mxu0 0.0
    %857 = vmatprep.subr.mxu0 0.0
    %858 = vmatpush1.msra.mxu0 0.0
    %859 = vmatprep.subr.mxu0 0.0
    %860 = vmatpush1.msra.mxu0 0.0
    %861 = vmatprep.subr.mxu0 0.0
    %862 = vmatpush1.msra.mxu0 0.0
    %863 = vmatprep.subr.mxu0 0.0
    %864 = vmatpush1.msra.mxu0 0.0
    %865 = vmatprep.subr.mxu0 0.0
    %866 = vmatpush1.msra.mxu0 0.0
    %867 = vmatprep.subr.mxu0 0.0
    %868 = vmatpush1.msra.mxu0 0.0
    %869 = vmatprep.subr.mxu0 0.0
    %870 = vmatpush1.msra.mxu0 0.0
    %871 = vmatprep.subr.mxu0 0.0
    %872 = vmatpush1.msra.mxu0 0.0
    %873 = vmatprep.subr.mxu0 0.0
    %874 = vmatpush1.msra.mxu0 0.0
    %875 = vmatprep.subr.mxu0 0.0
    %876 = vmatpush1.msra.mxu0 0.0
    %877 = vmatprep.subr.mxu0 0.0
    %878 = vmatpush1.msra.mxu0 0.0
    %879 = vmatprep.mubr.f32.mxu0 0.0
    %880 = vmatmul.mubr.f32.gmra.mrb[0].mxu0 %v813
    %v881 = vpop.f32.mrb[0].mxu0
    %v882 = vadd.f32 0.0, %v881
    %v883 = vpop.f32.mrb[0].mxu0
    %884 = vdwg.mxu0
    %885 = vrot.lane.b32.xlu0 %v386, 104
    %v886 = vpop.permute.xlu0 %885
    %887 = vrot.lane.b32.xlu0 %v386, 40
    %v888 = vpop.permute.xlu0 %887
    %v889 = vsel %vm225, %v886, 0
    %v891 = vsel %vm225, %v888, 0
    %893 = vmatprep.subr.mxu0 0.0
    %894 = vmatpush1.xpose.msra.mxu0 %v891
    %895 = vmatprep.subr.mxu0 0.0
    %896 = vmatpush1.xpose.msra.mxu0 0.0
    %897 = vmatprep.subr.mxu0 0.0
    %898 = vmatpush1.xpose.msra.mxu0 0.0
    %899 = vmatprep.subr.mxu0 0.0
    %900 = vmatpush1.xpose.msra.mxu0 0.0
    %901 = vmatprep.subr.mxu0 0.0
    %902 = vmatpush1.xpose.msra.mxu0 0.0
    %903 = vmatprep.subr.mxu0 0.0
    %904 = vmatpush1.xpose.msra.mxu0 0.0
    %905 = vmatprep.subr.mxu0 0.0
    %906 = vmatpush1.xpose.msra.mxu0 0.0
    %907 = vmatprep.subr.mxu0 0.0
    %908 = vmatpush1.xpose.msra.mxu0 0.0
    %909 = vmatprep.subr.mxu0 0.0
    %910 = vmatpush1.xpose.msra.mxu0 0.0
    %911 = vmatprep.subr.mxu0 0.0
    %912 = vmatpush1.xpose.msra.mxu0 0.0
    %913 = vmatprep.subr.mxu0 0.0
    %914 = vmatpush1.xpose.msra.mxu0 0.0
    %915 = vmatprep.subr.mxu0 0.0
    %916 = vmatpush1.xpose.msra.mxu0 0.0
    %917 = vmatprep.subr.mxu0 0.0
    %918 = vmatpush1.xpose.msra.mxu0 0.0
    %919 = vmatprep.subr.mxu0 0.0
    %920 = vmatpush1.xpose.msra.mxu0 0.0
    %921 = vmatprep.subr.mxu0 0.0
    %922 = vmatpush1.xpose.msra.mxu0 0.0
    %923 = vmatprep.subr.mxu0 0.0
    %924 = vmatpush1.xpose.msra.mxu0 0.0
    %925 = vmatprep.subr.mxu0 0.0
    %926 = vmatpush1.xpose.msra.mxu0 0.0
    %927 = vmatprep.subr.mxu0 0.0
    %928 = vmatpush1.xpose.msra.mxu0 0.0
    %929 = vmatprep.subr.mxu0 0.0
    %930 = vmatpush1.xpose.msra.mxu0 0.0
    %931 = vmatprep.subr.mxu0 0.0
    %932 = vmatpush1.xpose.msra.mxu0 0.0
    %933 = vmatprep.subr.mxu0 0.0
    %934 = vmatpush1.xpose.msra.mxu0 0.0
    %935 = vmatprep.subr.mxu0 0.0
    %936 = vmatpush1.xpose.msra.mxu0 0.0
    %937 = vmatprep.subr.mxu0 0.0
    %938 = vmatpush1.xpose.msra.mxu0 0.0
    %939 = vmatprep.subr.mxu0 0.0
    %940 = vmatpush1.xpose.msra.mxu0 0.0
    %941 = vmatprep.subr.mxu0 0.0
    %942 = vmatpush1.xpose.msra.mxu0 0.0
    %943 = vmatprep.subr.mxu0 0.0
    %944 = vmatpush1.xpose.msra.mxu0 0.0
    %945 = vmatprep.subr.mxu0 0.0
    %946 = vmatpush1.xpose.msra.mxu0 0.0
    %947 = vmatprep.subr.mxu0 0.0
    %948 = vmatpush1.xpose.msra.mxu0 0.0
    %949 = vmatprep.subr.mxu0 0.0
    %950 = vmatpush1.xpose.msra.mxu0 0.0
    %951 = vmatprep.subr.mxu0 0.0
    %952 = vmatpush1.xpose.msra.mxu0 0.0
    %953 = vmatprep.subr.mxu0 0.0
    %954 = vmatpush1.xpose.msra.mxu0 0.0
    %955 = vmatprep.subr.mxu0 0.0
    %956 = vmatpush1.xpose.msra.mxu0 0.0
    %957 = vmatprep.mubr.f32.mxu0 0.0
    %958 = vmatmul.mubr.f32.gmra.mrb[0].mxu0 %v889
    %v959 = vpop.f32.mrb[0].mxu0
    %v960 = vadd.f32 0.0, %v959
    %v961 = vpop.f32.mrb[0].mxu0
    %962 = vdwg.mxu0
    %v963 = vmul.f32 %v960, 0.35355338
    %v964 = vsel %vm225, %v963, -inf
    %965 = vmax.xlane.f32.xlu0 %v964
    %v966 = vpop.xlane.xlu0 %965
    %v967 = vsub.f32 %v963, %v966
    %v968 = vmul.f32 %v967, 1.442695
    %v969 = vpow.pop %v968
    %v970 = vsel %vm225, %v969, 0.0
    %971 = vadd.xlane.f32.xlu0 %v970
    %v972 = vpop.xlane.xlu0 %971
    %v973 = vrcp.pop %v972
    %v974 = vmul.f32 %v969, %v973
    %975 = vrot.lane.b32.xlu0 %v388, 104
    %v976 = vpop.permute.xlu0 %975
    %v979 = vsel %vm225, %v974, 0
    %981 = vmatprep.subr.mxu0 0.0
    %982 = vmatpush1.msra.mxu0 %v976
    %983 = vmatprep.subr.mxu0 0.0
    %984 = vmatpush1.msra.mxu0 0.0
    %985 = vmatprep.subr.mxu0 0.0
    %986 = vmatpush1.msra.mxu0 0.0
    %987 = vmatprep.subr.mxu0 0.0
    %988 = vmatpush1.msra.mxu0 0.0
    %989 = vmatprep.subr.mxu0 0.0
    %990 = vmatpush1.msra.mxu0 0.0
    %991 = vmatprep.subr.mxu0 0.0
    %992 = vmatpush1.msra.mxu0 0.0
    %993 = vmatprep.subr.mxu0 0.0
    %994 = vmatpush1.msra.mxu0 0.0
    %995 = vmatprep.subr.mxu0 0.0
    %996 = vmatpush1.msra.mxu0 0.0
    %997 = vmatprep.subr.mxu0 0.0
    %998 = vmatpush1.msra.mxu0 0.0
    %999 = vmatprep.subr.mxu0 0.0
    %1000 = vmatpush1.msra.mxu0 0.0
    %1001 = vmatprep.subr.mxu0 0.0
    %1002 = vmatpush1.msra.mxu0 0.0
    %1003 = vmatprep.subr.mxu0 0.0
    %1004 = vmatpush1.msra.mxu0 0.0
    %1005 = vmatprep.subr.mxu0 0.0
    %1006 = vmatpush1.msra.mxu0 0.0
    %1007 = vmatprep.subr.mxu0 0.0
    %1008 = vmatpush1.msra.mxu0 0.0
    %1009 = vmatprep.subr.mxu0 0.0
    %1010 = vmatpush1.msra.mxu0 0.0
    %1011 = vmatprep.subr.mxu0 0.0
    %1012 = vmatpush1.msra.mxu0 0.0
    %1013 = vmatprep.subr.mxu0 0.0
    %1014 = vmatpush1.msra.mxu0 0.0
    %1015 = vmatprep.subr.mxu0 0.0
    %1016 = vmatpush1.msra.mxu0 0.0
    %1017 = vmatprep.subr.mxu0 0.0
    %1018 = vmatpush1.msra.mxu0 0.0
    %1019 = vmatprep.subr.mxu0 0.0
    %1020 = vmatpush1.msra.mxu0 0.0
    %1021 = vmatprep.subr.mxu0 0.0
    %1022 = vmatpush1.msra.mxu0 0.0
    %1023 = vmatprep.subr.mxu0 0.0
    %1024 = vmatpush1.msra.mxu0 0.0
    %1025 = vmatprep.subr.mxu0 0.0
    %1026 = vmatpush1.msra.mxu0 0.0
    %1027 = vmatprep.subr.mxu0 0.0
    %1028 = vmatpush1.msra.mxu0 0.0
    %1029 = vmatprep.subr.mxu0 0.0
    %1030 = vmatpush1.msra.mxu0 0.0
    %1031 = vmatprep.subr.mxu0 0.0
    %1032 = vmatpush1.msra.mxu0 0.0
    %1033 = vmatprep.subr.mxu0 0.0
    %1034 = vmatpush1.msra.mxu0 0.0
    %1035 = vmatprep.subr.mxu0 0.0
    %1036 = vmatpush1.msra.mxu0 0.0
    %1037 = vmatprep.subr.mxu0 0.0
    %1038 = vmatpush1.msra.mxu0 0.0
    %1039 = vmatprep.subr.mxu0 0.0
    %1040 = vmatpush1.msra.mxu0 0.0
    %1041 = vmatprep.subr.mxu0 0.0
    %1042 = vmatpush1.msra.mxu0 0.0
    %1043 = vmatprep.subr.mxu0 0.0
    %1044 = vmatpush1.msra.mxu0 0.0
    %1045 = vmatprep.mubr.f32.mxu0 0.0
    %1046 = vmatmul.mubr.f32.gmra.mrb[0].mxu0 %v979
    %v1047 = vpop.f32.mrb[0].mxu0
    %v1048 = vadd.f32 0.0, %v1047
    %v1049 = vpop.f32.mrb[0].mxu0
    %1050 = vdwg.mxu0
    %1051 = vrot.lane.b32.xlu0 %v386, 96
    %v1052 = vpop.permute.xlu0 %1051
    %1053 = vrot.lane.b32.xlu0 %v386, 32
    %v1054 = vpop.permute.xlu0 %1053
    %v1055 = vsel %vm225, %v1052, 0
    %v1057 = vsel %vm225, %v1054, 0
    %1059 = vmatprep.subr.mxu0 0.0
    %1060 = vmatpush1.xpose.msra.mxu0 %v1057
    %1061 = vmatprep.subr.mxu0 0.0
    %1062 = vmatpush1.xpose.msra.mxu0 0.0
    %1063 = vmatprep.subr.mxu0 0.0
    %1064 = vmatpush1.xpose.msra.mxu0 0.0
    %1065 = vmatprep.subr.mxu0 0.0
    %1066 = vmatpush1.xpose.msra.mxu0 0.0
    %1067 = vmatprep.subr.mxu0 0.0
    %1068 = vmatpush1.xpose.msra.mxu0 0.0
    %1069 = vmatprep.subr.mxu0 0.0
    %1070 = vmatpush1.xpose.msra.mxu0 0.0
    %1071 = vmatprep.subr.mxu0 0.0
    %1072 = vmatpush1.xpose.msra.mxu0 0.0
    %1073 = vmatprep.subr.mxu0 0.0
    %1074 = vmatpush1.xpose.msra.mxu0 0.0
    %1075 = vmatprep.subr.mxu0 0.0
    %1076 = vmatpush1.xpose.msra.mxu0 0.0
    %1077 = vmatprep.subr.mxu0 0.0
    %1078 = vmatpush1.xpose.msra.mxu0 0.0
    %1079 = vmatprep.subr.mxu0 0.0
    %1080 = vmatpush1.xpose.msra.mxu0 0.0
    %1081 = vmatprep.subr.mxu0 0.0
    %1082 = vmatpush1.xpose.msra.mxu0 0.0
    %1083 = vmatprep.subr.mxu0 0.0
    %1084 = vmatpush1.xpose.msra.mxu0 0.0
    %1085 = vmatprep.subr.mxu0 0.0
    %1086 = vmatpush1.xpose.msra.mxu0 0.0
    %1087 = vmatprep.subr.mxu0 0.0
    %1088 = vmatpush1.xpose.msra.mxu0 0.0
    %1089 = vmatprep.subr.mxu0 0.0
    %1090 = vmatpush1.xpose.msra.mxu0 0.0
    %1091 = vmatprep.subr.mxu0 0.0
    %1092 = vmatpush1.xpose.msra.mxu0 0.0
    %1093 = vmatprep.subr.mxu0 0.0
    %1094 = vmatpush1.xpose.msra.mxu0 0.0
    %1095 = vmatprep.subr.mxu0 0.0
    %1096 = vmatpush1.xpose.msra.mxu0 0.0
    %1097 = vmatprep.subr.mxu0 0.0
    %1098 = vmatpush1.xpose.msra.mxu0 0.0
    %1099 = vmatprep.subr.mxu0 0.0
    %1100 = vmatpush1.xpose.msra.mxu0 0.0
    %1101 = vmatprep.subr.mxu0 0.0
    %1102 = vmatpush1.xpose.msra.mxu0 0.0
    %1103 = vmatprep.subr.mxu0 0.0
    %1104 = vmatpush1.xpose.msra.mxu0 0.0
    %1105 = vmatprep.subr.mxu0 0.0
    %1106 = vmatpush1.xpose.msra.mxu0 0.0
    %1107 = vmatprep.subr.mxu0 0.0
    %1108 = vmatpush1.xpose.msra.mxu0 0.0
    %1109 = vmatprep.subr.mxu0 0.0
    %1110 = vmatpush1.xpose.msra.mxu0 0.0
    %1111 = vmatprep.subr.mxu0 0.0
    %1112 = vmatpush1.xpose.msra.mxu0 0.0
    %1113 = vmatprep.subr.mxu0 0.0
    %1114 = vmatpush1.xpose.msra.mxu0 0.0
    %1115 = vmatprep.subr.mxu0 0.0
    %1116 = vmatpush1.xpose.msra.mxu0 0.0
    %1117 = vmatprep.subr.mxu0 0.0
    %1118 = vmatpush1.xpose.msra.mxu0 0.0
    %1119 = vmatprep.subr.mxu0 0.0
    %1120 = vmatpush1.xpose.msra.mxu0 0.0
    %1121 = vmatprep.subr.mxu0 0.0
    %1122 = vmatpush1.xpose.msra.mxu0 0.0
    %1123 = vmatprep.mubr.f32.mxu0 0.0
    %1124 = vmatmul.mubr.f32.gmra.mrb[0].mxu0 %v1055
    %v1125 = vpop.f32.mrb[0].mxu0
    %v1126 = vadd.f32 0.0, %v1125
    %v1127 = vpop.f32.mrb[0].mxu0
    %1128 = vdwg.mxu0
    %v1129 = vmul.f32 %v1126, 0.35355338
    %v1130 = vsel %vm225, %v1129, -inf
    %1131 = vmax.xlane.f32.xlu0 %v1130
    %v1132 = vpop.xlane.xlu0 %1131
    %v1133 = vsub.f32 %v1129, %v1132
    %v1134 = vmul.f32 %v1133, 1.442695
    %v1135 = vpow.pop %v1134
    %v1136 = vsel %vm225, %v1135, 0.0
    %1137 = vadd.xlane.f32.xlu0 %v1136
    %v1138 = vpop.xlane.xlu0 %1137
    %v1139 = vrcp.pop %v1138
    %v1140 = vmul.f32 %v1135, %v1139
    %1141 = vrot.lane.b32.xlu0 %v388, 96
    %v1142 = vpop.permute.xlu0 %1141
    %v1145 = vsel %vm225, %v1140, 0
    %1147 = vmatprep.subr.mxu0 0.0
    %1148 = vmatpush1.msra.mxu0 %v1142
    %1149 = vmatprep.subr.mxu0 0.0
    %1150 = vmatpush1.msra.mxu0 0.0
    %1151 = vmatprep.subr.mxu0 0.0
    %1152 = vmatpush1.msra.mxu0 0.0
    %1153 = vmatprep.subr.mxu0 0.0
    %1154 = vmatpush1.msra.mxu0 0.0
    %1155 = vmatprep.subr.mxu0 0.0
    %1156 = vmatpush1.msra.mxu0 0.0
    %1157 = vmatprep.subr.mxu0 0.0
    %1158 = vmatpush1.msra.mxu0 0.0
    %1159 = vmatprep.subr.mxu0 0.0
    %1160 = vmatpush1.msra.mxu0 0.0
    %1161 = vmatprep.subr.mxu0 0.0
    %1162 = vmatpush1.msra.mxu0 0.0
    %1163 = vmatprep.subr.mxu0 0.0
    %1164 = vmatpush1.msra.mxu0 0.0
    %1165 = vmatprep.subr.mxu0 0.0
    %1166 = vmatpush1.msra.mxu0 0.0
    %1167 = vmatprep.subr.mxu0 0.0
    %1168 = vmatpush1.msra.mxu0 0.0
    %1169 = vmatprep.subr.mxu0 0.0
    %1170 = vmatpush1.msra.mxu0 0.0
    %1171 = vmatprep.subr.mxu0 0.0
    %1172 = vmatpush1.msra.mxu0 0.0
    %1173 = vmatprep.subr.mxu0 0.0
    %1174 = vmatpush1.msra.mxu0 0.0
    %1175 = vmatprep.subr.mxu0 0.0
    %1176 = vmatpush1.msra.mxu0 0.0
    %1177 = vmatprep.subr.mxu0 0.0
    %1178 = vmatpush1.msra.mxu0 0.0
    %1179 = vmatprep.subr.mxu0 0.0
    %1180 = vmatpush1.msra.mxu0 0.0
    %1181 = vmatprep.subr.mxu0 0.0
    %1182 = vmatpush1.msra.mxu0 0.0
    %1183 = vmatprep.subr.mxu0 0.0
    %1184 = vmatpush1.msra.mxu0 0.0
    %1185 = vmatprep.subr.mxu0 0.0
    %1186 = vmatpush1.msra.mxu0 0.0
    %1187 = vmatprep.subr.mxu0 0.0
    %1188 = vmatpush1.msra.mxu0 0.0
    %1189 = vmatprep.subr.mxu0 0.0
    %1190 = vmatpush1.msra.mxu0 0.0
    %1191 = vmatprep.subr.mxu0 0.0
    %1192 = vmatpush1.msra.mxu0 0.0
    %1193 = vmatprep.subr.mxu0 0.0
    %1194 = vmatpush1.msra.mxu0 0.0
    %1195 = vmatprep.subr.mxu0 0.0
    %1196 = vmatpush1.msra.mxu0 0.0
    %1197 = vmatprep.subr.mxu0 0.0
    %1198 = vmatpush1.msra.mxu0 0.0
    %1199 = vmatprep.subr.mxu0 0.0
    %1200 = vmatpush1.msra.mxu0 0.0
    %1201 = vmatprep.subr.mxu0 0.0
    %1202 = vmatpush1.msra.mxu0 0.0
    %1203 = vmatprep.subr.mxu0 0.0
    %1204 = vmatpush1.msra.mxu0 0.0
    %1205 = vmatprep.subr.mxu0 0.0
    %1206 = vmatpush1.msra.mxu0 0.0
    %1207 = vmatprep.subr.mxu0 0.0
    %1208 = vmatpush1.msra.mxu0 0.0
    %1209 = vmatprep.subr.mxu0 0.0
    %1210 = vmatpush1.msra.mxu0 0.0
    %1211 = vmatprep.mubr.f32.mxu0 0.0
    %1212 = vmatmul.mubr.f32.gmra.mrb[0].mxu0 %v1145
    %v1213 = vpop.f32.mrb[0].mxu0
    %v1214 = vadd.f32 0.0, %v1213
    %v1215 = vpop.f32.mrb[0].mxu0
    %1216 = vdwg.mxu0
    %1217 = vrot.lane.b32.xlu0 %v386, 88
    %v1218 = vpop.permute.xlu0 %1217
    %1219 = vrot.lane.b32.xlu0 %v386, 24
    %v1220 = vpop.permute.xlu0 %1219
    %v1221 = vsel %vm225, %v1218, 0
    %v1223 = vsel %vm225, %v1220, 0
    %1225 = vmatprep.subr.mxu0 0.0
    %1226 = vmatpush1.xpose.msra.mxu0 %v1223
    %1227 = vmatprep.subr.mxu0 0.0
    %1228 = vmatpush1.xpose.msra.mxu0 0.0
    %1229 = vmatprep.subr.mxu0 0.0
    %1230 = vmatpush1.xpose.msra.mxu0 0.0
    %1231 = vmatprep.subr.mxu0 0.0
    %1232 = vmatpush1.xpose.msra.mxu0 0.0
    %1233 = vmatprep.subr.mxu0 0.0
    %1234 = vmatpush1.xpose.msra.mxu0 0.0
    %1235 = vmatprep.subr.mxu0 0.0
    %1236 = vmatpush1.xpose.msra.mxu0 0.0
    %1237 = vmatprep.subr.mxu0 0.0
    %1238 = vmatpush1.xpose.msra.mxu0 0.0
    %1239 = vmatprep.subr.mxu0 0.0
    %1240 = vmatpush1.xpose.msra.mxu0 0.0
    %1241 = vmatprep.subr.mxu0 0.0
    %1242 = vmatpush1.xpose.msra.mxu0 0.0
    %1243 = vmatprep.subr.mxu0 0.0
    %1244 = vmatpush1.xpose.msra.mxu0 0.0
    %1245 = vmatprep.subr.mxu0 0.0
    %1246 = vmatpush1.xpose.msra.mxu0 0.0
    %1247 = vmatprep.subr.mxu0 0.0
    %1248 = vmatpush1.xpose.msra.mxu0 0.0
    %1249 = vmatprep.subr.mxu0 0.0
    %1250 = vmatpush1.xpose.msra.mxu0 0.0
    %1251 = vmatprep.subr.mxu0 0.0
    %1252 = vmatpush1.xpose.msra.mxu0 0.0
    %1253 = vmatprep.subr.mxu0 0.0
    %1254 = vmatpush1.xpose.msra.mxu0 0.0
    %1255 = vmatprep.subr.mxu0 0.0
    %1256 = vmatpush1.xpose.msra.mxu0 0.0
    %1257 = vmatprep.subr.mxu0 0.0
    %1258 = vmatpush1.xpose.msra.mxu0 0.0
    %1259 = vmatprep.subr.mxu0 0.0
    %1260 = vmatpush1.xpose.msra.mxu0 0.0
    %1261 = vmatprep.subr.mxu0 0.0
    %1262 = vmatpush1.xpose.msra.mxu0 0.0
    %1263 = vmatprep.subr.mxu0 0.0
    %1264 = vmatpush1.xpose.msra.mxu0 0.0
    %1265 = vmatprep.subr.mxu0 0.0
    %1266 = vmatpush1.xpose.msra.mxu0 0.0
    %1267 = vmatprep.subr.mxu0 0.0
    %1268 = vmatpush1.xpose.msra.mxu0 0.0
    %1269 = vmatprep.subr.mxu0 0.0
    %1270 = vmatpush1.xpose.msra.mxu0 0.0
    %1271 = vmatprep.subr.mxu0 0.0
    %1272 = vmatpush1.xpose.msra.mxu0 0.0
    %1273 = vmatprep.subr.mxu0 0.0
    %1274 = vmatpush1.xpose.msra.mxu0 0.0
    %1275 = vmatprep.subr.mxu0 0.0
    %1276 = vmatpush1.xpose.msra.mxu0 0.0
    %1277 = vmatprep.subr.mxu0 0.0
    %1278 = vmatpush1.xpose.msra.mxu0 0.0
    %1279 = vmatprep.subr.mxu0 0.0
    %1280 = vmatpush1.xpose.msra.mxu0 0.0
    %1281 = vmatprep.subr.mxu0 0.0
    %1282 = vmatpush1.xpose.msra.mxu0 0.0
    %1283 = vmatprep.subr.mxu0 0.0
    %1284 = vmatpush1.xpose.msra.mxu0 0.0
    %1285 = vmatprep.subr.mxu0 0.0
    %1286 = vmatpush1.xpose.msra.mxu0 0.0
    %1287 = vmatprep.subr.mxu0 0.0
    %1288 = vmatpush1.xpose.msra.mxu0 0.0
    %1289 = vmatprep.mubr.f32.mxu0 0.0
    %1290 = vmatmul.mubr.f32.gmra.mrb[0].mxu0 %v1221
    %v1291 = vpop.f32.mrb[0].mxu0
    %v1292 = vadd.f32 0.0, %v1291
    %v1293 = vpop.f32.mrb[0].mxu0
    %1294 = vdwg.mxu0
    %v1295 = vmul.f32 %v1292, 0.35355338
    %v1296 = vsel %vm225, %v1295, -inf
    %1297 = vmax.xlane.f32.xlu0 %v1296
    %v1298 = vpop.xlane.xlu0 %1297
    %v1299 = vsub.f32 %v1295, %v1298
    %v1300 = vmul.f32 %v1299, 1.442695
    %v1301 = vpow.pop %v1300
    %v1302 = vsel %vm225, %v1301, 0.0
    %1303 = vadd.xlane.f32.xlu0 %v1302
    %v1304 = vpop.xlane.xlu0 %1303
    %v1305 = vrcp.pop %v1304
    %v1306 = vmul.f32 %v1301, %v1305
    %1307 = vrot.lane.b32.xlu0 %v388, 88
    %v1308 = vpop.permute.xlu0 %1307
    %v1311 = vsel %vm225, %v1306, 0
    %1313 = vmatprep.subr.mxu0 0.0
    %1314 = vmatpush1.msra.mxu0 %v1308
    %1315 = vmatprep.subr.mxu0 0.0
    %1316 = vmatpush1.msra.mxu0 0.0
    %1317 = vmatprep.subr.mxu0 0.0
    %1318 = vmatpush1.msra.mxu0 0.0
    %1319 = vmatprep.subr.mxu0 0.0
    %1320 = vmatpush1.msra.mxu0 0.0
    %1321 = vmatprep.subr.mxu0 0.0
    %1322 = vmatpush1.msra.mxu0 0.0
    %1323 = vmatprep.subr.mxu0 0.0
    %1324 = vmatpush1.msra.mxu0 0.0
    %1325 = vmatprep.subr.mxu0 0.0
    %1326 = vmatpush1.msra.mxu0 0.0
    %1327 = vmatprep.subr.mxu0 0.0
    %1328 = vmatpush1.msra.mxu0 0.0
    %1329 = vmatprep.subr.mxu0 0.0
    %1330 = vmatpush1.msra.mxu0 0.0
    %1331 = vmatprep.subr.mxu0 0.0
    %1332 = vmatpush1.msra.mxu0 0.0
    %1333 = vmatprep.subr.mxu0 0.0
    %1334 = vmatpush1.msra.mxu0 0.0
    %1335 = vmatprep.subr.mxu0 0.0
    %1336 = vmatpush1.msra.mxu0 0.0
    %1337 = vmatprep.subr.mxu0 0.0
    %1338 = vmatpush1.msra.mxu0 0.0
    %1339 = vmatprep.subr.mxu0 0.0
    %1340 = vmatpush1.msra.mxu0 0.0
    %1341 = vmatprep.subr.mxu0 0.0
    %1342 = vmatpush1.msra.mxu0 0.0
    %1343 = vmatprep.subr.mxu0 0.0
    %1344 = vmatpush1.msra.mxu0 0.0
    %1345 = vmatprep.subr.mxu0 0.0
    %1346 = vmatpush1.msra.mxu0 0.0
    %1347 = vmatprep.subr.mxu0 0.0
    %1348 = vmatpush1.msra.mxu0 0.0
    %1349 = vmatprep.subr.mxu0 0.0
    %1350 = vmatpush1.msra.mxu0 0.0
    %1351 = vmatprep.subr.mxu0 0.0
    %1352 = vmatpush1.msra.mxu0 0.0
    %1353 = vmatprep.subr.mxu0 0.0
    %1354 = vmatpush1.msra.mxu0 0.0
    %1355 = vmatprep.subr.mxu0 0.0
    %1356 = vmatpush1.msra.mxu0 0.0
    %1357 = vmatprep.subr.mxu0 0.0
    %1358 = vmatpush1.msra.mxu0 0.0
    %1359 = vmatprep.subr.mxu0 0.0
    %1360 = vmatpush1.msra.mxu0 0.0
    %1361 = vmatprep.subr.mxu0 0.0
    %1362 = vmatpush1.msra.mxu0 0.0
    %1363 = vmatprep.subr.mxu0 0.0
    %1364 = vmatpush1.msra.mxu0 0.0
    %1365 = vmatprep.subr.mxu0 0.0
    %1366 = vmatpush1.msra.mxu0 0.0
    %1367 = vmatprep.subr.mxu0 0.0
    %1368 = vmatpush1.msra.mxu0 0.0
    %1369 = vmatprep.subr.mxu0 0.0
    %1370 = vmatpush1.msra.mxu0 0.0
    %1371 = vmatprep.subr.mxu0 0.0
    %1372 = vmatpush1.msra.mxu0 0.0
    %1373 = vmatprep.subr.mxu0 0.0
    %1374 = vmatpush1.msra.mxu0 0.0
    %1375 = vmatprep.subr.mxu0 0.0
    %1376 = vmatpush1.msra.mxu0 0.0
    %1377 = vmatprep.mubr.f32.mxu0 0.0
    %1378 = vmatmul.mubr.f32.gmra.mrb[0].mxu0 %v1311
    %v1379 = vpop.f32.mrb[0].mxu0
    %v1380 = vadd.f32 0.0, %v1379
    %v1381 = vpop.f32.mrb[0].mxu0
    %1382 = vdwg.mxu0
    %1383 = vrot.lane.b32.xlu0 %v386, 80
    %v1384 = vpop.permute.xlu0 %1383
    %1385 = vrot.lane.b32.xlu0 %v386, 16
    %v1386 = vpop.permute.xlu0 %1385
    %v1387 = vsel %vm225, %v1384, 0
    %v1389 = vsel %vm225, %v1386, 0
    %1391 = vmatprep.subr.mxu0 0.0
    %1392 = vmatpush1.xpose.msra.mxu0 %v1389
    %1393 = vmatprep.subr.mxu0 0.0
    %1394 = vmatpush1.xpose.msra.mxu0 0.0
    %1395 = vmatprep.subr.mxu0 0.0
    %1396 = vmatpush1.xpose.msra.mxu0 0.0
    %1397 = vmatprep.subr.mxu0 0.0
    %1398 = vmatpush1.xpose.msra.mxu0 0.0
    %1399 = vmatprep.subr.mxu0 0.0
    %1400 = vmatpush1.xpose.msra.mxu0 0.0
    %1401 = vmatprep.subr.mxu0 0.0
    %1402 = vmatpush1.xpose.msra.mxu0 0.0
    %1403 = vmatprep.subr.mxu0 0.0
    %1404 = vmatpush1.xpose.msra.mxu0 0.0
    %1405 = vmatprep.subr.mxu0 0.0
    %1406 = vmatpush1.xpose.msra.mxu0 0.0
    %1407 = vmatprep.subr.mxu0 0.0
    %1408 = vmatpush1.xpose.msra.mxu0 0.0
    %1409 = vmatprep.subr.mxu0 0.0
    %1410 = vmatpush1.xpose.msra.mxu0 0.0
    %1411 = vmatprep.subr.mxu0 0.0
    %1412 = vmatpush1.xpose.msra.mxu0 0.0
    %1413 = vmatprep.subr.mxu0 0.0
    %1414 = vmatpush1.xpose.msra.mxu0 0.0
    %1415 = vmatprep.subr.mxu0 0.0
    %1416 = vmatpush1.xpose.msra.mxu0 0.0
    %1417 = vmatprep.subr.mxu0 0.0
    %1418 = vmatpush1.xpose.msra.mxu0 0.0
    %1419 = vmatprep.subr.mxu0 0.0
    %1420 = vmatpush1.xpose.msra.mxu0 0.0
    %1421 = vmatprep.subr.mxu0 0.0
    %1422 = vmatpush1.xpose.msra.mxu0 0.0
    %1423 = vmatprep.subr.mxu0 0.0
    %1424 = vmatpush1.xpose.msra.mxu0 0.0
    %1425 = vmatprep.subr.mxu0 0.0
    %1426 = vmatpush1.xpose.msra.mxu0 0.0
    %1427 = vmatprep.subr.mxu0 0.0
    %1428 = vmatpush1.xpose.msra.mxu0 0.0
    %1429 = vmatprep.subr.mxu0 0.0
    %1430 = vmatpush1.xpose.msra.mxu0 0.0
    %1431 = vmatprep.subr.mxu0 0.0
    %1432 = vmatpush1.xpose.msra.mxu0 0.0
    %1433 = vmatprep.subr.mxu0 0.0
    %1434 = vmatpush1.xpose.msra.mxu0 0.0
    %1435 = vmatprep.subr.mxu0 0.0
    %1436 = vmatpush1.xpose.msra.mxu0 0.0
    %1437 = vmatprep.subr.mxu0 0.0
    %1438 = vmatpush1.xpose.msra.mxu0 0.0
    %1439 = vmatprep.subr.mxu0 0.0
    %1440 = vmatpush1.xpose.msra.mxu0 0.0
    %1441 = vmatprep.subr.mxu0 0.0
    %1442 = vmatpush1.xpose.msra.mxu0 0.0
    %1443 = vmatprep.subr.mxu0 0.0
    %1444 = vmatpush1.xpose.msra.mxu0 0.0
    %1445 = vmatprep.subr.mxu0 0.0
    %1446 = vmatpush1.xpose.msra.mxu0 0.0
    %1447 = vmatprep.subr.mxu0 0.0
    %1448 = vmatpush1.xpose.msra.mxu0 0.0
    %1449 = vmatprep.subr.mxu0 0.0
    %1450 = vmatpush1.xpose.msra.mxu0 0.0
    %1451 = vmatprep.subr.mxu0 0.0
    %1452 = vmatpush1.xpose.msra.mxu0 0.0
    %1453 = vmatprep.subr.mxu0 0.0
    %1454 = vmatpush1.xpose.msra.mxu0 0.0
    %1455 = vmatprep.mubr.f32.mxu0 0.0
    %1456 = vmatmul.mubr.f32.gmra.mrb[0].mxu0 %v1387
    %v1457 = vpop.f32.mrb[0].mxu0
    %v1458 = vadd.f32 0.0, %v1457
    %v1459 = vpop.f32.mrb[0].mxu0
    %1460 = vdwg.mxu0
    %v1461 = vmul.f32 %v1458, 0.35355338
    %v1462 = vsel %vm225, %v1461, -inf
    %1463 = vmax.xlane.f32.xlu0 %v1462
    %v1464 = vpop.xlane.xlu0 %1463
    %v1465 = vsub.f32 %v1461, %v1464
    %v1466 = vmul.f32 %v1465, 1.442695
    %v1467 = vpow.pop %v1466
    %v1468 = vsel %vm225, %v1467, 0.0
    %1469 = vadd.xlane.f32.xlu0 %v1468
    %v1470 = vpop.xlane.xlu0 %1469
    %v1471 = vrcp.pop %v1470
    %v1472 = vmul.f32 %v1467, %v1471
    %1473 = vrot.lane.b32.xlu0 %v388, 80
    %v1474 = vpop.permute.xlu0 %1473
    %v1477 = vsel %vm225, %v1472, 0
    %1479 = vmatprep.subr.mxu0 0.0
    %1480 = vmatpush1.msra.mxu0 %v1474
    %1481 = vmatprep.subr.mxu0 0.0
    %1482 = vmatpush1.msra.mxu0 0.0
    %1483 = vmatprep.subr.mxu0 0.0
    %1484 = vmatpush1.msra.mxu0 0.0
    %1485 = vmatprep.subr.mxu0 0.0
    %1486 = vmatpush1.msra.mxu0 0.0
    %1487 = vmatprep.subr.mxu0 0.0
    %1488 = vmatpush1.msra.mxu0 0.0
    %1489 = vmatprep.subr.mxu0 0.0
    %1490 = vmatpush1.msra.mxu0 0.0
    %1491 = vmatprep.subr.mxu0 0.0
    %1492 = vmatpush1.msra.mxu0 0.0
    %1493 = vmatprep.subr.mxu0 0.0
    %1494 = vmatpush1.msra.mxu0 0.0
    %1495 = vmatprep.subr.mxu0 0.0
    %1496 = vmatpush1.msra.mxu0 0.0
    %1497 = vmatprep.subr.mxu0 0.0
    %1498 = vmatpush1.msra.mxu0 0.0
    %1499 = vmatprep.subr.mxu0 0.0
    %1500 = vmatpush1.msra.mxu0 0.0
    %1501 = vmatprep.subr.mxu0 0.0
    %1502 = vmatpush1.msra.mxu0 0.0
    %1503 = vmatprep.subr.mxu0 0.0
    %1504 = vmatpush1.msra.mxu0 0.0
    %1505 = vmatprep.subr.mxu0 0.0
    %1506 = vmatpush1.msra.mxu0 0.0
    %1507 = vmatprep.subr.mxu0 0.0
    %1508 = vmatpush1.msra.mxu0 0.0
    %1509 = vmatprep.subr.mxu0 0.0
    %1510 = vmatpush1.msra.mxu0 0.0
    %1511 = vmatprep.subr.mxu0 0.0
    %1512 = vmatpush1.msra.mxu0 0.0
    %1513 = vmatprep.subr.mxu0 0.0
    %1514 = vmatpush1.msra.mxu0 0.0
    %1515 = vmatprep.subr.mxu0 0.0
    %1516 = vmatpush1.msra.mxu0 0.0
    %1517 = vmatprep.subr.mxu0 0.0
    %1518 = vmatpush1.msra.mxu0 0.0
    %1519 = vmatprep.subr.mxu0 0.0
    %1520 = vmatpush1.msra.mxu0 0.0
    %1521 = vmatprep.subr.mxu0 0.0
    %1522 = vmatpush1.msra.mxu0 0.0
    %1523 = vmatprep.subr.mxu0 0.0
    %1524 = vmatpush1.msra.mxu0 0.0
    %1525 = vmatprep.subr.mxu0 0.0
    %1526 = vmatpush1.msra.mxu0 0.0
    %1527 = vmatprep.subr.mxu0 0.0
    %1528 = vmatpush1.msra.mxu0 0.0
    %1529 = vmatprep.subr.mxu0 0.0
    %1530 = vmatpush1.msra.mxu0 0.0
    %1531 = vmatprep.subr.mxu0 0.0
    %1532 = vmatpush1.msra.mxu0 0.0
    %1533 = vmatprep.subr.mxu0 0.0
    %1534 = vmatpush1.msra.mxu0 0.0
    %1535 = vmatprep.subr.mxu0 0.0
    %1536 = vmatpush1.msra.mxu0 0.0
    %1537 = vmatprep.subr.mxu0 0.0
    %1538 = vmatpush1.msra.mxu0 0.0
    %1539 = vmatprep.subr.mxu0 0.0
    %1540 = vmatpush1.msra.mxu0 0.0
    %1541 = vmatprep.subr.mxu0 0.0
    %1542 = vmatpush1.msra.mxu0 0.0
    %1543 = vmatprep.mubr.f32.mxu0 0.0
    %1544 = vmatmul.mubr.f32.gmra.mrb[0].mxu0 %v1477
    %v1545 = vpop.f32.mrb[0].mxu0
    %v1546 = vadd.f32 0.0, %v1545
    %v1547 = vpop.f32.mrb[0].mxu0
    %1548 = vdwg.mxu0
    %1549 = vrot.lane.b32.xlu0 %v386, 72
    %v1550 = vpop.permute.xlu0 %1549
    %1551 = vrot.lane.b32.xlu0 %v386, 8
    %v1552 = vpop.permute.xlu0 %1551
    %v1553 = vsel %vm225, %v1550, 0
    %v1555 = vsel %vm225, %v1552, 0
    %1557 = vmatprep.subr.mxu0 0.0
    %1558 = vmatpush1.xpose.msra.mxu0 %v1555
    %1559 = vmatprep.subr.mxu0 0.0
    %1560 = vmatpush1.xpose.msra.mxu0 0.0
    %1561 = vmatprep.subr.mxu0 0.0
    %1562 = vmatpush1.xpose.msra.mxu0 0.0
    %1563 = vmatprep.subr.mxu0 0.0
    %1564 = vmatpush1.xpose.msra.mxu0 0.0
    %1565 = vmatprep.subr.mxu0 0.0
    %1566 = vmatpush1.xpose.msra.mxu0 0.0
    %1567 = vmatprep.subr.mxu0 0.0
    %1568 = vmatpush1.xpose.msra.mxu0 0.0
    %1569 = vmatprep.subr.mxu0 0.0
    %1570 = vmatpush1.xpose.msra.mxu0 0.0
    %1571 = vmatprep.subr.mxu0 0.0
    %1572 = vmatpush1.xpose.msra.mxu0 0.0
    %1573 = vmatprep.subr.mxu0 0.0
    %1574 = vmatpush1.xpose.msra.mxu0 0.0
    %1575 = vmatprep.subr.mxu0 0.0
    %1576 = vmatpush1.xpose.msra.mxu0 0.0
    %1577 = vmatprep.subr.mxu0 0.0
    %1578 = vmatpush1.xpose.msra.mxu0 0.0
    %1579 = vmatprep.subr.mxu0 0.0
    %1580 = vmatpush1.xpose.msra.mxu0 0.0
    %1581 = vmatprep.subr.mxu0 0.0
    %1582 = vmatpush1.xpose.msra.mxu0 0.0
    %1583 = vmatprep.subr.mxu0 0.0
    %1584 = vmatpush1.xpose.msra.mxu0 0.0
    %1585 = vmatprep.subr.mxu0 0.0
    %1586 = vmatpush1.xpose.msra.mxu0 0.0
    %1587 = vmatprep.subr.mxu0 0.0
    %1588 = vmatpush1.xpose.msra.mxu0 0.0
    %1589 = vmatprep.subr.mxu0 0.0
    %1590 = vmatpush1.xpose.msra.mxu0 0.0
    %1591 = vmatprep.subr.mxu0 0.0
    %1592 = vmatpush1.xpose.msra.mxu0 0.0
    %1593 = vmatprep.subr.mxu0 0.0
    %1594 = vmatpush1.xpose.msra.mxu0 0.0
    %1595 = vmatprep.subr.mxu0 0.0
    %1596 = vmatpush1.xpose.msra.mxu0 0.0
    %1597 = vmatprep.subr.mxu0 0.0
    %1598 = vmatpush1.xpose.msra.mxu0 0.0
    %1599 = vmatprep.subr.mxu0 0.0
    %1600 = vmatpush1.xpose.msra.mxu0 0.0
    %1601 = vmatprep.subr.mxu0 0.0
    %1602 = vmatpush1.xpose.msra.mxu0 0.0
    %1603 = vmatprep.subr.mxu0 0.0
    %1604 = vmatpush1.xpose.msra.mxu0 0.0
    %1605 = vmatprep.subr.mxu0 0.0
    %1606 = vmatpush1.xpose.msra.mxu0 0.0
    %1607 = vmatprep.subr.mxu0 0.0
    %1608 = vmatpush1.xpose.msra.mxu0 0.0
    %1609 = vmatprep.subr.mxu0 0.0
    %1610 = vmatpush1.xpose.msra.mxu0 0.0
    %1611 = vmatprep.subr.mxu0 0.0
    %1612 = vmatpush1.xpose.msra.mxu0 0.0
    %1613 = vmatprep.subr.mxu0 0.0
    %1614 = vmatpush1.xpose.msra.mxu0 0.0
    %1615 = vmatprep.subr.mxu0 0.0
    %1616 = vmatpush1.xpose.msra.mxu0 0.0
    %1617 = vmatprep.subr.mxu0 0.0
    %1618 = vmatpush1.xpose.msra.mxu0 0.0
    %1619 = vmatprep.subr.mxu0 0.0
    %1620 = vmatpush1.xpose.msra.mxu0 0.0
    %1621 = vmatprep.mubr.f32.mxu0 0.0
    %1622 = vmatmul.mubr.f32.gmra.mrb[0].mxu0 %v1553
    %v1623 = vpop.f32.mrb[0].mxu0
    %v1624 = vadd.f32 0.0, %v1623
    %v1625 = vpop.f32.mrb[0].mxu0
    %1626 = vdwg.mxu0
    %v1627 = vmul.f32 %v1624, 0.35355338
    %v1628 = vsel %vm225, %v1627, -inf
    %1629 = vmax.xlane.f32.xlu0 %v1628
    %v1630 = vpop.xlane.xlu0 %1629
    %v1631 = vsub.f32 %v1627, %v1630
    %v1632 = vmul.f32 %v1631, 1.442695
    %v1633 = vpow.pop %v1632
    %v1634 = vsel %vm225, %v1633, 0.0
    %1635 = vadd.xlane.f32.xlu0 %v1634
    %v1636 = vpop.xlane.xlu0 %1635
    %v1637 = vrcp.pop %v1636
    %v1638 = vmul.f32 %v1633, %v1637
    %1639 = vrot.lane.b32.xlu0 %v388, 72
    %v1640 = vpop.permute.xlu0 %1639
    %v1643 = vsel %vm225, %v1638, 0
    %1645 = vmatprep.subr.mxu0 0.0
    %1646 = vmatpush1.msra.mxu0 %v1640
    %1647 = vmatprep.subr.mxu0 0.0
    %1648 = vmatpush1.msra.mxu0 0.0
    %1649 = vmatprep.subr.mxu0 0.0
    %1650 = vmatpush1.msra.mxu0 0.0
    %1651 = vmatprep.subr.mxu0 0.0
    %1652 = vmatpush1.msra.mxu0 0.0
    %1653 = vmatprep.subr.mxu0 0.0
    %1654 = vmatpush1.msra.mxu0 0.0
    %1655 = vmatprep.subr.mxu0 0.0
    %1656 = vmatpush1.msra.mxu0 0.0
    %1657 = vmatprep.subr.mxu0 0.0
    %1658 = vmatpush1.msra.mxu0 0.0
    %1659 = vmatprep.subr.mxu0 0.0
    %1660 = vmatpush1.msra.mxu0 0.0
    %1661 = vmatprep.subr.mxu0 0.0
    %1662 = vmatpush1.msra.mxu0 0.0
    %1663 = vmatprep.subr.mxu0 0.0
    %1664 = vmatpush1.msra.mxu0 0.0
    %1665 = vmatprep.subr.mxu0 0.0
    %1666 = vmatpush1.msra.mxu0 0.0
    %1667 = vmatprep.subr.mxu0 0.0
    %1668 = vmatpush1.msra.mxu0 0.0
    %1669 = vmatprep.subr.mxu0 0.0
    %1670 = vmatpush1.msra.mxu0 0.0
    %1671 = vmatprep.subr.mxu0 0.0
    %1672 = vmatpush1.msra.mxu0 0.0
    %1673 = vmatprep.subr.mxu0 0.0
    %1674 = vmatpush1.msra.mxu0 0.0
    %1675 = vmatprep.subr.mxu0 0.0
    %1676 = vmatpush1.msra.mxu0 0.0
    %1677 = vmatprep.subr.mxu0 0.0
    %1678 = vmatpush1.msra.mxu0 0.0
    %1679 = vmatprep.subr.mxu0 0.0
    %1680 = vmatpush1.msra.mxu0 0.0
    %1681 = vmatprep.subr.mxu0 0.0
    %1682 = vmatpush1.msra.mxu0 0.0
    %1683 = vmatprep.subr.mxu0 0.0
    %1684 = vmatpush1.msra.mxu0 0.0
    %1685 = vmatprep.subr.mxu0 0.0
    %1686 = vmatpush1.msra.mxu0 0.0
    %1687 = vmatprep.subr.mxu0 0.0
    %1688 = vmatpush1.msra.mxu0 0.0
    %1689 = vmatprep.subr.mxu0 0.0
    %1690 = vmatpush1.msra.mxu0 0.0
    %1691 = vmatprep.subr.mxu0 0.0
    %1692 = vmatpush1.msra.mxu0 0.0
    %1693 = vmatprep.subr.mxu0 0.0
    %1694 = vmatpush1.msra.mxu0 0.0
    %1695 = vmatprep.subr.mxu0 0.0
    %1696 = vmatpush1.msra.mxu0 0.0
    %1697 = vmatprep.subr.mxu0 0.0
    %1698 = vmatpush1.msra.mxu0 0.0
    %1699 = vmatprep.subr.mxu0 0.0
    %1700 = vmatpush1.msra.mxu0 0.0
    %1701 = vmatprep.subr.mxu0 0.0
    %1702 = vmatpush1.msra.mxu0 0.0
    %1703 = vmatprep.subr.mxu0 0.0
    %1704 = vmatpush1.msra.mxu0 0.0
    %1705 = vmatprep.subr.mxu0 0.0
    %1706 = vmatpush1.msra.mxu0 0.0
    %1707 = vmatprep.subr.mxu0 0.0
    %1708 = vmatpush1.msra.mxu0 0.0
    %1709 = vmatprep.mubr.f32.mxu0 0.0
    %1710 = vmatmul.mubr.f32.gmra.mrb[0].mxu0 %v1643
    %v1711 = vpop.f32.mrb[0].mxu0
    %v1712 = vadd.f32 0.0, %v1711
    %v1713 = vpop.f32.mrb[0].mxu0
    %1714 = vdwg.mxu0
    %1716 = vrot.lane.b32.xlu0 %v716, 8
    %v1717 = vpop.permute.xlu0 %1716
    %1720 = vrot.lane.b32.xlu0 %v882, 16
    %v1721 = vpop.permute.xlu0 %1720
    %1724 = vrot.lane.b32.xlu0 %v1048, 24
    %v1725 = vpop.permute.xlu0 %1724
    %1728 = vrot.lane.b32.xlu0 %v1214, 32
    %v1729 = vpop.permute.xlu0 %1728
    %1732 = vrot.lane.b32.xlu0 %v1380, 40
    %v1733 = vpop.permute.xlu0 %1732
    %1736 = vrot.lane.b32.xlu0 %v1546, 48
    %v1737 = vpop.permute.xlu0 %1736
    %1740 = vrot.lane.b32.xlu0 %v1712, 56
    %v1741 = vpop.permute.xlu0 %1740
    %v1743 = vsel %vm225, %v549, %v1717
    %vm1744 = vcmask 130048
    %v1745 = vsel %vm1744, %v1743, %v1721
    %vm1746 = vcmask 195584
    %v1747 = vsel %vm1746, %v1745, %v1725
    %vm1748 = vcmask 261120
    %v1749 = vsel %vm1748, %v1747, %v1729
    %vm1750 = vcmask 326656
    %v1751 = vsel %vm1750, %v1749, %v1733
    %vm1752 = vcmask 392192
    %v1753 = vsel %vm1752, %v1751, %v1737
    %vm1754 = vcmask 457728
    %v1755 = vsel %vm1754, %v1753, %v1741
    %v1756 = vld [vmem:[%s11] sm:$0xff]
    %v1757 = vld [vmem:[%s13] sm:$0x1]
    %v1759 = vlaneseq
    %v1760 = vshrl.u32 %v1759, 7
    %v1761 = vsub.s32 0, %v1760
    %v1762 = vrot.slane %v1757, %v1761
    %vm1764 = vcmask 523264
    %v1766 = vsel %vm1764, %v1755, 0
    %v1769 = vsel %vm1764, %v1756, 0
    %1771 = vmatprep.subr.mxu0 0.0
    %1772 = vmatpush1.xpose.msra.mxu0 %v1769
    %1773 = vmatprep.subr.mxu0 0.0
    %1774 = vmatpush1.xpose.msra.mxu0 0.0
    %1775 = vmatprep.subr.mxu0 0.0
    %1776 = vmatpush1.xpose.msra.mxu0 0.0
    %1777 = vmatprep.subr.mxu0 0.0
    %1778 = vmatpush1.xpose.msra.mxu0 0.0
    %1779 = vmatprep.subr.mxu0 0.0
    %1780 = vmatpush1.xpose.msra.mxu0 0.0
    %1781 = vmatprep.subr.mxu0 0.0
    %1782 = vmatpush1.xpose.msra.mxu0 0.0
    %1783 = vmatprep.subr.mxu0 0.0
    %1784 = vmatpush1.xpose.msra.mxu0 0.0
    %1785 = vmatprep.subr.mxu0 0.0
    %1786 = vmatpush1.xpose.msra.mxu0 0.0
    %1787 = vmatprep.subr.mxu0 0.0
    %1788 = vmatpush1.xpose.msra.mxu0 0.0
    %1789 = vmatprep.subr.mxu0 0.0
    %1790 = vmatpush1.xpose.msra.mxu0 0.0
    %1791 = vmatprep.subr.mxu0 0.0
    %1792 = vmatpush1.xpose.msra.mxu0 0.0
    %1793 = vmatprep.subr.mxu0 0.0
    %1794 = vmatpush1.xpose.msra.mxu0 0.0
    %1795 = vmatprep.subr.mxu0 0.0
    %1796 = vmatpush1.xpose.msra.mxu0 0.0
    %1797 = vmatprep.subr.mxu0 0.0
    %1798 = vmatpush1.xpose.msra.mxu0 0.0
    %1799 = vmatprep.subr.mxu0 0.0
    %1800 = vmatpush1.xpose.msra.mxu0 0.0
    %1801 = vmatprep.subr.mxu0 0.0
    %1802 = vmatpush1.xpose.msra.mxu0 0.0
    %1803 = vmatprep.subr.mxu0 0.0
    %1804 = vmatpush1.xpose.msra.mxu0 0.0
    %1805 = vmatprep.subr.mxu0 0.0
    %1806 = vmatpush1.xpose.msra.mxu0 0.0
    %1807 = vmatprep.subr.mxu0 0.0
    %1808 = vmatpush1.xpose.msra.mxu0 0.0
    %1809 = vmatprep.subr.mxu0 0.0
    %1810 = vmatpush1.xpose.msra.mxu0 0.0
    %1811 = vmatprep.subr.mxu0 0.0
    %1812 = vmatpush1.xpose.msra.mxu0 0.0
    %1813 = vmatprep.subr.mxu0 0.0
    %1814 = vmatpush1.xpose.msra.mxu0 0.0
    %1815 = vmatprep.subr.mxu0 0.0
    %1816 = vmatpush1.xpose.msra.mxu0 0.0
    %1817 = vmatprep.subr.mxu0 0.0
    %1818 = vmatpush1.xpose.msra.mxu0 0.0
    %1819 = vmatprep.subr.mxu0 0.0
    %1820 = vmatpush1.xpose.msra.mxu0 0.0
    %1821 = vmatprep.subr.mxu0 0.0
    %1822 = vmatpush1.xpose.msra.mxu0 0.0
    %1823 = vmatprep.subr.mxu0 0.0
    %1824 = vmatpush1.xpose.msra.mxu0 0.0
    %1825 = vmatprep.subr.mxu0 0.0
    %1826 = vmatpush1.xpose.msra.mxu0 0.0
    %1827 = vmatprep.subr.mxu0 0.0
    %1828 = vmatpush1.xpose.msra.mxu0 0.0
    %1829 = vmatprep.subr.mxu0 0.0
    %1830 = vmatpush1.xpose.msra.mxu0 0.0
    %1831 = vmatprep.subr.mxu0 0.0
    %1832 = vmatpush1.xpose.msra.mxu0 0.0
    %1833 = vmatprep.subr.mxu0 0.0
    %1834 = vmatpush1.xpose.msra.mxu0 0.0
    %1835 = vmatprep.mubr.f32.mxu0 0.0
    %1836 = vmatmul.mubr.f32.gmra.mrb[0].mxu0 %v1766
    %v1837 = vpop.f32.mrb[0].mxu0
    %v1838 = vadd.f32 %v1762, %v1837
    %v1839 = vpop.f32.mrb[0].mxu0
    %1840 = vdwg.mxu0
    %v1841 = vld [vmem:[%s15] sm:$0x7]
    %v1842 = vld [vmem:[%s17] sm:$0x1]
    %v1843 = vrot.slane %v388, 7
    %vm1845 = vcmask 1040384
    %v1846 = vsel %vm1845, 0.0, %v1843
    %v1847 = vsel %vm1845, %v1843, 0.0
    %v1848 = vlaneseq
    %v1849 = vshrl.u32 %v1848, 7
    %v1850 = vsub.s32 0, %v1849
    %v1851 = vrot.slane %v1841, %v1850
    %v1852 = vmul.f32 %v1846, %v1851
    %v1853 = vadd.f32 %v1852, 0.0
    %v1854 = vlaneseq
    %v1855 = vshrl.u32 %v1854, 7
    %v1856 = vsub.s32 1, %v1855
    %v1857 = vrot.slane %v1841, %v1856
    %v1858 = vmul.f32 %v1846, %v1857
    %v1859 = vmul.f32 %v1847, %v1857
    %vm1862 = vcmask 1046528
    %v1863 = vrot.slane %v1858, 1
    %v1864 = vrot.slane %v1859, 1
    %v1865 = vsel %vm1862, %v1863, %v1864
    %v1867 = vadd.f32 %v1853, %v1865
    %v1868 = vlaneseq
    %v1869 = vshrl.u32 %v1868, 7
    %v1870 = vsub.s32 2, %v1869
    %v1871 = vrot.slane %v1841, %v1870
    %v1872 = vmul.f32 %v1846, %v1871
    %v1873 = vmul.f32 %v1847, %v1871
    %vm1876 = vcmask 1045504
    %v1877 = vrot.slane %v1872, 2
    %v1878 = vrot.slane %v1873, 2
    %v1879 = vsel %vm1876, %v1877, %v1878
    %v1881 = vadd.f32 %v1867, %v1879
    %v1883 = vlaneseq
    %v1884 = vshrl.u32 %v1883, 7
    %v1885 = vsub.s32 0, %v1884
    %v1886 = vrot.slane %v1842, %v1885
    %v1888 = vadd.f32 %v1881, %v1886
    %v1889 = vld [vmem:[%s19] sm:$0x1f]
    %v1890 = vld [vmem:[%s21] sm:$0x1]
    %v1891 = vrot.slane %v388, 6
    %vm1893 = vcmask 1041408
    %v1894 = vsel %vm1893, 0.0, %v1891
    %v1895 = vsel %vm1893, %v1891, 0.0
    %v1896 = vlaneseq
    %v1897 = vshrl.u32 %v1896, 7
    %v1898 = vsub.s32 0, %v1897
    %v1899 = vrot.slane %v1889, %v1898
    %v1900 = vmul.f32 %v1894, %v1899
    %v1901 = vadd.f32 %v1900, 0.0
    %v1902 = vlaneseq
    %v1903 = vshrl.u32 %v1902, 7
    %v1904 = vsub.s32 1, %v1903
    %v1905 = vrot.slane %v1889, %v1904
    %v1906 = vmul.f32 %v1894, %v1905
    %v1907 = vmul.f32 %v1895, %v1905
    %v1910 = vrot.slane %v1906, 1
    %v1911 = vrot.slane %v1907, 1
    %v1912 = vsel %vm1862, %v1910, %v1911
    %v1914 = vadd.f32 %v1901, %v1912
    %v1915 = vlaneseq
    %v1916 = vshrl.u32 %v1915, 7
    %v1917 = vsub.s32 2, %v1916
    %v1918 = vrot.slane %v1889, %v1917
    %v1919 = vmul.f32 %v1894, %v1918
    %v1920 = vmul.f32 %v1895, %v1918
    %v1923 = vrot.slane %v1919, 2
    %v1924 = vrot.slane %v1920, 2
    %v1925 = vsel %vm1876, %v1923, %v1924
    %v1927 = vadd.f32 %v1914, %v1925
    %v1928 = vlaneseq
    %v1929 = vshrl.u32 %v1928, 7
    %v1930 = vsub.s32 3, %v1929
    %v1931 = vrot.slane %v1889, %v1930
    %v1932 = vmul.f32 %v1894, %v1931
    %v1933 = vmul.f32 %v1895, %v1931
    %vm1936 = vcmask 1044480
    %v1937 = vrot.slane %v1932, 3
    %v1938 = vrot.slane %v1933, 3
    %v1939 = vsel %vm1936, %v1937, %v1938
    %v1941 = vadd.f32 %v1927, %v1939
    %v1942 = vlaneseq
    %v1943 = vshrl.u32 %v1942, 7
    %v1944 = vsub.s32 4, %v1943
    %v1945 = vrot.slane %v1889, %v1944
    %v1946 = vmul.f32 %v1894, %v1945
    %v1947 = vmul.f32 %v1895, %v1945
    %vm1950 = vcmask 1043456
    %v1951 = vrot.slane %v1946, 4
    %v1952 = vrot.slane %v1947, 4
    %v1953 = vsel %vm1950, %v1951, %v1952
    %v1955 = vadd.f32 %v1941, %v1953
    %v1957 = vlaneseq
    %v1958 = vshrl.u32 %v1957, 7
    %v1959 = vsub.s32 0, %v1958
    %v1960 = vrot.slane %v1890, %v1959
    %v1962 = vadd.f32 %v1955, %v1960
    %1964 = vrot.lane.b32.xlu0 %v1888, 64
    %v1965 = vpop.permute.xlu0 %1964
    %v1967 = vsel %vm1764, %v388, %v1965
    %v1968 = vld [vmem:[%s23] sm:$0xff]
    %v1969 = vld [vmem:[%s23 + $0x8] sm:$0xff]
    %v1970 = vld [vmem:[%s25] sm:$0x1]
    %v1972 = vlaneseq
    %v1973 = vshrl.u32 %v1972, 7
    %v1974 = vsub.s32 0, %v1973
    %v1975 = vrot.slane %v1970, %v1974
    %v1978 = vsel %vm1764, %v1962, 0
    %v1981 = vsel %vm1764, %v1969, 0
    %1983 = vmatprep.subr.mxu0 %v1981
    %1984 = vmatpush1.xpose.msra.mxu0 %v1968
    %1985 = vmatprep.subr.mxu0 0.0
    %1986 = vmatpush1.xpose.msra.mxu0 0.0
    %1987 = vmatprep.subr.mxu0 0.0
    %1988 = vmatpush1.xpose.msra.mxu0 0.0
    %1989 = vmatprep.subr.mxu0 0.0
    %1990 = vmatpush1.xpose.msra.mxu0 0.0
    %1991 = vmatprep.subr.mxu0 0.0
    %1992 = vmatpush1.xpose.msra.mxu0 0.0
    %1993 = vmatprep.subr.mxu0 0.0
    %1994 = vmatpush1.xpose.msra.mxu0 0.0
    %1995 = vmatprep.subr.mxu0 0.0
    %1996 = vmatpush1.xpose.msra.mxu0 0.0
    %1997 = vmatprep.subr.mxu0 0.0
    %1998 = vmatpush1.xpose.msra.mxu0 0.0
    %1999 = vmatprep.subr.mxu0 0.0
    %2000 = vmatpush1.xpose.msra.mxu0 0.0
    %2001 = vmatprep.subr.mxu0 0.0
    %2002 = vmatpush1.xpose.msra.mxu0 0.0
    %2003 = vmatprep.subr.mxu0 0.0
    %2004 = vmatpush1.xpose.msra.mxu0 0.0
    %2005 = vmatprep.subr.mxu0 0.0
    %2006 = vmatpush1.xpose.msra.mxu0 0.0
    %2007 = vmatprep.subr.mxu0 0.0
    %2008 = vmatpush1.xpose.msra.mxu0 0.0
    %2009 = vmatprep.subr.mxu0 0.0
    %2010 = vmatpush1.xpose.msra.mxu0 0.0
    %2011 = vmatprep.subr.mxu0 0.0
    %2012 = vmatpush1.xpose.msra.mxu0 0.0
    %2013 = vmatprep.subr.mxu0 0.0
    %2014 = vmatpush1.xpose.msra.mxu0 0.0
    %2015 = vmatprep.subr.mxu0 0.0
    %2016 = vmatpush1.xpose.msra.mxu0 0.0
    %2017 = vmatprep.subr.mxu0 0.0
    %2018 = vmatpush1.xpose.msra.mxu0 0.0
    %2019 = vmatprep.subr.mxu0 0.0
    %2020 = vmatpush1.xpose.msra.mxu0 0.0
    %2021 = vmatprep.subr.mxu0 0.0
    %2022 = vmatpush1.xpose.msra.mxu0 0.0
    %2023 = vmatprep.subr.mxu0 0.0
    %2024 = vmatpush1.xpose.msra.mxu0 0.0
    %2025 = vmatprep.subr.mxu0 0.0
    %2026 = vmatpush1.xpose.msra.mxu0 0.0
    %2027 = vmatprep.subr.mxu0 0.0
    %2028 = vmatpush1.xpose.msra.mxu0 0.0
    %2029 = vmatprep.subr.mxu0 0.0
    %2030 = vmatpush1.xpose.msra.mxu0 0.0
    %2031 = vmatprep.subr.mxu0 0.0
    %2032 = vmatpush1.xpose.msra.mxu0 0.0
    %2033 = vmatprep.subr.mxu0 0.0
    %2034 = vmatpush1.xpose.msra.mxu0 0.0
    %2035 = vmatprep.subr.mxu0 0.0
    %2036 = vmatpush1.xpose.msra.mxu0 0.0
    %2037 = vmatprep.subr.mxu0 0.0
    %2038 = vmatpush1.xpose.msra.mxu0 0.0
    %2039 = vmatprep.subr.mxu0 0.0
    %2040 = vmatpush1.xpose.msra.mxu0 0.0
    %2041 = vmatprep.subr.mxu0 0.0
    %2042 = vmatpush1.xpose.msra.mxu0 0.0
    %2043 = vmatprep.subr.mxu0 0.0
    %2044 = vmatpush1.xpose.msra.mxu0 0.0
    %2045 = vmatprep.subr.mxu0 0.0
    %2046 = vmatpush1.xpose.msra.mxu0 0.0
    %2047 = vmatprep.mubr.f32.mxu0 %v1978
    %2048 = vmatmul.mubr.f32.gmra.mrb[0].mxu0 %v1967
    %v2049 = vpop.f32.mrb[0].mxu0
    %v2050 = vadd.f32 %v1975, %v2049
    %v2051 = vpop.f32.mrb[0].mxu0
    %2052 = vdwg.mxu0
    %v2053 = vadd.f32 %v1838, %v2050
    %2054 = vst.msk [vmem:[#allocation6] sm:$0xff] %vm225, %v2053
    %v2056 = vsel %vm225, %v2053, 0
    %2058 = vmatprep.subr.mxu0 0.0
    %2059 = vmatpush1.xpose.msra.mxu0 %v2056
    %2060 = vmatprep.subr.mxu0 0.0
    %2061 = vmatpush1.xpose.msra.mxu0 0.0
    %2062 = vmatprep.subr.mxu0 0.0
    %2063 = vmatpush1.xpose.msra.mxu0 0.0
    %2064 = vmatprep.subr.mxu0 0.0
    %2065 = vmatpush1.xpose.msra.mxu0 0.0
    %2066 = vmatprep.subr.mxu0 0.0
    %2067 = vmatpush1.xpose.msra.mxu0 0.0
    %2068 = vmatprep.subr.mxu0 0.0
    %2069 = vmatpush1.xpose.msra.mxu0 0.0
    %2070 = vmatprep.subr.mxu0 0.0
    %2071 = vmatpush1.xpose.msra.mxu0 0.0
    %2072 = vmatprep.subr.mxu0 0.0
    %2073 = vmatpush1.xpose.msra.mxu0 0.0
    %2074 = vmatprep.subr.mxu0 0.0
    %2075 = vmatpush1.xpose.msra.mxu0 0.0
    %2076 = vmatprep.subr.mxu0 0.0
    %2077 = vmatpush1.xpose.msra.mxu0 0.0
    %2078 = vmatprep.subr.mxu0 0.0
    %2079 = vmatpush1.xpose.msra.mxu0 0.0
    %2080 = vmatprep.subr.mxu0 0.0
    %2081 = vmatpush1.xpose.msra.mxu0 0.0
    %2082 = vmatprep.subr.mxu0 0.0
    %2083 = vmatpush1.xpose.msra.mxu0 0.0
    %2084 = vmatprep.subr.mxu0 0.0
    %2085 = vmatpush1.xpose.msra.mxu0 0.0
    %2086 = vmatprep.subr.mxu0 0.0
    %2087 = vmatpush1.xpose.msra.mxu0 0.0
    %2088 = vmatprep.subr.mxu0 0.0
    %2089 = vmatpush1.xpose.msra.mxu0 0.0
    %2090 = vmatprep.subr.mxu0 0.0
    %2091 = vmatpush1.xpose.msra.mxu0 0.0
    %2092 = vmatprep.subr.mxu0 0.0
    %2093 = vmatpush1.xpose.msra.mxu0 0.0
    %2094 = vmatprep.subr.mxu0 0.0
    %2095 = vmatpush1.xpose.msra.mxu0 0.0
    %2096 = vmatprep.subr.mxu0 0.0
    %2097 = vmatpush1.xpose.msra.mxu0 0.0
    %2098 = vmatprep.subr.mxu0 0.0
    %2099 = vmatpush1.xpose.msra.mxu0 0.0
    %2100 = vmatprep.subr.mxu0 0.0
    %2101 = vmatpush1.xpose.msra.mxu0 0.0
    %2102 = vmatprep.subr.mxu0 0.0
    %2103 = vmatpush1.xpose.msra.mxu0 0.0
    %2104 = vmatprep.subr.mxu0 0.0
    %2105 = vmatpush1.xpose.msra.mxu0 0.0
    %2106 = vmatprep.subr.mxu0 0.0
    %2107 = vmatpush1.xpose.msra.mxu0 0.0
    %2108 = vmatprep.subr.mxu0 0.0
    %2109 = vmatpush1.xpose.msra.mxu0 0.0
    %2110 = vmatprep.subr.mxu0 0.0
    %2111 = vmatpush1.xpose.msra.mxu0 0.0
    %2112 = vmatprep.subr.mxu0 0.0
    %2113 = vmatpush1.xpose.msra.mxu0 0.0
    %2114 = vmatprep.subr.mxu0 0.0
    %2115 = vmatpush1.xpose.msra.mxu0 0.0
    %2116 = vmatprep.subr.mxu0 0.0
    %2117 = vmatpush1.xpose.msra.mxu0 0.0
    %2118 = vmatprep.subr.mxu0 0.0
    %2119 = vmatpush1.xpose.msra.mxu0 0.0
    %2120 = vmatprep.subr.mxu0 0.0
    %2121 = vmatpush1.xpose.msra.mxu0 0.0
    %2122 = vmatprep.mubr.f32.mxu0 0.0
    %2123 = vmatmul.mubr.f32.gmra.mrb[0].mxu0 %v227
    %v2124 = vpop.f32.mrb[0].mxu0
    %v2125 = vadd.f32 0.0, %v2124
    %v2126 = vpop.f32.mrb[0].mxu0
    %2127 = vdwg.mxu0
    %v2128 = vld [vmem:[%s27] sm:$0x1]
    %v2130 = vrot.slane %v2125, 7
    %v2132 = vsel %vm1845, %v2128, %v2130
    %v2133 = vld [vmem:[%s29] sm:$0xff]
    %v2134 = vld [vmem:[%s29 + $0x8] sm:$0x1]
    %v2135 = vadd.f32 %v2132, %v2133
    %v2136 = vadd.f32 %v2130, %v2134
    %v2137 = vld [vmem:[%s31] sm:$0x1]
    %v2138 = vld [vmem:[%s33] sm:$0x1]
    %v2139 = vsel %vm225, %v2135, 0.0
    %2140 = vadd.xlane.f32.xlu0 %v2139
    %v2141 = vpop.xlane.xlu0 %2140
    %vm2142 = vcmask 57344
    %v2143 = vsel %vm2142, %v2136, 0.0
    %2144 = vadd.xlane.f32.xlu0 %v2143
    %v2145 = vpop.xlane.xlu0 %2144
    %v2146 = vrcp.pop 8.0
    %v2147 = vmul.f32 %v2141, %v2146
    %v2148 = vmul.f32 %v2145, %v2146
    %v2149 = vsub.f32 %v2135, %v2147
    %v2150 = vsub.f32 %v2136, %v2148
    %v2151 = vmul.f32 %v2149, %v2149
    %v2152 = vmul.f32 %v2150, %v2150
    %v2153 = vsel %vm225, %v2151, 0.0
    %2154 = vadd.xlane.f32.xlu0 %v2153
    %v2155 = vpop.xlane.xlu0 %2154
    %v2156 = vsel %vm2142, %v2152, 0.0
    %2157 = vadd.xlane.f32.xlu0 %v2156
    %v2158 = vpop.xlane.xlu0 %2157
    %v2159 = vmul.f32 %v2155, %v2146
    %v2160 = vmul.f32 %v2158, %v2146
    %v2161 = vadd.f32 %v2159, 1e-05
    %v2162 = vadd.f32 %v2160, 1e-05
    %v2163 = vrsqrt.pop %v2161
    %v2164 = vrsqrt.pop %v2162
    %v2165 = vmul.f32 %v2149, %v2163
    %v2166 = vmul.f32 %v2150, %v2164
    %v2168 = vlaneseq
    %v2169 = vshrl.u32 %v2168, 7
    %v2170 = vsub.s32 0, %v2169
    %v2171 = vrot.slane %v2137, %v2170
    %v2173 = vmul.f32 %v2165, %v2171
    %v2174 = vmul.f32 %v2166, %v2171
    %v2176 = vlaneseq
    %v2177 = vshrl.u32 %v2176, 7
    %v2178 = vsub.s32 0, %v2177
    %v2179 = vrot.slane %v2138, %v2178
    %v2181 = vadd.f32 %v2173, %v2179
    %v2182 = vadd.f32 %v2174, %v2179
    %v2183 = vld [vmem:[%s35] sm:$0xff]
    %v2185 = vsel %vm225, %v2181, 0
    %v2188 = vsel %vm225, %v2182, 0
    %2190 = vmatprep.subr.mxu0 0.0
    %2191 = vmatpush1.msra.mxu0 %v2183
    %2192 = vmatprep.subr.mxu0 0.0
    %2193 = vmatpush1.msra.mxu0 0.0
    %2194 = vmatprep.subr.mxu0 0.0
    %2195 = vmatpush1.msra.mxu0 0.0
    %2196 = vmatprep.subr.mxu0 0.0
    %2197 = vmatpush1.msra.mxu0 0.0
    %2198 = vmatprep.subr.mxu0 0.0
    %2199 = vmatpush1.msra.mxu0 0.0
    %2200 = vmatprep.subr.mxu0 0.0
    %2201 = vmatpush1.msra.mxu0 0.0
    %2202 = vmatprep.subr.mxu0 0.0
    %2203 = vmatpush1.msra.mxu0 0.0
    %2204 = vmatprep.subr.mxu0 0.0
    %2205 = vmatpush1.msra.mxu0 0.0
    %2206 = vmatprep.subr.mxu0 0.0
    %2207 = vmatpush1.msra.mxu0 0.0
    %2208 = vmatprep.subr.mxu0 0.0
    %2209 = vmatpush1.msra.mxu0 0.0
    %2210 = vmatprep.subr.mxu0 0.0
    %2211 = vmatpush1.msra.mxu0 0.0
    %2212 = vmatprep.subr.mxu0 0.0
    %2213 = vmatpush1.msra.mxu0 0.0
    %2214 = vmatprep.subr.mxu0 0.0
    %2215 = vmatpush1.msra.mxu0 0.0
    %2216 = vmatprep.subr.mxu0 0.0
    %2217 = vmatpush1.msra.mxu0 0.0
    %2218 = vmatprep.subr.mxu0 0.0
    %2219 = vmatpush1.msra.mxu0 0.0
    %2220 = vmatprep.subr.mxu0 0.0
    %2221 = vmatpush1.msra.mxu0 0.0
    %2222 = vmatprep.subr.mxu0 0.0
    %2223 = vmatpush1.msra.mxu0 0.0
    %2224 = vmatprep.subr.mxu0 0.0
    %2225 = vmatpush1.msra.mxu0 0.0
    %2226 = vmatprep.subr.mxu0 0.0
    %2227 = vmatpush1.msra.mxu0 0.0
    %2228 = vmatprep.subr.mxu0 0.0
    %2229 = vmatpush1.msra.mxu0 0.0
    %2230 = vmatprep.subr.mxu0 0.0
    %2231 = vmatpush1.msra.mxu0 0.0
    %2232 = vmatprep.subr.mxu0 0.0
    %2233 = vmatpush1.msra.mxu0 0.0
    %2234 = vmatprep.subr.mxu0 0.0
    %2235 = vmatpush1.msra.mxu0 0.0
    %2236 = vmatprep.subr.mxu0 0.0
    %2237 = vmatpush1.msra.mxu0 0.0
    %2238 = vmatprep.subr.mxu0 0.0
    %2239 = vmatpush1.msra.mxu0 0.0
    %2240 = vmatprep.subr.mxu0 0.0
    %2241 = vmatpush1.msra.mxu0 0.0
    %2242 = vmatprep.subr.mxu0 0.0
    %2243 = vmatpush1.msra.mxu0 0.0
    %2244 = vmatprep.subr.mxu0 0.0
    %2245 = vmatpush1.msra.mxu0 0.0
    %2246 = vmatprep.subr.mxu0 0.0
    %2247 = vmatpush1.msra.mxu0 0.0
    %2248 = vmatprep.subr.mxu0 0.0
    %2249 = vmatpush1.msra.mxu0 0.0
    %2250 = vmatprep.subr.mxu0 0.0
    %2251 = vmatpush1.msra.mxu0 0.0
    %2252 = vmatprep.subr.mxu0 0.0
    %2253 = vmatpush1.msra.mxu0 0.0
    %2254 = vmatprep.mubr.f32.mxu0 0.0
    %2255 = vmatmul.mubr.f32.gmra.mrb[0].mxu0 %v2185
    %v2256 = vpop.f32.mrb[0].mxu0
    %v2257 = vadd.f32 0.0, %v2256
    %v2258 = vpop.f32.mrb[0].mxu0
    %2259 = vmatprep.mubr.f32.mxu0 0.0
    %2260 = vmatmul.mubr.f32.gmra.mrb[0].mxu0 %v2188
    %v2261 = vpop.f32.mrb[0].mxu0
    %v2262 = vadd.f32 0.0, %v2261
    %v2263 = vpop.f32.mrb[0].mxu0
    %2264 = vdwg.mxu0
    %2267 = vrot.lane.b32.xlu0 %v2257, 120
    %v2268 = vpop.permute.xlu0 %2267
    %2269 = vrot.lane.b32.xlu0 %v2262, 120
    %v2270 = vpop.permute.xlu0 %2269
    %vm2271 = vcmask 31744
    %v2272 = vsel %vm2271, %v2257, 0
    %v2274 = vsel %vm2271, %v2262, 0
    %v2276 = vsel %vm2271, %v2268, 0
    %v2278 = vsel %vm2271, %v2270, 0
    %2280 = vmatprep.subr.mxu0 0.0
    %2281 = vmatpush1.xpose.msra.mxu0 %v2276
    %2282 = vmatprep.subr.mxu0 0.0
    %2283 = vmatpush1.xpose.msra.mxu0 %v2278
    %2284 = vmatprep.subr.mxu0 0.0
    %2285 = vmatpush1.xpose.msra.mxu0 0.0
    %2286 = vmatprep.subr.mxu0 0.0
    %2287 = vmatpush1.xpose.msra.mxu0 0.0
    %2288 = vmatprep.subr.mxu0 0.0
    %2289 = vmatpush1.xpose.msra.mxu0 0.0
    %2290 = vmatprep.subr.mxu0 0.0
    %2291 = vmatpush1.xpose.msra.mxu0 0.0
    %2292 = vmatprep.subr.mxu0 0.0
    %2293 = vmatpush1.xpose.msra.mxu0 0.0
    %2294 = vmatprep.subr.mxu0 0.0
    %2295 = vmatpush1.xpose.msra.mxu0 0.0
    %2296 = vmatprep.subr.mxu0 0.0
    %2297 = vmatpush1.xpose.msra.mxu0 0.0
    %2298 = vmatprep.subr.mxu0 0.0
    %2299 = vmatpush1.xpose.msra.mxu0 0.0
    %2300 = vmatprep.subr.mxu0 0.0
    %2301 = vmatpush1.xpose.msra.mxu0 0.0
    %2302 = vmatprep.subr.mxu0 0.0
    %2303 = vmatpush1.xpose.msra.mxu0 0.0
    %2304 = vmatprep.subr.mxu0 0.0
    %2305 = vmatpush1.xpose.msra.mxu0 0.0
    %2306 = vmatprep.subr.mxu0 0.0
    %2307 = vmatpush1.xpose.msra.mxu0 0.0
    %2308 = vmatprep.subr.mxu0 0.0
    %2309 = vmatpush1.xpose.msra.mxu0 0.0
    %2310 = vmatprep.subr.mxu0 0.0
    %2311 = vmatpush1.xpose.msra.mxu0 0.0
    %2312 = vmatprep.subr.mxu0 0.0
    %2313 = vmatpush1.xpose.msra.mxu0 0.0
    %2314 = vmatprep.subr.mxu0 0.0
    %2315 = vmatpush1.xpose.msra.mxu0 0.0
    %2316 = vmatprep.subr.mxu0 0.0
    %2317 = vmatpush1.xpose.msra.mxu0 0.0
    %2318 = vmatprep.subr.mxu0 0.0
    %2319 = vmatpush1.xpose.msra.mxu0 0.0
    %2320 = vmatprep.subr.mxu0 0.0
    %2321 = vmatpush1.xpose.msra.mxu0 0.0
    %2322 = vmatprep.subr.mxu0 0.0
    %2323 = vmatpush1.xpose.msra.mxu0 0.0
    %2324 = vmatprep.subr.mxu0 0.0
    %2325 = vmatpush1.xpose.msra.mxu0 0.0
    %2326 = vmatprep.subr.mxu0 0.0
    %2327 = vmatpush1.xpose.msra.mxu0 0.0
    %2328 = vmatprep.subr.mxu0 0.0
    %2329 = vmatpush1.xpose.msra.mxu0 0.0
    %2330 = vmatprep.subr.mxu0 0.0
    %2331 = vmatpush1.xpose.msra.mxu0 0.0
    %2332 = vmatprep.subr.mxu0 0.0
    %2333 = vmatpush1.xpose.msra.mxu0 0.0
    %2334 = vmatprep.subr.mxu0 0.0
    %2335 = vmatpush1.xpose.msra.mxu0 0.0
    %2336 = vmatprep.subr.mxu0 0.0
    %2337 = vmatpush1.xpose.msra.mxu0 0.0
    %2338 = vmatprep.subr.mxu0 0.0
    %2339 = vmatpush1.xpose.msra.mxu0 0.0
    %2340 = vmatprep.subr.mxu0 0.0
    %2341 = vmatpush1.xpose.msra.mxu0 0.0
    %2342 = vmatprep.subr.mxu0 0.0
    %2343 = vmatpush1.xpose.msra.mxu0 0.0
    %2344 = vmatprep.mubr.f32.mxu0 0.0
    %2345 = vmatmul.mubr.f32.gmra.mrb[0].mxu0 %v2272
    %v2346 = vpop.f32.mrb[0].mxu0
    %v2347 = vadd.f32 0.0, %v2346
    %v2348 = vpop.f32.mrb[0].mxu0
    %2349 = vmatprep.mubr.f32.mxu0 0.0
    %2350 = vmatmul.mubr.f32.gmra.mrb[0].mxu0 %v2274
    %v2351 = vpop.f32.mrb[0].mxu0
    %v2352 = vadd.f32 0.0, %v2351
    %v2353 = vpop.f32.mrb[0].mxu0
    %2354 = vdwg.mxu0
    %v2355 = vmul.f32 %v2347, 0.5
    %v2356 = vmul.f32 %v2352, 0.5
    %vm2357 = vcmask 72704
    %v2358 = vsel %vm2357, %v2355, -inf
    %2359 = vmax.xlane.f32.xlu0 %v2358
    %v2360 = vpop.xlane.xlu0 %2359
    %vm2361 = vcmask 65536
    %v2362 = vsel %vm2361, %v2356, -inf
    %2363 = vmax.xlane.f32.xlu0 %v2362
    %v2364 = vpop.xlane.xlu0 %2363
    %v2365 = vsub.f32 %v2355, %v2360
    %v2366 = vsub.f32 %v2356, %v2364
    %v2367 = vmul.f32 %v2365, 1.442695
    %v2368 = vpow.pop %v2367
    %v2369 = vmul.f32 %v2366, 1.442695
    %v2370 = vpow.pop %v2369
    %v2371 = vsel %vm2357, %v2368, 0.0
    %2372 = vadd.xlane.f32.xlu0 %v2371
    %v2373 = vpop.xlane.xlu0 %2372
    %v2374 = vsel %vm2361, %v2370, 0.0
    %2375 = vadd.xlane.f32.xlu0 %v2374
    %v2376 = vpop.xlane.xlu0 %2375
    %v2377 = vrcp.pop %v2373
    %v2378 = vrcp.pop %v2376
    %v2379 = vmul.f32 %v2368, %v2377
    %v2380 = vmul.f32 %v2370, %v2378
    %2381 = vrot.lane.b32.xlu0 %v2257, 112
    %v2382 = vpop.permute.xlu0 %2381
    %2383 = vrot.lane.b32.xlu0 %v2262, 112
    %v2384 = vpop.permute.xlu0 %2383
    %v2387 = vsel %vm2357, %v2379, 0
    %v2390 = vsel %vm2357, %v2380, 0
    %v2392 = vsel %vm1845, %v2384, 0
    %2394 = vmatprep.subr.mxu0 0.0
    %2395 = vmatpush1.msra.mxu0 %v2382
    %2396 = vmatprep.subr.mxu0 0.0
    %2397 = vmatpush1.msra.mxu0 %v2392
    %2398 = vmatprep.subr.mxu0 0.0
    %2399 = vmatpush1.msra.mxu0 0.0
    %2400 = vmatprep.subr.mxu0 0.0
    %2401 = vmatpush1.msra.mxu0 0.0
    %2402 = vmatprep.subr.mxu0 0.0
    %2403 = vmatpush1.msra.mxu0 0.0
    %2404 = vmatprep.subr.mxu0 0.0
    %2405 = vmatpush1.msra.mxu0 0.0
    %2406 = vmatprep.subr.mxu0 0.0
    %2407 = vmatpush1.msra.mxu0 0.0
    %2408 = vmatprep.subr.mxu0 0.0
    %2409 = vmatpush1.msra.mxu0 0.0
    %2410 = vmatprep.subr.mxu0 0.0
    %2411 = vmatpush1.msra.mxu0 0.0
    %2412 = vmatprep.subr.mxu0 0.0
    %2413 = vmatpush1.msra.mxu0 0.0
    %2414 = vmatprep.subr.mxu0 0.0
    %2415 = vmatpush1.msra.mxu0 0.0
    %2416 = vmatprep.subr.mxu0 0.0
    %2417 = vmatpush1.msra.mxu0 0.0
    %2418 = vmatprep.subr.mxu0 0.0
    %2419 = vmatpush1.msra.mxu0 0.0
    %2420 = vmatprep.subr.mxu0 0.0
    %2421 = vmatpush1.msra.mxu0 0.0
    %2422 = vmatprep.subr.mxu0 0.0
    %2423 = vmatpush1.msra.mxu0 0.0
    %2424 = vmatprep.subr.mxu0 0.0
    %2425 = vmatpush1.msra.mxu0 0.0
    %2426 = vmatprep.subr.mxu0 0.0
    %2427 = vmatpush1.msra.mxu0 0.0
    %2428 = vmatprep.subr.mxu0 0.0
    %2429 = vmatpush1.msra.mxu0 0.0
    %2430 = vmatprep.subr.mxu0 0.0
    %2431 = vmatpush1.msra.mxu0 0.0
    %2432 = vmatprep.subr.mxu0 0.0
    %2433 = vmatpush1.msra.mxu0 0.0
    %2434 = vmatprep.subr.mxu0 0.0
    %2435 = vmatpush1.msra.mxu0 0.0
    %2436 = vmatprep.subr.mxu0 0.0
    %2437 = vmatpush1.msra.mxu0 0.0
    %2438 = vmatprep.subr.mxu0 0.0
    %2439 = vmatpush1.msra.mxu0 0.0
    %2440 = vmatprep.subr.mxu0 0.0
    %2441 = vmatpush1.msra.mxu0 0.0
    %2442 = vmatprep.subr.mxu0 0.0
    %2443 = vmatpush1.msra.mxu0 0.0
    %2444 = vmatprep.subr.mxu0 0.0
    %2445 = vmatpush1.msra.mxu0 0.0
    %2446 = vmatprep.subr.mxu0 0.0
    %2447 = vmatpush1.msra.mxu0 0.0
    %2448 = vmatprep.subr.mxu0 0.0
    %2449 = vmatpush1.msra.mxu0 0.0
    %2450 = vmatprep.subr.mxu0 0.0
    %2451 = vmatpush1.msra.mxu0 0.0
    %2452 = vmatprep.subr.mxu0 0.0
    %2453 = vmatpush1.msra.mxu0 0.0
    %2454 = vmatprep.subr.mxu0 0.0
    %2455 = vmatpush1.msra.mxu0 0.0
    %2456 = vmatprep.subr.mxu0 0.0
    %2457 = vmatpush1.msra.mxu0 0.0
    %2458 = vmatprep.mubr.f32.mxu0 0.0
    %2459 = vmatmul.mubr.f32.gmra.mrb[0].mxu0 %v2387
    %v2460 = vpop.f32.mrb[0].mxu0
    %v2461 = vadd.f32 0.0, %v2460
    %v2462 = vpop.f32.mrb[0].mxu0
    %2463 = vmatprep.mubr.f32.mxu0 0.0
    %2464 = vmatmul.mubr.f32.gmra.mrb[0].mxu0 %v2390
    %v2465 = vpop.f32.mrb[0].mxu0
    %v2466 = vadd.f32 0.0, %v2465
    %v2467 = vpop.f32.mrb[0].mxu0
    %2468 = vdwg.mxu0
    %2469 = vrot.lane.b32.xlu0 %v2257, 124
    %v2470 = vpop.permute.xlu0 %2469
    %2471 = vrot.lane.b32.xlu0 %v2262, 124
    %v2472 = vpop.permute.xlu0 %2471
    %2473 = vrot.lane.b32.xlu0 %v2257, 116
    %v2474 = vpop.permute.xlu0 %2473
    %2475 = vrot.lane.b32.xlu0 %v2262, 116
    %v2476 = vpop.permute.xlu0 %2475
    %v2477 = vsel %vm2271, %v2470, 0
    %v2479 = vsel %vm2271, %v2472, 0
    %v2481 = vsel %vm2271, %v2474, 0
    %v2483 = vsel %vm2271, %v2476, 0
    %2485 = vmatprep.subr.mxu0 0.0
    %2486 = vmatpush1.xpose.msra.mxu0 %v2481
    %2487 = vmatprep.subr.mxu0 0.0
    %2488 = vmatpush1.xpose.msra.mxu0 %v2483
    %2489 = vmatprep.subr.mxu0 0.0
    %2490 = vmatpush1.xpose.msra.mxu0 0.0
    %2491 = vmatprep.subr.mxu0 0.0
    %2492 = vmatpush1.xpose.msra.mxu0 0.0
    %2493 = vmatprep.subr.mxu0 0.0
    %2494 = vmatpush1.xpose.msra.mxu0 0.0
    %2495 = vmatprep.subr.mxu0 0.0
    %2496 = vmatpush1.xpose.msra.mxu0 0.0
    %2497 = vmatprep.subr.mxu0 0.0
    %2498 = vmatpush1.xpose.msra.mxu0 0.0
    %2499 = vmatprep.subr.mxu0 0.0
    %2500 = vmatpush1.xpose.msra.mxu0 0.0
    %2501 = vmatprep.subr.mxu0 0.0
    %2502 = vmatpush1.xpose.msra.mxu0 0.0
    %2503 = vmatprep.subr.mxu0 0.0
    %2504 = vmatpush1.xpose.msra.mxu0 0.0
    %2505 = vmatprep.subr.mxu0 0.0
    %2506 = vmatpush1.xpose.msra.mxu0 0.0
    %2507 = vmatprep.subr.mxu0 0.0
    %2508 = vmatpush1.xpose.msra.mxu0 0.0
    %2509 = vmatprep.subr.mxu0 0.0
    %2510 = vmatpush1.xpose.msra.mxu0 0.0
    %2511 = vmatprep.subr.mxu0 0.0
    %2512 = vmatpush1.xpose.msra.mxu0 0.0
    %2513 = vmatprep.subr.mxu0 0.0
    %2514 = vmatpush1.xpose.msra.mxu0 0.0
    %2515 = vmatprep.subr.mxu0 0.0
    %2516 = vmatpush1.xpose.msra.mxu0 0.0
    %2517 = vmatprep.subr.mxu0 0.0
    %2518 = vmatpush1.xpose.msra.mxu0 0.0
    %2519 = vmatprep.subr.mxu0 0.0
    %2520 = vmatpush1.xpose.msra.mxu0 0.0
    %2521 = vmatprep.subr.mxu0 0.0
    %2522 = vmatpush1.xpose.msra.mxu0 0.0
    %2523 = vmatprep.subr.mxu0 0.0
    %2524 = vmatpush1.xpose.msra.mxu0 0.0
    %2525 = vmatprep.subr.mxu0 0.0
    %2526 = vmatpush1.xpose.msra.mxu0 0.0
    %2527 = vmatprep.subr.mxu0 0.0
    %2528 = vmatpush1.xpose.msra.mxu0 0.0
    %2529 = vmatprep.subr.mxu0 0.0
    %2530 = vmatpush1.xpose.msra.mxu0 0.0
    %2531 = vmatprep.subr.mxu0 0.0
    %2532 = vmatpush1.xpose.msra.mxu0 0.0
    %2533 = vmatprep.subr.mxu0 0.0
    %2534 = vmatpush1.xpose.msra.mxu0 0.0
    %2535 = vmatprep.subr.mxu0 0.0
    %2536 = vmatpush1.xpose.msra.mxu0 0.0
    %2537 = vmatprep.subr.mxu0 0.0
    %2538 = vmatpush1.xpose.msra.mxu0 0.0
    %2539 = vmatprep.subr.mxu0 0.0
    %2540 = vmatpush1.xpose.msra.mxu0 0.0
    %2541 = vmatprep.subr.mxu0 0.0
    %2542 = vmatpush1.xpose.msra.mxu0 0.0
    %2543 = vmatprep.subr.mxu0 0.0
    %2544 = vmatpush1.xpose.msra.mxu0 0.0
    %2545 = vmatprep.subr.mxu0 0.0
    %2546 = vmatpush1.xpose.msra.mxu0 0.0
    %2547 = vmatprep.subr.mxu0 0.0
    %2548 = vmatpush1.xpose.msra.mxu0 0.0
    %2549 = vmatprep.mubr.f32.mxu0 0.0
    %2550 = vmatmul.mubr.f32.gmra.mrb[0].mxu0 %v2477
    %v2551 = vpop.f32.mrb[0].mxu0
    %v2552 = vadd.f32 0.0, %v2551
    %v2553 = vpop.f32.mrb[0].mxu0
    %2554 = vmatprep.mubr.f32.mxu0 0.0
    %2555 = vmatmul.mubr.f32.gmra.mrb[0].mxu0 %v2479
    %v2556 = vpop.f32.mrb[0].mxu0
    %v2557 = vadd.f32 0.0, %v2556
    %v2558 = vpop.f32.mrb[0].mxu0
    %2559 = vdwg.mxu0
    %v2560 = vmul.f32 %v2552, 0.5
    %v2561 = vmul.f32 %v2557, 0.5
    %v2562 = vsel %vm2357, %v2560, -inf
    %2563 = vmax.xlane.f32.xlu0 %v2562
    %v2564 = vpop.xlane.xlu0 %2563
    %v2565 = vsel %vm2361, %v2561, -inf
    %2566 = vmax.xlane.f32.xlu0 %v2565
    %v2567 = vpop.xlane.xlu0 %2566
    %v2568 = vsub.f32 %v2560, %v2564
    %v2569 = vsub.f32 %v2561, %v2567
    %v2570 = vmul.f32 %v2568, 1.442695
    %v2571 = vpow.pop %v2570
    %v2572 = vmul.f32 %v2569, 1.442695
    %v2573 = vpow.pop %v2572
    %v2574 = vsel %vm2357, %v2571, 0.0
    %2575 = vadd.xlane.f32.xlu0 %v2574
    %v2576 = vpop.xlane.xlu0 %2575
    %v2577 = vsel %vm2361, %v2573, 0.0
    %2578 = vadd.xlane.f32.xlu0 %v2577
    %v2579 = vpop.xlane.xlu0 %2578
    %v2580 = vrcp.pop %v2576
    %v2581 = vrcp.pop %v2579
    %v2582 = vmul.f32 %v2571, %v2580
    %v2583 = vmul.f32 %v2573, %v2581
    %2584 = vrot.lane.b32.xlu0 %v2257, 108
    %v2585 = vpop.permute.xlu0 %2584
    %2586 = vrot.lane.b32.xlu0 %v2262, 108
    %v2587 = vpop.permute.xlu0 %2586
    %v2590 = vsel %vm2357, %v2582, 0
    %v2593 = vsel %vm2357, %v2583, 0
    %v2595 = vsel %vm1845, %v2587, 0
    %2597 = vmatprep.subr.mxu0 0.0
    %2598 = vmatpush1.msra.mxu0 %v2585
    %2599 = vmatprep.subr.mxu0 0.0
    %2600 = vmatpush1.msra.mxu0 %v2595
    %2601 = vmatprep.subr.mxu0 0.0
    %2602 = vmatpush1.msra.mxu0 0.0
    %2603 = vmatprep.subr.mxu0 0.0
    %2604 = vmatpush1.msra.mxu0 0.0
    %2605 = vmatprep.subr.mxu0 0.0
    %2606 = vmatpush1.msra.mxu0 0.0
    %2607 = vmatprep.subr.mxu0 0.0
    %2608 = vmatpush1.msra.mxu0 0.0
    %2609 = vmatprep.subr.mxu0 0.0
    %2610 = vmatpush1.msra.mxu0 0.0
    %2611 = vmatprep.subr.mxu0 0.0
    %2612 = vmatpush1.msra.mxu0 0.0
    %2613 = vmatprep.subr.mxu0 0.0
    %2614 = vmatpush1.msra.mxu0 0.0
    %2615 = vmatprep.subr.mxu0 0.0
    %2616 = vmatpush1.msra.mxu0 0.0
    %2617 = vmatprep.subr.mxu0 0.0
    %2618 = vmatpush1.msra.mxu0 0.0
    %2619 = vmatprep.subr.mxu0 0.0
    %2620 = vmatpush1.msra.mxu0 0.0
    %2621 = vmatprep.subr.mxu0 0.0
    %2622 = vmatpush1.msra.mxu0 0.0
    %2623 = vmatprep.subr.mxu0 0.0
    %2624 = vmatpush1.msra.mxu0 0.0
    %2625 = vmatprep.subr.mxu0 0.0
    %2626 = vmatpush1.msra.mxu0 0.0
    %2627 = vmatprep.subr.mxu0 0.0
    %2628 = vmatpush1.msra.mxu0 0.0
    %2629 = vmatprep.subr.mxu0 0.0
    %2630 = vmatpush1.msra.mxu0 0.0
    %2631 = vmatprep.subr.mxu0 0.0
    %2632 = vmatpush1.msra.mxu0 0.0
    %2633 = vmatprep.subr.mxu0 0.0
    %2634 = vmatpush1.msra.mxu0 0.0
    %2635 = vmatprep.subr.mxu0 0.0
    %2636 = vmatpush1.msra.mxu0 0.0
    %2637 = vmatprep.subr.mxu0 0.0
    %2638 = vmatpush1.msra.mxu0 0.0
    %2639 = vmatprep.subr.mxu0 0.0
    %2640 = vmatpush1.msra.mxu0 0.0
    %2641 = vmatprep.subr.mxu0 0.0
    %2642 = vmatpush1.msra.mxu0 0.0
    %2643 = vmatprep.subr.mxu0 0.0
    %2644 = vmatpush1.msra.mxu0 0.0
    %2645 = vmatprep.subr.mxu0 0.0
    %2646 = vmatpush1.msra.mxu0 0.0
    %2647 = vmatprep.subr.mxu0 0.0
    %2648 = vmatpush1.msra.mxu0 0.0
    %2649 = vmatprep.subr.mxu0 0.0
    %2650 = vmatpush1.msra.mxu0 0.0
    %2651 = vmatprep.subr.mxu0 0.0
    %2652 = vmatpush1.msra.mxu0 0.0
    %2653 = vmatprep.subr.mxu0 0.0
    %2654 = vmatpush1.msra.mxu0 0.0
    %2655 = vmatprep.subr.mxu0 0.0
    %2656 = vmatpush1.msra.mxu0 0.0
    %2657 = vmatprep.subr.mxu0 0.0
    %2658 = vmatpush1.msra.mxu0 0.0
    %2659 = vmatprep.subr.mxu0 0.0
    %2660 = vmatpush1.msra.mxu0 0.0
    %2661 = vmatprep.mubr.f32.mxu0 0.0
    %2662 = vmatmul.mubr.f32.gmra.mrb[0].mxu0 %v2590
    %v2663 = vpop.f32.mrb[0].mxu0
    %v2664 = vadd.f32 0.0, %v2663
    %v2665 = vpop.f32.mrb[0].mxu0
    %2666 = vmatprep.mubr.f32.mxu0 0.0
    %2667 = vmatmul.mubr.f32.gmra.mrb[0].mxu0 %v2593
    %v2668 = vpop.f32.mrb[0].mxu0
    %v2669 = vadd.f32 0.0, %v2668
    %v2670 = vpop.f32.mrb[0].mxu0
    %2671 = vdwg.mxu0
    %2674 = vrot.lane.b32.xlu0 %v2664, 4
    %v2675 = vpop.permute.xlu0 %2674
    %2676 = vrot.lane.b32.xlu0 %v2669, 4
    %v2677 = vpop.permute.xlu0 %2676
    %v2680 = vsel %vm2271, %v2461, %v2675
    %v2681 = vsel %vm2271, %v2466, %v2677
    %v2682 = vld [vmem:[%s37] sm:$0xff]
    %v2683 = vld [vmem:[%s39] sm:$0x1]
    %v2685 = vlaneseq
    %v2686 = vshrl.u32 %v2685, 7
    %v2687 = vsub.s32 0, %v2686
    %v2688 = vrot.slane %v2683, %v2687
    %v2691 = vsel %vm225, %v2680, 0
    %v2694 = vsel %vm225, %v2681, 0
    %2696 = vmatprep.subr.mxu0 0.0
    %2697 = vmatpush1.msra.mxu0 %v2682
    %2698 = vmatprep.subr.mxu0 0.0
    %2699 = vmatpush1.msra.mxu0 0.0
    %2700 = vmatprep.subr.mxu0 0.0
    %2701 = vmatpush1.msra.mxu0 0.0
    %2702 = vmatprep.subr.mxu0 0.0
    %2703 = vmatpush1.msra.mxu0 0.0
    %2704 = vmatprep.subr.mxu0 0.0
    %2705 = vmatpush1.msra.mxu0 0.0
    %2706 = vmatprep.subr.mxu0 0.0
    %2707 = vmatpush1.msra.mxu0 0.0
    %2708 = vmatprep.subr.mxu0 0.0
    %2709 = vmatpush1.msra.mxu0 0.0
    %2710 = vmatprep.subr.mxu0 0.0
    %2711 = vmatpush1.msra.mxu0 0.0
    %2712 = vmatprep.subr.mxu0 0.0
    %2713 = vmatpush1.msra.mxu0 0.0
    %2714 = vmatprep.subr.mxu0 0.0
    %2715 = vmatpush1.msra.mxu0 0.0
    %2716 = vmatprep.subr.mxu0 0.0
    %2717 = vmatpush1.msra.mxu0 0.0
    %2718 = vmatprep.subr.mxu0 0.0
    %2719 = vmatpush1.msra.mxu0 0.0
    %2720 = vmatprep.subr.mxu0 0.0
    %2721 = vmatpush1.msra.mxu0 0.0
    %2722 = vmatprep.subr.mxu0 0.0
    %2723 = vmatpush1.msra.mxu0 0.0
    %2724 = vmatprep.subr.mxu0 0.0
    %2725 = vmatpush1.msra.mxu0 0.0
    %2726 = vmatprep.subr.mxu0 0.0
    %2727 = vmatpush1.msra.mxu0 0.0
    %2728 = vmatprep.subr.mxu0 0.0
    %2729 = vmatpush1.msra.mxu0 0.0
    %2730 = vmatprep.subr.mxu0 0.0
    %2731 = vmatpush1.msra.mxu0 0.0
    %2732 = vmatprep.subr.mxu0 0.0
    %2733 = vmatpush1.msra.mxu0 0.0
    %2734 = vmatprep.subr.mxu0 0.0
    %2735 = vmatpush1.msra.mxu0 0.0
    %2736 = vmatprep.subr.mxu0 0.0
    %2737 = vmatpush1.msra.mxu0 0.0
    %2738 = vmatprep.subr.mxu0 0.0
    %2739 = vmatpush1.msra.mxu0 0.0
    %2740 = vmatprep.subr.mxu0 0.0
    %2741 = vmatpush1.msra.mxu0 0.0
    %2742 = vmatprep.subr.mxu0 0.0
    %2743 = vmatpush1.msra.mxu0 0.0
    %2744 = vmatprep.subr.mxu0 0.0
    %2745 = vmatpush1.msra.mxu0 0.0
    %2746 = vmatprep.subr.mxu0 0.0
    %2747 = vmatpush1.msra.mxu0 0.0
    %2748 = vmatprep.subr.mxu0 0.0
    %2749 = vmatpush1.msra.mxu0 0.0
    %2750 = vmatprep.subr.mxu0 0.0
    %2751 = vmatpush1.msra.mxu0 0.0
    %2752 = vmatprep.subr.mxu0 0.0
    %2753 = vmatpush1.msra.mxu0 0.0
    %2754 = vmatprep.subr.mxu0 0.0
    %2755 = vmatpush1.msra.mxu0 0.0
    %2756 = vmatprep.subr.mxu0 0.0
    %2757 = vmatpush1.msra.mxu0 0.0
    %2758 = vmatprep.subr.mxu0 0.0
    %2759 = vmatpush1.msra.mxu0 0.0
    %2760 = vmatprep.mubr.f32.mxu0 0.0
    %2761 = vmatmul.mubr.f32.gmra.mrb[0].mxu0 %v2691
    %v2762 = vpop.f32.mrb[0].mxu0
    %v2763 = vadd.f32 %v2688, %v2762
    %v2764 = vpop.f32.mrb[0].mxu0
    %2765 = vmatprep.mubr.f32.mxu0 0.0
    %2766 = vmatmul.mubr.f32.gmra.mrb[0].mxu0 %v2694
    %v2767 = vpop.f32.mrb[0].mxu0
    %v2768 = vadd.f32 %v2688, %v2767
    %v2769 = vpop.f32.mrb[0].mxu0
    %2770 = vdwg.mxu0
    %v2771 = vadd.f32 %v2135, %v2763
    %v2772 = vadd.f32 %v2136, %v2768
    %v2773 = vld [vmem:[%s41] sm:$0x1]
    %v2774 = vld [vmem:[%s43] sm:$0x1]
    %v2775 = vsel %vm225, %v2771, 0.0
    %2776 = vadd.xlane.f32.xlu0 %v2775
    %v2777 = vpop.xlane.xlu0 %2776
    %v2778 = vsel %vm2142, %v2772, 0.0
    %2779 = vadd.xlane.f32.xlu0 %v2778
    %v2780 = vpop.xlane.xlu0 %2779
    %v2781 = vmul.f32 %v2777, %v2146
    %v2782 = vmul.f32 %v2780, %v2146
    %v2783 = vsub.f32 %v2771, %v2781
    %v2784 = vsub.f32 %v2772, %v2782
    %v2785 = vmul.f32 %v2783, %v2783
    %v2786 = vmul.f32 %v2784, %v2784
    %v2787 = vsel %vm225, %v2785, 0.0
    %2788 = vadd.xlane.f32.xlu0 %v2787
    %v2789 = vpop.xlane.xlu0 %2788
    %v2790 = vsel %vm2142, %v2786, 0.0
    %2791 = vadd.xlane.f32.xlu0 %v2790
    %v2792 = vpop.xlane.xlu0 %2791
    %v2793 = vmul.f32 %v2789, %v2146
    %v2794 = vmul.f32 %v2792, %v2146
    %v2795 = vadd.f32 %v2793, 1e-05
    %v2796 = vadd.f32 %v2794, 1e-05
    %v2797 = vrsqrt.pop %v2795
    %v2798 = vrsqrt.pop %v2796
    %v2799 = vmul.f32 %v2783, %v2797
    %v2800 = vmul.f32 %v2784, %v2798
    %v2802 = vlaneseq
    %v2803 = vshrl.u32 %v2802, 7
    %v2804 = vsub.s32 0, %v2803
    %v2805 = vrot.slane %v2773, %v2804
    %v2807 = vmul.f32 %v2799, %v2805
    %v2808 = vmul.f32 %v2800, %v2805
    %v2810 = vlaneseq
    %v2811 = vshrl.u32 %v2810, 7
    %v2812 = vsub.s32 0, %v2811
    %v2813 = vrot.slane %v2774, %v2812
    %v2815 = vadd.f32 %v2807, %v2813
    %v2816 = vadd.f32 %v2808, %v2813
    %v2817 = vld [vmem:[%s45] sm:$0xff]
    %v2818 = vld [vmem:[%s47] sm:$0x1]
    %v2820 = vlaneseq
    %v2821 = vshrl.u32 %v2820, 7
    %v2822 = vsub.s32 0, %v2821
    %v2823 = vrot.slane %v2818, %v2822
    %v2826 = vsel %vm225, %v2815, 0
    %v2829 = vsel %vm225, %v2816, 0
    %2831 = vmatprep.subr.mxu0 0.0
    %2832 = vmatpush1.msra.mxu0 %v2817
    %2833 = vmatprep.subr.mxu0 0.0
    %2834 = vmatpush1.msra.mxu0 0.0
    %2835 = vmatprep.subr.mxu0 0.0
    %2836 = vmatpush1.msra.mxu0 0.0
    %2837 = vmatprep.subr.mxu0 0.0
    %2838 = vmatpush1.msra.mxu0 0.0
    %2839 = vmatprep.subr.mxu0 0.0
    %2840 = vmatpush1.msra.mxu0 0.0
    %2841 = vmatprep.subr.mxu0 0.0
    %2842 = vmatpush1.msra.mxu0 0.0
    %2843 = vmatprep.subr.mxu0 0.0
    %2844 = vmatpush1.msra.mxu0 0.0
    %2845 = vmatprep.subr.mxu0 0.0
    %2846 = vmatpush1.msra.mxu0 0.0
    %2847 = vmatprep.subr.mxu0 0.0
    %2848 = vmatpush1.msra.mxu0 0.0
    %2849 = vmatprep.subr.mxu0 0.0
    %2850 = vmatpush1.msra.mxu0 0.0
    %2851 = vmatprep.subr.mxu0 0.0
    %2852 = vmatpush1.msra.mxu0 0.0
    %2853 = vmatprep.subr.mxu0 0.0
    %2854 = vmatpush1.msra.mxu0 0.0
    %2855 = vmatprep.subr.mxu0 0.0
    %2856 = vmatpush1.msra.mxu0 0.0
    %2857 = vmatprep.subr.mxu0 0.0
    %2858 = vmatpush1.msra.mxu0 0.0
    %2859 = vmatprep.subr.mxu0 0.0
    %2860 = vmatpush1.msra.mxu0 0.0
    %2861 = vmatprep.subr.mxu0 0.0
    %2862 = vmatpush1.msra.mxu0 0.0
    %2863 = vmatprep.subr.mxu0 0.0
    %2864 = vmatpush1.msra.mxu0 0.0
    %2865 = vmatprep.subr.mxu0 0.0
    %2866 = vmatpush1.msra.mxu0 0.0
    %2867 = vmatprep.subr.mxu0 0.0
    %2868 = vmatpush1.msra.mxu0 0.0
    %2869 = vmatprep.subr.mxu0 0.0
    %2870 = vmatpush1.msra.mxu0 0.0
    %2871 = vmatprep.subr.mxu0 0.0
    %2872 = vmatpush1.msra.mxu0 0.0
    %2873 = vmatprep.subr.mxu0 0.0
    %2874 = vmatpush1.msra.mxu0 0.0
    %2875 = vmatprep.subr.mxu0 0.0
    %2876 = vmatpush1.msra.mxu0 0.0
    %2877 = vmatprep.subr.mxu0 0.0
    %2878 = vmatpush1.msra.mxu0 0.0
    %2879 = vmatprep.subr.mxu0 0.0
    %2880 = vmatpush1.msra.mxu0 0.0
    %2881 = vmatprep.subr.mxu0 0.0
    %2882 = vmatpush1.msra.mxu0 0.0
    %2883 = vmatprep.subr.mxu0 0.0
    %2884 = vmatpush1.msra.mxu0 0.0
    %2885 = vmatprep.subr.mxu0 0.0
    %2886 = vmatpush1.msra.mxu0 0.0
    %2887 = vmatprep.subr.mxu0 0.0
    %2888 = vmatpush1.msra.mxu0 0.0
    %2889 = vmatprep.subr.mxu0 0.0
    %2890 = vmatpush1.msra.mxu0 0.0
    %2891 = vmatprep.subr.mxu0 0.0
    %2892 = vmatpush1.msra.mxu0 0.0
    %2893 = vmatprep.subr.mxu0 0.0
    %2894 = vmatpush1.msra.mxu0 0.0
    %2895 = vmatprep.mubr.f32.mxu0 0.0
    %2896 = vmatmul.mubr.f32.gmra.mrb[0].mxu0 %v2826
    %v2897 = vpop.f32.mrb[0].mxu0
    %v2898 = vadd.f32 %v2823, %v2897
    %v2899 = vpop.f32.mrb[0].mxu0
    %2900 = vmatprep.mubr.f32.mxu0 0.0
    %2901 = vmatmul.mubr.f32.gmra.mrb[0].mxu0 %v2829
    %v2902 = vpop.f32.mrb[0].mxu0
    %v2903 = vadd.f32 %v2823, %v2902
    %v2904 = vpop.f32.mrb[0].mxu0
    %2905 = vdwg.mxu0
    %v2906 = vmul.f32 %v2898, 0.5
    %v2907 = vmul.f32 %v2903, 0.5
    %v2908 = vmul.f32 %v2898, 0.70710677
    %v2909 = vmul.f32 %v2903, 0.70710677
    %v2910 = verf.f32.pop %v2908
    %v2911 = verf.f32.pop %v2909
    %v2912 = vadd.f32 %v2910, 1.0
    %v2913 = vadd.f32 %v2911, 1.0
    %v2914 = vmul.f32 %v2906, %v2912
    %v2915 = vmul.f32 %v2907, %v2913
    %v2916 = vld [vmem:[%s49] sm:$0xff]
    %v2917 = vld [vmem:[%s49 + $0x8] sm:$0xff]
    %v2918 = vld [vmem:[%s51] sm:$0x1]
    %v2920 = vlaneseq
    %v2921 = vshrl.u32 %v2920, 7
    %v2922 = vsub.s32 0, %v2921
    %v2923 = vrot.slane %v2918, %v2922
    %v2926 = vsel %vm1744, %v2914, 0
    %v2929 = vsel %vm1744, %v2915, 0
    %2931 = vmatprep.subr.mxu0 0.0
    %2932 = vmatpush1.msra.mxu0 %v2916
    %2933 = vmatprep.subr.mxu0 0.0
    %2934 = vmatpush1.msra.mxu0 %v2917
    %2935 = vmatprep.subr.mxu0 0.0
    %2936 = vmatpush1.msra.mxu0 0.0
    %2937 = vmatprep.subr.mxu0 0.0
    %2938 = vmatpush1.msra.mxu0 0.0
    %2939 = vmatprep.subr.mxu0 0.0
    %2940 = vmatpush1.msra.mxu0 0.0
    %2941 = vmatprep.subr.mxu0 0.0
    %2942 = vmatpush1.msra.mxu0 0.0
    %2943 = vmatprep.subr.mxu0 0.0
    %2944 = vmatpush1.msra.mxu0 0.0
    %2945 = vmatprep.subr.mxu0 0.0
    %2946 = vmatpush1.msra.mxu0 0.0
    %2947 = vmatprep.subr.mxu0 0.0
    %2948 = vmatpush1.msra.mxu0 0.0
    %2949 = vmatprep.subr.mxu0 0.0
    %2950 = vmatpush1.msra.mxu0 0.0
    %2951 = vmatprep.subr.mxu0 0.0
    %2952 = vmatpush1.msra.mxu0 0.0
    %2953 = vmatprep.subr.mxu0 0.0
    %2954 = vmatpush1.msra.mxu0 0.0
    %2955 = vmatprep.subr.mxu0 0.0
    %2956 = vmatpush1.msra.mxu0 0.0
    %2957 = vmatprep.subr.mxu0 0.0
    %2958 = vmatpush1.msra.mxu0 0.0
    %2959 = vmatprep.subr.mxu0 0.0
    %2960 = vmatpush1.msra.mxu0 0.0
    %2961 = vmatprep.subr.mxu0 0.0
    %2962 = vmatpush1.msra.mxu0 0.0
    %2963 = vmatprep.subr.mxu0 0.0
    %2964 = vmatpush1.msra.mxu0 0.0
    %2965 = vmatprep.subr.mxu0 0.0
    %2966 = vmatpush1.msra.mxu0 0.0
    %2967 = vmatprep.subr.mxu0 0.0
    %2968 = vmatpush1.msra.mxu0 0.0
    %2969 = vmatprep.subr.mxu0 0.0
    %2970 = vmatpush1.msra.mxu0 0.0
    %2971 = vmatprep.subr.mxu0 0.0
    %2972 = vmatpush1.msra.mxu0 0.0
    %2973 = vmatprep.subr.mxu0 0.0
    %2974 = vmatpush1.msra.mxu0 0.0
    %2975 = vmatprep.subr.mxu0 0.0
    %2976 = vmatpush1.msra.mxu0 0.0
    %2977 = vmatprep.subr.mxu0 0.0
    %2978 = vmatpush1.msra.mxu0 0.0
    %2979 = vmatprep.subr.mxu0 0.0
    %2980 = vmatpush1.msra.mxu0 0.0
    %2981 = vmatprep.subr.mxu0 0.0
    %2982 = vmatpush1.msra.mxu0 0.0
    %2983 = vmatprep.subr.mxu0 0.0
    %2984 = vmatpush1.msra.mxu0 0.0
    %2985 = vmatprep.subr.mxu0 0.0
    %2986 = vmatpush1.msra.mxu0 0.0
    %2987 = vmatprep.subr.mxu0 0.0
    %2988 = vmatpush1.msra.mxu0 0.0
    %2989 = vmatprep.subr.mxu0 0.0
    %2990 = vmatpush1.msra.mxu0 0.0
    %2991 = vmatprep.subr.mxu0 0.0
    %2992 = vmatpush1.msra.mxu0 0.0
    %2993 = vmatprep.subr.mxu0 0.0
    %2994 = vmatpush1.msra.mxu0 0.0
    %2995 = vmatprep.mubr.f32.mxu0 0.0
    %2996 = vmatmul.mubr.f32.gmra.mrb[0].mxu0 %v2926
    %v2997 = vpop.f32.mrb[0].mxu0
    %v2998 = vadd.f32 %v2923, %v2997
    %v2999 = vpop.f32.mrb[0].mxu0
    %3000 = vmatprep.mubr.f32.mxu0 0.0
    %3001 = vmatmul.mubr.f32.gmra.mrb[0].mxu0 %v2929
    %v3002 = vpop.f32.mrb[0].mxu0
    %v3003 = vadd.f32 %v2923, %v3002
    %v3004 = vpop.f32.mrb[0].mxu0
    %3005 = vdwg.mxu0
    %v3006 = vadd.f32 %v2771, %v2998
    %v3007 = vadd.f32 %v2772, %v3003
    %s3008 = scalar_lea.vmem %s31, 1
    %v3009 = vld [vmem:[%s3008] sm:$0x1]
    %s3010 = scalar_lea.vmem %s33, 1
    %v3011 = vld [vmem:[%s3010] sm:$0x1]
    %v3012 = vsel %vm225, %v3006, 0.0
    %3013 = vadd.xlane.f32.xlu0 %v3012
    %v3014 = vpop.xlane.xlu0 %3013
    %v3015 = vsel %vm2142, %v3007, 0.0
    %3016 = vadd.xlane.f32.xlu0 %v3015
    %v3017 = vpop.xlane.xlu0 %3016
    %v3018 = vmul.f32 %v3014, %v2146
    %v3019 = vmul.f32 %v3017, %v2146
    %v3020 = vsub.f32 %v3006, %v3018
    %v3021 = vsub.f32 %v3007, %v3019
    %v3022 = vmul.f32 %v3020, %v3020
    %v3023 = vmul.f32 %v3021, %v3021
    %v3024 = vsel %vm225, %v3022, 0.0
    %3025 = vadd.xlane.f32.xlu0 %v3024
    %v3026 = vpop.xlane.xlu0 %3025
    %v3027 = vsel %vm2142, %v3023, 0.0
    %3028 = vadd.xlane.f32.xlu0 %v3027
    %v3029 = vpop.xlane.xlu0 %3028
    %v3030 = vmul.f32 %v3026, %v2146
    %v3031 = vmul.f32 %v3029, %v2146
    %v3032 = vadd.f32 %v3030, 1e-05
    %v3033 = vadd.f32 %v3031, 1e-05
    %v3034 = vrsqrt.pop %v3032
    %v3035 = vrsqrt.pop %v3033
    %v3036 = vmul.f32 %v3020, %v3034
    %v3037 = vmul.f32 %v3021, %v3035
    %v3039 = vlaneseq
    %v3040 = vshrl.u32 %v3039, 7
    %v3041 = vsub.s32 0, %v3040
    %v3042 = vrot.slane %v3009, %v3041
    %v3044 = vmul.f32 %v3036, %v3042
    %v3045 = vmul.f32 %v3037, %v3042
    %v3047 = vlaneseq
    %v3048 = vshrl.u32 %v3047, 7
    %v3049 = vsub.s32 0, %v3048
    %v3050 = vrot.slane %v3011, %v3049
    %v3052 = vadd.f32 %v3044, %v3050
    %v3053 = vadd.f32 %v3045, %v3050
    %s3054 = scalar_lea.vmem %s35, 8
    %v3055 = vld [vmem:[%s3054] sm:$0xff]
    %v3057 = vsel %vm225, %v3052, 0
    %v3060 = vsel %vm225, %v3053, 0
    %3062 = vmatprep.subr.mxu0 0.0
    %3063 = vmatpush1.msra.mxu0 %v3055
    %3064 = vmatprep.subr.mxu0 0.0
    %3065 = vmatpush1.msra.mxu0 0.0
    %3066 = vmatprep.subr.mxu0 0.0
    %3067 = vmatpush1.msra.mxu0 0.0
    %3068 = vmatprep.subr.mxu0 0.0
    %3069 = vmatpush1.msra.mxu0 0.0
    %3070 = vmatprep.subr.mxu0 0.0
    %3071 = vmatpush1.msra.mxu0 0.0
    %3072 = vmatprep.subr.mxu0 0.0
    %3073 = vmatpush1.msra.mxu0 0.0
    %3074 = vmatprep.subr.mxu0 0.0
    %3075 = vmatpush1.msra.mxu0 0.0
    %3076 = vmatprep.subr.mxu0 0.0
    %3077 = vmatpush1.msra.mxu0 0.0
    %3078 = vmatprep.subr.mxu0 0.0
    %3079 = vmatpush1.msra.mxu0 0.0
    %3080 = vmatprep.subr.mxu0 0.0
    %3081 = vmatpush1.msra.mxu0 0.0
    %3082 = vmatprep.subr.mxu0 0.0
    %3083 = vmatpush1.msra.mxu0 0.0
    %3084 = vmatprep.subr.mxu0 0.0
    %3085 = vmatpush1.msra.mxu0 0.0
    %3086 = vmatprep.subr.mxu0 0.0
    %3087 = vmatpush1.msra.mxu0 0.0
    %3088 = vmatprep.subr.mxu0 0.0
    %3089 = vmatpush1.msra.mxu0 0.0
    %3090 = vmatprep.subr.mxu0 0.0
    %3091 = vmatpush1.msra.mxu0 0.0
    %3092 = vmatprep.subr.mxu0 0.0
    %3093 = vmatpush1.msra.mxu0 0.0
    %3094 = vmatprep.subr.mxu0 0.0
    %3095 = vmatpush1.msra.mxu0 0.0
    %3096 = vmatprep.subr.mxu0 0.0
    %3097 = vmatpush1.msra.mxu0 0.0
    %3098 = vmatprep.subr.mxu0 0.0
    %3099 = vmatpush1.msra.mxu0 0.0
    %3100 = vmatprep.subr.mxu0 0.0
    %3101 = vmatpush1.msra.mxu0 0.0
    %3102 = vmatprep.subr.mxu0 0.0
    %3103 = vmatpush1.msra.mxu0 0.0
    %3104 = vmatprep.subr.mxu0 0.0
    %3105 = vmatpush1.msra.mxu0 0.0
    %3106 = vmatprep.subr.mxu0 0.0
    %3107 = vmatpush1.msra.mxu0 0.0
    %3108 = vmatprep.subr.mxu0 0.0
    %3109 = vmatpush1.msra.mxu0 0.0
    %3110 = vmatprep.subr.mxu0 0.0
    %3111 = vmatpush1.msra.mxu0 0.0
    %3112 = vmatprep.subr.mxu0 0.0
    %3113 = vmatpush1.msra.mxu0 0.0
    %3114 = vmatprep.subr.mxu0 0.0
    %3115 = vmatpush1.msra.mxu0 0.0
    %3116 = vmatprep.subr.mxu0 0.0
    %3117 = vmatpush1.msra.mxu0 0.0
    %3118 = vmatprep.subr.mxu0 0.0
    %3119 = vmatpush1.msra.mxu0 0.0
    %3120 = vmatprep.subr.mxu0 0.0
    %3121 = vmatpush1.msra.mxu0 0.0
    %3122 = vmatprep.subr.mxu0 0.0
    %3123 = vmatpush1.msra.mxu0 0.0
    %3124 = vmatprep.subr.mxu0 0.0
    %3125 = vmatpush1.msra.mxu0 0.0
    %3126 = vmatprep.mubr.f32.mxu0 0.0
    %3127 = vmatmul.mubr.f32.gmra.mrb[0].mxu0 %v3057
    %v3128 = vpop.f32.mrb[0].mxu0
    %v3129 = vadd.f32 0.0, %v3128
    %v3130 = vpop.f32.mrb[0].mxu0
    %3131 = vmatprep.mubr.f32.mxu0 0.0
    %3132 = vmatmul.mubr.f32.gmra.mrb[0].mxu0 %v3060
    %v3133 = vpop.f32.mrb[0].mxu0
    %v3134 = vadd.f32 0.0, %v3133
    %v3135 = vpop.f32.mrb[0].mxu0
    %3136 = vdwg.mxu0
    %3139 = vrot.lane.b32.xlu0 %v3129, 120
    %v3140 = vpop.permute.xlu0 %3139
    %3141 = vrot.lane.b32.xlu0 %v3134, 120
    %v3142 = vpop.permute.xlu0 %3141
    %v3143 = vsel %vm2271, %v3129, 0
    %v3145 = vsel %vm2271, %v3134, 0
    %v3147 = vsel %vm2271, %v3140, 0
    %v3149 = vsel %vm2271, %v3142, 0
    %3151 = vmatprep.subr.mxu0 0.0
    %3152 = vmatpush1.xpose.msra.mxu0 %v3147
    %3153 = vmatprep.subr.mxu0 0.0
    %3154 = vmatpush1.xpose.msra.mxu0 %v3149
    %3155 = vmatprep.subr.mxu0 0.0
    %3156 = vmatpush1.xpose.msra.mxu0 0.0
    %3157 = vmatprep.subr.mxu0 0.0
    %3158 = vmatpush1.xpose.msra.mxu0 0.0
    %3159 = vmatprep.subr.mxu0 0.0
    %3160 = vmatpush1.xpose.msra.mxu0 0.0
    %3161 = vmatprep.subr.mxu0 0.0
    %3162 = vmatpush1.xpose.msra.mxu0 0.0
    %3163 = vmatprep.subr.mxu0 0.0
    %3164 = vmatpush1.xpose.msra.mxu0 0.0
    %3165 = vmatprep.subr.mxu0 0.0
    %3166 = vmatpush1.xpose.msra.mxu0 0.0
    %3167 = vmatprep.subr.mxu0 0.0
    %3168 = vmatpush1.xpose.msra.mxu0 0.0
    %3169 = vmatprep.subr.mxu0 0.0
    %3170 = vmatpush1.xpose.msra.mxu0 0.0
    %3171 = vmatprep.subr.mxu0 0.0
    %3172 = vmatpush1.xpose.msra.mxu0 0.0
    %3173 = vmatprep.subr.mxu0 0.0
    %3174 = vmatpush1.xpose.msra.mxu0 0.0
    %3175 = vmatprep.subr.mxu0 0.0
    %3176 = vmatpush1.xpose.msra.mxu0 0.0
    %3177 = vmatprep.subr.mxu0 0.0
    %3178 = vmatpush1.xpose.msra.mxu0 0.0
    %3179 = vmatprep.subr.mxu0 0.0
    %3180 = vmatpush1.xpose.msra.mxu0 0.0
    %3181 = vmatprep.subr.mxu0 0.0
    %3182 = vmatpush1.xpose.msra.mxu0 0.0
    %3183 = vmatprep.subr.mxu0 0.0
    %3184 = vmatpush1.xpose.msra.mxu0 0.0
    %3185 = vmatprep.subr.mxu0 0.0
    %3186 = vmatpush1.xpose.msra.mxu0 0.0
    %3187 = vmatprep.subr.mxu0 0.0
    %3188 = vmatpush1.xpose.msra.mxu0 0.0
    %3189 = vmatprep.subr.mxu0 0.0
    %3190 = vmatpush1.xpose.msra.mxu0 0.0
    %3191 = vmatprep.subr.mxu0 0.0
    %3192 = vmatpush1.xpose.msra.mxu0 0.0
    %3193 = vmatprep.subr.mxu0 0.0
    %3194 = vmatpush1.xpose.msra.mxu0 0.0
    %3195 = vmatprep.subr.mxu0 0.0
    %3196 = vmatpush1.xpose.msra.mxu0 0.0
    %3197 = vmatprep.subr.mxu0 0.0
    %3198 = vmatpush1.xpose.msra.mxu0 0.0
    %3199 = vmatprep.subr.mxu0 0.0
    %3200 = vmatpush1.xpose.msra.mxu0 0.0
    %3201 = vmatprep.subr.mxu0 0.0
    %3202 = vmatpush1.xpose.msra.mxu0 0.0
    %3203 = vmatprep.subr.mxu0 0.0
    %3204 = vmatpush1.xpose.msra.mxu0 0.0
    %3205 = vmatprep.subr.mxu0 0.0
    %3206 = vmatpush1.xpose.msra.mxu0 0.0
    %3207 = vmatprep.subr.mxu0 0.0
    %3208 = vmatpush1.xpose.msra.mxu0 0.0
    %3209 = vmatprep.subr.mxu0 0.0
    %3210 = vmatpush1.xpose.msra.mxu0 0.0
    %3211 = vmatprep.subr.mxu0 0.0
    %3212 = vmatpush1.xpose.msra.mxu0 0.0
    %3213 = vmatprep.subr.mxu0 0.0
    %3214 = vmatpush1.xpose.msra.mxu0 0.0
    %3215 = vmatprep.mubr.f32.mxu0 0.0
    %3216 = vmatmul.mubr.f32.gmra.mrb[0].mxu0 %v3143
    %v3217 = vpop.f32.mrb[0].mxu0
    %v3218 = vadd.f32 0.0, %v3217
    %v3219 = vpop.f32.mrb[0].mxu0
    %3220 = vmatprep.mubr.f32.mxu0 0.0
    %3221 = vmatmul.mubr.f32.gmra.mrb[0].mxu0 %v3145
    %v3222 = vpop.f32.mrb[0].mxu0
    %v3223 = vadd.f32 0.0, %v3222
    %v3224 = vpop.f32.mrb[0].mxu0
    %3225 = vdwg.mxu0
    %v3226 = vmul.f32 %v3218, 0.5
    %v3227 = vmul.f32 %v3223, 0.5
    %v3228 = vsel %vm2357, %v3226, -inf
    %3229 = vmax.xlane.f32.xlu0 %v3228
    %v3230 = vpop.xlane.xlu0 %3229
    %v3231 = vsel %vm2361, %v3227, -inf
    %3232 = vmax.xlane.f32.xlu0 %v3231
    %v3233 = vpop.xlane.xlu0 %3232
    %v3234 = vsub.f32 %v3226, %v3230
    %v3235 = vsub.f32 %v3227, %v3233
    %v3236 = vmul.f32 %v3234, 1.442695
    %v3237 = vpow.pop %v3236
    %v3238 = vmul.f32 %v3235, 1.442695
    %v3239 = vpow.pop %v3238
    %v3240 = vsel %vm2357, %v3237, 0.0
    %3241 = vadd.xlane.f32.xlu0 %v3240
    %v3242 = vpop.xlane.xlu0 %3241
    %v3243 = vsel %vm2361, %v3239, 0.0
    %3244 = vadd.xlane.f32.xlu0 %v3243
    %v3245 = vpop.xlane.xlu0 %3244
    %v3246 = vrcp.pop %v3242
    %v3247 = vrcp.pop %v3245
    %v3248 = vmul.f32 %v3237, %v3246
    %v3249 = vmul.f32 %v3239, %v3247
    %3250 = vrot.lane.b32.xlu0 %v3129, 112
    %v3251 = vpop.permute.xlu0 %3250
    %3252 = vrot.lane.b32.xlu0 %v3134, 112
    %v3253 = vpop.permute.xlu0 %3252
    %v3256 = vsel %vm2357, %v3248, 0
    %v3259 = vsel %vm2357, %v3249, 0
    %v3261 = vsel %vm1845, %v3253, 0
    %3263 = vmatprep.subr.mxu0 0.0
    %3264 = vmatpush1.msra.mxu0 %v3251
    %3265 = vmatprep.subr.mxu0 0.0
    %3266 = vmatpush1.msra.mxu0 %v3261
    %3267 = vmatprep.subr.mxu0 0.0
    %3268 = vmatpush1.msra.mxu0 0.0
    %3269 = vmatprep.subr.mxu0 0.0
    %3270 = vmatpush1.msra.mxu0 0.0
    %3271 = vmatprep.subr.mxu0 0.0
    %3272 = vmatpush1.msra.mxu0 0.0
    %3273 = vmatprep.subr.mxu0 0.0
    %3274 = vmatpush1.msra.mxu0 0.0
    %3275 = vmatprep.subr.mxu0 0.0
    %3276 = vmatpush1.msra.mxu0 0.0
    %3277 = vmatprep.subr.mxu0 0.0
    %3278 = vmatpush1.msra.mxu0 0.0
    %3279 = vmatprep.subr.mxu0 0.0
    %3280 = vmatpush1.msra.mxu0 0.0
    %3281 = vmatprep.subr.mxu0 0.0
    %3282 = vmatpush1.msra.mxu0 0.0
    %3283 = vmatprep.subr.mxu0 0.0
    %3284 = vmatpush1.msra.mxu0 0.0
    %3285 = vmatprep.subr.mxu0 0.0
    %3286 = vmatpush1.msra.mxu0 0.0
    %3287 = vmatprep.subr.mxu0 0.0
    %3288 = vmatpush1.msra.mxu0 0.0
    %3289 = vmatprep.subr.mxu0 0.0
    %3290 = vmatpush1.msra.mxu0 0.0
    %3291 = vmatprep.subr.mxu0 0.0
    %3292 = vmatpush1.msra.mxu0 0.0
    %3293 = vmatprep.subr.mxu0 0.0
    %3294 = vmatpush1.msra.mxu0 0.0
    %3295 = vmatprep.subr.mxu0 0.0
    %3296 = vmatpush1.msra.mxu0 0.0
    %3297 = vmatprep.subr.mxu0 0.0
    %3298 = vmatpush1.msra.mxu0 0.0
    %3299 = vmatprep.subr.mxu0 0.0
    %3300 = vmatpush1.msra.mxu0 0.0
    %3301 = vmatprep.subr.mxu0 0.0
    %3302 = vmatpush1.msra.mxu0 0.0
    %3303 = vmatprep.subr.mxu0 0.0
    %3304 = vmatpush1.msra.mxu0 0.0
    %3305 = vmatprep.subr.mxu0 0.0
    %3306 = vmatpush1.msra.mxu0 0.0
    %3307 = vmatprep.subr.mxu0 0.0
    %3308 = vmatpush1.msra.mxu0 0.0
    %3309 = vmatprep.subr.mxu0 0.0
    %3310 = vmatpush1.msra.mxu0 0.0
    %3311 = vmatprep.subr.mxu0 0.0
    %3312 = vmatpush1.msra.mxu0 0.0
    %3313 = vmatprep.subr.mxu0 0.0
    %3314 = vmatpush1.msra.mxu0 0.0
    %3315 = vmatprep.subr.mxu0 0.0
    %3316 = vmatpush1.msra.mxu0 0.0
    %3317 = vmatprep.subr.mxu0 0.0
    %3318 = vmatpush1.msra.mxu0 0.0
    %3319 = vmatprep.subr.mxu0 0.0
    %3320 = vmatpush1.msra.mxu0 0.0
    %3321 = vmatprep.subr.mxu0 0.0
    %3322 = vmatpush1.msra.mxu0 0.0
    %3323 = vmatprep.subr.mxu0 0.0
    %3324 = vmatpush1.msra.mxu0 0.0
    %3325 = vmatprep.subr.mxu0 0.0
    %3326 = vmatpush1.msra.mxu0 0.0
    %3327 = vmatprep.mubr.f32.mxu0 0.0
    %3328 = vmatmul.mubr.f32.gmra.mrb[0].mxu0 %v3256
    %v3329 = vpop.f32.mrb[0].mxu0
    %v3330 = vadd.f32 0.0, %v3329
    %v3331 = vpop.f32.mrb[0].mxu0
    %3332 = vmatprep.mubr.f32.mxu0 0.0
    %3333 = vmatmul.mubr.f32.gmra.mrb[0].mxu0 %v3259
    %v3334 = vpop.f32.mrb[0].mxu0
    %v3335 = vadd.f32 0.0, %v3334
    %v3336 = vpop.f32.mrb[0].mxu0
    %3337 = vdwg.mxu0
    %3338 = vrot.lane.b32.xlu0 %v3129, 124
    %v3339 = vpop.permute.xlu0 %3338
    %3340 = vrot.lane.b32.xlu0 %v3134, 124
    %v3341 = vpop.permute.xlu0 %3340
    %3342 = vrot.lane.b32.xlu0 %v3129, 116
    %v3343 = vpop.permute.xlu0 %3342
    %3344 = vrot.lane.b32.xlu0 %v3134, 116
    %v3345 = vpop.permute.xlu0 %3344
    %v3346 = vsel %vm2271, %v3339, 0
    %v3348 = vsel %vm2271, %v3341, 0
    %v3350 = vsel %vm2271, %v3343, 0
    %v3352 = vsel %vm2271, %v3345, 0
    %3354 = vmatprep.subr.mxu0 0.0
    %3355 = vmatpush1.xpose.msra.mxu0 %v3350
    %3356 = vmatprep.subr.mxu0 0.0
    %3357 = vmatpush1.xpose.msra.mxu0 %v3352
    %3358 = vmatprep.subr.mxu0 0.0
    %3359 = vmatpush1.xpose.msra.mxu0 0.0
    %3360 = vmatprep.subr.mxu0 0.0
    %3361 = vmatpush1.xpose.msra.mxu0 0.0
    %3362 = vmatprep.subr.mxu0 0.0
    %3363 = vmatpush1.xpose.msra.mxu0 0.0
    %3364 = vmatprep.subr.mxu0 0.0
    %3365 = vmatpush1.xpose.msra.mxu0 0.0
    %3366 = vmatprep.subr.mxu0 0.0
    %3367 = vmatpush1.xpose.msra.mxu0 0.0
    %3368 = vmatprep.subr.mxu0 0.0
    %3369 = vmatpush1.xpose.msra.mxu0 0.0
    %3370 = vmatprep.subr.mxu0 0.0
    %3371 = vmatpush1.xpose.msra.mxu0 0.0
    %3372 = vmatprep.subr.mxu0 0.0
    %3373 = vmatpush1.xpose.msra.mxu0 0.0
    %3374 = vmatprep.subr.mxu0 0.0
    %3375 = vmatpush1.xpose.msra.mxu0 0.0
    %3376 = vmatprep.subr.mxu0 0.0
    %3377 = vmatpush1.xpose.msra.mxu0 0.0
    %3378 = vmatprep.subr.mxu0 0.0
    %3379 = vmatpush1.xpose.msra.mxu0 0.0
    %3380 = vmatprep.subr.mxu0 0.0
    %3381 = vmatpush1.xpose.msra.mxu0 0.0
    %3382 = vmatprep.subr.mxu0 0.0
    %3383 = vmatpush1.xpose.msra.mxu0 0.0
    %3384 = vmatprep.subr.mxu0 0.0
    %3385 = vmatpush1.xpose.msra.mxu0 0.0
    %3386 = vmatprep.subr.mxu0 0.0
    %3387 = vmatpush1.xpose.msra.mxu0 0.0
    %3388 = vmatprep.subr.mxu0 0.0
    %3389 = vmatpush1.xpose.msra.mxu0 0.0
    %3390 = vmatprep.subr.mxu0 0.0
    %3391 = vmatpush1.xpose.msra.mxu0 0.0
    %3392 = vmatprep.subr.mxu0 0.0
    %3393 = vmatpush1.xpose.msra.mxu0 0.0
    %3394 = vmatprep.subr.mxu0 0.0
    %3395 = vmatpush1.xpose.msra.mxu0 0.0
    %3396 = vmatprep.subr.mxu0 0.0
    %3397 = vmatpush1.xpose.msra.mxu0 0.0
    %3398 = vmatprep.subr.mxu0 0.0
    %3399 = vmatpush1.xpose.msra.mxu0 0.0
    %3400 = vmatprep.subr.mxu0 0.0
    %3401 = vmatpush1.xpose.msra.mxu0 0.0
    %3402 = vmatprep.subr.mxu0 0.0
    %3403 = vmatpush1.xpose.msra.mxu0 0.0
    %3404 = vmatprep.subr.mxu0 0.0
    %3405 = vmatpush1.xpose.msra.mxu0 0.0
    %3406 = vmatprep.subr.mxu0 0.0
    %3407 = vmatpush1.xpose.msra.mxu0 0.0
    %3408 = vmatprep.subr.mxu0 0.0
    %3409 = vmatpush1.xpose.msra.mxu0 0.0
    %3410 = vmatprep.subr.mxu0 0.0
    %3411 = vmatpush1.xpose.msra.mxu0 0.0
    %3412 = vmatprep.subr.mxu0 0.0
    %3413 = vmatpush1.xpose.msra.mxu0 0.0
    %3414 = vmatprep.subr.mxu0 0.0
    %3415 = vmatpush1.xpose.msra.mxu0 0.0
    %3416 = vmatprep.subr.mxu0 0.0
    %3417 = vmatpush1.xpose.msra.mxu0 0.0
    %3418 = vmatprep.mubr.f32.mxu0 0.0
    %3419 = vmatmul.mubr.f32.gmra.mrb[0].mxu0 %v3346
    %v3420 = vpop.f32.mrb[0].mxu0
    %v3421 = vadd.f32 0.0, %v3420
    %v3422 = vpop.f32.mrb[0].mxu0
    %3423 = vmatprep.mubr.f32.mxu0 0.0
    %3424 = vmatmul.mubr.f32.gmra.mrb[0].mxu0 %v3348
    %v3425 = vpop.f32.mrb[0].mxu0
    %v3426 = vadd.f32 0.0, %v3425
    %v3427 = vpop.f32.mrb[0].mxu0
    %3428 = vdwg.mxu0
    %v3429 = vmul.f32 %v3421, 0.5
    %v3430 = vmul.f32 %v3426, 0.5
    %v3431 = vsel %vm2357, %v3429, -inf
    %3432 = vmax.xlane.f32.xlu0 %v3431
    %v3433 = vpop.xlane.xlu0 %3432
    %v3434 = vsel %vm2361, %v3430, -inf
    %3435 = vmax.xlane.f32.xlu0 %v3434
    %v3436 = vpop.xlane.xlu0 %3435
    %v3437 = vsub.f32 %v3429, %v3433
    %v3438 = vsub.f32 %v3430, %v3436
    %v3439 = vmul.f32 %v3437, 1.442695
    %v3440 = vpow.pop %v3439
    %v3441 = vmul.f32 %v3438, 1.442695
    %v3442 = vpow.pop %v3441
    %v3443 = vsel %vm2357, %v3440, 0.0
    %3444 = vadd.xlane.f32.xlu0 %v3443
    %v3445 = vpop.xlane.xlu0 %3444
    %v3446 = vsel %vm2361, %v3442, 0.0
    %3447 = vadd.xlane.f32.xlu0 %v3446
    %v3448 = vpop.xlane.xlu0 %3447
    %v3449 = vrcp.pop %v3445
    %v3450 = vrcp.pop %v3448
    %v3451 = vmul.f32 %v3440, %v3449
    %v3452 = vmul.f32 %v3442, %v3450
    %3453 = vrot.lane.b32.xlu0 %v3129, 108
    %v3454 = vpop.permute.xlu0 %3453
    %3455 = vrot.lane.b32.xlu0 %v3134, 108
    %v3456 = vpop.permute.xlu0 %3455
    %v3459 = vsel %vm2357, %v3451, 0
    %v3462 = vsel %vm2357, %v3452, 0
    %v3464 = vsel %vm1845, %v3456, 0
    %3466 = vmatprep.subr.mxu0 0.0
    %3467 = vmatpush1.msra.mxu0 %v3454
    %3468 = vmatprep.subr.mxu0 0.0
    %3469 = vmatpush1.msra.mxu0 %v3464
    %3470 = vmatprep.subr.mxu0 0.0
    %3471 = vmatpush1.msra.mxu0 0.0
    %3472 = vmatprep.subr.mxu0 0.0
    %3473 = vmatpush1.msra.mxu0 0.0
    %3474 = vmatprep.subr.mxu0 0.0
    %3475 = vmatpush1.msra.mxu0 0.0
    %3476 = vmatprep.subr.mxu0 0.0
    %3477 = vmatpush1.msra.mxu0 0.0
    %3478 = vmatprep.subr.mxu0 0.0
    %3479 = vmatpush1.msra.mxu0 0.0
    %3480 = vmatprep.subr.mxu0 0.0
    %3481 = vmatpush1.msra.mxu0 0.0
    %3482 = vmatprep.subr.mxu0 0.0
    %3483 = vmatpush1.msra.mxu0 0.0
    %3484 = vmatprep.subr.mxu0 0.0
    %3485 = vmatpush1.msra.mxu0 0.0
    %3486 = vmatprep.subr.mxu0 0.0
    %3487 = vmatpush1.msra.mxu0 0.0
    %3488 = vmatprep.subr.mxu0 0.0
    %3489 = vmatpush1.msra.mxu0 0.0
    %3490 = vmatprep.subr.mxu0 0.0
    %3491 = vmatpush1.msra.mxu0 0.0
    %3492 = vmatprep.subr.mxu0 0.0
    %3493 = vmatpush1.msra.mxu0 0.0
    %3494 = vmatprep.subr.mxu0 0.0
    %3495 = vmatpush1.msra.mxu0 0.0
    %3496 = vmatprep.subr.mxu0 0.0
    %3497 = vmatpush1.msra.mxu0 0.0
    %3498 = vmatprep.subr.mxu0 0.0
    %3499 = vmatpush1.msra.mxu0 0.0
    %3500 = vmatprep.subr.mxu0 0.0
    %3501 = vmatpush1.msra.mxu0 0.0
    %3502 = vmatprep.subr.mxu0 0.0
    %3503 = vmatpush1.msra.mxu0 0.0
    %3504 = vmatprep.subr.mxu0 0.0
    %3505 = vmatpush1.msra.mxu0 0.0
    %3506 = vmatprep.subr.mxu0 0.0
    %3507 = vmatpush1.msra.mxu0 0.0
    %3508 = vmatprep.subr.mxu0 0.0
    %3509 = vmatpush1.msra.mxu0 0.0
    %3510 = vmatprep.subr.mxu0 0.0
    %3511 = vmatpush1.msra.mxu0 0.0
    %3512 = vmatprep.subr.mxu0 0.0
    %3513 = vmatpush1.msra.mxu0 0.0
    %3514 = vmatprep.subr.mxu0 0.0
    %3515 = vmatpush1.msra.mxu0 0.0
    %3516 = vmatprep.subr.mxu0 0.0
    %3517 = vmatpush1.msra.mxu0 0.0
    %3518 = vmatprep.subr.mxu0 0.0
    %3519 = vmatpush1.msra.mxu0 0.0
    %3520 = vmatprep.subr.mxu0 0.0
    %3521 = vmatpush1.msra.mxu0 0.0
    %3522 = vmatprep.subr.mxu0 0.0
    %3523 = vmatpush1.msra.mxu0 0.0
    %3524 = vmatprep.subr.mxu0 0.0
    %3525 = vmatpush1.msra.mxu0 0.0
    %3526 = vmatprep.subr.mxu0 0.0
    %3527 = vmatpush1.msra.mxu0 0.0
    %3528 = vmatprep.subr.mxu0 0.0
    %3529 = vmatpush1.msra.mxu0 0.0
    %3530 = vmatprep.mubr.f32.mxu0 0.0
    %3531 = vmatmul.mubr.f32.gmra.mrb[0].mxu0 %v3459
    %v3532 = vpop.f32.mrb[0].mxu0
    %v3533 = vadd.f32 0.0, %v3532
    %v3534 = vpop.f32.mrb[0].mxu0
    %3535 = vmatprep.mubr.f32.mxu0 0.0
    %3536 = vmatmul.mubr.f32.gmra.mrb[0].mxu0 %v3462
    %v3537 = vpop.f32.mrb[0].mxu0
    %v3538 = vadd.f32 0.0, %v3537
    %v3539 = vpop.f32.mrb[0].mxu0
    %3540 = vdwg.mxu0
    %3543 = vrot.lane.b32.xlu0 %v3533, 4
    %v3544 = vpop.permute.xlu0 %3543
    %3545 = vrot.lane.b32.xlu0 %v3538, 4
    %v3546 = vpop.permute.xlu0 %3545
    %v3549 = vsel %vm2271, %v3330, %v3544
    %v3550 = vsel %vm2271, %v3335, %v3546
    %s3551 = scalar_lea.vmem %s37, 8
    %v3552 = vld [vmem:[%s3551] sm:$0xff]
    %s3553 = scalar_lea.vmem %s39, 1
    %v3554 = vld [vmem:[%s3553] sm:$0x1]
    %v3556 = vlaneseq
    %v3557 = vshrl.u32 %v3556, 7
    %v3558 = vsub.s32 0, %v3557
    %v3559 = vrot.slane %v3554, %v3558
    %v3562 = vsel %vm225, %v3549, 0
    %v3565 = vsel %vm225, %v3550, 0
    %3567 = vmatprep.subr.mxu0 0.0
    %3568 = vmatpush1.msra.mxu0 %v3552
    %3569 = vmatprep.subr.mxu0 0.0
    %3570 = vmatpush1.msra.mxu0 0.0
    %3571 = vmatprep.subr.mxu0 0.0
    %3572 = vmatpush1.msra.mxu0 0.0
    %3573 = vmatprep.subr.mxu0 0.0
    %3574 = vmatpush1.msra.mxu0 0.0
    %3575 = vmatprep.subr.mxu0 0.0
    %3576 = vmatpush1.msra.mxu0 0.0
    %3577 = vmatprep.subr.mxu0 0.0
    %3578 = vmatpush1.msra.mxu0 0.0
    %3579 = vmatprep.subr.mxu0 0.0
    %3580 = vmatpush1.msra.mxu0 0.0
    %3581 = vmatprep.subr.mxu0 0.0
    %3582 = vmatpush1.msra.mxu0 0.0
    %3583 = vmatprep.subr.mxu0 0.0
    %3584 = vmatpush1.msra.mxu0 0.0
    %3585 = vmatprep.subr.mxu0 0.0
    %3586 = vmatpush1.msra.mxu0 0.0
    %3587 = vmatprep.subr.mxu0 0.0
    %3588 = vmatpush1.msra.mxu0 0.0
    %3589 = vmatprep.subr.mxu0 0.0
    %3590 = vmatpush1.msra.mxu0 0.0
    %3591 = vmatprep.subr.mxu0 0.0
    %3592 = vmatpush1.msra.mxu0 0.0
    %3593 = vmatprep.subr.mxu0 0.0
    %3594 = vmatpush1.msra.mxu0 0.0
    %3595 = vmatprep.subr.mxu0 0.0
    %3596 = vmatpush1.msra.mxu0 0.0
    %3597 = vmatprep.subr.mxu0 0.0
    %3598 = vmatpush1.msra.mxu0 0.0
    %3599 = vmatprep.subr.mxu0 0.0
    %3600 = vmatpush1.msra.mxu0 0.0
    %3601 = vmatprep.subr.mxu0 0.0
    %3602 = vmatpush1.msra.mxu0 0.0
    %3603 = vmatprep.subr.mxu0 0.0
    %3604 = vmatpush1.msra.mxu0 0.0
    %3605 = vmatprep.subr.mxu0 0.0
    %3606 = vmatpush1.msra.mxu0 0.0
    %3607 = vmatprep.subr.mxu0 0.0
    %3608 = vmatpush1.msra.mxu0 0.0
    %3609 = vmatprep.subr.mxu0 0.0
    %3610 = vmatpush1.msra.mxu0 0.0
    %3611 = vmatprep.subr.mxu0 0.0
    %3612 = vmatpush1.msra.mxu0 0.0
    %3613 = vmatprep.subr.mxu0 0.0
    %3614 = vmatpush1.msra.mxu0 0.0
    %3615 = vmatprep.subr.mxu0 0.0
    %3616 = vmatpush1.msra.mxu0 0.0
    %3617 = vmatprep.subr.mxu0 0.0
    %3618 = vmatpush1.msra.mxu0 0.0
    %3619 = vmatprep.subr.mxu0 0.0
    %3620 = vmatpush1.msra.mxu0 0.0
    %3621 = vmatprep.subr.mxu0 0.0
    %3622 = vmatpush1.msra.mxu0 0.0
    %3623 = vmatprep.subr.mxu0 0.0
    %3624 = vmatpush1.msra.mxu0 0.0
    %3625 = vmatprep.subr.mxu0 0.0
    %3626 = vmatpush1.msra.mxu0 0.0
    %3627 = vmatprep.subr.mxu0 0.0
    %3628 = vmatpush1.msra.mxu0 0.0
    %3629 = vmatprep.subr.mxu0 0.0
    %3630 = vmatpush1.msra.mxu0 0.0
    %3631 = vmatprep.mubr.f32.mxu0 0.0
    %3632 = vmatmul.mubr.f32.gmra.mrb[0].mxu0 %v3562
    %v3633 = vpop.f32.mrb[0].mxu0
    %v3634 = vadd.f32 %v3559, %v3633
    %v3635 = vpop.f32.mrb[0].mxu0
    %3636 = vmatprep.mubr.f32.mxu0 0.0
    %3637 = vmatmul.mubr.f32.gmra.mrb[0].mxu0 %v3565
    %v3638 = vpop.f32.mrb[0].mxu0
    %v3639 = vadd.f32 %v3559, %v3638
    %v3640 = vpop.f32.mrb[0].mxu0
    %3641 = vdwg.mxu0
    %v3642 = vadd.f32 %v3006, %v3634
    %v3643 = vadd.f32 %v3007, %v3639
    %s3644 = scalar_lea.vmem %s41, 1
    %v3645 = vld [vmem:[%s3644] sm:$0x1]
    %s3646 = scalar_lea.vmem %s43, 1
    %v3647 = vld [vmem:[%s3646] sm:$0x1]
    %v3648 = vsel %vm225, %v3642, 0.0
    %3649 = vadd.xlane.f32.xlu0 %v3648
    %v3650 = vpop.xlane.xlu0 %3649
    %v3651 = vsel %vm2142, %v3643, 0.0
    %3652 = vadd.xlane.f32.xlu0 %v3651
    %v3653 = vpop.xlane.xlu0 %3652
    %v3654 = vmul.f32 %v3650, %v2146
    %v3655 = vmul.f32 %v3653, %v2146
    %v3656 = vsub.f32 %v3642, %v3654
    %v3657 = vsub.f32 %v3643, %v3655
    %v3658 = vmul.f32 %v3656, %v3656
    %v3659 = vmul.f32 %v3657, %v3657
    %v3660 = vsel %vm225, %v3658, 0.0
    %3661 = vadd.xlane.f32.xlu0 %v3660
    %v3662 = vpop.xlane.xlu0 %3661
    %v3663 = vsel %vm2142, %v3659, 0.0
    %3664 = vadd.xlane.f32.xlu0 %v3663
    %v3665 = vpop.xlane.xlu0 %3664
    %v3666 = vmul.f32 %v3662, %v2146
    %v3667 = vmul.f32 %v3665, %v2146
    %v3668 = vadd.f32 %v3666, 1e-05
    %v3669 = vadd.f32 %v3667, 1e-05
    %v3670 = vrsqrt.pop %v3668
    %v3671 = vrsqrt.pop %v3669
    %v3672 = vmul.f32 %v3656, %v3670
    %v3673 = vmul.f32 %v3657, %v3671
    %v3675 = vlaneseq
    %v3676 = vshrl.u32 %v3675, 7
    %v3677 = vsub.s32 0, %v3676
    %v3678 = vrot.slane %v3645, %v3677
    %v3680 = vmul.f32 %v3672, %v3678
    %v3681 = vmul.f32 %v3673, %v3678
    %v3683 = vlaneseq
    %v3684 = vshrl.u32 %v3683, 7
    %v3685 = vsub.s32 0, %v3684
    %v3686 = vrot.slane %v3647, %v3685
    %v3688 = vadd.f32 %v3680, %v3686
    %v3689 = vadd.f32 %v3681, %v3686
    %s3690 = scalar_lea.vmem %s45, 8
    %v3691 = vld [vmem:[%s3690] sm:$0xff]
    %s3692 = scalar_lea.vmem %s47, 1
    %v3693 = vld [vmem:[%s3692] sm:$0x1]
    %v3695 = vlaneseq
    %v3696 = vshrl.u32 %v3695, 7
    %v3697 = vsub.s32 0, %v3696
    %v3698 = vrot.slane %v3693, %v3697
    %v3701 = vsel %vm225, %v3688, 0
    %v3704 = vsel %vm225, %v3689, 0
    %3706 = vmatprep.subr.mxu0 0.0
    %3707 = vmatpush1.msra.mxu0 %v3691
    %3708 = vmatprep.subr.mxu0 0.0
    %3709 = vmatpush1.msra.mxu0 0.0
    %3710 = vmatprep.subr.mxu0 0.0
    %3711 = vmatpush1.msra.mxu0 0.0
    %3712 = vmatprep.subr.mxu0 0.0
    %3713 = vmatpush1.msra.mxu0 0.0
    %3714 = vmatprep.subr.mxu0 0.0
    %3715 = vmatpush1.msra.mxu0 0.0
    %3716 = vmatprep.subr.mxu0 0.0
    %3717 = vmatpush1.msra.mxu0 0.0
    %3718 = vmatprep.subr.mxu0 0.0
    %3719 = vmatpush1.msra.mxu0 0.0
    %3720 = vmatprep.subr.mxu0 0.0
    %3721 = vmatpush1.msra.mxu0 0.0
    %3722 = vmatprep.subr.mxu0 0.0
    %3723 = vmatpush1.msra.mxu0 0.0
    %3724 = vmatprep.subr.mxu0 0.0
    %3725 = vmatpush1.msra.mxu0 0.0
    %3726 = vmatprep.subr.mxu0 0.0
    %3727 = vmatpush1.msra.mxu0 0.0
    %3728 = vmatprep.subr.mxu0 0.0
    %3729 = vmatpush1.msra.mxu0 0.0
    %3730 = vmatprep.subr.mxu0 0.0
    %3731 = vmatpush1.msra.mxu0 0.0
    %3732 = vmatprep.subr.mxu0 0.0
    %3733 = vmatpush1.msra.mxu0 0.0
    %3734 = vmatprep.subr.mxu0 0.0
    %3735 = vmatpush1.msra.mxu0 0.0
    %3736 = vmatprep.subr.mxu0 0.0
    %3737 = vmatpush1.msra.mxu0 0.0
    %3738 = vmatprep.subr.mxu0 0.0
    %3739 = vmatpush1.msra.mxu0 0.0
    %3740 = vmatprep.subr.mxu0 0.0
    %3741 = vmatpush1.msra.mxu0 0.0
    %3742 = vmatprep.subr.mxu0 0.0
    %3743 = vmatpush1.msra.mxu0 0.0
    %3744 = vmatprep.subr.mxu0 0.0
    %3745 = vmatpush1.msra.mxu0 0.0
    %3746 = vmatprep.subr.mxu0 0.0
    %3747 = vmatpush1.msra.mxu0 0.0
    %3748 = vmatprep.subr.mxu0 0.0
    %3749 = vmatpush1.msra.mxu0 0.0
    %3750 = vmatprep.subr.mxu0 0.0
    %3751 = vmatpush1.msra.mxu0 0.0
    %3752 = vmatprep.subr.mxu0 0.0
    %3753 = vmatpush1.msra.mxu0 0.0
    %3754 = vmatprep.subr.mxu0 0.0
    %3755 = vmatpush1.msra.mxu0 0.0
    %3756 = vmatprep.subr.mxu0 0.0
    %3757 = vmatpush1.msra.mxu0 0.0
    %3758 = vmatprep.subr.mxu0 0.0
    %3759 = vmatpush1.msra.mxu0 0.0
    %3760 = vmatprep.subr.mxu0 0.0
    %3761 = vmatpush1.msra.mxu0 0.0
    %3762 = vmatprep.subr.mxu0 0.0
    %3763 = vmatpush1.msra.mxu0 0.0
    %3764 = vmatprep.subr.mxu0 0.0
    %3765 = vmatpush1.msra.mxu0 0.0
    %3766 = vmatprep.subr.mxu0 0.0
    %3767 = vmatpush1.msra.mxu0 0.0
    %3768 = vmatprep.subr.mxu0 0.0
    %3769 = vmatpush1.msra.mxu0 0.0
    %3770 = vmatprep.mubr.f32.mxu0 0.0
    %3771 = vmatmul.mubr.f32.gmra.mrb[0].mxu0 %v3701
    %v3772 = vpop.f32.mrb[0].mxu0
    %v3773 = vadd.f32 %v3698, %v3772
    %v3774 = vpop.f32.mrb[0].mxu0
    %3775 = vmatprep.mubr.f32.mxu0 0.0
    %3776 = vmatmul.mubr.f32.gmra.mrb[0].mxu0 %v3704
    %v3777 = vpop.f32.mrb[0].mxu0
    %v3778 = vadd.f32 %v3698, %v3777
    %v3779 = vpop.f32.mrb[0].mxu0
    %3780 = vdwg.mxu0
    %v3781 = vmul.f32 %v3773, 0.5
    %v3782 = vmul.f32 %v3778, 0.5
    %v3783 = vmul.f32 %v3773, 0.70710677
    %v3784 = vmul.f32 %v3778, 0.70710677
    %v3785 = verf.f32.pop %v3783
    %v3786 = verf.f32.pop %v3784
    %v3787 = vadd.f32 %v3785, 1.0
    %v3788 = vadd.f32 %v3786, 1.0
    %v3789 = vmul.f32 %v3781, %v3787
    %v3790 = vmul.f32 %v3782, %v3788
    %s3791 = scalar_lea.vmem %s49, 16
    %v3792 = vld [vmem:[%s3791] sm:$0xff]
    %v3793 = vld [vmem:[%s3791 + $0x8] sm:$0xff]
    %s3794 = scalar_lea.vmem %s51, 1
    %v3795 = vld [vmem:[%s3794] sm:$0x1]
    %v3797 = vlaneseq
    %v3798 = vshrl.u32 %v3797, 7
    %v3799 = vsub.s32 0, %v3798
    %v3800 = vrot.slane %v3795, %v3799
    %v3803 = vsel %vm1744, %v3789, 0
    %v3806 = vsel %vm1744, %v3790, 0
    %3808 = vmatprep.subr.mxu0 0.0
    %3809 = vmatpush1.msra.mxu0 %v3792
    %3810 = vmatprep.subr.mxu0 0.0
    %3811 = vmatpush1.msra.mxu0 %v3793
    %3812 = vmatprep.subr.mxu0 0.0
    %3813 = vmatpush1.msra.mxu0 0.0
    %3814 = vmatprep.subr.mxu0 0.0
    %3815 = vmatpush1.msra.mxu0 0.0
    %3816 = vmatprep.subr.mxu0 0.0
    %3817 = vmatpush1.msra.mxu0 0.0
    %3818 = vmatprep.subr.mxu0 0.0
    %3819 = vmatpush1.msra.mxu0 0.0
    %3820 = vmatprep.subr.mxu0 0.0
    %3821 = vmatpush1.msra.mxu0 0.0
    %3822 = vmatprep.subr.mxu0 0.0
    %3823 = vmatpush1.msra.mxu0 0.0
    %3824 = vmatprep.subr.mxu0 0.0
    %3825 = vmatpush1.msra.mxu0 0.0
    %3826 = vmatprep.subr.mxu0 0.0
    %3827 = vmatpush1.msra.mxu0 0.0
    %3828 = vmatprep.subr.mxu0 0.0
    %3829 = vmatpush1.msra.mxu0 0.0
    %3830 = vmatprep.subr.mxu0 0.0
    %3831 = vmatpush1.msra.mxu0 0.0
    %3832 = vmatprep.subr.mxu0 0.0
    %3833 = vmatpush1.msra.mxu0 0.0
    %3834 = vmatprep.subr.mxu0 0.0
    %3835 = vmatpush1.msra.mxu0 0.0
    %3836 = vmatprep.subr.mxu0 0.0
    %3837 = vmatpush1.msra.mxu0 0.0
    %3838 = vmatprep.subr.mxu0 0.0
    %3839 = vmatpush1.msra.mxu0 0.0
    %3840 = vmatprep.subr.mxu0 0.0
    %3841 = vmatpush1.msra.mxu0 0.0
    %3842 = vmatprep.subr.mxu0 0.0
    %3843 = vmatpush1.msra.mxu0 0.0
    %3844 = vmatprep.subr.mxu0 0.0
    %3845 = vmatpush1.msra.mxu0 0.0
    %3846 = vmatprep.subr.mxu0 0.0
    %3847 = vmatpush1.msra.mxu0 0.0
    %3848 = vmatprep.subr.mxu0 0.0
    %3849 = vmatpush1.msra.mxu0 0.0
    %3850 = vmatprep.subr.mxu0 0.0
    %3851 = vmatpush1.msra.mxu0 0.0
    %3852 = vmatprep.subr.mxu0 0.0
    %3853 = vmatpush1.msra.mxu0 0.0
    %3854 = vmatprep.subr.mxu0 0.0
    %3855 = vmatpush1.msra.mxu0 0.0
    %3856 = vmatprep.subr.mxu0 0.0
    %3857 = vmatpush1.msra.mxu0 0.0
    %3858 = vmatprep.subr.mxu0 0.0
    %3859 = vmatpush1.msra.mxu0 0.0
    %3860 = vmatprep.subr.mxu0 0.0
    %3861 = vmatpush1.msra.mxu0 0.0
    %3862 = vmatprep.subr.mxu0 0.0
    %3863 = vmatpush1.msra.mxu0 0.0
    %3864 = vmatprep.subr.mxu0 0.0
    %3865 = vmatpush1.msra.mxu0 0.0
    %3866 = vmatprep.subr.mxu0 0.0
    %3867 = vmatpush1.msra.mxu0 0.0
    %3868 = vmatprep.subr.mxu0 0.0
    %3869 = vmatpush1.msra.mxu0 0.0
    %3870 = vmatprep.subr.mxu0 0.0
    %3871 = vmatpush1.msra.mxu0 0.0
    %3872 = vmatprep.mubr.f32.mxu0 0.0
    %3873 = vmatmul.mubr.f32.gmra.mrb[0].mxu0 %v3803
    %v3874 = vpop.f32.mrb[0].mxu0
    %v3875 = vadd.f32 %v3800, %v3874
    %v3876 = vpop.f32.mrb[0].mxu0
    %3877 = vmatprep.mubr.f32.mxu0 0.0
    %3878 = vmatmul.mubr.f32.gmra.mrb[0].mxu0 %v3806
    %v3879 = vpop.f32.mrb[0].mxu0
    %v3880 = vpop.f32.mrb[0].mxu0
    %3881 = vdwg.mxu0
    %v3882 = vadd.f32 %v3642, %v3875
    %3883 = vst.msk [vmem:[#allocation4] sm:$0x1] %vm2142, %v3882
    %v3884 = vld [vmem:[%s53] sm:$0x1]
    %v3885 = vld [vmem:[%s55] sm:$0x1]
    %v3886 = vsel %vm2142, %v3882, 0.0
    %3887 = vadd.xlane.f32.xlu0 %v3886
    %v3888 = vpop.xlane.xlu0 %3887
    %v3889 = vmul.f32 %v3888, %v2146
    %v3890 = vsub.f32 %v3882, %v3889
    %v3891 = vmul.f32 %v3890, %v3890
    %v3892 = vsel %vm2142, %v3891, 0.0
    %3893 = vadd.xlane.f32.xlu0 %v3892
    %v3894 = vpop.xlane.xlu0 %3893
    %v3895 = vmul.f32 %v3894, %v2146
    %v3896 = vadd.f32 %v3895, 1e-05
    %v3897 = vrsqrt.pop %v3896
    %v3898 = vmul.f32 %v3890, %v3897
    %v3899 = vmul.f32 %v3898, %v3884
    %v3900 = vadd.f32 %v3899, %v3885
    %v3901 = vld [vmem:[%s57] sm:$0xff]
    %v3902 = vld [vmem:[%s59] sm:$0x1]
    %v3904 = vsel %vm225, %v3900, 0
    %3906 = vmatprep.subr.mxu0 0.0
    %3907 = vmatpush1.msra.mxu0 %v3901
    %3908 = vmatprep.subr.mxu0 0.0
    %3909 = vmatpush1.msra.mxu0 0.0
    %3910 = vmatprep.subr.mxu0 0.0
    %3911 = vmatpush1.msra.mxu0 0.0
    %3912 = vmatprep.subr.mxu0 0.0
    %3913 = vmatpush1.msra.mxu0 0.0
    %3914 = vmatprep.subr.mxu0 0.0
    %3915 = vmatpush1.msra.mxu0 0.0
    %3916 = vmatprep.subr.mxu0 0.0
    %3917 = vmatpush1.msra.mxu0 0.0
    %3918 = vmatprep.subr.mxu0 0.0
    %3919 = vmatpush1.msra.mxu0 0.0
    %3920 = vmatprep.subr.mxu0 0.0
    %3921 = vmatpush1.msra.mxu0 0.0
    %3922 = vmatprep.subr.mxu0 0.0
    %3923 = vmatpush1.msra.mxu0 0.0
    %3924 = vmatprep.subr.mxu0 0.0
    %3925 = vmatpush1.msra.mxu0 0.0
    %3926 = vmatprep.subr.mxu0 0.0
    %3927 = vmatpush1.msra.mxu0 0.0
    %3928 = vmatprep.subr.mxu0 0.0
    %3929 = vmatpush1.msra.mxu0 0.0
    %3930 = vmatprep.subr.mxu0 0.0
    %3931 = vmatpush1.msra.mxu0 0.0
    %3932 = vmatprep.subr.mxu0 0.0
    %3933 = vmatpush1.msra.mxu0 0.0
    %3934 = vmatprep.subr.mxu0 0.0
    %3935 = vmatpush1.msra.mxu0 0.0
    %3936 = vmatprep.subr.mxu0 0.0
    %3937 = vmatpush1.msra.mxu0 0.0
    %3938 = vmatprep.subr.mxu0 0.0
    %3939 = vmatpush1.msra.mxu0 0.0
    %3940 = vmatprep.subr.mxu0 0.0
    %3941 = vmatpush1.msra.mxu0 0.0
    %3942 = vmatprep.subr.mxu0 0.0
    %3943 = vmatpush1.msra.mxu0 0.0
    %3944 = vmatprep.subr.mxu0 0.0
    %3945 = vmatpush1.msra.mxu0 0.0
    %3946 = vmatprep.subr.mxu0 0.0
    %3947 = vmatpush1.msra.mxu0 0.0
    %3948 = vmatprep.subr.mxu0 0.0
    %3949 = vmatpush1.msra.mxu0 0.0
    %3950 = vmatprep.subr.mxu0 0.0
    %3951 = vmatpush1.msra.mxu0 0.0
    %3952 = vmatprep.subr.mxu0 0.0
    %3953 = vmatpush1.msra.mxu0 0.0
    %3954 = vmatprep.subr.mxu0 0.0
    %3955 = vmatpush1.msra.mxu0 0.0
    %3956 = vmatprep.subr.mxu0 0.0
    %3957 = vmatpush1.msra.mxu0 0.0
    %3958 = vmatprep.subr.mxu0 0.0
    %3959 = vmatpush1.msra.mxu0 0.0
    %3960 = vmatprep.subr.mxu0 0.0
    %3961 = vmatpush1.msra.mxu0 0.0
    %3962 = vmatprep.subr.mxu0 0.0
    %3963 = vmatpush1.msra.mxu0 0.0
    %3964 = vmatprep.subr.mxu0 0.0
    %3965 = vmatpush1.msra.mxu0 0.0
    %3966 = vmatprep.subr.mxu0 0.0
    %3967 = vmatpush1.msra.mxu0 0.0
    %3968 = vmatprep.subr.mxu0 0.0
    %3969 = vmatpush1.msra.mxu0 0.0
    %3970 = vmatprep.mubr.f32.mxu0 0.0
    %3971 = vmatmul.mubr.f32.gmra.mrb[0].mxu0 %v3904
    %v3972 = vpop.f32.mrb[0].mxu0
    %v3973 = vadd.f32 %v3902, %v3972
    %v3974 = vpop.f32.mrb[0].mxu0
    %3975 = vdwg.mxu0
    %vm3976 = vcmask 16384
    %3977 = vst.msk [vmem:[#allocation2] sm:$0x1] %vm3976, %v3973
    %s3978 = scalar_lea.vmem %s1, 8
    %v3979 = vld [vmem:[%s3978] sm:$0xff]
    %v3980 = vld [vmem:[%s3] sm:$0xff]
    %v3981 = vld [vmem:[%s5] sm:$0x1]
    %v3983 = vlaneseq
    %v3984 = vshrl.u32 %v3983, 7
    %v3985 = vsub.s32 0, %v3984
    %v3986 = vrot.slane %v3981, %v3985
    %v3989 = vsel %vm148, %v3979, 0
    %v3992 = vsel %vm148, %v3980, 0
    %3994 = vmatprep.subr.mxu0 0.0
    %3995 = vmatpush1.xpose.msra.mxu0 %v3992
    %3996 = vmatprep.subr.mxu0 0.0
    %3997 = vmatpush1.xpose.msra.mxu0 0.0
    %3998 = vmatprep.subr.mxu0 0.0
    %3999 = vmatpush1.xpose.msra.mxu0 0.0
    %4000 = vmatprep.subr.mxu0 0.0
    %4001 = vmatpush1.xpose.msra.mxu0 0.0
    %4002 = vmatprep.subr.mxu0 0.0
    %4003 = vmatpush1.xpose.msra.mxu0 0.0
    %4004 = vmatprep.subr.mxu0 0.0
    %4005 = vmatpush1.xpose.msra.mxu0 0.0
    %4006 = vmatprep.subr.mxu0 0.0
    %4007 = vmatpush1.xpose.msra.mxu0 0.0
    %4008 = vmatprep.subr.mxu0 0.0
    %4009 = vmatpush1.xpose.msra.mxu0 0.0
    %4010 = vmatprep.subr.mxu0 0.0
    %4011 = vmatpush1.xpose.msra.mxu0 0.0
    %4012 = vmatprep.subr.mxu0 0.0
    %4013 = vmatpush1.xpose.msra.mxu0 0.0
    %4014 = vmatprep.subr.mxu0 0.0
    %4015 = vmatpush1.xpose.msra.mxu0 0.0
    %4016 = vmatprep.subr.mxu0 0.0
    %4017 = vmatpush1.xpose.msra.mxu0 0.0
    %4018 = vmatprep.subr.mxu0 0.0
    %4019 = vmatpush1.xpose.msra.mxu0 0.0
    %4020 = vmatprep.subr.mxu0 0.0
    %4021 = vmatpush1.xpose.msra.mxu0 0.0
    %4022 = vmatprep.subr.mxu0 0.0
    %4023 = vmatpush1.xpose.msra.mxu0 0.0
    %4024 = vmatprep.subr.mxu0 0.0
    %4025 = vmatpush1.xpose.msra.mxu0 0.0
    %4026 = vmatprep.subr.mxu0 0.0
    %4027 = vmatpush1.xpose.msra.mxu0 0.0
    %4028 = vmatprep.subr.mxu0 0.0
    %4029 = vmatpush1.xpose.msra.mxu0 0.0
    %4030 = vmatprep.subr.mxu0 0.0
    %4031 = vmatpush1.xpose.msra.mxu0 0.0
    %4032 = vmatprep.subr.mxu0 0.0
    %4033 = vmatpush1.xpose.msra.mxu0 0.0
    %4034 = vmatprep.subr.mxu0 0.0
    %4035 = vmatpush1.xpose.msra.mxu0 0.0
    %4036 = vmatprep.subr.mxu0 0.0
    %4037 = vmatpush1.xpose.msra.mxu0 0.0
    %4038 = vmatprep.subr.mxu0 0.0
    %4039 = vmatpush1.xpose.msra.mxu0 0.0
    %4040 = vmatprep.subr.mxu0 0.0
    %4041 = vmatpush1.xpose.msra.mxu0 0.0
    %4042 = vmatprep.subr.mxu0 0.0
    %4043 = vmatpush1.xpose.msra.mxu0 0.0
    %4044 = vmatprep.subr.mxu0 0.0
    %4045 = vmatpush1.xpose.msra.mxu0 0.0
    %4046 = vmatprep.subr.mxu0 0.0
    %4047 = vmatpush1.xpose.msra.mxu0 0.0
    %4048 = vmatprep.subr.mxu0 0.0
    %4049 = vmatpush1.xpose.msra.mxu0 0.0
    %4050 = vmatprep.subr.mxu0 0.0
    %4051 = vmatpush1.xpose.msra.mxu0 0.0
    %4052 = vmatprep.subr.mxu0 0.0
    %4053 = vmatpush1.xpose.msra.mxu0 0.0
    %4054 = vmatprep.subr.mxu0 0.0
    %4055 = vmatpush1.xpose.msra.mxu0 0.0
    %4056 = vmatprep.subr.mxu0 0.0
    %4057 = vmatpush1.xpose.msra.mxu0 0.0
    %4058 = vmatprep.mubr.f32.mxu0 0.0
    %4059 = vmatmul.mubr.f32.gmra.mrb[0].mxu0 %v3989
    %v4060 = vpop.f32.mrb[0].mxu0
    %v4061 = vadd.f32 %v3986, %v4060
    %v4062 = vpop.f32.mrb[0].mxu0
    %4063 = vdwg.mxu0
    %v4065 = vsel %vm225, %v4061, 0
    %4067 = vmatprep.subr.mxu0 0.0
    %4068 = vmatpush1.xpose.msra.mxu0 %v4065
    %4069 = vmatprep.subr.mxu0 0.0
    %4070 = vmatpush1.xpose.msra.mxu0 0.0
    %4071 = vmatprep.subr.mxu0 0.0
    %4072 = vmatpush1.xpose.msra.mxu0 0.0
    %4073 = vmatprep.subr.mxu0 0.0
    %4074 = vmatpush1.xpose.msra.mxu0 0.0
    %4075 = vmatprep.subr.mxu0 0.0
    %4076 = vmatpush1.xpose.msra.mxu0 0.0
    %4077 = vmatprep.subr.mxu0 0.0
    %4078 = vmatpush1.xpose.msra.mxu0 0.0
    %4079 = vmatprep.subr.mxu0 0.0
    %4080 = vmatpush1.xpose.msra.mxu0 0.0
    %4081 = vmatprep.subr.mxu0 0.0
    %4082 = vmatpush1.xpose.msra.mxu0 0.0
    %4083 = vmatprep.subr.mxu0 0.0
    %4084 = vmatpush1.xpose.msra.mxu0 0.0
    %4085 = vmatprep.subr.mxu0 0.0
    %4086 = vmatpush1.xpose.msra.mxu0 0.0
    %4087 = vmatprep.subr.mxu0 0.0
    %4088 = vmatpush1.xpose.msra.mxu0 0.0
    %4089 = vmatprep.subr.mxu0 0.0
    %4090 = vmatpush1.xpose.msra.mxu0 0.0
    %4091 = vmatprep.subr.mxu0 0.0
    %4092 = vmatpush1.xpose.msra.mxu0 0.0
    %4093 = vmatprep.subr.mxu0 0.0
    %4094 = vmatpush1.xpose.msra.mxu0 0.0
    %4095 = vmatprep.subr.mxu0 0.0
    %4096 = vmatpush1.xpose.msra.mxu0 0.0
    %4097 = vmatprep.subr.mxu0 0.0
    %4098 = vmatpush1.xpose.msra.mxu0 0.0
    %4099 = vmatprep.subr.mxu0 0.0
    %4100 = vmatpush1.xpose.msra.mxu0 0.0
    %4101 = vmatprep.subr.mxu0 0.0
    %4102 = vmatpush1.xpose.msra.mxu0 0.0
    %4103 = vmatprep.subr.mxu0 0.0
    %4104 = vmatpush1.xpose.msra.mxu0 0.0
    %4105 = vmatprep.subr.mxu0 0.0
    %4106 = vmatpush1.xpose.msra.mxu0 0.0
    %4107 = vmatprep.subr.mxu0 0.0
    %4108 = vmatpush1.xpose.msra.mxu0 0.0
    %4109 = vmatprep.subr.mxu0 0.0
    %4110 = vmatpush1.xpose.msra.mxu0 0.0
    %4111 = vmatprep.subr.mxu0 0.0
    %4112 = vmatpush1.xpose.msra.mxu0 0.0
    %4113 = vmatprep.subr.mxu0 0.0
    %4114 = vmatpush1.xpose.msra.mxu0 0.0
    %4115 = vmatprep.subr.mxu0 0.0
    %4116 = vmatpush1.xpose.msra.mxu0 0.0
    %4117 = vmatprep.subr.mxu0 0.0
    %4118 = vmatpush1.xpose.msra.mxu0 0.0
    %4119 = vmatprep.subr.mxu0 0.0
    %4120 = vmatpush1.xpose.msra.mxu0 0.0
    %4121 = vmatprep.subr.mxu0 0.0
    %4122 = vmatpush1.xpose.msra.mxu0 0.0
    %4123 = vmatprep.subr.mxu0 0.0
    %4124 = vmatpush1.xpose.msra.mxu0 0.0
    %4125 = vmatprep.subr.mxu0 0.0
    %4126 = vmatpush1.xpose.msra.mxu0 0.0
    %4127 = vmatprep.subr.mxu0 0.0
    %4128 = vmatpush1.xpose.msra.mxu0 0.0
    %4129 = vmatprep.subr.mxu0 0.0
    %4130 = vmatpush1.xpose.msra.mxu0 0.0
    %4131 = vmatprep.mubr.f32.mxu0 0.0
    %4132 = vmatmul.mubr.f32.gmra.mrb[0].mxu0 %v227
    %v4133 = vpop.f32.mrb[0].mxu0
    %v4134 = vadd.f32 0.0, %v4133
    %v4135 = vpop.f32.mrb[0].mxu0
    %4136 = vdwg.mxu0
    %v4137 = vld [vmem:[%s7] sm:$0xff]
    %v4138 = vld [vmem:[%s7 + $0x8] sm:$0xff]
    %v4139 = vld [vmem:[%s9] sm:$0x3]
    %v4141 = vlaneseq
    %v4142 = vshrl.u32 %v4141, 7
    %v4143 = vsub.s32 0, %v4142
    %v4144 = vrot.slane %v4139, %v4143
    %v4145 = vlaneseq
    %v4146 = vshrl.u32 %v4145, 7
    %v4147 = vsub.s32 1, %v4146
    %v4148 = vrot.slane %v4139, %v4147
    %v4152 = vsel %vm225, %v4134, 0
    %4154 = vmatprep.subr.mxu0 %v4138
    %4155 = vmatpush1.msra.mxu0 %v4137
    %4156 = vmatprep.subr.mxu0 0.0
    %4157 = vmatpush1.msra.mxu0 0.0
    %4158 = vmatprep.subr.mxu0 0.0
    %4159 = vmatpush1.msra.mxu0 0.0
    %4160 = vmatprep.subr.mxu0 0.0
    %4161 = vmatpush1.msra.mxu0 0.0
    %4162 = vmatprep.subr.mxu0 0.0
    %4163 = vmatpush1.msra.mxu0 0.0
    %4164 = vmatprep.subr.mxu0 0.0
    %4165 = vmatpush1.msra.mxu0 0.0
    %4166 = vmatprep.subr.mxu0 0.0
    %4167 = vmatpush1.msra.mxu0 0.0
    %4168 = vmatprep.subr.mxu0 0.0
    %4169 = vmatpush1.msra.mxu0 0.0
    %4170 = vmatprep.subr.mxu0 0.0
    %4171 = vmatpush1.msra.mxu0 0.0
    %4172 = vmatprep.subr.mxu0 0.0
    %4173 = vmatpush1.msra.mxu0 0.0
    %4174 = vmatprep.subr.mxu0 0.0
    %4175 = vmatpush1.msra.mxu0 0.0
    %4176 = vmatprep.subr.mxu0 0.0
    %4177 = vmatpush1.msra.mxu0 0.0
    %4178 = vmatprep.subr.mxu0 0.0
    %4179 = vmatpush1.msra.mxu0 0.0
    %4180 = vmatprep.subr.mxu0 0.0
    %4181 = vmatpush1.msra.mxu0 0.0
    %4182 = vmatprep.subr.mxu0 0.0
    %4183 = vmatpush1.msra.mxu0 0.0
    %4184 = vmatprep.subr.mxu0 0.0
    %4185 = vmatpush1.msra.mxu0 0.0
    %4186 = vmatprep.subr.mxu0 0.0
    %4187 = vmatpush1.msra.mxu0 0.0
    %4188 = vmatprep.subr.mxu0 0.0
    %4189 = vmatpush1.msra.mxu0 0.0
    %4190 = vmatprep.subr.mxu0 0.0
    %4191 = vmatpush1.msra.mxu0 0.0
    %4192 = vmatprep.subr.mxu0 0.0
    %4193 = vmatpush1.msra.mxu0 0.0
    %4194 = vmatprep.subr.mxu0 0.0
    %4195 = vmatpush1.msra.mxu0 0.0
    %4196 = vmatprep.subr.mxu0 0.0
    %4197 = vmatpush1.msra.mxu0 0.0
    %4198 = vmatprep.subr.mxu0 0.0
    %4199 = vmatpush1.msra.mxu0 0.0
    %4200 = vmatprep.subr.mxu0 0.0
    %4201 = vmatpush1.msra.mxu0 0.0
    %4202 = vmatprep.subr.mxu0 0.0
    %4203 = vmatpush1.msra.mxu0 0.0
    %4204 = vmatprep.subr.mxu0 0.0
    %4205 = vmatpush1.msra.mxu0 0.0
    %4206 = vmatprep.subr.mxu0 0.0
    %4207 = vmatpush1.msra.mxu0 0.0
    %4208 = vmatprep.subr.mxu0 0.0
    %4209 = vmatpush1.msra.mxu0 0.0
    %4210 = vmatprep.subr.mxu0 0.0
    %4211 = vmatpush1.msra.mxu0 0.0
    %4212 = vmatprep.subr.mxu0 0.0
    %4213 = vmatpush1.msra.mxu0 0.0
    %4214 = vmatprep.subr.mxu0 0.0
    %4215 = vmatpush1.msra.mxu0 0.0
    %4216 = vmatprep.subr.mxu0 0.0
    %4217 = vmatpush1.msra.mxu0 0.0
    %4218 = vmatprep.mubr.f32.mxu0 0.0
    %4219 = vmatmul.mubr.f32.gmra.mrb[0].mxu0 %v4152
    %v4220 = vpop.f32.mrb[0].mxu0
    %v4221 = vadd.f32 %v4144, %v4220
    %v4222 = vpop.f32.mrb[0].mxu0
    %v4223 = vadd.f32 %v4148, %v4222
    %4224 = vdwg.mxu0
    %4226 = vrot.lane.b32.xlu0 %v4221, 64
    %v4227 = vpop.permute.xlu0 %4226
    %v4228 = vsel %vm225, %v4221, 0
    %v4230 = vsel %vm225, %v4227, 0
    %4232 = vmatprep.subr.mxu0 0.0
    %4233 = vmatpush1.xpose.msra.mxu0 %v4230
    %4234 = vmatprep.subr.mxu0 0.0
    %4235 = vmatpush1.xpose.msra.mxu0 0.0
    %4236 = vmatprep.subr.mxu0 0.0
    %4237 = vmatpush1.xpose.msra.mxu0 0.0
    %4238 = vmatprep.subr.mxu0 0.0
    %4239 = vmatpush1.xpose.msra.mxu0 0.0
    %4240 = vmatprep.subr.mxu0 0.0
    %4241 = vmatpush1.xpose.msra.mxu0 0.0
    %4242 = vmatprep.subr.mxu0 0.0
    %4243 = vmatpush1.xpose.msra.mxu0 0.0
    %4244 = vmatprep.subr.mxu0 0.0
    %4245 = vmatpush1.xpose.msra.mxu0 0.0
    %4246 = vmatprep.subr.mxu0 0.0
    %4247 = vmatpush1.xpose.msra.mxu0 0.0
    %4248 = vmatprep.subr.mxu0 0.0
    %4249 = vmatpush1.xpose.msra.mxu0 0.0
    %4250 = vmatprep.subr.mxu0 0.0
    %4251 = vmatpush1.xpose.msra.mxu0 0.0
    %4252 = vmatprep.subr.mxu0 0.0
    %4253 = vmatpush1.xpose.msra.mxu0 0.0
    %4254 = vmatprep.subr.mxu0 0.0
    %4255 = vmatpush1.xpose.msra.mxu0 0.0
    %4256 = vmatprep.subr.mxu0 0.0
    %4257 = vmatpush1.xpose.msra.mxu0 0.0
    %4258 = vmatprep.subr.mxu0 0.0
    %4259 = vmatpush1.xpose.msra.mxu0 0.0
    %4260 = vmatprep.subr.mxu0 0.0
    %4261 = vmatpush1.xpose.msra.mxu0 0.0
    %4262 = vmatprep.subr.mxu0 0.0
    %4263 = vmatpush1.xpose.msra.mxu0 0.0
    %4264 = vmatprep.subr.mxu0 0.0
    %4265 = vmatpush1.xpose.msra.mxu0 0.0
    %4266 = vmatprep.subr.mxu0 0.0
    %4267 = vmatpush1.xpose.msra.mxu0 0.0
    %4268 = vmatprep.subr.mxu0 0.0
    %4269 = vmatpush1.xpose.msra.mxu0 0.0
    %4270 = vmatprep.subr.mxu0 0.0
    %4271 = vmatpush1.xpose.msra.mxu0 0.0
    %4272 = vmatprep.subr.mxu0 0.0
    %4273 = vmatpush1.xpose.msra.mxu0 0.0
    %4274 = vmatprep.subr.mxu0 0.0
    %4275 = vmatpush1.xpose.msra.mxu0 0.0
    %4276 = vmatprep.subr.mxu0 0.0
    %4277 = vmatpush1.xpose.msra.mxu0 0.0
    %4278 = vmatprep.subr.mxu0 0.0
    %4279 = vmatpush1.xpose.msra.mxu0 0.0
    %4280 = vmatprep.subr.mxu0 0.0
    %4281 = vmatpush1.xpose.msra.mxu0 0.0
    %4282 = vmatprep.subr.mxu0 0.0
    %4283 = vmatpush1.xpose.msra.mxu0 0.0
    %4284 = vmatprep.subr.mxu0 0.0
    %4285 = vmatpush1.xpose.msra.mxu0 0.0
    %4286 = vmatprep.subr.mxu0 0.0
    %4287 = vmatpush1.xpose.msra.mxu0 0.0
    %4288 = vmatprep.subr.mxu0 0.0
    %4289 = vmatpush1.xpose.msra.mxu0 0.0
    %4290 = vmatprep.subr.mxu0 0.0
    %4291 = vmatpush1.xpose.msra.mxu0 0.0
    %4292 = vmatprep.subr.mxu0 0.0
    %4293 = vmatpush1.xpose.msra.mxu0 0.0
    %4294 = vmatprep.subr.mxu0 0.0
    %4295 = vmatpush1.xpose.msra.mxu0 0.0
    %4296 = vmatprep.mubr.f32.mxu0 0.0
    %4297 = vmatmul.mubr.f32.gmra.mrb[0].mxu0 %v4228
    %v4298 = vpop.f32.mrb[0].mxu0
    %v4299 = vadd.f32 0.0, %v4298
    %v4300 = vpop.f32.mrb[0].mxu0
    %4301 = vdwg.mxu0
    %v4302 = vmul.f32 %v4299, 0.35355338
    %v4303 = vsel %vm225, %v4302, -inf
    %4304 = vmax.xlane.f32.xlu0 %v4303
    %v4305 = vpop.xlane.xlu0 %4304
    %v4306 = vsub.f32 %v4302, %v4305
    %v4307 = vmul.f32 %v4306, 1.442695
    %v4308 = vpow.pop %v4307
    %v4309 = vsel %vm225, %v4308, 0.0
    %4310 = vadd.xlane.f32.xlu0 %v4309
    %v4311 = vpop.xlane.xlu0 %4310
    %v4312 = vrcp.pop %v4311
    %v4313 = vmul.f32 %v4308, %v4312
    %v4315 = vsel %vm225, %v4313, 0
    %4317 = vmatprep.subr.mxu0 0.0
    %4318 = vmatpush1.msra.mxu0 %v4223
    %4319 = vmatprep.subr.mxu0 0.0
    %4320 = vmatpush1.msra.mxu0 0.0
    %4321 = vmatprep.subr.mxu0 0.0
    %4322 = vmatpush1.msra.mxu0 0.0
    %4323 = vmatprep.subr.mxu0 0.0
    %4324 = vmatpush1.msra.mxu0 0.0
    %4325 = vmatprep.subr.mxu0 0.0
    %4326 = vmatpush1.msra.mxu0 0.0
    %4327 = vmatprep.subr.mxu0 0.0
    %4328 = vmatpush1.msra.mxu0 0.0
    %4329 = vmatprep.subr.mxu0 0.0
    %4330 = vmatpush1.msra.mxu0 0.0
    %4331 = vmatprep.subr.mxu0 0.0
    %4332 = vmatpush1.msra.mxu0 0.0
    %4333 = vmatprep.subr.mxu0 0.0
    %4334 = vmatpush1.msra.mxu0 0.0
    %4335 = vmatprep.subr.mxu0 0.0
    %4336 = vmatpush1.msra.mxu0 0.0
    %4337 = vmatprep.subr.mxu0 0.0
    %4338 = vmatpush1.msra.mxu0 0.0
    %4339 = vmatprep.subr.mxu0 0.0
    %4340 = vmatpush1.msra.mxu0 0.0
    %4341 = vmatprep.subr.mxu0 0.0
    %4342 = vmatpush1.msra.mxu0 0.0
    %4343 = vmatprep.subr.mxu0 0.0
    %4344 = vmatpush1.msra.mxu0 0.0
    %4345 = vmatprep.subr.mxu0 0.0
    %4346 = vmatpush1.msra.mxu0 0.0
    %4347 = vmatprep.subr.mxu0 0.0
    %4348 = vmatpush1.msra.mxu0 0.0
    %4349 = vmatprep.subr.mxu0 0.0
    %4350 = vmatpush1.msra.mxu0 0.0
    %4351 = vmatprep.subr.mxu0 0.0
    %4352 = vmatpush1.msra.mxu0 0.0
    %4353 = vmatprep.subr.mxu0 0.0
    %4354 = vmatpush1.msra.mxu0 0.0
    %4355 = vmatprep.subr.mxu0 0.0
    %4356 = vmatpush1.msra.mxu0 0.0
    %4357 = vmatprep.subr.mxu0 0.0
    %4358 = vmatpush1.msra.mxu0 0.0
    %4359 = vmatprep.subr.mxu0 0.0
    %4360 = vmatpush1.msra.mxu0 0.0
    %4361 = vmatprep.subr.mxu0 0.0
    %4362 = vmatpush1.msra.mxu0 0.0
    %4363 = vmatprep.subr.mxu0 0.0
    %4364 = vmatpush1.msra.mxu0 0.0
    %4365 = vmatprep.subr.mxu0 0.0
    %4366 = vmatpush1.msra.mxu0 0.0
    %4367 = vmatprep.subr.mxu0 0.0
    %4368 = vmatpush1.msra.mxu0 0.0
    %4369 = vmatprep.subr.mxu0 0.0
    %4370 = vmatpush1.msra.mxu0 0.0
    %4371 = vmatprep.subr.mxu0 0.0
    %4372 = vmatpush1.msra.mxu0 0.0
    %4373 = vmatprep.subr.mxu0 0.0
    %4374 = vmatpush1.msra.mxu0 0.0
    %4375 = vmatprep.subr.mxu0 0.0
    %4376 = vmatpush1.msra.mxu0 0.0
    %4377 = vmatprep.subr.mxu0 0.0
    %4378 = vmatpush1.msra.mxu0 0.0
    %4379 = vmatprep.subr.mxu0 0.0
    %4380 = vmatpush1.msra.mxu0 0.0
    %4381 = vmatprep.mubr.f32.mxu0 0.0
    %4382 = vmatmul.mubr.f32.gmra.mrb[0].mxu0 %v4315
    %v4383 = vpop.f32.mrb[0].mxu0
    %v4384 = vadd.f32 0.0, %v4383
    %v4385 = vpop.f32.mrb[0].mxu0
    %4386 = vdwg.mxu0
    %4387 = vrot.lane.b32.xlu0 %v4221, 120
    %v4388 = vpop.permute.xlu0 %4387
    %4389 = vrot.lane.b32.xlu0 %v4221, 56
    %v4390 = vpop.permute.xlu0 %4389
    %v4391 = vsel %vm225, %v4388, 0
    %v4393 = vsel %vm225, %v4390, 0
    %4395 = vmatprep.subr.mxu0 0.0
    %4396 = vmatpush1.xpose.msra.mxu0 %v4393
    %4397 = vmatprep.subr.mxu0 0.0
    %4398 = vmatpush1.xpose.msra.mxu0 0.0
    %4399 = vmatprep.subr.mxu0 0.0
    %4400 = vmatpush1.xpose.msra.mxu0 0.0
    %4401 = vmatprep.subr.mxu0 0.0
    %4402 = vmatpush1.xpose.msra.mxu0 0.0
    %4403 = vmatprep.subr.mxu0 0.0
    %4404 = vmatpush1.xpose.msra.mxu0 0.0
    %4405 = vmatprep.subr.mxu0 0.0
    %4406 = vmatpush1.xpose.msra.mxu0 0.0
    %4407 = vmatprep.subr.mxu0 0.0
    %4408 = vmatpush1.xpose.msra.mxu0 0.0
    %4409 = vmatprep.subr.mxu0 0.0
    %4410 = vmatpush1.xpose.msra.mxu0 0.0
    %4411 = vmatprep.subr.mxu0 0.0
    %4412 = vmatpush1.xpose.msra.mxu0 0.0
    %4413 = vmatprep.subr.mxu0 0.0
    %4414 = vmatpush1.xpose.msra.mxu0 0.0
    %4415 = vmatprep.subr.mxu0 0.0
    %4416 = vmatpush1.xpose.msra.mxu0 0.0
    %4417 = vmatprep.subr.mxu0 0.0
    %4418 = vmatpush1.xpose.msra.mxu0 0.0
    %4419 = vmatprep.subr.mxu0 0.0
    %4420 = vmatpush1.xpose.msra.mxu0 0.0
    %4421 = vmatprep.subr.mxu0 0.0
    %4422 = vmatpush1.xpose.msra.mxu0 0.0
    %4423 = vmatprep.subr.mxu0 0.0
    %4424 = vmatpush1.xpose.msra.mxu0 0.0
    %4425 = vmatprep.subr.mxu0 0.0
    %4426 = vmatpush1.xpose.msra.mxu0 0.0
    %4427 = vmatprep.subr.mxu0 0.0
    %4428 = vmatpush1.xpose.msra.mxu0 0.0
    %4429 = vmatprep.subr.mxu0 0.0
    %4430 = vmatpush1.xpose.msra.mxu0 0.0
    %4431 = vmatprep.subr.mxu0 0.0
    %4432 = vmatpush1.xpose.msra.mxu0 0.0
    %4433 = vmatprep.subr.mxu0 0.0
    %4434 = vmatpush1.xpose.msra.mxu0 0.0
    %4435 = vmatprep.subr.mxu0 0.0
    %4436 = vmatpush1.xpose.msra.mxu0 0.0
    %4437 = vmatprep.subr.mxu0 0.0
    %4438 = vmatpush1.xpose.msra.mxu0 0.0
    %4439 = vmatprep.subr.mxu0 0.0
    %4440 = vmatpush1.xpose.msra.mxu0 0.0
    %4441 = vmatprep.subr.mxu0 0.0
    %4442 = vmatpush1.xpose.msra.mxu0 0.0
    %4443 = vmatprep.subr.mxu0 0.0
    %4444 = vmatpush1.xpose.msra.mxu0 0.0
    %4445 = vmatprep.subr.mxu0 0.0
    %4446 = vmatpush1.xpose.msra.mxu0 0.0
    %4447 = vmatprep.subr.mxu0 0.0
    %4448 = vmatpush1.xpose.msra.mxu0 0.0
    %4449 = vmatprep.subr.mxu0 0.0
    %4450 = vmatpush1.xpose.msra.mxu0 0.0
    %4451 = vmatprep.subr.mxu0 0.0
    %4452 = vmatpush1.xpose.msra.mxu0 0.0
    %4453 = vmatprep.subr.mxu0 0.0
    %4454 = vmatpush1.xpose.msra.mxu0 0.0
    %4455 = vmatprep.subr.mxu0 0.0
    %4456 = vmatpush1.xpose.msra.mxu0 0.0
    %4457 = vmatprep.subr.mxu0 0.0
    %4458 = vmatpush1.xpose.msra.mxu0 0.0
    %4459 = vmatprep.mubr.f32.mxu0 0.0
    %4460 = vmatmul.mubr.f32.gmra.mrb[0].mxu0 %v4391
    %v4461 = vpop.f32.mrb[0].mxu0
    %v4462 = vadd.f32 0.0, %v4461
    %v4463 = vpop.f32.mrb[0].mxu0
    %4464 = vdwg.mxu0
    %v4465 = vmul.f32 %v4462, 0.35355338
    %v4466 = vsel %vm225, %v4465, -inf
    %4467 = vmax.xlane.f32.xlu0 %v4466
    %v4468 = vpop.xlane.xlu0 %4467
    %v4469 = vsub.f32 %v4465, %v4468
    %v4470 = vmul.f32 %v4469, 1.442695
    %v4471 = vpow.pop %v4470
    %v4472 = vsel %vm225, %v4471, 0.0
    %4473 = vadd.xlane.f32.xlu0 %v4472
    %v4474 = vpop.xlane.xlu0 %4473
    %v4475 = vrcp.pop %v4474
    %v4476 = vmul.f32 %v4471, %v4475
    %4478 = vrot.lane.b32.xlu0 %v4223, 120
    %v4479 = vpop.permute.xlu0 %4478
    %v4482 = vsel %vm225, %v4476, 0
    %4484 = vmatprep.subr.mxu0 0.0
    %4485 = vmatpush1.msra.mxu0 %v4479
    %4486 = vmatprep.subr.mxu0 0.0
    %4487 = vmatpush1.msra.mxu0 0.0
    %4488 = vmatprep.subr.mxu0 0.0
    %4489 = vmatpush1.msra.mxu0 0.0
    %4490 = vmatprep.subr.mxu0 0.0
    %4491 = vmatpush1.msra.mxu0 0.0
    %4492 = vmatprep.subr.mxu0 0.0
    %4493 = vmatpush1.msra.mxu0 0.0
    %4494 = vmatprep.subr.mxu0 0.0
    %4495 = vmatpush1.msra.mxu0 0.0
    %4496 = vmatprep.subr.mxu0 0.0
    %4497 = vmatpush1.msra.mxu0 0.0
    %4498 = vmatprep.subr.mxu0 0.0
    %4499 = vmatpush1.msra.mxu0 0.0
    %4500 = vmatprep.subr.mxu0 0.0
    %4501 = vmatpush1.msra.mxu0 0.0
    %4502 = vmatprep.subr.mxu0 0.0
    %4503 = vmatpush1.msra.mxu0 0.0
    %4504 = vmatprep.subr.mxu0 0.0
    %4505 = vmatpush1.msra.mxu0 0.0
    %4506 = vmatprep.subr.mxu0 0.0
    %4507 = vmatpush1.msra.mxu0 0.0
    %4508 = vmatprep.subr.mxu0 0.0
    %4509 = vmatpush1.msra.mxu0 0.0
    %4510 = vmatprep.subr.mxu0 0.0
    %4511 = vmatpush1.msra.mxu0 0.0
    %4512 = vmatprep.subr.mxu0 0.0
    %4513 = vmatpush1.msra.mxu0 0.0
    %4514 = vmatprep.subr.mxu0 0.0
    %4515 = vmatpush1.msra.mxu0 0.0
    %4516 = vmatprep.subr.mxu0 0.0
    %4517 = vmatpush1.msra.mxu0 0.0
    %4518 = vmatprep.subr.mxu0 0.0
    %4519 = vmatpush1.msra.mxu0 0.0
    %4520 = vmatprep.subr.mxu0 0.0
    %4521 = vmatpush1.msra.mxu0 0.0
    %4522 = vmatprep.subr.mxu0 0.0
    %4523 = vmatpush1.msra.mxu0 0.0
    %4524 = vmatprep.subr.mxu0 0.0
    %4525 = vmatpush1.msra.mxu0 0.0
    %4526 = vmatprep.subr.mxu0 0.0
    %4527 = vmatpush1.msra.mxu0 0.0
    %4528 = vmatprep.subr.mxu0 0.0
    %4529 = vmatpush1.msra.mxu0 0.0
    %4530 = vmatprep.subr.mxu0 0.0
    %4531 = vmatpush1.msra.mxu0 0.0
    %4532 = vmatprep.subr.mxu0 0.0
    %4533 = vmatpush1.msra.mxu0 0.0
    %4534 = vmatprep.subr.mxu0 0.0
    %4535 = vmatpush1.msra.mxu0 0.0
    %4536 = vmatprep.subr.mxu0 0.0
    %4537 = vmatpush1.msra.mxu0 0.0
    %4538 = vmatprep.subr.mxu0 0.0
    %4539 = vmatpush1.msra.mxu0 0.0
    %4540 = vmatprep.subr.mxu0 0.0
    %4541 = vmatpush1.msra.mxu0 0.0
    %4542 = vmatprep.subr.mxu0 0.0
    %4543 = vmatpush1.msra.mxu0 0.0
    %4544 = vmatprep.subr.mxu0 0.0
    %4545 = vmatpush1.msra.mxu0 0.0
    %4546 = vmatprep.subr.mxu0 0.0
    %4547 = vmatpush1.msra.mxu0 0.0
    %4548 = vmatprep.mubr.f32.mxu0 0.0
    %4549 = vmatmul.mubr.f32.gmra.mrb[0].mxu0 %v4482
    %v4550 = vpop.f32.mrb[0].mxu0
    %v4551 = vadd.f32 0.0, %v4550
    %v4552 = vpop.f32.mrb[0].mxu0
    %4553 = vdwg.mxu0
    %4554 = vrot.lane.b32.xlu0 %v4221, 112
    %v4555 = vpop.permute.xlu0 %4554
    %4556 = vrot.lane.b32.xlu0 %v4221, 48
    %v4557 = vpop.permute.xlu0 %4556
    %v4558 = vsel %vm225, %v4555, 0
    %v4560 = vsel %vm225, %v4557, 0
    %4562 = vmatprep.subr.mxu0 0.0
    %4563 = vmatpush1.xpose.msra.mxu0 %v4560
    %4564 = vmatprep.subr.mxu0 0.0
    %4565 = vmatpush1.xpose.msra.mxu0 0.0
    %4566 = vmatprep.subr.mxu0 0.0
    %4567 = vmatpush1.xpose.msra.mxu0 0.0
    %4568 = vmatprep.subr.mxu0 0.0
    %4569 = vmatpush1.xpose.msra.mxu0 0.0
    %4570 = vmatprep.subr.mxu0 0.0
    %4571 = vmatpush1.xpose.msra.mxu0 0.0
    %4572 = vmatprep.subr.mxu0 0.0
    %4573 = vmatpush1.xpose.msra.mxu0 0.0
    %4574 = vmatprep.subr.mxu0 0.0
    %4575 = vmatpush1.xpose.msra.mxu0 0.0
    %4576 = vmatprep.subr.mxu0 0.0
    %4577 = vmatpush1.xpose.msra.mxu0 0.0
    %4578 = vmatprep.subr.mxu0 0.0
    %4579 = vmatpush1.xpose.msra.mxu0 0.0
    %4580 = vmatprep.subr.mxu0 0.0
    %4581 = vmatpush1.xpose.msra.mxu0 0.0
    %4582 = vmatprep.subr.mxu0 0.0
    %4583 = vmatpush1.xpose.msra.mxu0 0.0
    %4584 = vmatprep.subr.mxu0 0.0
    %4585 = vmatpush1.xpose.msra.mxu0 0.0
    %4586 = vmatprep.subr.mxu0 0.0
    %4587 = vmatpush1.xpose.msra.mxu0 0.0
    %4588 = vmatprep.subr.mxu0 0.0
    %4589 = vmatpush1.xpose.msra.mxu0 0.0
    %4590 = vmatprep.subr.mxu0 0.0
    %4591 = vmatpush1.xpose.msra.mxu0 0.0
    %4592 = vmatprep.subr.mxu0 0.0
    %4593 = vmatpush1.xpose.msra.mxu0 0.0
    %4594 = vmatprep.subr.mxu0 0.0
    %4595 = vmatpush1.xpose.msra.mxu0 0.0
    %4596 = vmatprep.subr.mxu0 0.0
    %4597 = vmatpush1.xpose.msra.mxu0 0.0
    %4598 = vmatprep.subr.mxu0 0.0
    %4599 = vmatpush1.xpose.msra.mxu0 0.0
    %4600 = vmatprep.subr.mxu0 0.0
    %4601 = vmatpush1.xpose.msra.mxu0 0.0
    %4602 = vmatprep.subr.mxu0 0.0
    %4603 = vmatpush1.xpose.msra.mxu0 0.0
    %4604 = vmatprep.subr.mxu0 0.0
    %4605 = vmatpush1.xpose.msra.mxu0 0.0
    %4606 = vmatprep.subr.mxu0 0.0
    %4607 = vmatpush1.xpose.msra.mxu0 0.0
    %4608 = vmatprep.subr.mxu0 0.0
    %4609 = vmatpush1.xpose.msra.mxu0 0.0
    %4610 = vmatprep.subr.mxu0 0.0
    %4611 = vmatpush1.xpose.msra.mxu0 0.0
    %4612 = vmatprep.subr.mxu0 0.0
    %4613 = vmatpush1.xpose.msra.mxu0 0.0
    %4614 = vmatprep.subr.mxu0 0.0
    %4615 = vmatpush1.xpose.msra.mxu0 0.0
    %4616 = vmatprep.subr.mxu0 0.0
    %4617 = vmatpush1.xpose.msra.mxu0 0.0
    %4618 = vmatprep.subr.mxu0 0.0
    %4619 = vmatpush1.xpose.msra.mxu0 0.0
    %4620 = vmatprep.subr.mxu0 0.0
    %4621 = vmatpush1.xpose.msra.mxu0 0.0
    %4622 = vmatprep.subr.mxu0 0.0
    %4623 = vmatpush1.xpose.msra.mxu0 0.0
    %4624 = vmatprep.subr.mxu0 0.0
    %4625 = vmatpush1.xpose.msra.mxu0 0.0
    %4626 = vmatprep.mubr.f32.mxu0 0.0
    %4627 = vmatmul.mubr.f32.gmra.mrb[0].mxu0 %v4558
    %v4628 = vpop.f32.mrb[0].mxu0
    %v4629 = vadd.f32 0.0, %v4628
    %v4630 = vpop.f32.mrb[0].mxu0
    %4631 = vdwg.mxu0
    %v4632 = vmul.f32 %v4629, 0.35355338
    %v4633 = vsel %vm225, %v4632, -inf
    %4634 = vmax.xlane.f32.xlu0 %v4633
    %v4635 = vpop.xlane.xlu0 %4634
    %v4636 = vsub.f32 %v4632, %v4635
    %v4637 = vmul.f32 %v4636, 1.442695
    %v4638 = vpow.pop %v4637
    %v4639 = vsel %vm225, %v4638, 0.0
    %4640 = vadd.xlane.f32.xlu0 %v4639
    %v4641 = vpop.xlane.xlu0 %4640
    %v4642 = vrcp.pop %v4641
    %v4643 = vmul.f32 %v4638, %v4642
    %4644 = vrot.lane.b32.xlu0 %v4223, 112
    %v4645 = vpop.permute.xlu0 %4644
    %v4648 = vsel %vm225, %v4643, 0
    %4650 = vmatprep.subr.mxu0 0.0
    %4651 = vmatpush1.msra.mxu0 %v4645
    %4652 = vmatprep.subr.mxu0 0.0
    %4653 = vmatpush1.msra.mxu0 0.0
    %4654 = vmatprep.subr.mxu0 0.0
    %4655 = vmatpush1.msra.mxu0 0.0
    %4656 = vmatprep.subr.mxu0 0.0
    %4657 = vmatpush1.msra.mxu0 0.0
    %4658 = vmatprep.subr.mxu0 0.0
    %4659 = vmatpush1.msra.mxu0 0.0
    %4660 = vmatprep.subr.mxu0 0.0
    %4661 = vmatpush1.msra.mxu0 0.0
    %4662 = vmatprep.subr.mxu0 0.0
    %4663 = vmatpush1.msra.mxu0 0.0
    %4664 = vmatprep.subr.mxu0 0.0
    %4665 = vmatpush1.msra.mxu0 0.0
    %4666 = vmatprep.subr.mxu0 0.0
    %4667 = vmatpush1.msra.mxu0 0.0
    %4668 = vmatprep.subr.mxu0 0.0
    %4669 = vmatpush1.msra.mxu0 0.0
    %4670 = vmatprep.subr.mxu0 0.0
    %4671 = vmatpush1.msra.mxu0 0.0
    %4672 = vmatprep.subr.mxu0 0.0
    %4673 = vmatpush1.msra.mxu0 0.0
    %4674 = vmatprep.subr.mxu0 0.0
    %4675 = vmatpush1.msra.mxu0 0.0
    %4676 = vmatprep.subr.mxu0 0.0
    %4677 = vmatpush1.msra.mxu0 0.0
    %4678 = vmatprep.subr.mxu0 0.0
    %4679 = vmatpush1.msra.mxu0 0.0
    %4680 = vmatprep.subr.mxu0 0.0
    %4681 = vmatpush1.msra.mxu0 0.0
    %4682 = vmatprep.subr.mxu0 0.0
    %4683 = vmatpush1.msra.mxu0 0.0
    %4684 = vmatprep.subr.mxu0 0.0
    %4685 = vmatpush1.msra.mxu0 0.0
    %4686 = vmatprep.subr.mxu0 0.0
    %4687 = vmatpush1.msra.mxu0 0.0
    %4688 = vmatprep.subr.mxu0 0.0
    %4689 = vmatpush1.msra.mxu0 0.0
    %4690 = vmatprep.subr.mxu0 0.0
    %4691 = vmatpush1.msra.mxu0 0.0
    %4692 = vmatprep.subr.mxu0 0.0
    %4693 = vmatpush1.msra.mxu0 0.0
    %4694 = vmatprep.subr.mxu0 0.0
    %4695 = vmatpush1.msra.mxu0 0.0
    %4696 = vmatprep.subr.mxu0 0.0
    %4697 = vmatpush1.msra.mxu0 0.0
    %4698 = vmatprep.subr.mxu0 0.0
    %4699 = vmatpush1.msra.mxu0 0.0
    %4700 = vmatprep.subr.mxu0 0.0
    %4701 = vmatpush1.msra.mxu0 0.0
    %4702 = vmatprep.subr.mxu0 0.0
    %4703 = vmatpush1.msra.mxu0 0.0
    %4704 = vmatprep.subr.mxu0 0.0
    %4705 = vmatpush1.msra.mxu0 0.0
    %4706 = vmatprep.subr.mxu0 0.0
    %4707 = vmatpush1.msra.mxu0 0.0
    %4708 = vmatprep.subr.mxu0 0.0
    %4709 = vmatpush1.msra.mxu0 0.0
    %4710 = vmatprep.subr.mxu0 0.0
    %4711 = vmatpush1.msra.mxu0 0.0
    %4712 = vmatprep.subr.mxu0 0.0
    %4713 = vmatpush1.msra.mxu0 0.0
    %4714 = vmatprep.mubr.f32.mxu0 0.0
    %4715 = vmatmul.mubr.f32.gmra.mrb[0].mxu0 %v4648
    %v4716 = vpop.f32.mrb[0].mxu0
    %v4717 = vadd.f32 0.0, %v4716
    %v4718 = vpop.f32.mrb[0].mxu0
    %4719 = vdwg.mxu0
    %4720 = vrot.lane.b32.xlu0 %v4221, 104
    %v4721 = vpop.permute.xlu0 %4720
    %4722 = vrot.lane.b32.xlu0 %v4221, 40
    %v4723 = vpop.permute.xlu0 %4722
    %v4724 = vsel %vm225, %v4721, 0
    %v4726 = vsel %vm225, %v4723, 0
    %4728 = vmatprep.subr.mxu0 0.0
    %4729 = vmatpush1.xpose.msra.mxu0 %v4726
    %4730 = vmatprep.subr.mxu0 0.0
    %4731 = vmatpush1.xpose.msra.mxu0 0.0
    %4732 = vmatprep.subr.mxu0 0.0
    %4733 = vmatpush1.xpose.msra.mxu0 0.0
    %4734 = vmatprep.subr.mxu0 0.0
    %4735 = vmatpush1.xpose.msra.mxu0 0.0
    %4736 = vmatprep.subr.mxu0 0.0
    %4737 = vmatpush1.xpose.msra.mxu0 0.0
    %4738 = vmatprep.subr.mxu0 0.0
    %4739 = vmatpush1.xpose.msra.mxu0 0.0
    %4740 = vmatprep.subr.mxu0 0.0
    %4741 = vmatpush1.xpose.msra.mxu0 0.0
    %4742 = vmatprep.subr.mxu0 0.0
    %4743 = vmatpush1.xpose.msra.mxu0 0.0
    %4744 = vmatprep.subr.mxu0 0.0
    %4745 = vmatpush1.xpose.msra.mxu0 0.0
    %4746 = vmatprep.subr.mxu0 0.0
    %4747 = vmatpush1.xpose.msra.mxu0 0.0
    %4748 = vmatprep.subr.mxu0 0.0
    %4749 = vmatpush1.xpose.msra.mxu0 0.0
    %4750 = vmatprep.subr.mxu0 0.0
    %4751 = vmatpush1.xpose.msra.mxu0 0.0
    %4752 = vmatprep.subr.mxu0 0.0
    %4753 = vmatpush1.xpose.msra.mxu0 0.0
    %4754 = vmatprep.subr.mxu0 0.0
    %4755 = vmatpush1.xpose.msra.mxu0 0.0
    %4756 = vmatprep.subr.mxu0 0.0
    %4757 = vmatpush1.xpose.msra.mxu0 0.0
    %4758 = vmatprep.subr.mxu0 0.0
    %4759 = vmatpush1.xpose.msra.mxu0 0.0
    %4760 = vmatprep.subr.mxu0 0.0
    %4761 = vmatpush1.xpose.msra.mxu0 0.0
    %4762 = vmatprep.subr.mxu0 0.0
    %4763 = vmatpush1.xpose.msra.mxu0 0.0
    %4764 = vmatprep.subr.mxu0 0.0
    %4765 = vmatpush1.xpose.msra.mxu0 0.0
    %4766 = vmatprep.subr.mxu0 0.0
    %4767 = vmatpush1.xpose.msra.mxu0 0.0
    %4768 = vmatprep.subr.mxu0 0.0
    %4769 = vmatpush1.xpose.msra.mxu0 0.0
    %4770 = vmatprep.subr.mxu0 0.0
    %4771 = vmatpush1.xpose.msra.mxu0 0.0
    %4772 = vmatprep.subr.mxu0 0.0
    %4773 = vmatpush1.xpose.msra.mxu0 0.0
    %4774 = vmatprep.subr.mxu0 0.0
    %4775 = vmatpush1.xpose.msra.mxu0 0.0
    %4776 = vmatprep.subr.mxu0 0.0
    %4777 = vmatpush1.xpose.msra.mxu0 0.0
    %4778 = vmatprep.subr.mxu0 0.0
    %4779 = vmatpush1.xpose.msra.mxu0 0.0
    %4780 = vmatprep.subr.mxu0 0.0
    %4781 = vmatpush1.xpose.msra.mxu0 0.0
    %4782 = vmatprep.subr.mxu0 0.0
    %4783 = vmatpush1.xpose.msra.mxu0 0.0
    %4784 = vmatprep.subr.mxu0 0.0
    %4785 = vmatpush1.xpose.msra.mxu0 0.0
    %4786 = vmatprep.subr.mxu0 0.0
    %4787 = vmatpush1.xpose.msra.mxu0 0.0
    %4788 = vmatprep.subr.mxu0 0.0
    %4789 = vmatpush1.xpose.msra.mxu0 0.0
    %4790 = vmatprep.subr.mxu0 0.0
    %4791 = vmatpush1.xpose.msra.mxu0 0.0
    %4792 = vmatprep.mubr.f32.mxu0 0.0
    %4793 = vmatmul.mubr.f32.gmra.mrb[0].mxu0 %v4724
    %v4794 = vpop.f32.mrb[0].mxu0
    %v4795 = vadd.f32 0.0, %v4794
    %v4796 = vpop.f32.mrb[0].mxu0
    %4797 = vdwg.mxu0
    %v4798 = vmul.f32 %v4795, 0.35355338
    %v4799 = vsel %vm225, %v4798, -inf
    %4800 = vmax.xlane.f32.xlu0 %v4799
    %v4801 = vpop.xlane.xlu0 %4800
    %v4802 = vsub.f32 %v4798, %v4801
    %v4803 = vmul.f32 %v4802, 1.442695
    %v4804 = vpow.pop %v4803
    %v4805 = vsel %vm225, %v4804, 0.0
    %4806 = vadd.xlane.f32.xlu0 %v4805
    %v4807 = vpop.xlane.xlu0 %4806
    %v4808 = vrcp.pop %v4807
    %v4809 = vmul.f32 %v4804, %v4808
    %4810 = vrot.lane.b32.xlu0 %v4223, 104
    %v4811 = vpop.permute.xlu0 %4810
    %v4814 = vsel %vm225, %v4809, 0
    %4816 = vmatprep.subr.mxu0 0.0
    %4817 = vmatpush1.msra.mxu0 %v4811
    %4818 = vmatprep.subr.mxu0 0.0
    %4819 = vmatpush1.msra.mxu0 0.0
    %4820 = vmatprep.subr.mxu0 0.0
    %4821 = vmatpush1.msra.mxu0 0.0
    %4822 = vmatprep.subr.mxu0 0.0
    %4823 = vmatpush1.msra.mxu0 0.0
    %4824 = vmatprep.subr.mxu0 0.0
    %4825 = vmatpush1.msra.mxu0 0.0
    %4826 = vmatprep.subr.mxu0 0.0
    %4827 = vmatpush1.msra.mxu0 0.0
    %4828 = vmatprep.subr.mxu0 0.0
    %4829 = vmatpush1.msra.mxu0 0.0
    %4830 = vmatprep.subr.mxu0 0.0
    %4831 = vmatpush1.msra.mxu0 0.0
    %4832 = vmatprep.subr.mxu0 0.0
    %4833 = vmatpush1.msra.mxu0 0.0
    %4834 = vmatprep.subr.mxu0 0.0
    %4835 = vmatpush1.msra.mxu0 0.0
    %4836 = vmatprep.subr.mxu0 0.0
    %4837 = vmatpush1.msra.mxu0 0.0
    %4838 = vmatprep.subr.mxu0 0.0
    %4839 = vmatpush1.msra.mxu0 0.0
    %4840 = vmatprep.subr.mxu0 0.0
    %4841 = vmatpush1.msra.mxu0 0.0
    %4842 = vmatprep.subr.mxu0 0.0
    %4843 = vmatpush1.msra.mxu0 0.0
    %4844 = vmatprep.subr.mxu0 0.0
    %4845 = vmatpush1.msra.mxu0 0.0
    %4846 = vmatprep.subr.mxu0 0.0
    %4847 = vmatpush1.msra.mxu0 0.0
    %4848 = vmatprep.subr.mxu0 0.0
    %4849 = vmatpush1.msra.mxu0 0.0
    %4850 = vmatprep.subr.mxu0 0.0
    %4851 = vmatpush1.msra.mxu0 0.0
    %4852 = vmatprep.subr.mxu0 0.0
    %4853 = vmatpush1.msra.mxu0 0.0
    %4854 = vmatprep.subr.mxu0 0.0
    %4855 = vmatpush1.msra.mxu0 0.0
    %4856 = vmatprep.subr.mxu0 0.0
    %4857 = vmatpush1.msra.mxu0 0.0
    %4858 = vmatprep.subr.mxu0 0.0
    %4859 = vmatpush1.msra.mxu0 0.0
    %4860 = vmatprep.subr.mxu0 0.0
    %4861 = vmatpush1.msra.mxu0 0.0
    %4862 = vmatprep.subr.mxu0 0.0
    %4863 = vmatpush1.msra.mxu0 0.0
    %4864 = vmatprep.subr.mxu0 0.0
    %4865 = vmatpush1.msra.mxu0 0.0
    %4866 = vmatprep.subr.mxu0 0.0
    %4867 = vmatpush1.msra.mxu0 0.0
    %4868 = vmatprep.subr.mxu0 0.0
    %4869 = vmatpush1.msra.mxu0 0.0
    %4870 = vmatprep.subr.mxu0 0.0
    %4871 = vmatpush1.msra.mxu0 0.0
    %4872 = vmatprep.subr.mxu0 0.0
    %4873 = vmatpush1.msra.mxu0 0.0
    %4874 = vmatprep.subr.mxu0 0.0
    %4875 = vmatpush1.msra.mxu0 0.0
    %4876 = vmatprep.subr.mxu0 0.0
    %4877 = vmatpush1.msra.mxu0 0.0
    %4878 = vmatprep.subr.mxu0 0.0
    %4879 = vmatpush1.msra.mxu0 0.0
    %4880 = vmatprep.mubr.f32.mxu0 0.0
    %4881 = vmatmul.mubr.f32.gmra.mrb[0].mxu0 %v4814
    %v4882 = vpop.f32.mrb[0].mxu0
    %v4883 = vadd.f32 0.0, %v4882
    %v4884 = vpop.f32.mrb[0].mxu0
    %4885 = vdwg.mxu0
    %4886 = vrot.lane.b32.xlu0 %v4221, 96
    %v4887 = vpop.permute.xlu0 %4886
    %4888 = vrot.lane.b32.xlu0 %v4221, 32
    %v4889 = vpop.permute.xlu0 %4888
    %v4890 = vsel %vm225, %v4887, 0
    %v4892 = vsel %vm225, %v4889, 0
    %4894 = vmatprep.subr.mxu0 0.0
    %4895 = vmatpush1.xpose.msra.mxu0 %v4892
    %4896 = vmatprep.subr.mxu0 0.0
    %4897 = vmatpush1.xpose.msra.mxu0 0.0
    %4898 = vmatprep.subr.mxu0 0.0
    %4899 = vmatpush1.xpose.msra.mxu0 0.0
    %4900 = vmatprep.subr.mxu0 0.0
    %4901 = vmatpush1.xpose.msra.mxu0 0.0
    %4902 = vmatprep.subr.mxu0 0.0
    %4903 = vmatpush1.xpose.msra.mxu0 0.0
    %4904 = vmatprep.subr.mxu0 0.0
    %4905 = vmatpush1.xpose.msra.mxu0 0.0
    %4906 = vmatprep.subr.mxu0 0.0
    %4907 = vmatpush1.xpose.msra.mxu0 0.0
    %4908 = vmatprep.subr.mxu0 0.0
    %4909 = vmatpush1.xpose.msra.mxu0 0.0
    %4910 = vmatprep.subr.mxu0 0.0
    %4911 = vmatpush1.xpose.msra.mxu0 0.0
    %4912 = vmatprep.subr.mxu0 0.0
    %4913 = vmatpush1.xpose.msra.mxu0 0.0
    %4914 = vmatprep.subr.mxu0 0.0
    %4915 = vmatpush1.xpose.msra.mxu0 0.0
    %4916 = vmatprep.subr.mxu0 0.0
    %4917 = vmatpush1.xpose.msra.mxu0 0.0
    %4918 = vmatprep.subr.mxu0 0.0
    %4919 = vmatpush1.xpose.msra.mxu0 0.0
    %4920 = vmatprep.subr.mxu0 0.0
    %4921 = vmatpush1.xpose.msra.mxu0 0.0
    %4922 = vmatprep.subr.mxu0 0.0
    %4923 = vmatpush1.xpose.msra.mxu0 0.0
    %4924 = vmatprep.subr.mxu0 0.0
    %4925 = vmatpush1.xpose.msra.mxu0 0.0
    %4926 = vmatprep.subr.mxu0 0.0
    %4927 = vmatpush1.xpose.msra.mxu0 0.0
    %4928 = vmatprep.subr.mxu0 0.0
    %4929 = vmatpush1.xpose.msra.mxu0 0.0
    %4930 = vmatprep.subr.mxu0 0.0
    %4931 = vmatpush1.xpose.msra.mxu0 0.0
    %4932 = vmatprep.subr.mxu0 0.0
    %4933 = vmatpush1.xpose.msra.mxu0 0.0
    %4934 = vmatprep.subr.mxu0 0.0
    %4935 = vmatpush1.xpose.msra.mxu0 0.0
    %4936 = vmatprep.subr.mxu0 0.0
    %4937 = vmatpush1.xpose.msra.mxu0 0.0
    %4938 = vmatprep.subr.mxu0 0.0
    %4939 = vmatpush1.xpose.msra.mxu0 0.0
    %4940 = vmatprep.subr.mxu0 0.0
    %4941 = vmatpush1.xpose.msra.mxu0 0.0
    %4942 = vmatprep.subr.mxu0 0.0
    %4943 = vmatpush1.xpose.msra.mxu0 0.0
    %4944 = vmatprep.subr.mxu0 0.0
    %4945 = vmatpush1.xpose.msra.mxu0 0.0
    %4946 = vmatprep.subr.mxu0 0.0
    %4947 = vmatpush1.xpose.msra.mxu0 0.0
    %4948 = vmatprep.subr.mxu0 0.0
    %4949 = vmatpush1.xpose.msra.mxu0 0.0
    %4950 = vmatprep.subr.mxu0 0.0
    %4951 = vmatpush1.xpose.msra.mxu0 0.0
    %4952 = vmatprep.subr.mxu0 0.0
    %4953 = vmatpush1.xpose.msra.mxu0 0.0
    %4954 = vmatprep.subr.mxu0 0.0
    %4955 = vmatpush1.xpose.msra.mxu0 0.0
    %4956 = vmatprep.subr.mxu0 0.0
    %4957 = vmatpush1.xpose.msra.mxu0 0.0
    %4958 = vmatprep.mubr.f32.mxu0 0.0
    %4959 = vmatmul.mubr.f32.gmra.mrb[0].mxu0 %v4890
    %v4960 = vpop.f32.mrb[0].mxu0
    %v4961 = vadd.f32 0.0, %v4960
    %v4962 = vpop.f32.mrb[0].mxu0
    %4963 = vdwg.mxu0
    %v4964 = vmul.f32 %v4961, 0.35355338
    %v4965 = vsel %vm225, %v4964, -inf
    %4966 = vmax.xlane.f32.xlu0 %v4965
    %v4967 = vpop.xlane.xlu0 %4966
    %v4968 = vsub.f32 %v4964, %v4967
    %v4969 = vmul.f32 %v4968, 1.442695
    %v4970 = vpow.pop %v4969
    %v4971 = vsel %vm225, %v4970, 0.0
    %4972 = vadd.xlane.f32.xlu0 %v4971
    %v4973 = vpop.xlane.xlu0 %4972
    %v4974 = vrcp.pop %v4973
    %v4975 = vmul.f32 %v4970, %v4974
    %4976 = vrot.lane.b32.xlu0 %v4223, 96
    %v4977 = vpop.permute.xlu0 %4976
    %v4980 = vsel %vm225, %v4975, 0
    %4982 = vmatprep.subr.mxu0 0.0
    %4983 = vmatpush1.msra.mxu0 %v4977
    %4984 = vmatprep.subr.mxu0 0.0
    %4985 = vmatpush1.msra.mxu0 0.0
    %4986 = vmatprep.subr.mxu0 0.0
    %4987 = vmatpush1.msra.mxu0 0.0
    %4988 = vmatprep.subr.mxu0 0.0
    %4989 = vmatpush1.msra.mxu0 0.0
    %4990 = vmatprep.subr.mxu0 0.0
    %4991 = vmatpush1.msra.mxu0 0.0
    %4992 = vmatprep.subr.mxu0 0.0
    %4993 = vmatpush1.msra.mxu0 0.0
    %4994 = vmatprep.subr.mxu0 0.0
    %4995 = vmatpush1.msra.mxu0 0.0
    %4996 = vmatprep.subr.mxu0 0.0
    %4997 = vmatpush1.msra.mxu0 0.0
    %4998 = vmatprep.subr.mxu0 0.0
    %4999 = vmatpush1.msra.mxu0 0.0
    %5000 = vmatprep.subr.mxu0 0.0
    %5001 = vmatpush1.msra.mxu0 0.0
    %5002 = vmatprep.subr.mxu0 0.0
    %5003 = vmatpush1.msra.mxu0 0.0
    %5004 = vmatprep.subr.mxu0 0.0
    %5005 = vmatpush1.msra.mxu0 0.0
    %5006 = vmatprep.subr.mxu0 0.0
    %5007 = vmatpush1.msra.mxu0 0.0
    %5008 = vmatprep.subr.mxu0 0.0
    %5009 = vmatpush1.msra.mxu0 0.0
    %5010 = vmatprep.subr.mxu0 0.0
    %5011 = vmatpush1.msra.mxu0 0.0
    %5012 = vmatprep.subr.mxu0 0.0
    %5013 = vmatpush1.msra.mxu0 0.0
    %5014 = vmatprep.subr.mxu0 0.0
    %5015 = vmatpush1.msra.mxu0 0.0
    %5016 = vmatprep.subr.mxu0 0.0
    %5017 = vmatpush1.msra.mxu0 0.0
    %5018 = vmatprep.subr.mxu0 0.0
    %5019 = vmatpush1.msra.mxu0 0.0
    %5020 = vmatprep.subr.mxu0 0.0
    %5021 = vmatpush1.msra.mxu0 0.0
    %5022 = vmatprep.subr.mxu0 0.0
    %5023 = vmatpush1.msra.mxu0 0.0
    %5024 = vmatprep.subr.mxu0 0.0
    %5025 = vmatpush1.msra.mxu0 0.0
    %5026 = vmatprep.subr.mxu0 0.0
    %5027 = vmatpush1.msra.mxu0 0.0
    %5028 = vmatprep.subr.mxu0 0.0
    %5029 = vmatpush1.msra.mxu0 0.0
    %5030 = vmatprep.subr.mxu0 0.0
    %5031 = vmatpush1.msra.mxu0 0.0
    %5032 = vmatprep.subr.mxu0 0.0
    %5033 = vmatpush1.msra.mxu0 0.0
    %5034 = vmatprep.subr.mxu0 0.0
    %5035 = vmatpush1.msra.mxu0 0.0
    %5036 = vmatprep.subr.mxu0 0.0
    %5037 = vmatpush1.msra.mxu0 0.0
    %5038 = vmatprep.subr.mxu0 0.0
    %5039 = vmatpush1.msra.mxu0 0.0
    %5040 = vmatprep.subr.mxu0 0.0
    %5041 = vmatpush1.msra.mxu0 0.0
    %5042 = vmatprep.subr.mxu0 0.0
    %5043 = vmatpush1.msra.mxu0 0.0
    %5044 = vmatprep.subr.mxu0 0.0
    %5045 = vmatpush1.msra.mxu0 0.0
    %5046 = vmatprep.mubr.f32.mxu0 0.0
    %5047 = vmatmul.mubr.f32.gmra.mrb[0].mxu0 %v4980
    %v5048 = vpop.f32.mrb[0].mxu0
    %v5049 = vadd.f32 0.0, %v5048
    %v5050 = vpop.f32.mrb[0].mxu0
    %5051 = vdwg.mxu0
    %5052 = vrot.lane.b32.xlu0 %v4221, 88
    %v5053 = vpop.permute.xlu0 %5052
    %5054 = vrot.lane.b32.xlu0 %v4221, 24
    %v5055 = vpop.permute.xlu0 %5054
    %v5056 = vsel %vm225, %v5053, 0
    %v5058 = vsel %vm225, %v5055, 0
    %5060 = vmatprep.subr.mxu0 0.0
    %5061 = vmatpush1.xpose.msra.mxu0 %v5058
    %5062 = vmatprep.subr.mxu0 0.0
    %5063 = vmatpush1.xpose.msra.mxu0 0.0
    %5064 = vmatprep.subr.mxu0 0.0
    %5065 = vmatpush1.xpose.msra.mxu0 0.0
    %5066 = vmatprep.subr.mxu0 0.0
    %5067 = vmatpush1.xpose.msra.mxu0 0.0
    %5068 = vmatprep.subr.mxu0 0.0
    %5069 = vmatpush1.xpose.msra.mxu0 0.0
    %5070 = vmatprep.subr.mxu0 0.0
    %5071 = vmatpush1.xpose.msra.mxu0 0.0
    %5072 = vmatprep.subr.mxu0 0.0
    %5073 = vmatpush1.xpose.msra.mxu0 0.0
    %5074 = vmatprep.subr.mxu0 0.0
    %5075 = vmatpush1.xpose.msra.mxu0 0.0
    %5076 = vmatprep.subr.mxu0 0.0
    %5077 = vmatpush1.xpose.msra.mxu0 0.0
    %5078 = vmatprep.subr.mxu0 0.0
    %5079 = vmatpush1.xpose.msra.mxu0 0.0
    %5080 = vmatprep.subr.mxu0 0.0
    %5081 = vmatpush1.xpose.msra.mxu0 0.0
    %5082 = vmatprep.subr.mxu0 0.0
    %5083 = vmatpush1.xpose.msra.mxu0 0.0
    %5084 = vmatprep.subr.mxu0 0.0
    %5085 = vmatpush1.xpose.msra.mxu0 0.0
    %5086 = vmatprep.subr.mxu0 0.0
    %5087 = vmatpush1.xpose.msra.mxu0 0.0
    %5088 = vmatprep.subr.mxu0 0.0
    %5089 = vmatpush1.xpose.msra.mxu0 0.0
    %5090 = vmatprep.subr.mxu0 0.0
    %5091 = vmatpush1.xpose.msra.mxu0 0.0
    %5092 = vmatprep.subr.mxu0 0.0
    %5093 = vmatpush1.xpose.msra.mxu0 0.0
    %5094 = vmatprep.subr.mxu0 0.0
    %5095 = vmatpush1.xpose.msra.mxu0 0.0
    %5096 = vmatprep.subr.mxu0 0.0
    %5097 = vmatpush1.xpose.msra.mxu0 0.0
    %5098 = vmatprep.subr.mxu0 0.0
    %5099 = vmatpush1.xpose.msra.mxu0 0.0
    %5100 = vmatprep.subr.mxu0 0.0
    %5101 = vmatpush1.xpose.msra.mxu0 0.0
    %5102 = vmatprep.subr.mxu0 0.0
    %5103 = vmatpush1.xpose.msra.mxu0 0.0
    %5104 = vmatprep.subr.mxu0 0.0
    %5105 = vmatpush1.xpose.msra.mxu0 0.0
    %5106 = vmatprep.subr.mxu0 0.0
    %5107 = vmatpush1.xpose.msra.mxu0 0.0
    %5108 = vmatprep.subr.mxu0 0.0
    %5109 = vmatpush1.xpose.msra.mxu0 0.0
    %5110 = vmatprep.subr.mxu0 0.0
    %5111 = vmatpush1.xpose.msra.mxu0 0.0
    %5112 = vmatprep.subr.mxu0 0.0
    %5113 = vmatpush1.xpose.msra.mxu0 0.0
    %5114 = vmatprep.subr.mxu0 0.0
    %5115 = vmatpush1.xpose.msra.mxu0 0.0
    %5116 = vmatprep.subr.mxu0 0.0
    %5117 = vmatpush1.xpose.msra.mxu0 0.0
    %5118 = vmatprep.subr.mxu0 0.0
    %5119 = vmatpush1.xpose.msra.mxu0 0.0
    %5120 = vmatprep.subr.mxu0 0.0
    %5121 = vmatpush1.xpose.msra.mxu0 0.0
    %5122 = vmatprep.subr.mxu0 0.0
    %5123 = vmatpush1.xpose.msra.mxu0 0.0
    %5124 = vmatprep.mubr.f32.mxu0 0.0
    %5125 = vmatmul.mubr.f32.gmra.mrb[0].mxu0 %v5056
    %v5126 = vpop.f32.mrb[0].mxu0
    %v5127 = vadd.f32 0.0, %v5126
    %v5128 = vpop.f32.mrb[0].mxu0
    %5129 = vdwg.mxu0
    %v5130 = vmul.f32 %v5127, 0.35355338
    %v5131 = vsel %vm225, %v5130, -inf
    %5132 = vmax.xlane.f32.xlu0 %v5131
    %v5133 = vpop.xlane.xlu0 %5132
    %v5134 = vsub.f32 %v5130, %v5133
    %v5135 = vmul.f32 %v5134, 1.442695
    %v5136 = vpow.pop %v5135
    %v5137 = vsel %vm225, %v5136, 0.0
    %5138 = vadd.xlane.f32.xlu0 %v5137
    %v5139 = vpop.xlane.xlu0 %5138
    %v5140 = vrcp.pop %v5139
    %v5141 = vmul.f32 %v5136, %v5140
    %5142 = vrot.lane.b32.xlu0 %v4223, 88
    %v5143 = vpop.permute.xlu0 %5142
    %v5146 = vsel %vm225, %v5141, 0
    %5148 = vmatprep.subr.mxu0 0.0
    %5149 = vmatpush1.msra.mxu0 %v5143
    %5150 = vmatprep.subr.mxu0 0.0
    %5151 = vmatpush1.msra.mxu0 0.0
    %5152 = vmatprep.subr.mxu0 0.0
    %5153 = vmatpush1.msra.mxu0 0.0
    %5154 = vmatprep.subr.mxu0 0.0
    %5155 = vmatpush1.msra.mxu0 0.0
    %5156 = vmatprep.subr.mxu0 0.0
    %5157 = vmatpush1.msra.mxu0 0.0
    %5158 = vmatprep.subr.mxu0 0.0
    %5159 = vmatpush1.msra.mxu0 0.0
    %5160 = vmatprep.subr.mxu0 0.0
    %5161 = vmatpush1.msra.mxu0 0.0
    %5162 = vmatprep.subr.mxu0 0.0
    %5163 = vmatpush1.msra.mxu0 0.0
    %5164 = vmatprep.subr.mxu0 0.0
    %5165 = vmatpush1.msra.mxu0 0.0
    %5166 = vmatprep.subr.mxu0 0.0
    %5167 = vmatpush1.msra.mxu0 0.0
    %5168 = vmatprep.subr.mxu0 0.0
    %5169 = vmatpush1.msra.mxu0 0.0
    %5170 = vmatprep.subr.mxu0 0.0
    %5171 = vmatpush1.msra.mxu0 0.0
    %5172 = vmatprep.subr.mxu0 0.0
    %5173 = vmatpush1.msra.mxu0 0.0
    %5174 = vmatprep.subr.mxu0 0.0
    %5175 = vmatpush1.msra.mxu0 0.0
    %5176 = vmatprep.subr.mxu0 0.0
    %5177 = vmatpush1.msra.mxu0 0.0
    %5178 = vmatprep.subr.mxu0 0.0
    %5179 = vmatpush1.msra.mxu0 0.0
    %5180 = vmatprep.subr.mxu0 0.0
    %5181 = vmatpush1.msra.mxu0 0.0
    %5182 = vmatprep.subr.mxu0 0.0
    %5183 = vmatpush1.msra.mxu0 0.0
    %5184 = vmatprep.subr.mxu0 0.0
    %5185 = vmatpush1.msra.mxu0 0.0
    %5186 = vmatprep.subr.mxu0 0.0
    %5187 = vmatpush1.msra.mxu0 0.0
    %5188 = vmatprep.subr.mxu0 0.0
    %5189 = vmatpush1.msra.mxu0 0.0
    %5190 = vmatprep.subr.mxu0 0.0
    %5191 = vmatpush1.msra.mxu0 0.0
    %5192 = vmatprep.subr.mxu0 0.0
    %5193 = vmatpush1.msra.mxu0 0.0
    %5194 = vmatprep.subr.mxu0 0.0
    %5195 = vmatpush1.msra.mxu0 0.0
    %5196 = vmatprep.subr.mxu0 0.0
    %5197 = vmatpush1.msra.mxu0 0.0
    %5198 = vmatprep.subr.mxu0 0.0
    %5199 = vmatpush1.msra.mxu0 0.0
    %5200 = vmatprep.subr.mxu0 0.0
    %5201 = vmatpush1.msra.mxu0 0.0
    %5202 = vmatprep.subr.mxu0 0.0
    %5203 = vmatpush1.msra.mxu0 0.0
    %5204 = vmatprep.subr.mxu0 0.0
    %5205 = vmatpush1.msra.mxu0 0.0
    %5206 = vmatprep.subr.mxu0 0.0
    %5207 = vmatpush1.msra.mxu0 0.0
    %5208 = vmatprep.subr.mxu0 0.0
    %5209 = vmatpush1.msra.mxu0 0.0
    %5210 = vmatprep.subr.mxu0 0.0
    %5211 = vmatpush1.msra.mxu0 0.0
    %5212 = vmatprep.mubr.f32.mxu0 0.0
    %5213 = vmatmul.mubr.f32.gmra.mrb[0].mxu0 %v5146
    %v5214 = vpop.f32.mrb[0].mxu0
    %v5215 = vadd.f32 0.0, %v5214
    %v5216 = vpop.f32.mrb[0].mxu0
    %5217 = vdwg.mxu0
    %5218 = vrot.lane.b32.xlu0 %v4221, 80
    %v5219 = vpop.permute.xlu0 %5218
    %5220 = vrot.lane.b32.xlu0 %v4221, 16
    %v5221 = vpop.permute.xlu0 %5220
    %v5222 = vsel %vm225, %v5219, 0
    %v5224 = vsel %vm225, %v5221, 0
    %5226 = vmatprep.subr.mxu0 0.0
    %5227 = vmatpush1.xpose.msra.mxu0 %v5224
    %5228 = vmatprep.subr.mxu0 0.0
    %5229 = vmatpush1.xpose.msra.mxu0 0.0
    %5230 = vmatprep.subr.mxu0 0.0
    %5231 = vmatpush1.xpose.msra.mxu0 0.0
    %5232 = vmatprep.subr.mxu0 0.0
    %5233 = vmatpush1.xpose.msra.mxu0 0.0
    %5234 = vmatprep.subr.mxu0 0.0
    %5235 = vmatpush1.xpose.msra.mxu0 0.0
    %5236 = vmatprep.subr.mxu0 0.0
    %5237 = vmatpush1.xpose.msra.mxu0 0.0
    %5238 = vmatprep.subr.mxu0 0.0
    %5239 = vmatpush1.xpose.msra.mxu0 0.0
    %5240 = vmatprep.subr.mxu0 0.0
    %5241 = vmatpush1.xpose.msra.mxu0 0.0
    %5242 = vmatprep.subr.mxu0 0.0
    %5243 = vmatpush1.xpose.msra.mxu0 0.0
    %5244 = vmatprep.subr.mxu0 0.0
    %5245 = vmatpush1.xpose.msra.mxu0 0.0
    %5246 = vmatprep.subr.mxu0 0.0
    %5247 = vmatpush1.xpose.msra.mxu0 0.0
    %5248 = vmatprep.subr.mxu0 0.0
    %5249 = vmatpush1.xpose.msra.mxu0 0.0
    %5250 = vmatprep.subr.mxu0 0.0
    %5251 = vmatpush1.xpose.msra.mxu0 0.0
    %5252 = vmatprep.subr.mxu0 0.0
    %5253 = vmatpush1.xpose.msra.mxu0 0.0
    %5254 = vmatprep.subr.mxu0 0.0
    %5255 = vmatpush1.xpose.msra.mxu0 0.0
    %5256 = vmatprep.subr.mxu0 0.0
    %5257 = vmatpush1.xpose.msra.mxu0 0.0
    %5258 = vmatprep.subr.mxu0 0.0
    %5259 = vmatpush1.xpose.msra.mxu0 0.0
    %5260 = vmatprep.subr.mxu0 0.0
    %5261 = vmatpush1.xpose.msra.mxu0 0.0
    %5262 = vmatprep.subr.mxu0 0.0
    %5263 = vmatpush1.xpose.msra.mxu0 0.0
    %5264 = vmatprep.subr.mxu0 0.0
    %5265 = vmatpush1.xpose.msra.mxu0 0.0
    %5266 = vmatprep.subr.mxu0 0.0
    %5267 = vmatpush1.xpose.msra.mxu0 0.0
    %5268 = vmatprep.subr.mxu0 0.0
    %5269 = vmatpush1.xpose.msra.mxu0 0.0
    %5270 = vmatprep.subr.mxu0 0.0
    %5271 = vmatpush1.xpose.msra.mxu0 0.0
    %5272 = vmatprep.subr.mxu0 0.0
    %5273 = vmatpush1.xpose.msra.mxu0 0.0
    %5274 = vmatprep.subr.mxu0 0.0
    %5275 = vmatpush1.xpose.msra.mxu0 0.0
    %5276 = vmatprep.subr.mxu0 0.0
    %5277 = vmatpush1.xpose.msra.mxu0 0.0
    %5278 = vmatprep.subr.mxu0 0.0
    %5279 = vmatpush1.xpose.msra.mxu0 0.0
    %5280 = vmatprep.subr.mxu0 0.0
    %5281 = vmatpush1.xpose.msra.mxu0 0.0
    %5282 = vmatprep.subr.mxu0 0.0
    %5283 = vmatpush1.xpose.msra.mxu0 0.0
    %5284 = vmatprep.subr.mxu0 0.0
    %5285 = vmatpush1.xpose.msra.mxu0 0.0
    %5286 = vmatprep.subr.mxu0 0.0
    %5287 = vmatpush1.xpose.msra.mxu0 0.0
    %5288 = vmatprep.subr.mxu0 0.0
    %5289 = vmatpush1.xpose.msra.mxu0 0.0
    %5290 = vmatprep.mubr.f32.mxu0 0.0
    %5291 = vmatmul.mubr.f32.gmra.mrb[0].mxu0 %v5222
    %v5292 = vpop.f32.mrb[0].mxu0
    %v5293 = vadd.f32 0.0, %v5292
    %v5294 = vpop.f32.mrb[0].mxu0
    %5295 = vdwg.mxu0
    %v5296 = vmul.f32 %v5293, 0.35355338
    %v5297 = vsel %vm225, %v5296, -inf
    %5298 = vmax.xlane.f32.xlu0 %v5297
    %v5299 = vpop.xlane.xlu0 %5298
    %v5300 = vsub.f32 %v5296, %v5299
    %v5301 = vmul.f32 %v5300, 1.442695
    %v5302 = vpow.pop %v5301
    %v5303 = vsel %vm225, %v5302, 0.0
    %5304 = vadd.xlane.f32.xlu0 %v5303
    %v5305 = vpop.xlane.xlu0 %5304
    %v5306 = vrcp.pop %v5305
    %v5307 = vmul.f32 %v5302, %v5306
    %5308 = vrot.lane.b32.xlu0 %v4223, 80
    %v5309 = vpop.permute.xlu0 %5308
    %v5312 = vsel %vm225, %v5307, 0
    %5314 = vmatprep.subr.mxu0 0.0
    %5315 = vmatpush1.msra.mxu0 %v5309
    %5316 = vmatprep.subr.mxu0 0.0
    %5317 = vmatpush1.msra.mxu0 0.0
    %5318 = vmatprep.subr.mxu0 0.0
    %5319 = vmatpush1.msra.mxu0 0.0
    %5320 = vmatprep.subr.mxu0 0.0
    %5321 = vmatpush1.msra.mxu0 0.0
    %5322 = vmatprep.subr.mxu0 0.0
    %5323 = vmatpush1.msra.mxu0 0.0
    %5324 = vmatprep.subr.mxu0 0.0
    %5325 = vmatpush1.msra.mxu0 0.0
    %5326 = vmatprep.subr.mxu0 0.0
    %5327 = vmatpush1.msra.mxu0 0.0
    %5328 = vmatprep.subr.mxu0 0.0
    %5329 = vmatpush1.msra.mxu0 0.0
    %5330 = vmatprep.subr.mxu0 0.0
    %5331 = vmatpush1.msra.mxu0 0.0
    %5332 = vmatprep.subr.mxu0 0.0
    %5333 = vmatpush1.msra.mxu0 0.0
    %5334 = vmatprep.subr.mxu0 0.0
    %5335 = vmatpush1.msra.mxu0 0.0
    %5336 = vmatprep.subr.mxu0 0.0
    %5337 = vmatpush1.msra.mxu0 0.0
    %5338 = vmatprep.subr.mxu0 0.0
    %5339 = vmatpush1.msra.mxu0 0.0
    %5340 = vmatprep.subr.mxu0 0.0
    %5341 = vmatpush1.msra.mxu0 0.0
    %5342 = vmatprep.subr.mxu0 0.0
    %5343 = vmatpush1.msra.mxu0 0.0
    %5344 = vmatprep.subr.mxu0 0.0
    %5345 = vmatpush1.msra.mxu0 0.0
    %5346 = vmatprep.subr.mxu0 0.0
    %5347 = vmatpush1.msra.mxu0 0.0
    %5348 = vmatprep.subr.mxu0 0.0
    %5349 = vmatpush1.msra.mxu0 0.0
    %5350 = vmatprep.subr.mxu0 0.0
    %5351 = vmatpush1.msra.mxu0 0.0
    %5352 = vmatprep.subr.mxu0 0.0
    %5353 = vmatpush1.msra.mxu0 0.0
    %5354 = vmatprep.subr.mxu0 0.0
    %5355 = vmatpush1.msra.mxu0 0.0
    %5356 = vmatprep.subr.mxu0 0.0
    %5357 = vmatpush1.msra.mxu0 0.0
    %5358 = vmatprep.subr.mxu0 0.0
    %5359 = vmatpush1.msra.mxu0 0.0
    %5360 = vmatprep.subr.mxu0 0.0
    %5361 = vmatpush1.msra.mxu0 0.0
    %5362 = vmatprep.subr.mxu0 0.0
    %5363 = vmatpush1.msra.mxu0 0.0
    %5364 = vmatprep.subr.mxu0 0.0
    %5365 = vmatpush1.msra.mxu0 0.0
    %5366 = vmatprep.subr.mxu0 0.0
    %5367 = vmatpush1.msra.mxu0 0.0
    %5368 = vmatprep.subr.mxu0 0.0
    %5369 = vmatpush1.msra.mxu0 0.0
    %5370 = vmatprep.subr.mxu0 0.0
    %5371 = vmatpush1.msra.mxu0 0.0
    %5372 = vmatprep.subr.mxu0 0.0
    %5373 = vmatpush1.msra.mxu0 0.0
    %5374 = vmatprep.subr.mxu0 0.0
    %5375 = vmatpush1.msra.mxu0 0.0
    %5376 = vmatprep.subr.mxu0 0.0
    %5377 = vmatpush1.msra.mxu0 0.0
    %5378 = vmatprep.mubr.f32.mxu0 0.0
    %5379 = vmatmul.mubr.f32.gmra.mrb[0].mxu0 %v5312
    %v5380 = vpop.f32.mrb[0].mxu0
    %v5381 = vadd.f32 0.0, %v5380
    %v5382 = vpop.f32.mrb[0].mxu0
    %5383 = vdwg.mxu0
    %5384 = vrot.lane.b32.xlu0 %v4221, 72
    %v5385 = vpop.permute.xlu0 %5384
    %5386 = vrot.lane.b32.xlu0 %v4221, 8
    %v5387 = vpop.permute.xlu0 %5386
    %v5388 = vsel %vm225, %v5385, 0
    %v5390 = vsel %vm225, %v5387, 0
    %5392 = vmatprep.subr.mxu0 0.0
    %5393 = vmatpush1.xpose.msra.mxu0 %v5390
    %5394 = vmatprep.subr.mxu0 0.0
    %5395 = vmatpush1.xpose.msra.mxu0 0.0
    %5396 = vmatprep.subr.mxu0 0.0
    %5397 = vmatpush1.xpose.msra.mxu0 0.0
    %5398 = vmatprep.subr.mxu0 0.0
    %5399 = vmatpush1.xpose.msra.mxu0 0.0
    %5400 = vmatprep.subr.mxu0 0.0
    %5401 = vmatpush1.xpose.msra.mxu0 0.0
    %5402 = vmatprep.subr.mxu0 0.0
    %5403 = vmatpush1.xpose.msra.mxu0 0.0
    %5404 = vmatprep.subr.mxu0 0.0
    %5405 = vmatpush1.xpose.msra.mxu0 0.0
    %5406 = vmatprep.subr.mxu0 0.0
    %5407 = vmatpush1.xpose.msra.mxu0 0.0
    %5408 = vmatprep.subr.mxu0 0.0
    %5409 = vmatpush1.xpose.msra.mxu0 0.0
    %5410 = vmatprep.subr.mxu0 0.0
    %5411 = vmatpush1.xpose.msra.mxu0 0.0
    %5412 = vmatprep.subr.mxu0 0.0
    %5413 = vmatpush1.xpose.msra.mxu0 0.0
    %5414 = vmatprep.subr.mxu0 0.0
    %5415 = vmatpush1.xpose.msra.mxu0 0.0
    %5416 = vmatprep.subr.mxu0 0.0
    %5417 = vmatpush1.xpose.msra.mxu0 0.0
    %5418 = vmatprep.subr.mxu0 0.0
    %5419 = vmatpush1.xpose.msra.mxu0 0.0
    %5420 = vmatprep.subr.mxu0 0.0
    %5421 = vmatpush1.xpose.msra.mxu0 0.0
    %5422 = vmatprep.subr.mxu0 0.0
    %5423 = vmatpush1.xpose.msra.mxu0 0.0
    %5424 = vmatprep.subr.mxu0 0.0
    %5425 = vmatpush1.xpose.msra.mxu0 0.0
    %5426 = vmatprep.subr.mxu0 0.0
    %5427 = vmatpush1.xpose.msra.mxu0 0.0
    %5428 = vmatprep.subr.mxu0 0.0
    %5429 = vmatpush1.xpose.msra.mxu0 0.0
    %5430 = vmatprep.subr.mxu0 0.0
    %5431 = vmatpush1.xpose.msra.mxu0 0.0
    %5432 = vmatprep.subr.mxu0 0.0
    %5433 = vmatpush1.xpose.msra.mxu0 0.0
    %5434 = vmatprep.subr.mxu0 0.0
    %5435 = vmatpush1.xpose.msra.mxu0 0.0
    %5436 = vmatprep.subr.mxu0 0.0
    %5437 = vmatpush1.xpose.msra.mxu0 0.0
    %5438 = vmatprep.subr.mxu0 0.0
    %5439 = vmatpush1.xpose.msra.mxu0 0.0
    %5440 = vmatprep.subr.mxu0 0.0
    %5441 = vmatpush1.xpose.msra.mxu0 0.0
    %5442 = vmatprep.subr.mxu0 0.0
    %5443 = vmatpush1.xpose.msra.mxu0 0.0
    %5444 = vmatprep.subr.mxu0 0.0
    %5445 = vmatpush1.xpose.msra.mxu0 0.0
    %5446 = vmatprep.subr.mxu0 0.0
    %5447 = vmatpush1.xpose.msra.mxu0 0.0
    %5448 = vmatprep.subr.mxu0 0.0
    %5449 = vmatpush1.xpose.msra.mxu0 0.0
    %5450 = vmatprep.subr.mxu0 0.0
    %5451 = vmatpush1.xpose.msra.mxu0 0.0
    %5452 = vmatprep.subr.mxu0 0.0
    %5453 = vmatpush1.xpose.msra.mxu0 0.0
    %5454 = vmatprep.subr.mxu0 0.0
    %5455 = vmatpush1.xpose.msra.mxu0 0.0
    %5456 = vmatprep.mubr.f32.mxu0 0.0
    %5457 = vmatmul.mubr.f32.gmra.mrb[0].mxu0 %v5388
    %v5458 = vpop.f32.mrb[0].mxu0
    %v5459 = vadd.f32 0.0, %v5458
    %v5460 = vpop.f32.mrb[0].mxu0
    %5461 = vdwg.mxu0
    %v5462 = vmul.f32 %v5459, 0.35355338
    %v5463 = vsel %vm225, %v5462, -inf
    %5464 = vmax.xlane.f32.xlu0 %v5463
    %v5465 = vpop.xlane.xlu0 %5464
    %v5466 = vsub.f32 %v5462, %v5465
    %v5467 = vmul.f32 %v5466, 1.442695
    %v5468 = vpow.pop %v5467
    %v5469 = vsel %vm225, %v5468, 0.0
    %5470 = vadd.xlane.f32.xlu0 %v5469
    %v5471 = vpop.xlane.xlu0 %5470
    %v5472 = vrcp.pop %v5471
    %v5473 = vmul.f32 %v5468, %v5472
    %5474 = vrot.lane.b32.xlu0 %v4223, 72
    %v5475 = vpop.permute.xlu0 %5474
    %v5478 = vsel %vm225, %v5473, 0
    %5480 = vmatprep.subr.mxu0 0.0
    %5481 = vmatpush1.msra.mxu0 %v5475
    %5482 = vmatprep.subr.mxu0 0.0
    %5483 = vmatpush1.msra.mxu0 0.0
    %5484 = vmatprep.subr.mxu0 0.0
    %5485 = vmatpush1.msra.mxu0 0.0
    %5486 = vmatprep.subr.mxu0 0.0
    %5487 = vmatpush1.msra.mxu0 0.0
    %5488 = vmatprep.subr.mxu0 0.0
    %5489 = vmatpush1.msra.mxu0 0.0
    %5490 = vmatprep.subr.mxu0 0.0
    %5491 = vmatpush1.msra.mxu0 0.0
    %5492 = vmatprep.subr.mxu0 0.0
    %5493 = vmatpush1.msra.mxu0 0.0
    %5494 = vmatprep.subr.mxu0 0.0
    %5495 = vmatpush1.msra.mxu0 0.0
    %5496 = vmatprep.subr.mxu0 0.0
    %5497 = vmatpush1.msra.mxu0 0.0
    %5498 = vmatprep.subr.mxu0 0.0
    %5499 = vmatpush1.msra.mxu0 0.0
    %5500 = vmatprep.subr.mxu0 0.0
    %5501 = vmatpush1.msra.mxu0 0.0
    %5502 = vmatprep.subr.mxu0 0.0
    %5503 = vmatpush1.msra.mxu0 0.0
    %5504 = vmatprep.subr.mxu0 0.0
    %5505 = vmatpush1.msra.mxu0 0.0
    %5506 = vmatprep.subr.mxu0 0.0
    %5507 = vmatpush1.msra.mxu0 0.0
    %5508 = vmatprep.subr.mxu0 0.0
    %5509 = vmatpush1.msra.mxu0 0.0
    %5510 = vmatprep.subr.mxu0 0.0
    %5511 = vmatpush1.msra.mxu0 0.0
    %5512 = vmatprep.subr.mxu0 0.0
    %5513 = vmatpush1.msra.mxu0 0.0
    %5514 = vmatprep.subr.mxu0 0.0
    %5515 = vmatpush1.msra.mxu0 0.0
    %5516 = vmatprep.subr.mxu0 0.0
    %5517 = vmatpush1.msra.mxu0 0.0
    %5518 = vmatprep.subr.mxu0 0.0
    %5519 = vmatpush1.msra.mxu0 0.0
    %5520 = vmatprep.subr.mxu0 0.0
    %5521 = vmatpush1.msra.mxu0 0.0
    %5522 = vmatprep.subr.mxu0 0.0
    %5523 = vmatpush1.msra.mxu0 0.0
    %5524 = vmatprep.subr.mxu0 0.0
    %5525 = vmatpush1.msra.mxu0 0.0
    %5526 = vmatprep.subr.mxu0 0.0
    %5527 = vmatpush1.msra.mxu0 0.0
    %5528 = vmatprep.subr.mxu0 0.0
    %5529 = vmatpush1.msra.mxu0 0.0
    %5530 = vmatprep.subr.mxu0 0.0
    %5531 = vmatpush1.msra.mxu0 0.0
    %5532 = vmatprep.subr.mxu0 0.0
    %5533 = vmatpush1.msra.mxu0 0.0
    %5534 = vmatprep.subr.mxu0 0.0
    %5535 = vmatpush1.msra.mxu0 0.0
    %5536 = vmatprep.subr.mxu0 0.0
    %5537 = vmatpush1.msra.mxu0 0.0
    %5538 = vmatprep.subr.mxu0 0.0
    %5539 = vmatpush1.msra.mxu0 0.0
    %5540 = vmatprep.subr.mxu0 0.0
    %5541 = vmatpush1.msra.mxu0 0.0
    %5542 = vmatprep.subr.mxu0 0.0
    %5543 = vmatpush1.msra.mxu0 0.0
    %5544 = vmatprep.mubr.f32.mxu0 0.0
    %5545 = vmatmul.mubr.f32.gmra.mrb[0].mxu0 %v5478
    %v5546 = vpop.f32.mrb[0].mxu0
    %v5547 = vadd.f32 0.0, %v5546
    %v5548 = vpop.f32.mrb[0].mxu0
    %5549 = vdwg.mxu0
    %5551 = vrot.lane.b32.xlu0 %v4551, 8
    %v5552 = vpop.permute.xlu0 %5551
    %5555 = vrot.lane.b32.xlu0 %v4717, 16
    %v5556 = vpop.permute.xlu0 %5555
    %5559 = vrot.lane.b32.xlu0 %v4883, 24
    %v5560 = vpop.permute.xlu0 %5559
    %5563 = vrot.lane.b32.xlu0 %v5049, 32
    %v5564 = vpop.permute.xlu0 %5563
    %5567 = vrot.lane.b32.xlu0 %v5215, 40
    %v5568 = vpop.permute.xlu0 %5567
    %5571 = vrot.lane.b32.xlu0 %v5381, 48
    %v5572 = vpop.permute.xlu0 %5571
    %5575 = vrot.lane.b32.xlu0 %v5547, 56
    %v5576 = vpop.permute.xlu0 %5575
    %v5578 = vsel %vm225, %v4384, %v5552
    %v5579 = vsel %vm1744, %v5578, %v5556
    %v5580 = vsel %vm1746, %v5579, %v5560
    %v5581 = vsel %vm1748, %v5580, %v5564
    %v5582 = vsel %vm1750, %v5581, %v5568
    %v5583 = vsel %vm1752, %v5582, %v5572
    %v5584 = vsel %vm1754, %v5583, %v5576
    %v5585 = vld [vmem:[%s11] sm:$0xff]
    %v5586 = vld [vmem:[%s13] sm:$0x1]
    %v5588 = vlaneseq
    %v5589 = vshrl.u32 %v5588, 7
    %v5590 = vsub.s32 0, %v5589
    %v5591 = vrot.slane %v5586, %v5590
    %v5594 = vsel %vm1764, %v5584, 0
    %v5597 = vsel %vm1764, %v5585, 0
    %5599 = vmatprep.subr.mxu0 0.0
    %5600 = vmatpush1.xpose.msra.mxu0 %v5597
    %5601 = vmatprep.subr.mxu0 0.0
    %5602 = vmatpush1.xpose.msra.mxu0 0.0
    %5603 = vmatprep.subr.mxu0 0.0
    %5604 = vmatpush1.xpose.msra.mxu0 0.0
    %5605 = vmatprep.subr.mxu0 0.0
    %5606 = vmatpush1.xpose.msra.mxu0 0.0
    %5607 = vmatprep.subr.mxu0 0.0
    %5608 = vmatpush1.xpose.msra.mxu0 0.0
    %5609 = vmatprep.subr.mxu0 0.0
    %5610 = vmatpush1.xpose.msra.mxu0 0.0
    %5611 = vmatprep.subr.mxu0 0.0
    %5612 = vmatpush1.xpose.msra.mxu0 0.0
    %5613 = vmatprep.subr.mxu0 0.0
    %5614 = vmatpush1.xpose.msra.mxu0 0.0
    %5615 = vmatprep.subr.mxu0 0.0
    %5616 = vmatpush1.xpose.msra.mxu0 0.0
    %5617 = vmatprep.subr.mxu0 0.0
    %5618 = vmatpush1.xpose.msra.mxu0 0.0
    %5619 = vmatprep.subr.mxu0 0.0
    %5620 = vmatpush1.xpose.msra.mxu0 0.0
    %5621 = vmatprep.subr.mxu0 0.0
    %5622 = vmatpush1.xpose.msra.mxu0 0.0
    %5623 = vmatprep.subr.mxu0 0.0
    %5624 = vmatpush1.xpose.msra.mxu0 0.0
    %5625 = vmatprep.subr.mxu0 0.0
    %5626 = vmatpush1.xpose.msra.mxu0 0.0
    %5627 = vmatprep.subr.mxu0 0.0
    %5628 = vmatpush1.xpose.msra.mxu0 0.0
    %5629 = vmatprep.subr.mxu0 0.0
    %5630 = vmatpush1.xpose.msra.mxu0 0.0
    %5631 = vmatprep.subr.mxu0 0.0
    %5632 = vmatpush1.xpose.msra.mxu0 0.0
    %5633 = vmatprep.subr.mxu0 0.0
    %5634 = vmatpush1.xpose.msra.mxu0 0.0
    %5635 = vmatprep.subr.mxu0 0.0
    %5636 = vmatpush1.xpose.msra.mxu0 0.0
    %5637 = vmatprep.subr.mxu0 0.0
    %5638 = vmatpush1.xpose.msra.mxu0 0.0
    %5639 = vmatprep.subr.mxu0 0.0
    %5640 = vmatpush1.xpose.msra.mxu0 0.0
    %5641 = vmatprep.subr.mxu0 0.0
    %5642 = vmatpush1.xpose.msra.mxu0 0.0
    %5643 = vmatprep.subr.mxu0 0.0
    %5644 = vmatpush1.xpose.msra.mxu0 0.0
    %5645 = vmatprep.subr.mxu0 0.0
    %5646 = vmatpush1.xpose.msra.mxu0 0.0
    %5647 = vmatprep.subr.mxu0 0.0
    %5648 = vmatpush1.xpose.msra.mxu0 0.0
    %5649 = vmatprep.subr.mxu0 0.0
    %5650 = vmatpush1.xpose.msra.mxu0 0.0
    %5651 = vmatprep.subr.mxu0 0.0
    %5652 = vmatpush1.xpose.msra.mxu0 0.0
    %5653 = vmatprep.subr.mxu0 0.0
    %5654 = vmatpush1.xpose.msra.mxu0 0.0
    %5655 = vmatprep.subr.mxu0 0.0
    %5656 = vmatpush1.xpose.msra.mxu0 0.0
    %5657 = vmatprep.subr.mxu0 0.0
    %5658 = vmatpush1.xpose.msra.mxu0 0.0
    %5659 = vmatprep.subr.mxu0 0.0
    %5660 = vmatpush1.xpose.msra.mxu0 0.0
    %5661 = vmatprep.subr.mxu0 0.0
    %5662 = vmatpush1.xpose.msra.mxu0 0.0
    %5663 = vmatprep.mubr.f32.mxu0 0.0
    %5664 = vmatmul.mubr.f32.gmra.mrb[0].mxu0 %v5594
    %v5665 = vpop.f32.mrb[0].mxu0
    %v5666 = vadd.f32 %v5591, %v5665
    %v5667 = vpop.f32.mrb[0].mxu0
    %5668 = vdwg.mxu0
    %v5669 = vld [vmem:[%s15] sm:$0x7]
    %v5670 = vld [vmem:[%s17] sm:$0x1]
    %v5671 = vrot.slane %v4223, 7
    %v5673 = vsel %vm1845, 0.0, %v5671
    %v5674 = vsel %vm1845, %v5671, 0.0
    %v5675 = vlaneseq
    %v5676 = vshrl.u32 %v5675, 7
    %v5677 = vsub.s32 0, %v5676
    %v5678 = vrot.slane %v5669, %v5677
    %v5679 = vmul.f32 %v5673, %v5678
    %v5680 = vadd.f32 %v5679, 0.0
    %v5681 = vlaneseq
    %v5682 = vshrl.u32 %v5681, 7
    %v5683 = vsub.s32 1, %v5682
    %v5684 = vrot.slane %v5669, %v5683
    %v5685 = vmul.f32 %v5673, %v5684
    %v5686 = vmul.f32 %v5674, %v5684
    %v5689 = vrot.slane %v5685, 1
    %v5690 = vrot.slane %v5686, 1
    %v5691 = vsel %vm1862, %v5689, %v5690
    %v5693 = vadd.f32 %v5680, %v5691
    %v5694 = vlaneseq
    %v5695 = vshrl.u32 %v5694, 7
    %v5696 = vsub.s32 2, %v5695
    %v5697 = vrot.slane %v5669, %v5696
    %v5698 = vmul.f32 %v5673, %v5697
    %v5699 = vmul.f32 %v5674, %v5697
    %v5702 = vrot.slane %v5698, 2
    %v5703 = vrot.slane %v5699, 2
    %v5704 = vsel %vm1876, %v5702, %v5703
    %v5706 = vadd.f32 %v5693, %v5704
    %v5708 = vlaneseq
    %v5709 = vshrl.u32 %v5708, 7
    %v5710 = vsub.s32 0, %v5709
    %v5711 = vrot.slane %v5670, %v5710
    %v5713 = vadd.f32 %v5706, %v5711
    %v5714 = vld [vmem:[%s19] sm:$0x1f]
    %v5715 = vld [vmem:[%s21] sm:$0x1]
    %v5716 = vrot.slane %v4223, 6
    %v5718 = vsel %vm1893, 0.0, %v5716
    %v5719 = vsel %vm1893, %v5716, 0.0
    %v5720 = vlaneseq
    %v5721 = vshrl.u32 %v5720, 7
    %v5722 = vsub.s32 0, %v5721
    %v5723 = vrot.slane %v5714, %v5722
    %v5724 = vmul.f32 %v5718, %v5723
    %v5725 = vadd.f32 %v5724, 0.0
    %v5726 = vlaneseq
    %v5727 = vshrl.u32 %v5726, 7
    %v5728 = vsub.s32 1, %v5727
    %v5729 = vrot.slane %v5714, %v5728
    %v5730 = vmul.f32 %v5718, %v5729
    %v5731 = vmul.f32 %v5719, %v5729
    %v5734 = vrot.slane %v5730, 1
    %v5735 = vrot.slane %v5731, 1
    %v5736 = vsel %vm1862, %v5734, %v5735
    %v5738 = vadd.f32 %v5725, %v5736
    %v5739 = vlaneseq
    %v5740 = vshrl.u32 %v5739, 7
    %v5741 = vsub.s32 2, %v5740
    %v5742 = vrot.slane %v5714, %v5741
    %v5743 = vmul.f32 %v5718, %v5742
    %v5744 = vmul.f32 %v5719, %v5742
    %v5747 = vrot.slane %v5743, 2
    %v5748 = vrot.slane %v5744, 2
    %v5749 = vsel %vm1876, %v5747, %v5748
    %v5751 = vadd.f32 %v5738, %v5749
    %v5752 = vlaneseq
    %v5753 = vshrl.u32 %v5752, 7
    %v5754 = vsub.s32 3, %v5753
    %v5755 = vrot.slane %v5714, %v5754
    %v5756 = vmul.f32 %v5718, %v5755
    %v5757 = vmul.f32 %v5719, %v5755
    %v5760 = vrot.slane %v5756, 3
    %v5761 = vrot.slane %v5757, 3
    %v5762 = vsel %vm1936, %v5760, %v5761
    %v5764 = vadd.f32 %v5751, %v5762
    %v5765 = vlaneseq
    %v5766 = vshrl.u32 %v5765, 7
    %v5767 = vsub.s32 4, %v5766
    %v5768 = vrot.slane %v5714, %v5767
    %v5769 = vmul.f32 %v5718, %v5768
    %v5770 = vmul.f32 %v5719, %v5768
    %v5773 = vrot.slane %v5769, 4
    %v5774 = vrot.slane %v5770, 4
    %v5775 = vsel %vm1950, %v5773, %v5774
    %v5777 = vadd.f32 %v5764, %v5775
    %v5779 = vlaneseq
    %v5780 = vshrl.u32 %v5779, 7
    %v5781 = vsub.s32 0, %v5780
    %v5782 = vrot.slane %v5715, %v5781
    %v5784 = vadd.f32 %v5777, %v5782
    %5786 = vrot.lane.b32.xlu0 %v5713, 64
    %v5787 = vpop.permute.xlu0 %5786
    %v5789 = vsel %vm1764, %v4223, %v5787
    %v5790 = vld [vmem:[%s23] sm:$0xff]
    %v5791 = vld [vmem:[%s23 + $0x8] sm:$0xff]
    %v5792 = vld [vmem:[%s25] sm:$0x1]
    %v5794 = vlaneseq
    %v5795 = vshrl.u32 %v5794, 7
    %v5796 = vsub.s32 0, %v5795
    %v5797 = vrot.slane %v5792, %v5796
    %v5800 = vsel %vm1764, %v5784, 0
    %v5803 = vsel %vm1764, %v5791, 0
    %5805 = vmatprep.subr.mxu0 %v5803
    %5806 = vmatpush1.xpose.msra.mxu0 %v5790
    %5807 = vmatprep.subr.mxu0 0.0
    %5808 = vmatpush1.xpose.msra.mxu0 0.0
    %5809 = vmatprep.subr.mxu0 0.0
    %5810 = vmatpush1.xpose.msra.mxu0 0.0
    %5811 = vmatprep.subr.mxu0 0.0
    %5812 = vmatpush1.xpose.msra.mxu0 0.0
    %5813 = vmatprep.subr.mxu0 0.0
    %5814 = vmatpush1.xpose.msra.mxu0 0.0
    %5815 = vmatprep.subr.mxu0 0.0
    %5816 = vmatpush1.xpose.msra.mxu0 0.0
    %5817 = vmatprep.subr.mxu0 0.0
    %5818 = vmatpush1.xpose.msra.mxu0 0.0
    %5819 = vmatprep.subr.mxu0 0.0
    %5820 = vmatpush1.xpose.msra.mxu0 0.0
    %5821 = vmatprep.subr.mxu0 0.0
    %5822 = vmatpush1.xpose.msra.mxu0 0.0
    %5823 = vmatprep.subr.mxu0 0.0
    %5824 = vmatpush1.xpose.msra.mxu0 0.0
    %5825 = vmatprep.subr.mxu0 0.0
    %5826 = vmatpush1.xpose.msra.mxu0 0.0
    %5827 = vmatprep.subr.mxu0 0.0
    %5828 = vmatpush1.xpose.msra.mxu0 0.0
    %5829 = vmatprep.subr.mxu0 0.0
    %5830 = vmatpush1.xpose.msra.mxu0 0.0
    %5831 = vmatprep.subr.mxu0 0.0
    %5832 = vmatpush1.xpose.msra.mxu0 0.0
    %5833 = vmatprep.subr.mxu0 0.0
    %5834 = vmatpush1.xpose.msra.mxu0 0.0
    %5835 = vmatprep.subr.mxu0 0.0
    %5836 = vmatpush1.xpose.msra.mxu0 0.0
    %5837 = vmatprep.subr.mxu0 0.0
    %5838 = vmatpush1.xpose.msra.mxu0 0.0
    %5839 = vmatprep.subr.mxu0 0.0
    %5840 = vmatpush1.xpose.msra.mxu0 0.0
    %5841 = vmatprep.subr.mxu0 0.0
    %5842 = vmatpush1.xpose.msra.mxu0 0.0
    %5843 = vmatprep.subr.mxu0 0.0
    %5844 = vmatpush1.xpose.msra.mxu0 0.0
    %5845 = vmatprep.subr.mxu0 0.0
    %5846 = vmatpush1.xpose.msra.mxu0 0.0
    %5847 = vmatprep.subr.mxu0 0.0
    %5848 = vmatpush1.xpose.msra.mxu0 0.0
    %5849 = vmatprep.subr.mxu0 0.0
    %5850 = vmatpush1.xpose.msra.mxu0 0.0
    %5851 = vmatprep.subr.mxu0 0.0
    %5852 = vmatpush1.xpose.msra.mxu0 0.0
    %5853 = vmatprep.subr.mxu0 0.0
    %5854 = vmatpush1.xpose.msra.mxu0 0.0
    %5855 = vmatprep.subr.mxu0 0.0
    %5856 = vmatpush1.xpose.msra.mxu0 0.0
    %5857 = vmatprep.subr.mxu0 0.0
    %5858 = vmatpush1.xpose.msra.mxu0 0.0
    %5859 = vmatprep.subr.mxu0 0.0
    %5860 = vmatpush1.xpose.msra.mxu0 0.0
    %5861 = vmatprep.subr.mxu0 0.0
    %5862 = vmatpush1.xpose.msra.mxu0 0.0
    %5863 = vmatprep.subr.mxu0 0.0
    %5864 = vmatpush1.xpose.msra.mxu0 0.0
    %5865 = vmatprep.subr.mxu0 0.0
    %5866 = vmatpush1.xpose.msra.mxu0 0.0
    %5867 = vmatprep.subr.mxu0 0.0
    %5868 = vmatpush1.xpose.msra.mxu0 0.0
    %5869 = vmatprep.mubr.f32.mxu0 %v5800
    %5870 = vmatmul.mubr.f32.gmra.mrb[0].mxu0 %v5789
    %v5871 = vpop.f32.mrb[0].mxu0
    %v5872 = vadd.f32 %v5797, %v5871
    %v5873 = vpop.f32.mrb[0].mxu0
    %5874 = vdwg.mxu0
    %v5875 = vadd.f32 %v5666, %v5872
    %s5876 = scalar_lea.vmem [#allocation6], 8
    %5877 = vst.msk [vmem:[%s5876] sm:$0xff] %vm225, %v5875
    %v5879 = vsel %vm225, %v5875, 0
    %5881 = vmatprep.subr.mxu0 0.0
    %5882 = vmatpush1.xpose.msra.mxu0 %v5879
    %5883 = vmatprep.subr.mxu0 0.0
    %5884 = vmatpush1.xpose.msra.mxu0 0.0
    %5885 = vmatprep.subr.mxu0 0.0
    %5886 = vmatpush1.xpose.msra.mxu0 0.0
    %5887 = vmatprep.subr.mxu0 0.0
    %5888 = vmatpush1.xpose.msra.mxu0 0.0
    %5889 = vmatprep.subr.mxu0 0.0
    %5890 = vmatpush1.xpose.msra.mxu0 0.0
    %5891 = vmatprep.subr.mxu0 0.0
    %5892 = vmatpush1.xpose.msra.mxu0 0.0
    %5893 = vmatprep.subr.mxu0 0.0
    %5894 = vmatpush1.xpose.msra.mxu0 0.0
    %5895 = vmatprep.subr.mxu0 0.0
    %5896 = vmatpush1.xpose.msra.mxu0 0.0
    %5897 = vmatprep.subr.mxu0 0.0
    %5898 = vmatpush1.xpose.msra.mxu0 0.0
    %5899 = vmatprep.subr.mxu0 0.0
    %5900 = vmatpush1.xpose.msra.mxu0 0.0
    %5901 = vmatprep.subr.mxu0 0.0
    %5902 = vmatpush1.xpose.msra.mxu0 0.0
    %5903 = vmatprep.subr.mxu0 0.0
    %5904 = vmatpush1.xpose.msra.mxu0 0.0
    %5905 = vmatprep.subr.mxu0 0.0
    %5906 = vmatpush1.xpose.msra.mxu0 0.0
    %5907 = vmatprep.subr.mxu0 0.0
    %5908 = vmatpush1.xpose.msra.mxu0 0.0
    %5909 = vmatprep.subr.mxu0 0.0
    %5910 = vmatpush1.xpose.msra.mxu0 0.0
    %5911 = vmatprep.subr.mxu0 0.0
    %5912 = vmatpush1.xpose.msra.mxu0 0.0
    %5913 = vmatprep.subr.mxu0 0.0
    %5914 = vmatpush1.xpose.msra.mxu0 0.0
    %5915 = vmatprep.subr.mxu0 0.0
    %5916 = vmatpush1.xpose.msra.mxu0 0.0
    %5917 = vmatprep.subr.mxu0 0.0
    %5918 = vmatpush1.xpose.msra.mxu0 0.0
    %5919 = vmatprep.subr.mxu0 0.0
    %5920 = vmatpush1.xpose.msra.mxu0 0.0
    %5921 = vmatprep.subr.mxu0 0.0
    %5922 = vmatpush1.xpose.msra.mxu0 0.0
    %5923 = vmatprep.subr.mxu0 0.0
    %5924 = vmatpush1.xpose.msra.mxu0 0.0
    %5925 = vmatprep.subr.mxu0 0.0
    %5926 = vmatpush1.xpose.msra.mxu0 0.0
    %5927 = vmatprep.subr.mxu0 0.0
    %5928 = vmatpush1.xpose.msra.mxu0 0.0
    %5929 = vmatprep.subr.mxu0 0.0
    %5930 = vmatpush1.xpose.msra.mxu0 0.0
    %5931 = vmatprep.subr.mxu0 0.0
    %5932 = vmatpush1.xpose.msra.mxu0 0.0
    %5933 = vmatprep.subr.mxu0 0.0
    %5934 = vmatpush1.xpose.msra.mxu0 0.0
    %5935 = vmatprep.subr.mxu0 0.0
    %5936 = vmatpush1.xpose.msra.mxu0 0.0
    %5937 = vmatprep.subr.mxu0 0.0
    %5938 = vmatpush1.xpose.msra.mxu0 0.0
    %5939 = vmatprep.subr.mxu0 0.0
    %5940 = vmatpush1.xpose.msra.mxu0 0.0
    %5941 = vmatprep.subr.mxu0 0.0
    %5942 = vmatpush1.xpose.msra.mxu0 0.0
    %5943 = vmatprep.subr.mxu0 0.0
    %5944 = vmatpush1.xpose.msra.mxu0 0.0
    %5945 = vmatprep.mubr.f32.mxu0 0.0
    %5946 = vmatmul.mubr.f32.gmra.mrb[0].mxu0 %v227
    %v5947 = vpop.f32.mrb[0].mxu0
    %v5948 = vadd.f32 0.0, %v5947
    %v5949 = vpop.f32.mrb[0].mxu0
    %5950 = vdwg.mxu0
    %v5951 = vld [vmem:[%s27] sm:$0x1]
    %v5953 = vrot.slane %v5948, 7
    %v5955 = vsel %vm1845, %v5951, %v5953
    %v5956 = vld [vmem:[%s29] sm:$0xff]
    %v5957 = vld [vmem:[%s29 + $0x8] sm:$0x1]
    %v5958 = vadd.f32 %v5955, %v5956
    %v5959 = vadd.f32 %v5953, %v5957
    %v5960 = vld [vmem:[%s31] sm:$0x1]
    %v5961 = vld [vmem:[%s33] sm:$0x1]
    %v5962 = vsel %vm225, %v5958, 0.0
    %5963 = vadd.xlane.f32.xlu0 %v5962
    %v5964 = vpop.xlane.xlu0 %5963
    %v5965 = vsel %vm2142, %v5959, 0.0
    %5966 = vadd.xlane.f32.xlu0 %v5965
    %v5967 = vpop.xlane.xlu0 %5966
    %v5968 = vmul.f32 %v5964, %v2146
    %v5969 = vmul.f32 %v5967, %v2146
    %v5970 = vsub.f32 %v5958, %v5968
    %v5971 = vsub.f32 %v5959, %v5969
    %v5972 = vmul.f32 %v5970, %v5970
    %v5973 = vmul.f32 %v5971, %v5971
    %v5974 = vsel %vm225, %v5972, 0.0
    %5975 = vadd.xlane.f32.xlu0 %v5974
    %v5976 = vpop.xlane.xlu0 %5975
    %v5977 = vsel %vm2142, %v5973, 0.0
    %5978 = vadd.xlane.f32.xlu0 %v5977
    %v5979 = vpop.xlane.xlu0 %5978
    %v5980 = vmul.f32 %v5976, %v2146
    %v5981 = vmul.f32 %v5979, %v2146
    %v5982 = vadd.f32 %v5980, 1e-05
    %v5983 = vadd.f32 %v5981, 1e-05
    %v5984 = vrsqrt.pop %v5982
    %v5985 = vrsqrt.pop %v5983
    %v5986 = vmul.f32 %v5970, %v5984
    %v5987 = vmul.f32 %v5971, %v5985
    %v5989 = vlaneseq
    %v5990 = vshrl.u32 %v5989, 7
    %v5991 = vsub.s32 0, %v5990
    %v5992 = vrot.slane %v5960, %v5991
    %v5994 = vmul.f32 %v5986, %v5992
    %v5995 = vmul.f32 %v5987, %v5992
    %v5997 = vlaneseq
    %v5998 = vshrl.u32 %v5997, 7
    %v5999 = vsub.s32 0, %v5998
    %v6000 = vrot.slane %v5961, %v5999
    %v6002 = vadd.f32 %v5994, %v6000
    %v6003 = vadd.f32 %v5995, %v6000
    %v6004 = vld [vmem:[%s35] sm:$0xff]
    %v6006 = vsel %vm225, %v6002, 0
    %v6009 = vsel %vm225, %v6003, 0
    %6011 = vmatprep.subr.mxu0 0.0
    %6012 = vmatpush1.msra.mxu0 %v6004
    %6013 = vmatprep.subr.mxu0 0.0
    %6014 = vmatpush1.msra.mxu0 0.0
    %6015 = vmatprep.subr.mxu0 0.0
    %6016 = vmatpush1.msra.mxu0 0.0
    %6017 = vmatprep.subr.mxu0 0.0
    %6018 = vmatpush1.msra.mxu0 0.0
    %6019 = vmatprep.subr.mxu0 0.0
    %6020 = vmatpush1.msra.mxu0 0.0
    %6021 = vmatprep.subr.mxu0 0.0
    %6022 = vmatpush1.msra.mxu0 0.0
    %6023 = vmatprep.subr.mxu0 0.0
    %6024 = vmatpush1.msra.mxu0 0.0
    %6025 = vmatprep.subr.mxu0 0.0
    %6026 = vmatpush1.msra.mxu0 0.0
    %6027 = vmatprep.subr.mxu0 0.0
    %6028 = vmatpush1.msra.mxu0 0.0
    %6029 = vmatprep.subr.mxu0 0.0
    %6030 = vmatpush1.msra.mxu0 0.0
    %6031 = vmatprep.subr.mxu0 0.0
    %6032 = vmatpush1.msra.mxu0 0.0
    %6033 = vmatprep.subr.mxu0 0.0
    %6034 = vmatpush1.msra.mxu0 0.0
    %6035 = vmatprep.subr.mxu0 0.0
    %6036 = vmatpush1.msra.mxu0 0.0
    %6037 = vmatprep.subr.mxu0 0.0
    %6038 = vmatpush1.msra.mxu0 0.0
    %6039 = vmatprep.subr.mxu0 0.0
    %6040 = vmatpush1.msra.mxu0 0.0
    %6041 = vmatprep.subr.mxu0 0.0
    %6042 = vmatpush1.msra.mxu0 0.0
    %6043 = vmatprep.subr.mxu0 0.0
    %6044 = vmatpush1.msra.mxu0 0.0
    %6045 = vmatprep.subr.mxu0 0.0
    %6046 = vmatpush1.msra.mxu0 0.0
    %6047 = vmatprep.subr.mxu0 0.0
    %6048 = vmatpush1.msra.mxu0 0.0
    %6049 = vmatprep.subr.mxu0 0.0
    %6050 = vmatpush1.msra.mxu0 0.0
    %6051 = vmatprep.subr.mxu0 0.0
    %6052 = vmatpush1.msra.mxu0 0.0
    %6053 = vmatprep.subr.mxu0 0.0
    %6054 = vmatpush1.msra.mxu0 0.0
    %6055 = vmatprep.subr.mxu0 0.0
    %6056 = vmatpush1.msra.mxu0 0.0
    %6057 = vmatprep.subr.mxu0 0.0
    %6058 = vmatpush1.msra.mxu0 0.0
    %6059 = vmatprep.subr.mxu0 0.0
    %6060 = vmatpush1.msra.mxu0 0.0
    %6061 = vmatprep.subr.mxu0 0.0
    %6062 = vmatpush1.msra.mxu0 0.0
    %6063 = vmatprep.subr.mxu0 0.0
    %6064 = vmatpush1.msra.mxu0 0.0
    %6065 = vmatprep.subr.mxu0 0.0
    %6066 = vmatpush1.msra.mxu0 0.0
    %6067 = vmatprep.subr.mxu0 0.0
    %6068 = vmatpush1.msra.mxu0 0.0
    %6069 = vmatprep.subr.mxu0 0.0
    %6070 = vmatpush1.msra.mxu0 0.0
    %6071 = vmatprep.subr.mxu0 0.0
    %6072 = vmatpush1.msra.mxu0 0.0
    %6073 = vmatprep.subr.mxu0 0.0
    %6074 = vmatpush1.msra.mxu0 0.0
    %6075 = vmatprep.mubr.f32.mxu0 0.0
    %6076 = vmatmul.mubr.f32.gmra.mrb[0].mxu0 %v6006
    %v6077 = vpop.f32.mrb[0].mxu0
    %v6078 = vadd.f32 0.0, %v6077
    %v6079 = vpop.f32.mrb[0].mxu0
    %6080 = vmatprep.mubr.f32.mxu0 0.0
    %6081 = vmatmul.mubr.f32.gmra.mrb[0].mxu0 %v6009
    %v6082 = vpop.f32.mrb[0].mxu0
    %v6083 = vadd.f32 0.0, %v6082
    %v6084 = vpop.f32.mrb[0].mxu0
    %6085 = vdwg.mxu0
    %6088 = vrot.lane.b32.xlu0 %v6078, 120
    %v6089 = vpop.permute.xlu0 %6088
    %6090 = vrot.lane.b32.xlu0 %v6083, 120
    %v6091 = vpop.permute.xlu0 %6090
    %v6092 = vsel %vm2271, %v6078, 0
    %v6094 = vsel %vm2271, %v6083, 0
    %v6096 = vsel %vm2271, %v6089, 0
    %v6098 = vsel %vm2271, %v6091, 0
    %6100 = vmatprep.subr.mxu0 0.0
    %6101 = vmatpush1.xpose.msra.mxu0 %v6096
    %6102 = vmatprep.subr.mxu0 0.0
    %6103 = vmatpush1.xpose.msra.mxu0 %v6098
    %6104 = vmatprep.subr.mxu0 0.0
    %6105 = vmatpush1.xpose.msra.mxu0 0.0
    %6106 = vmatprep.subr.mxu0 0.0
    %6107 = vmatpush1.xpose.msra.mxu0 0.0
    %6108 = vmatprep.subr.mxu0 0.0
    %6109 = vmatpush1.xpose.msra.mxu0 0.0
    %6110 = vmatprep.subr.mxu0 0.0
    %6111 = vmatpush1.xpose.msra.mxu0 0.0
    %6112 = vmatprep.subr.mxu0 0.0
    %6113 = vmatpush1.xpose.msra.mxu0 0.0
    %6114 = vmatprep.subr.mxu0 0.0
    %6115 = vmatpush1.xpose.msra.mxu0 0.0
    %6116 = vmatprep.subr.mxu0 0.0
    %6117 = vmatpush1.xpose.msra.mxu0 0.0
    %6118 = vmatprep.subr.mxu0 0.0
    %6119 = vmatpush1.xpose.msra.mxu0 0.0
    %6120 = vmatprep.subr.mxu0 0.0
    %6121 = vmatpush1.xpose.msra.mxu0 0.0
    %6122 = vmatprep.subr.mxu0 0.0
    %6123 = vmatpush1.xpose.msra.mxu0 0.0
    %6124 = vmatprep.subr.mxu0 0.0
    %6125 = vmatpush1.xpose.msra.mxu0 0.0
    %6126 = vmatprep.subr.mxu0 0.0
    %6127 = vmatpush1.xpose.msra.mxu0 0.0
    %6128 = vmatprep.subr.mxu0 0.0
    %6129 = vmatpush1.xpose.msra.mxu0 0.0
    %6130 = vmatprep.subr.mxu0 0.0
    %6131 = vmatpush1.xpose.msra.mxu0 0.0
    %6132 = vmatprep.subr.mxu0 0.0
    %6133 = vmatpush1.xpose.msra.mxu0 0.0
    %6134 = vmatprep.subr.mxu0 0.0
    %6135 = vmatpush1.xpose.msra.mxu0 0.0
    %6136 = vmatprep.subr.mxu0 0.0
    %6137 = vmatpush1.xpose.msra.mxu0 0.0
    %6138 = vmatprep.subr.mxu0 0.0
    %6139 = vmatpush1.xpose.msra.mxu0 0.0
    %6140 = vmatprep.subr.mxu0 0.0
    %6141 = vmatpush1.xpose.msra.mxu0 0.0
    %6142 = vmatprep.subr.mxu0 0.0
    %6143 = vmatpush1.xpose.msra.mxu0 0.0
    %6144 = vmatprep.subr.mxu0 0.0
    %6145 = vmatpush1.xpose.msra.mxu0 0.0
    %6146 = vmatprep.subr.mxu0 0.0
    %6147 = vmatpush1.xpose.msra.mxu0 0.0
    %6148 = vmatprep.subr.mxu0 0.0
    %6149 = vmatpush1.xpose.msra.mxu0 0.0
    %6150 = vmatprep.subr.mxu0 0.0
    %6151 = vmatpush1.xpose.msra.mxu0 0.0
    %6152 = vmatprep.subr.mxu0 0.0
    %6153 = vmatpush1.xpose.msra.mxu0 0.0
    %6154 = vmatprep.subr.mxu0 0.0
    %6155 = vmatpush1.xpose.msra.mxu0 0.0
    %6156 = vmatprep.subr.mxu0 0.0
    %6157 = vmatpush1.xpose.msra.mxu0 0.0
    %6158 = vmatprep.subr.mxu0 0.0
    %6159 = vmatpush1.xpose.msra.mxu0 0.0
    %6160 = vmatprep.subr.mxu0 0.0
    %6161 = vmatpush1.xpose.msra.mxu0 0.0
    %6162 = vmatprep.subr.mxu0 0.0
    %6163 = vmatpush1.xpose.msra.mxu0 0.0
    %6164 = vmatprep.mubr.f32.mxu0 0.0
    %6165 = vmatmul.mubr.f32.gmra.mrb[0].mxu0 %v6092
    %v6166 = vpop.f32.mrb[0].mxu0
    %v6167 = vadd.f32 0.0, %v6166
    %v6168 = vpop.f32.mrb[0].mxu0
    %6169 = vmatprep.mubr.f32.mxu0 0.0
    %6170 = vmatmul.mubr.f32.gmra.mrb[0].mxu0 %v6094
    %v6171 = vpop.f32.mrb[0].mxu0
    %v6172 = vadd.f32 0.0, %v6171
    %v6173 = vpop.f32.mrb[0].mxu0
    %6174 = vdwg.mxu0
    %v6175 = vmul.f32 %v6167, 0.5
    %v6176 = vmul.f32 %v6172, 0.5
    %v6177 = vsel %vm2357, %v6175, -inf
    %6178 = vmax.xlane.f32.xlu0 %v6177
    %v6179 = vpop.xlane.xlu0 %6178
    %v6180 = vsel %vm2361, %v6176, -inf
    %6181 = vmax.xlane.f32.xlu0 %v6180
    %v6182 = vpop.xlane.xlu0 %6181
    %v6183 = vsub.f32 %v6175, %v6179
    %v6184 = vsub.f32 %v6176, %v6182
    %v6185 = vmul.f32 %v6183, 1.442695
    %v6186 = vpow.pop %v6185
    %v6187 = vmul.f32 %v6184, 1.442695
    %v6188 = vpow.pop %v6187
    %v6189 = vsel %vm2357, %v6186, 0.0
    %6190 = vadd.xlane.f32.xlu0 %v6189
    %v6191 = vpop.xlane.xlu0 %6190
    %v6192 = vsel %vm2361, %v6188, 0.0
    %6193 = vadd.xlane.f32.xlu0 %v6192
    %v6194 = vpop.xlane.xlu0 %6193
    %v6195 = vrcp.pop %v6191
    %v6196 = vrcp.pop %v6194
    %v6197 = vmul.f32 %v6186, %v6195
    %v6198 = vmul.f32 %v6188, %v6196
    %6199 = vrot.lane.b32.xlu0 %v6078, 112
    %v6200 = vpop.permute.xlu0 %6199
    %6201 = vrot.lane.b32.xlu0 %v6083, 112
    %v6202 = vpop.permute.xlu0 %6201
    %v6205 = vsel %vm2357, %v6197, 0
    %v6208 = vsel %vm2357, %v6198, 0
    %v6210 = vsel %vm1845, %v6202, 0
    %6212 = vmatprep.subr.mxu0 0.0
    %6213 = vmatpush1.msra.mxu0 %v6200
    %6214 = vmatprep.subr.mxu0 0.0
    %6215 = vmatpush1.msra.mxu0 %v6210
    %6216 = vmatprep.subr.mxu0 0.0
    %6217 = vmatpush1.msra.mxu0 0.0
    %6218 = vmatprep.subr.mxu0 0.0
    %6219 = vmatpush1.msra.mxu0 0.0
    %6220 = vmatprep.subr.mxu0 0.0
    %6221 = vmatpush1.msra.mxu0 0.0
    %6222 = vmatprep.subr.mxu0 0.0
    %6223 = vmatpush1.msra.mxu0 0.0
    %6224 = vmatprep.subr.mxu0 0.0
    %6225 = vmatpush1.msra.mxu0 0.0
    %6226 = vmatprep.subr.mxu0 0.0
    %6227 = vmatpush1.msra.mxu0 0.0
    %6228 = vmatprep.subr.mxu0 0.0
    %6229 = vmatpush1.msra.mxu0 0.0
    %6230 = vmatprep.subr.mxu0 0.0
    %6231 = vmatpush1.msra.mxu0 0.0
    %6232 = vmatprep.subr.mxu0 0.0
    %6233 = vmatpush1.msra.mxu0 0.0
    %6234 = vmatprep.subr.mxu0 0.0
    %6235 = vmatpush1.msra.mxu0 0.0
    %6236 = vmatprep.subr.mxu0 0.0
    %6237 = vmatpush1.msra.mxu0 0.0
    %6238 = vmatprep.subr.mxu0 0.0
    %6239 = vmatpush1.msra.mxu0 0.0
    %6240 = vmatprep.subr.mxu0 0.0
    %6241 = vmatpush1.msra.mxu0 0.0
    %6242 = vmatprep.subr.mxu0 0.0
    %6243 = vmatpush1.msra.mxu0 0.0
    %6244 = vmatprep.subr.mxu0 0.0
    %6245 = vmatpush1.msra.mxu0 0.0
    %6246 = vmatprep.subr.mxu0 0.0
    %6247 = vmatpush1.msra.mxu0 0.0
    %6248 = vmatprep.subr.mxu0 0.0
    %6249 = vmatpush1.msra.mxu0 0.0
    %6250 = vmatprep.subr.mxu0 0.0
    %6251 = vmatpush1.msra.mxu0 0.0
    %6252 = vmatprep.subr.mxu0 0.0
    %6253 = vmatpush1.msra.mxu0 0.0
    %6254 = vmatprep.subr.mxu0 0.0
    %6255 = vmatpush1.msra.mxu0 0.0
    %6256 = vmatprep.subr.mxu0 0.0
    %6257 = vmatpush1.msra.mxu0 0.0
    %6258 = vmatprep.subr.mxu0 0.0
    %6259 = vmatpush1.msra.mxu0 0.0
    %6260 = vmatprep.subr.mxu0 0.0
    %6261 = vmatpush1.msra.mxu0 0.0
    %6262 = vmatprep.subr.mxu0 0.0
    %6263 = vmatpush1.msra.mxu0 0.0
    %6264 = vmatprep.subr.mxu0 0.0
    %6265 = vmatpush1.msra.mxu0 0.0
    %6266 = vmatprep.subr.mxu0 0.0
    %6267 = vmatpush1.msra.mxu0 0.0
    %6268 = vmatprep.subr.mxu0 0.0
    %6269 = vmatpush1.msra.mxu0 0.0
    %6270 = vmatprep.subr.mxu0 0.0
    %6271 = vmatpush1.msra.mxu0 0.0
    %6272 = vmatprep.subr.mxu0 0.0
    %6273 = vmatpush1.msra.mxu0 0.0
    %6274 = vmatprep.subr.mxu0 0.0
    %6275 = vmatpush1.msra.mxu0 0.0
    %6276 = vmatprep.mubr.f32.mxu0 0.0
    %6277 = vmatmul.mubr.f32.gmra.mrb[0].mxu0 %v6205
    %v6278 = vpop.f32.mrb[0].mxu0
    %v6279 = vadd.f32 0.0, %v6278
    %v6280 = vpop.f32.mrb[0].mxu0
    %6281 = vmatprep.mubr.f32.mxu0 0.0
    %6282 = vmatmul.mubr.f32.gmra.mrb[0].mxu0 %v6208
    %v6283 = vpop.f32.mrb[0].mxu0
    %v6284 = vadd.f32 0.0, %v6283
    %v6285 = vpop.f32.mrb[0].mxu0
    %6286 = vdwg.mxu0
    %6287 = vrot.lane.b32.xlu0 %v6078, 124
    %v6288 = vpop.permute.xlu0 %6287
    %6289 = vrot.lane.b32.xlu0 %v6083, 124
    %v6290 = vpop.permute.xlu0 %6289
    %6291 = vrot.lane.b32.xlu0 %v6078, 116
    %v6292 = vpop.permute.xlu0 %6291
    %6293 = vrot.lane.b32.xlu0 %v6083, 116
    %v6294 = vpop.permute.xlu0 %6293
    %v6295 = vsel %vm2271, %v6288, 0
    %v6297 = vsel %vm2271, %v6290, 0
    %v6299 = vsel %vm2271, %v6292, 0
    %v6301 = vsel %vm2271, %v6294, 0
    %6303 = vmatprep.subr.mxu0 0.0
    %6304 = vmatpush1.xpose.msra.mxu0 %v6299
    %6305 = vmatprep.subr.mxu0 0.0
    %6306 = vmatpush1.xpose.msra.mxu0 %v6301
    %6307 = vmatprep.subr.mxu0 0.0
    %6308 = vmatpush1.xpose.msra.mxu0 0.0
    %6309 = vmatprep.subr.mxu0 0.0
    %6310 = vmatpush1.xpose.msra.mxu0 0.0
    %6311 = vmatprep.subr.mxu0 0.0
    %6312 = vmatpush1.xpose.msra.mxu0 0.0
    %6313 = vmatprep.subr.mxu0 0.0
    %6314 = vmatpush1.xpose.msra.mxu0 0.0
    %6315 = vmatprep.subr.mxu0 0.0
    %6316 = vmatpush1.xpose.msra.mxu0 0.0
    %6317 = vmatprep.subr.mxu0 0.0
    %6318 = vmatpush1.xpose.msra.mxu0 0.0
    %6319 = vmatprep.subr.mxu0 0.0
    %6320 = vmatpush1.xpose.msra.mxu0 0.0
    %6321 = vmatprep.subr.mxu0 0.0
    %6322 = vmatpush1.xpose.msra.mxu0 0.0
    %6323 = vmatprep.subr.mxu0 0.0
    %6324 = vmatpush1.xpose.msra.mxu0 0.0
    %6325 = vmatprep.subr.mxu0 0.0
    %6326 = vmatpush1.xpose.msra.mxu0 0.0
    %6327 = vmatprep.subr.mxu0 0.0
    %6328 = vmatpush1.xpose.msra.mxu0 0.0
    %6329 = vmatprep.subr.mxu0 0.0
    %6330 = vmatpush1.xpose.msra.mxu0 0.0
    %6331 = vmatprep.subr.mxu0 0.0
    %6332 = vmatpush1.xpose.msra.mxu0 0.0
    %6333 = vmatprep.subr.mxu0 0.0
    %6334 = vmatpush1.xpose.msra.mxu0 0.0
    %6335 = vmatprep.subr.mxu0 0.0
    %6336 = vmatpush1.xpose.msra.mxu0 0.0
    %6337 = vmatprep.subr.mxu0 0.0
    %6338 = vmatpush1.xpose.msra.mxu0 0.0
    %6339 = vmatprep.subr.mxu0 0.0
    %6340 = vmatpush1.xpose.msra.mxu0 0.0
    %6341 = vmatprep.subr.mxu0 0.0
    %6342 = vmatpush1.xpose.msra.mxu0 0.0
    %6343 = vmatprep.subr.mxu0 0.0
    %6344 = vmatpush1.xpose.msra.mxu0 0.0
    %6345 = vmatprep.subr.mxu0 0.0
    %6346 = vmatpush1.xpose.msra.mxu0 0.0
    %6347 = vmatprep.subr.mxu0 0.0
    %6348 = vmatpush1.xpose.msra.mxu0 0.0
    %6349 = vmatprep.subr.mxu0 0.0
    %6350 = vmatpush1.xpose.msra.mxu0 0.0
    %6351 = vmatprep.subr.mxu0 0.0
    %6352 = vmatpush1.xpose.msra.mxu0 0.0
    %6353 = vmatprep.subr.mxu0 0.0
    %6354 = vmatpush1.xpose.msra.mxu0 0.0
    %6355 = vmatprep.subr.mxu0 0.0
    %6356 = vmatpush1.xpose.msra.mxu0 0.0
    %6357 = vmatprep.subr.mxu0 0.0
    %6358 = vmatpush1.xpose.msra.mxu0 0.0
    %6359 = vmatprep.subr.mxu0 0.0
    %6360 = vmatpush1.xpose.msra.mxu0 0.0
    %6361 = vmatprep.subr.mxu0 0.0
    %6362 = vmatpush1.xpose.msra.mxu0 0.0
    %6363 = vmatprep.subr.mxu0 0.0
    %6364 = vmatpush1.xpose.msra.mxu0 0.0
    %6365 = vmatprep.subr.mxu0 0.0
    %6366 = vmatpush1.xpose.msra.mxu0 0.0
    %6367 = vmatprep.mubr.f32.mxu0 0.0
    %6368 = vmatmul.mubr.f32.gmra.mrb[0].mxu0 %v6295
    %v6369 = vpop.f32.mrb[0].mxu0
    %v6370 = vadd.f32 0.0, %v6369
    %v6371 = vpop.f32.mrb[0].mxu0
    %6372 = vmatprep.mubr.f32.mxu0 0.0
    %6373 = vmatmul.mubr.f32.gmra.mrb[0].mxu0 %v6297
    %v6374 = vpop.f32.mrb[0].mxu0
    %v6375 = vadd.f32 0.0, %v6374
    %v6376 = vpop.f32.mrb[0].mxu0
    %6377 = vdwg.mxu0
    %v6378 = vmul.f32 %v6370, 0.5
    %v6379 = vmul.f32 %v6375, 0.5
    %v6380 = vsel %vm2357, %v6378, -inf
    %6381 = vmax.xlane.f32.xlu0 %v6380
    %v6382 = vpop.xlane.xlu0 %6381
    %v6383 = vsel %vm2361, %v6379, -inf
    %6384 = vmax.xlane.f32.xlu0 %v6383
    %v6385 = vpop.xlane.xlu0 %6384
    %v6386 = vsub.f32 %v6378, %v6382
    %v6387 = vsub.f32 %v6379, %v6385
    %v6388 = vmul.f32 %v6386, 1.442695
    %v6389 = vpow.pop %v6388
    %v6390 = vmul.f32 %v6387, 1.442695
    %v6391 = vpow.pop %v6390
    %v6392 = vsel %vm2357, %v6389, 0.0
    %6393 = vadd.xlane.f32.xlu0 %v6392
    %v6394 = vpop.xlane.xlu0 %6393
    %v6395 = vsel %vm2361, %v6391, 0.0
    %6396 = vadd.xlane.f32.xlu0 %v6395
    %v6397 = vpop.xlane.xlu0 %6396
    %v6398 = vrcp.pop %v6394
    %v6399 = vrcp.pop %v6397
    %v6400 = vmul.f32 %v6389, %v6398
    %v6401 = vmul.f32 %v6391, %v6399
    %6402 = vrot.lane.b32.xlu0 %v6078, 108
    %v6403 = vpop.permute.xlu0 %6402
    %6404 = vrot.lane.b32.xlu0 %v6083, 108
    %v6405 = vpop.permute.xlu0 %6404
    %v6408 = vsel %vm2357, %v6400, 0
    %v6411 = vsel %vm2357, %v6401, 0
    %v6413 = vsel %vm1845, %v6405, 0
    %6415 = vmatprep.subr.mxu0 0.0
    %6416 = vmatpush1.msra.mxu0 %v6403
    %6417 = vmatprep.subr.mxu0 0.0
    %6418 = vmatpush1.msra.mxu0 %v6413
    %6419 = vmatprep.subr.mxu0 0.0
    %6420 = vmatpush1.msra.mxu0 0.0
    %6421 = vmatprep.subr.mxu0 0.0
    %6422 = vmatpush1.msra.mxu0 0.0
    %6423 = vmatprep.subr.mxu0 0.0
    %6424 = vmatpush1.msra.mxu0 0.0
    %6425 = vmatprep.subr.mxu0 0.0
    %6426 = vmatpush1.msra.mxu0 0.0
    %6427 = vmatprep.subr.mxu0 0.0
    %6428 = vmatpush1.msra.mxu0 0.0
    %6429 = vmatprep.subr.mxu0 0.0
    %6430 = vmatpush1.msra.mxu0 0.0
    %6431 = vmatprep.subr.mxu0 0.0
    %6432 = vmatpush1.msra.mxu0 0.0
    %6433 = vmatprep.subr.mxu0 0.0
    %6434 = vmatpush1.msra.mxu0 0.0
    %6435 = vmatprep.subr.mxu0 0.0
    %6436 = vmatpush1.msra.mxu0 0.0
    %6437 = vmatprep.subr.mxu0 0.0
    %6438 = vmatpush1.msra.mxu0 0.0
    %6439 = vmatprep.subr.mxu0 0.0
    %6440 = vmatpush1.msra.mxu0 0.0
    %6441 = vmatprep.subr.mxu0 0.0
    %6442 = vmatpush1.msra.mxu0 0.0
    %6443 = vmatprep.subr.mxu0 0.0
    %6444 = vmatpush1.msra.mxu0 0.0
    %6445 = vmatprep.subr.mxu0 0.0
    %6446 = vmatpush1.msra.mxu0 0.0
    %6447 = vmatprep.subr.mxu0 0.0
    %6448 = vmatpush1.msra.mxu0 0.0
    %6449 = vmatprep.subr.mxu0 0.0
    %6450 = vmatpush1.msra.mxu0 0.0
    %6451 = vmatprep.subr.mxu0 0.0
    %6452 = vmatpush1.msra.mxu0 0.0
    %6453 = vmatprep.subr.mxu0 0.0
    %6454 = vmatpush1.msra.mxu0 0.0
    %6455 = vmatprep.subr.mxu0 0.0
    %6456 = vmatpush1.msra.mxu0 0.0
    %6457 = vmatprep.subr.mxu0 0.0
    %6458 = vmatpush1.msra.mxu0 0.0
    %6459 = vmatprep.subr.mxu0 0.0
    %6460 = vmatpush1.msra.mxu0 0.0
    %6461 = vmatprep.subr.mxu0 0.0
    %6462 = vmatpush1.msra.mxu0 0.0
    %6463 = vmatprep.subr.mxu0 0.0
    %6464 = vmatpush1.msra.mxu0 0.0
    %6465 = vmatprep.subr.mxu0 0.0
    %6466 = vmatpush1.msra.mxu0 0.0
    %6467 = vmatprep.subr.mxu0 0.0
    %6468 = vmatpush1.msra.mxu0 0.0
    %6469 = vmatprep.subr.mxu0 0.0
    %6470 = vmatpush1.msra.mxu0 0.0
    %6471 = vmatprep.subr.mxu0 0.0
    %6472 = vmatpush1.msra.mxu0 0.0
    %6473 = vmatprep.subr.mxu0 0.0
    %6474 = vmatpush1.msra.mxu0 0.0
    %6475 = vmatprep.subr.mxu0 0.0
    %6476 = vmatpush1.msra.mxu0 0.0
    %6477 = vmatprep.subr.mxu0 0.0
    %6478 = vmatpush1.msra.mxu0 0.0
    %6479 = vmatprep.mubr.f32.mxu0 0.0
    %6480 = vmatmul.mubr.f32.gmra.mrb[0].mxu0 %v6408
    %v6481 = vpop.f32.mrb[0].mxu0
    %v6482 = vadd.f32 0.0, %v6481
    %v6483 = vpop.f32.mrb[0].mxu0
    %6484 = vmatprep.mubr.f32.mxu0 0.0
    %6485 = vmatmul.mubr.f32.gmra.mrb[0].mxu0 %v6411
    %v6486 = vpop.f32.mrb[0].mxu0
    %v6487 = vadd.f32 0.0, %v6486
    %v6488 = vpop.f32.mrb[0].mxu0
    %6489 = vdwg.mxu0
    %6492 = vrot.lane.b32.xlu0 %v6482, 4
    %v6493 = vpop.permute.xlu0 %6492
    %6494 = vrot.lane.b32.xlu0 %v6487, 4
    %v6495 = vpop.permute.xlu0 %6494
    %v6498 = vsel %vm2271, %v6279, %v6493
    %v6499 = vsel %vm2271, %v6284, %v6495
    %v6500 = vld [vmem:[%s37] sm:$0xff]
    %v6501 = vld [vmem:[%s39] sm:$0x1]
    %v6503 = vlaneseq
    %v6504 = vshrl.u32 %v6503, 7
    %v6505 = vsub.s32 0, %v6504
    %v6506 = vrot.slane %v6501, %v6505
    %v6509 = vsel %vm225, %v6498, 0
    %v6512 = vsel %vm225, %v6499, 0
    %6514 = vmatprep.subr.mxu0 0.0
    %6515 = vmatpush1.msra.mxu0 %v6500
    %6516 = vmatprep.subr.mxu0 0.0
    %6517 = vmatpush1.msra.mxu0 0.0
    %6518 = vmatprep.subr.mxu0 0.0
    %6519 = vmatpush1.msra.mxu0 0.0
    %6520 = vmatprep.subr.mxu0 0.0
    %6521 = vmatpush1.msra.mxu0 0.0
    %6522 = vmatprep.subr.mxu0 0.0
    %6523 = vmatpush1.msra.mxu0 0.0
    %6524 = vmatprep.subr.mxu0 0.0
    %6525 = vmatpush1.msra.mxu0 0.0
    %6526 = vmatprep.subr.mxu0 0.0
    %6527 = vmatpush1.msra.mxu0 0.0
    %6528 = vmatprep.subr.mxu0 0.0
    %6529 = vmatpush1.msra.mxu0 0.0
    %6530 = vmatprep.subr.mxu0 0.0
    %6531 = vmatpush1.msra.mxu0 0.0
    %6532 = vmatprep.subr.mxu0 0.0
    %6533 = vmatpush1.msra.mxu0 0.0
    %6534 = vmatprep.subr.mxu0 0.0
    %6535 = vmatpush1.msra.mxu0 0.0
    %6536 = vmatprep.subr.mxu0 0.0
    %6537 = vmatpush1.msra.mxu0 0.0
    %6538 = vmatprep.subr.mxu0 0.0
    %6539 = vmatpush1.msra.mxu0 0.0
    %6540 = vmatprep.subr.mxu0 0.0
    %6541 = vmatpush1.msra.mxu0 0.0
    %6542 = vmatprep.subr.mxu0 0.0
    %6543 = vmatpush1.msra.mxu0 0.0
    %6544 = vmatprep.subr.mxu0 0.0
    %6545 = vmatpush1.msra.mxu0 0.0
    %6546 = vmatprep.subr.mxu0 0.0
    %6547 = vmatpush1.msra.mxu0 0.0
    %6548 = vmatprep.subr.mxu0 0.0
    %6549 = vmatpush1.msra.mxu0 0.0
    %6550 = vmatprep.subr.mxu0 0.0
    %6551 = vmatpush1.msra.mxu0 0.0
    %6552 = vmatprep.subr.mxu0 0.0
    %6553 = vmatpush1.msra.mxu0 0.0
    %6554 = vmatprep.subr.mxu0 0.0
    %6555 = vmatpush1.msra.mxu0 0.0
    %6556 = vmatprep.subr.mxu0 0.0
    %6557 = vmatpush1.msra.mxu0 0.0
    %6558 = vmatprep.subr.mxu0 0.0
    %6559 = vmatpush1.msra.mxu0 0.0
    %6560 = vmatprep.subr.mxu0 0.0
    %6561 = vmatpush1.msra.mxu0 0.0
    %6562 = vmatprep.subr.mxu0 0.0
    %6563 = vmatpush1.msra.mxu0 0.0
    %6564 = vmatprep.subr.mxu0 0.0
    %6565 = vmatpush1.msra.mxu0 0.0
    %6566 = vmatprep.subr.mxu0 0.0
    %6567 = vmatpush1.msra.mxu0 0.0
    %6568 = vmatprep.subr.mxu0 0.0
    %6569 = vmatpush1.msra.mxu0 0.0
    %6570 = vmatprep.subr.mxu0 0.0
    %6571 = vmatpush1.msra.mxu0 0.0
    %6572 = vmatprep.subr.mxu0 0.0
    %6573 = vmatpush1.msra.mxu0 0.0
    %6574 = vmatprep.subr.mxu0 0.0
    %6575 = vmatpush1.msra.mxu0 0.0
    %6576 = vmatprep.subr.mxu0 0.0
    %6577 = vmatpush1.msra.mxu0 0.0
    %6578 = vmatprep.mubr.f32.mxu0 0.0
    %6579 = vmatmul.mubr.f32.gmra.mrb[0].mxu0 %v6509
    %v6580 = vpop.f32.mrb[0].mxu0
    %v6581 = vadd.f32 %v6506, %v6580
    %v6582 = vpop.f32.mrb[0].mxu0
    %6583 = vmatprep.mubr.f32.mxu0 0.0
    %6584 = vmatmul.mubr.f32.gmra.mrb[0].mxu0 %v6512
    %v6585 = vpop.f32.mrb[0].mxu0
    %v6586 = vadd.f32 %v6506, %v6585
    %v6587 = vpop.f32.mrb[0].mxu0
    %6588 = vdwg.mxu0
    %v6589 = vadd.f32 %v5958, %v6581
    %v6590 = vadd.f32 %v5959, %v6586
    %v6591 = vld [vmem:[%s41] sm:$0x1]
    %v6592 = vld [vmem:[%s43] sm:$0x1]
    %v6593 = vsel %vm225, %v6589, 0.0
    %6594 = vadd.xlane.f32.xlu0 %v6593
    %v6595 = vpop.xlane.xlu0 %6594
    %v6596 = vsel %vm2142, %v6590, 0.0
    %6597 = vadd.xlane.f32.xlu0 %v6596
    %v6598 = vpop.xlane.xlu0 %6597
    %v6599 = vmul.f32 %v6595, %v2146
    %v6600 = vmul.f32 %v6598, %v2146
    %v6601 = vsub.f32 %v6589, %v6599
    %v6602 = vsub.f32 %v6590, %v6600
    %v6603 = vmul.f32 %v6601, %v6601
    %v6604 = vmul.f32 %v6602, %v6602
    %v6605 = vsel %vm225, %v6603, 0.0
    %6606 = vadd.xlane.f32.xlu0 %v6605
    %v6607 = vpop.xlane.xlu0 %6606
    %v6608 = vsel %vm2142, %v6604, 0.0
    %6609 = vadd.xlane.f32.xlu0 %v6608
    %v6610 = vpop.xlane.xlu0 %6609
    %v6611 = vmul.f32 %v6607, %v2146
    %v6612 = vmul.f32 %v6610, %v2146
    %v6613 = vadd.f32 %v6611, 1e-05
    %v6614 = vadd.f32 %v6612, 1e-05
    %v6615 = vrsqrt.pop %v6613
    %v6616 = vrsqrt.pop %v6614
    %v6617 = vmul.f32 %v6601, %v6615
    %v6618 = vmul.f32 %v6602, %v6616
    %v6620 = vlaneseq
    %v6621 = vshrl.u32 %v6620, 7
    %v6622 = vsub.s32 0, %v6621
    %v6623 = vrot.slane %v6591, %v6622
    %v6625 = vmul.f32 %v6617, %v6623
    %v6626 = vmul.f32 %v6618, %v6623
    %v6628 = vlaneseq
    %v6629 = vshrl.u32 %v6628, 7
    %v6630 = vsub.s32 0, %v6629
    %v6631 = vrot.slane %v6592, %v6630
    %v6633 = vadd.f32 %v6625, %v6631
    %v6634 = vadd.f32 %v6626, %v6631
    %v6635 = vld [vmem:[%s45] sm:$0xff]
    %v6636 = vld [vmem:[%s47] sm:$0x1]
    %v6638 = vlaneseq
    %v6639 = vshrl.u32 %v6638, 7
    %v6640 = vsub.s32 0, %v6639
    %v6641 = vrot.slane %v6636, %v6640
    %v6644 = vsel %vm225, %v6633, 0
    %v6647 = vsel %vm225, %v6634, 0
    %6649 = vmatprep.subr.mxu0 0.0
    %6650 = vmatpush1.msra.mxu0 %v6635
    %6651 = vmatprep.subr.mxu0 0.0
    %6652 = vmatpush1.msra.mxu0 0.0
    %6653 = vmatprep.subr.mxu0 0.0
    %6654 = vmatpush1.msra.mxu0 0.0
    %6655 = vmatprep.subr.mxu0 0.0
    %6656 = vmatpush1.msra.mxu0 0.0
    %6657 = vmatprep.subr.mxu0 0.0
    %6658 = vmatpush1.msra.mxu0 0.0
    %6659 = vmatprep.subr.mxu0 0.0
    %6660 = vmatpush1.msra.mxu0 0.0
    %6661 = vmatprep.subr.mxu0 0.0
    %6662 = vmatpush1.msra.mxu0 0.0
    %6663 = vmatprep.subr.mxu0 0.0
    %6664 = vmatpush1.msra.mxu0 0.0
    %6665 = vmatprep.subr.mxu0 0.0
    %6666 = vmatpush1.msra.mxu0 0.0
    %6667 = vmatprep.subr.mxu0 0.0
    %6668 = vmatpush1.msra.mxu0 0.0
    %6669 = vmatprep.subr.mxu0 0.0
    %6670 = vmatpush1.msra.mxu0 0.0
    %6671 = vmatprep.subr.mxu0 0.0
    %6672 = vmatpush1.msra.mxu0 0.0
    %6673 = vmatprep.subr.mxu0 0.0
    %6674 = vmatpush1.msra.mxu0 0.0
    %6675 = vmatprep.subr.mxu0 0.0
    %6676 = vmatpush1.msra.mxu0 0.0
    %6677 = vmatprep.subr.mxu0 0.0
    %6678 = vmatpush1.msra.mxu0 0.0
    %6679 = vmatprep.subr.mxu0 0.0
    %6680 = vmatpush1.msra.mxu0 0.0
    %6681 = vmatprep.subr.mxu0 0.0
    %6682 = vmatpush1.msra.mxu0 0.0
    %6683 = vmatprep.subr.mxu0 0.0
    %6684 = vmatpush1.msra.mxu0 0.0
    %6685 = vmatprep.subr.mxu0 0.0
    %6686 = vmatpush1.msra.mxu0 0.0
    %6687 = vmatprep.subr.mxu0 0.0
    %6688 = vmatpush1.msra.mxu0 0.0
    %6689 = vmatprep.subr.mxu0 0.0
    %6690 = vmatpush1.msra.mxu0 0.0
    %6691 = vmatprep.subr.mxu0 0.0
    %6692 = vmatpush1.msra.mxu0 0.0
    %6693 = vmatprep.subr.mxu0 0.0
    %6694 = vmatpush1.msra.mxu0 0.0
    %6695 = vmatprep.subr.mxu0 0.0
    %6696 = vmatpush1.msra.mxu0 0.0
    %6697 = vmatprep.subr.mxu0 0.0
    %6698 = vmatpush1.msra.mxu0 0.0
    %6699 = vmatprep.subr.mxu0 0.0
    %6700 = vmatpush1.msra.mxu0 0.0
    %6701 = vmatprep.subr.mxu0 0.0
    %6702 = vmatpush1.msra.mxu0 0.0
    %6703 = vmatprep.subr.mxu0 0.0
    %6704 = vmatpush1.msra.mxu0 0.0
    %6705 = vmatprep.subr.mxu0 0.0
    %6706 = vmatpush1.msra.mxu0 0.0
    %6707 = vmatprep.subr.mxu0 0.0
    %6708 = vmatpush1.msra.mxu0 0.0
    %6709 = vmatprep.subr.mxu0 0.0
    %6710 = vmatpush1.msra.mxu0 0.0
    %6711 = vmatprep.subr.mxu0 0.0
    %6712 = vmatpush1.msra.mxu0 0.0
    %6713 = vmatprep.mubr.f32.mxu0 0.0
    %6714 = vmatmul.mubr.f32.gmra.mrb[0].mxu0 %v6644
    %v6715 = vpop.f32.mrb[0].mxu0
    %v6716 = vadd.f32 %v6641, %v6715
    %v6717 = vpop.f32.mrb[0].mxu0
    %6718 = vmatprep.mubr.f32.mxu0 0.0
    %6719 = vmatmul.mubr.f32.gmra.mrb[0].mxu0 %v6647
    %v6720 = vpop.f32.mrb[0].mxu0
    %v6721 = vadd.f32 %v6641, %v6720
    %v6722 = vpop.f32.mrb[0].mxu0
    %6723 = vdwg.mxu0
    %v6724 = vmul.f32 %v6716, 0.5
    %v6725 = vmul.f32 %v6721, 0.5
    %v6726 = vmul.f32 %v6716, 0.70710677
    %v6727 = vmul.f32 %v6721, 0.70710677
    %v6728 = verf.f32.pop %v6726
    %v6729 = verf.f32.pop %v6727
    %v6730 = vadd.f32 %v6728, 1.0
    %v6731 = vadd.f32 %v6729, 1.0
    %v6732 = vmul.f32 %v6724, %v6730
    %v6733 = vmul.f32 %v6725, %v6731
    %v6734 = vld [vmem:[%s49] sm:$0xff]
    %v6735 = vld [vmem:[%s49 + $0x8] sm:$0xff]
    %v6736 = vld [vmem:[%s51] sm:$0x1]
    %v6738 = vlaneseq
    %v6739 = vshrl.u32 %v6738, 7
    %v6740 = vsub.s32 0, %v6739
    %v6741 = vrot.slane %v6736, %v6740
    %v6744 = vsel %vm1744, %v6732, 0
    %v6747 = vsel %vm1744, %v6733, 0
    %6749 = vmatprep.subr.mxu0 0.0
    %6750 = vmatpush1.msra.mxu0 %v6734
    %6751 = vmatprep.subr.mxu0 0.0
    %6752 = vmatpush1.msra.mxu0 %v6735
    %6753 = vmatprep.subr.mxu0 0.0
    %6754 = vmatpush1.msra.mxu0 0.0
    %6755 = vmatprep.subr.mxu0 0.0
    %6756 = vmatpush1.msra.mxu0 0.0
    %6757 = vmatprep.subr.mxu0 0.0
    %6758 = vmatpush1.msra.mxu0 0.0
    %6759 = vmatprep.subr.mxu0 0.0
    %6760 = vmatpush1.msra.mxu0 0.0
    %6761 = vmatprep.subr.mxu0 0.0
    %6762 = vmatpush1.msra.mxu0 0.0
    %6763 = vmatprep.subr.mxu0 0.0
    %6764 = vmatpush1.msra.mxu0 0.0
    %6765 = vmatprep.subr.mxu0 0.0
    %6766 = vmatpush1.msra.mxu0 0.0
    %6767 = vmatprep.subr.mxu0 0.0
    %6768 = vmatpush1.msra.mxu0 0.0
    %6769 = vmatprep.subr.mxu0 0.0
    %6770 = vmatpush1.msra.mxu0 0.0
    %6771 = vmatprep.subr.mxu0 0.0
    %6772 = vmatpush1.msra.mxu0 0.0
    %6773 = vmatprep.subr.mxu0 0.0
    %6774 = vmatpush1.msra.mxu0 0.0
    %6775 = vmatprep.subr.mxu0 0.0
    %6776 = vmatpush1.msra.mxu0 0.0
    %6777 = vmatprep.subr.mxu0 0.0
    %6778 = vmatpush1.msra.mxu0 0.0
    %6779 = vmatprep.subr.mxu0 0.0
    %6780 = vmatpush1.msra.mxu0 0.0
    %6781 = vmatprep.subr.mxu0 0.0
    %6782 = vmatpush1.msra.mxu0 0.0
    %6783 = vmatprep.subr.mxu0 0.0
    %6784 = vmatpush1.msra.mxu0 0.0
    %6785 = vmatprep.subr.mxu0 0.0
    %6786 = vmatpush1.msra.mxu0 0.0
    %6787 = vmatprep.subr.mxu0 0.0
    %6788 = vmatpush1.msra.mxu0 0.0
    %6789 = vmatprep.subr.mxu0 0.0
    %6790 = vmatpush1.msra.mxu0 0.0
    %6791 = vmatprep.subr.mxu0 0.0
    %6792 = vmatpush1.msra.mxu0 0.0
    %6793 = vmatprep.subr.mxu0 0.0
    %6794 = vmatpush1.msra.mxu0 0.0
    %6795 = vmatprep.subr.mxu0 0.0
    %6796 = vmatpush1.msra.mxu0 0.0
    %6797 = vmatprep.subr.mxu0 0.0
    %6798 = vmatpush1.msra.mxu0 0.0
    %6799 = vmatprep.subr.mxu0 0.0
    %6800 = vmatpush1.msra.mxu0 0.0
    %6801 = vmatprep.subr.mxu0 0.0
    %6802 = vmatpush1.msra.mxu0 0.0
    %6803 = vmatprep.subr.mxu0 0.0
    %6804 = vmatpush1.msra.mxu0 0.0
    %6805 = vmatprep.subr.mxu0 0.0
    %6806 = vmatpush1.msra.mxu0 0.0
    %6807 = vmatprep.subr.mxu0 0.0
    %6808 = vmatpush1.msra.mxu0 0.0
    %6809 = vmatprep.subr.mxu0 0.0
    %6810 = vmatpush1.msra.mxu0 0.0
    %6811 = vmatprep.subr.mxu0 0.0
    %6812 = vmatpush1.msra.mxu0 0.0
    %6813 = vmatprep.mubr.f32.mxu0 0.0
    %6814 = vmatmul.mubr.f32.gmra.mrb[0].mxu0 %v6744
    %v6815 = vpop.f32.mrb[0].mxu0
    %v6816 = vadd.f32 %v6741, %v6815
    %v6817 = vpop.f32.mrb[0].mxu0
    %6818 = vmatprep.mubr.f32.mxu0 0.0
    %6819 = vmatmul.mubr.f32.gmra.mrb[0].mxu0 %v6747
    %v6820 = vpop.f32.mrb[0].mxu0
    %v6821 = vadd.f32 %v6741, %v6820
    %v6822 = vpop.f32.mrb[0].mxu0
    %6823 = vdwg.mxu0
    %v6824 = vadd.f32 %v6589, %v6816
    %v6825 = vadd.f32 %v6590, %v6821
    %v6826 = vld [vmem:[%s3008] sm:$0x1]
    %v6827 = vld [vmem:[%s3010] sm:$0x1]
    %v6828 = vsel %vm225, %v6824, 0.0
    %6829 = vadd.xlane.f32.xlu0 %v6828
    %v6830 = vpop.xlane.xlu0 %6829
    %v6831 = vsel %vm2142, %v6825, 0.0
    %6832 = vadd.xlane.f32.xlu0 %v6831
    %v6833 = vpop.xlane.xlu0 %6832
    %v6834 = vmul.f32 %v6830, %v2146
    %v6835 = vmul.f32 %v6833, %v2146
    %v6836 = vsub.f32 %v6824, %v6834
    %v6837 = vsub.f32 %v6825, %v6835
    %v6838 = vmul.f32 %v6836, %v6836
    %v6839 = vmul.f32 %v6837, %v6837
    %v6840 = vsel %vm225, %v6838, 0.0
    %6841 = vadd.xlane.f32.xlu0 %v6840
    %v6842 = vpop.xlane.xlu0 %6841
    %v6843 = vsel %vm2142, %v6839, 0.0
    %6844 = vadd.xlane.f32.xlu0 %v6843
    %v6845 = vpop.xlane.xlu0 %6844
    %v6846 = vmul.f32 %v6842, %v2146
    %v6847 = vmul.f32 %v6845, %v2146
    %v6848 = vadd.f32 %v6846, 1e-05
    %v6849 = vadd.f32 %v6847, 1e-05
    %v6850 = vrsqrt.pop %v6848
    %v6851 = vrsqrt.pop %v6849
    %v6852 = vmul.f32 %v6836, %v6850
    %v6853 = vmul.f32 %v6837, %v6851
    %v6855 = vlaneseq
    %v6856 = vshrl.u32 %v6855, 7
    %v6857 = vsub.s32 0, %v6856
    %v6858 = vrot.slane %v6826, %v6857
    %v6860 = vmul.f32 %v6852, %v6858
    %v6861 = vmul.f32 %v6853, %v6858
    %v6863 = vlaneseq
    %v6864 = vshrl.u32 %v6863, 7
    %v6865 = vsub.s32 0, %v6864
    %v6866 = vrot.slane %v6827, %v6865
    %v6868 = vadd.f32 %v6860, %v6866
    %v6869 = vadd.f32 %v6861, %v6866
    %v6870 = vld [vmem:[%s3054] sm:$0xff]
    %v6872 = vsel %vm225, %v6868, 0
    %v6875 = vsel %vm225, %v6869, 0
    %6877 = vmatprep.subr.mxu0 0.0
    %6878 = vmatpush1.msra.mxu0 %v6870
    %6879 = vmatprep.subr.mxu0 0.0
    %6880 = vmatpush1.msra.mxu0 0.0
    %6881 = vmatprep.subr.mxu0 0.0
    %6882 = vmatpush1.msra.mxu0 0.0
    %6883 = vmatprep.subr.mxu0 0.0
    %6884 = vmatpush1.msra.mxu0 0.0
    %6885 = vmatprep.subr.mxu0 0.0
    %6886 = vmatpush1.msra.mxu0 0.0
    %6887 = vmatprep.subr.mxu0 0.0
    %6888 = vmatpush1.msra.mxu0 0.0
    %6889 = vmatprep.subr.mxu0 0.0
    %6890 = vmatpush1.msra.mxu0 0.0
    %6891 = vmatprep.subr.mxu0 0.0
    %6892 = vmatpush1.msra.mxu0 0.0
    %6893 = vmatprep.subr.mxu0 0.0
    %6894 = vmatpush1.msra.mxu0 0.0
    %6895 = vmatprep.subr.mxu0 0.0
    %6896 = vmatpush1.msra.mxu0 0.0
    %6897 = vmatprep.subr.mxu0 0.0
    %6898 = vmatpush1.msra.mxu0 0.0
    %6899 = vmatprep.subr.mxu0 0.0
    %6900 = vmatpush1.msra.mxu0 0.0
    %6901 = vmatprep.subr.mxu0 0.0
    %6902 = vmatpush1.msra.mxu0 0.0
    %6903 = vmatprep.subr.mxu0 0.0
    %6904 = vmatpush1.msra.mxu0 0.0
    %6905 = vmatprep.subr.mxu0 0.0
    %6906 = vmatpush1.msra.mxu0 0.0
    %6907 = vmatprep.subr.mxu0 0.0
    %6908 = vmatpush1.msra.mxu0 0.0
    %6909 = vmatprep.subr.mxu0 0.0
    %6910 = vmatpush1.msra.mxu0 0.0
    %6911 = vmatprep.subr.mxu0 0.0
    %6912 = vmatpush1.msra.mxu0 0.0
    %6913 = vmatprep.subr.mxu0 0.0
    %6914 = vmatpush1.msra.mxu0 0.0
    %6915 = vmatprep.subr.mxu0 0.0
    %6916 = vmatpush1.msra.mxu0 0.0
    %6917 = vmatprep.subr.mxu0 0.0
    %6918 = vmatpush1.msra.mxu0 0.0
    %6919 = vmatprep.subr.mxu0 0.0
    %6920 = vmatpush1.msra.mxu0 0.0
    %6921 = vmatprep.subr.mxu0 0.0
    %6922 = vmatpush1.msra.mxu0 0.0
    %6923 = vmatprep.subr.mxu0 0.0
    %6924 = vmatpush1.msra.mxu0 0.0
    %6925 = vmatprep.subr.mxu0 0.0
    %6926 = vmatpush1.msra.mxu0 0.0
    %6927 = vmatprep.subr.mxu0 0.0
    %6928 = vmatpush1.msra.mxu0 0.0
    %6929 = vmatprep.subr.mxu0 0.0
    %6930 = vmatpush1.msra.mxu0 0.0
    %6931 = vmatprep.subr.mxu0 0.0
    %6932 = vmatpush1.msra.mxu0 0.0
    %6933 = vmatprep.subr.mxu0 0.0
    %6934 = vmatpush1.msra.mxu0 0.0
    %6935 = vmatprep.subr.mxu0 0.0
    %6936 = vmatpush1.msra.mxu0 0.0
    %6937 = vmatprep.subr.mxu0 0.0
    %6938 = vmatpush1.msra.mxu0 0.0
    %6939 = vmatprep.subr.mxu0 0.0
    %6940 = vmatpush1.msra.mxu0 0.0
    %6941 = vmatprep.mubr.f32.mxu0 0.0
    %6942 = vmatmul.mubr.f32.gmra.mrb[0].mxu0 %v6872
    %v6943 = vpop.f32.mrb[0].mxu0
    %v6944 = vadd.f32 0.0, %v6943
    %v6945 = vpop.f32.mrb[0].mxu0
    %6946 = vmatprep.mubr.f32.mxu0 0.0
    %6947 = vmatmul.mubr.f32.gmra.mrb[0].mxu0 %v6875
    %v6948 = vpop.f32.mrb[0].mxu0
    %v6949 = vadd.f32 0.0, %v6948
    %v6950 = vpop.f32.mrb[0].mxu0
    %6951 = vdwg.mxu0
    %6954 = vrot.lane.b32.xlu0 %v6944, 120
    %v6955 = vpop.permute.xlu0 %6954
    %6956 = vrot.lane.b32.xlu0 %v6949, 120
    %v6957 = vpop.permute.xlu0 %6956
    %v6958 = vsel %vm2271, %v6944, 0
    %v6960 = vsel %vm2271, %v6949, 0
    %v6962 = vsel %vm2271, %v6955, 0
    %v6964 = vsel %vm2271, %v6957, 0
    %6966 = vmatprep.subr.mxu0 0.0
    %6967 = vmatpush1.xpose.msra.mxu0 %v6962
    %6968 = vmatprep.subr.mxu0 0.0
    %6969 = vmatpush1.xpose.msra.mxu0 %v6964
    %6970 = vmatprep.subr.mxu0 0.0
    %6971 = vmatpush1.xpose.msra.mxu0 0.0
    %6972 = vmatprep.subr.mxu0 0.0
    %6973 = vmatpush1.xpose.msra.mxu0 0.0
    %6974 = vmatprep.subr.mxu0 0.0
    %6975 = vmatpush1.xpose.msra.mxu0 0.0
    %6976 = vmatprep.subr.mxu0 0.0
    %6977 = vmatpush1.xpose.msra.mxu0 0.0
    %6978 = vmatprep.subr.mxu0 0.0
    %6979 = vmatpush1.xpose.msra.mxu0 0.0
    %6980 = vmatprep.subr.mxu0 0.0
    %6981 = vmatpush1.xpose.msra.mxu0 0.0
    %6982 = vmatprep.subr.mxu0 0.0
    %6983 = vmatpush1.xpose.msra.mxu0 0.0
    %6984 = vmatprep.subr.mxu0 0.0
    %6985 = vmatpush1.xpose.msra.mxu0 0.0
    %6986 = vmatprep.subr.mxu0 0.0
    %6987 = vmatpush1.xpose.msra.mxu0 0.0
    %6988 = vmatprep.subr.mxu0 0.0
    %6989 = vmatpush1.xpose.msra.mxu0 0.0
    %6990 = vmatprep.subr.mxu0 0.0
    %6991 = vmatpush1.xpose.msra.mxu0 0.0
    %6992 = vmatprep.subr.mxu0 0.0
    %6993 = vmatpush1.xpose.msra.mxu0 0.0
    %6994 = vmatprep.subr.mxu0 0.0
    %6995 = vmatpush1.xpose.msra.mxu0 0.0
    %6996 = vmatprep.subr.mxu0 0.0
    %6997 = vmatpush1.xpose.msra.mxu0 0.0
    %6998 = vmatprep.subr.mxu0 0.0
    %6999 = vmatpush1.xpose.msra.mxu0 0.0
    %7000 = vmatprep.subr.mxu0 0.0
    %7001 = vmatpush1.xpose.msra.mxu0 0.0
    %7002 = vmatprep.subr.mxu0 0.0
    %7003 = vmatpush1.xpose.msra.mxu0 0.0
    %7004 = vmatprep.subr.mxu0 0.0
    %7005 = vmatpush1.xpose.msra.mxu0 0.0
    %7006 = vmatprep.subr.mxu0 0.0
    %7007 = vmatpush1.xpose.msra.mxu0 0.0
    %7008 = vmatprep.subr.mxu0 0.0
    %7009 = vmatpush1.xpose.msra.mxu0 0.0
    %7010 = vmatprep.subr.mxu0 0.0
    %7011 = vmatpush1.xpose.msra.mxu0 0.0
    %7012 = vmatprep.subr.mxu0 0.0
    %7013 = vmatpush1.xpose.msra.mxu0 0.0
    %7014 = vmatprep.subr.mxu0 0.0
    %7015 = vmatpush1.xpose.msra.mxu0 0.0
    %7016 = vmatprep.subr.mxu0 0.0
    %7017 = vmatpush1.xpose.msra.mxu0 0.0
    %7018 = vmatprep.subr.mxu0 0.0
    %7019 = vmatpush1.xpose.msra.mxu0 0.0
    %7020 = vmatprep.subr.mxu0 0.0
    %7021 = vmatpush1.xpose.msra.mxu0 0.0
    %7022 = vmatprep.subr.mxu0 0.0
    %7023 = vmatpush1.xpose.msra.mxu0 0.0
    %7024 = vmatprep.subr.mxu0 0.0
    %7025 = vmatpush1.xpose.msra.mxu0 0.0
    %7026 = vmatprep.subr.mxu0 0.0
    %7027 = vmatpush1.xpose.msra.mxu0 0.0
    %7028 = vmatprep.subr.mxu0 0.0
    %7029 = vmatpush1.xpose.msra.mxu0 0.0
    %7030 = vmatprep.mubr.f32.mxu0 0.0
    %7031 = vmatmul.mubr.f32.gmra.mrb[0].mxu0 %v6958
    %v7032 = vpop.f32.mrb[0].mxu0
    %v7033 = vadd.f32 0.0, %v7032
    %v7034 = vpop.f32.mrb[0].mxu0
    %7035 = vmatprep.mubr.f32.mxu0 0.0
    %7036 = vmatmul.mubr.f32.gmra.mrb[0].mxu0 %v6960
    %v7037 = vpop.f32.mrb[0].mxu0
    %v7038 = vadd.f32 0.0, %v7037
    %v7039 = vpop.f32.mrb[0].mxu0
    %7040 = vdwg.mxu0
    %v7041 = vmul.f32 %v7033, 0.5
    %v7042 = vmul.f32 %v7038, 0.5
    %v7043 = vsel %vm2357, %v7041, -inf
    %7044 = vmax.xlane.f32.xlu0 %v7043
    %v7045 = vpop.xlane.xlu0 %7044
    %v7046 = vsel %vm2361, %v7042, -inf
    %7047 = vmax.xlane.f32.xlu0 %v7046
    %v7048 = vpop.xlane.xlu0 %7047
    %v7049 = vsub.f32 %v7041, %v7045
    %v7050 = vsub.f32 %v7042, %v7048
    %v7051 = vmul.f32 %v7049, 1.442695
    %v7052 = vpow.pop %v7051
    %v7053 = vmul.f32 %v7050, 1.442695
    %v7054 = vpow.pop %v7053
    %v7055 = vsel %vm2357, %v7052, 0.0
    %7056 = vadd.xlane.f32.xlu0 %v7055
    %v7057 = vpop.xlane.xlu0 %7056
    %v7058 = vsel %vm2361, %v7054, 0.0
    %7059 = vadd.xlane.f32.xlu0 %v7058
    %v7060 = vpop.xlane.xlu0 %7059
    %v7061 = vrcp.pop %v7057
    %v7062 = vrcp.pop %v7060
    %v7063 = vmul.f32 %v7052, %v7061
    %v7064 = vmul.f32 %v7054, %v7062
    %7065 = vrot.lane.b32.xlu0 %v6944, 112
    %v7066 = vpop.permute.xlu0 %7065
    %7067 = vrot.lane.b32.xlu0 %v6949, 112
    %v7068 = vpop.permute.xlu0 %7067
    %v7071 = vsel %vm2357, %v7063, 0
    %v7074 = vsel %vm2357, %v7064, 0
    %v7076 = vsel %vm1845, %v7068, 0
    %7078 = vmatprep.subr.mxu0 0.0
    %7079 = vmatpush1.msra.mxu0 %v7066
    %7080 = vmatprep.subr.mxu0 0.0
    %7081 = vmatpush1.msra.mxu0 %v7076
    %7082 = vmatprep.subr.mxu0 0.0
    %7083 = vmatpush1.msra.mxu0 0.0
    %7084 = vmatprep.subr.mxu0 0.0
    %7085 = vmatpush1.msra.mxu0 0.0
    %7086 = vmatprep.subr.mxu0 0.0
    %7087 = vmatpush1.msra.mxu0 0.0
    %7088 = vmatprep.subr.mxu0 0.0
    %7089 = vmatpush1.msra.mxu0 0.0
    %7090 = vmatprep.subr.mxu0 0.0
    %7091 = vmatpush1.msra.mxu0 0.0
    %7092 = vmatprep.subr.mxu0 0.0
    %7093 = vmatpush1.msra.mxu0 0.0
    %7094 = vmatprep.subr.mxu0 0.0
    %7095 = vmatpush1.msra.mxu0 0.0
    %7096 = vmatprep.subr.mxu0 0.0
    %7097 = vmatpush1.msra.mxu0 0.0
    %7098 = vmatprep.subr.mxu0 0.0
    %7099 = vmatpush1.msra.mxu0 0.0
    %7100 = vmatprep.subr.mxu0 0.0
    %7101 = vmatpush1.msra.mxu0 0.0
    %7102 = vmatprep.subr.mxu0 0.0
    %7103 = vmatpush1.msra.mxu0 0.0
    %7104 = vmatprep.subr.mxu0 0.0
    %7105 = vmatpush1.msra.mxu0 0.0
    %7106 = vmatprep.subr.mxu0 0.0
    %7107 = vmatpush1.msra.mxu0 0.0
    %7108 = vmatprep.subr.mxu0 0.0
    %7109 = vmatpush1.msra.mxu0 0.0
    %7110 = vmatprep.subr.mxu0 0.0
    %7111 = vmatpush1.msra.mxu0 0.0
    %7112 = vmatprep.subr.mxu0 0.0
    %7113 = vmatpush1.msra.mxu0 0.0
    %7114 = vmatprep.subr.mxu0 0.0
    %7115 = vmatpush1.msra.mxu0 0.0
    %7116 = vmatprep.subr.mxu0 0.0
    %7117 = vmatpush1.msra.mxu0 0.0
    %7118 = vmatprep.subr.mxu0 0.0
    %7119 = vmatpush1.msra.mxu0 0.0
    %7120 = vmatprep.subr.mxu0 0.0
    %7121 = vmatpush1.msra.mxu0 0.0
    %7122 = vmatprep.subr.mxu0 0.0
    %7123 = vmatpush1.msra.mxu0 0.0
    %7124 = vmatprep.subr.mxu0 0.0
    %7125 = vmatpush1.msra.mxu0 0.0
    %7126 = vmatprep.subr.mxu0 0.0
    %7127 = vmatpush1.msra.mxu0 0.0
    %7128 = vmatprep.subr.mxu0 0.0
    %7129 = vmatpush1.msra.mxu0 0.0
    %7130 = vmatprep.subr.mxu0 0.0
    %7131 = vmatpush1.msra.mxu0 0.0
    %7132 = vmatprep.subr.mxu0 0.0
    %7133 = vmatpush1.msra.mxu0 0.0
    %7134 = vmatprep.subr.mxu0 0.0
    %7135 = vmatpush1.msra.mxu0 0.0
    %7136 = vmatprep.subr.mxu0 0.0
    %7137 = vmatpush1.msra.mxu0 0.0
    %7138 = vmatprep.subr.mxu0 0.0
    %7139 = vmatpush1.msra.mxu0 0.0
    %7140 = vmatprep.subr.mxu0 0.0
    %7141 = vmatpush1.msra.mxu0 0.0
    %7142 = vmatprep.mubr.f32.mxu0 0.0
    %7143 = vmatmul.mubr.f32.gmra.mrb[0].mxu0 %v7071
    %v7144 = vpop.f32.mrb[0].mxu0
    %v7145 = vadd.f32 0.0, %v7144
    %v7146 = vpop.f32.mrb[0].mxu0
    %7147 = vmatprep.mubr.f32.mxu0 0.0
    %7148 = vmatmul.mubr.f32.gmra.mrb[0].mxu0 %v7074
    %v7149 = vpop.f32.mrb[0].mxu0
    %v7150 = vadd.f32 0.0, %v7149
    %v7151 = vpop.f32.mrb[0].mxu0
    %7152 = vdwg.mxu0
    %7153 = vrot.lane.b32.xlu0 %v6944, 124
    %v7154 = vpop.permute.xlu0 %7153
    %7155 = vrot.lane.b32.xlu0 %v6949, 124
    %v7156 = vpop.permute.xlu0 %7155
    %7157 = vrot.lane.b32.xlu0 %v6944, 116
    %v7158 = vpop.permute.xlu0 %7157
    %7159 = vrot.lane.b32.xlu0 %v6949, 116
    %v7160 = vpop.permute.xlu0 %7159
    %v7161 = vsel %vm2271, %v7154, 0
    %v7163 = vsel %vm2271, %v7156, 0
    %v7165 = vsel %vm2271, %v7158, 0
    %v7167 = vsel %vm2271, %v7160, 0
    %7169 = vmatprep.subr.mxu0 0.0
    %7170 = vmatpush1.xpose.msra.mxu0 %v7165
    %7171 = vmatprep.subr.mxu0 0.0
    %7172 = vmatpush1.xpose.msra.mxu0 %v7167
    %7173 = vmatprep.subr.mxu0 0.0
    %7174 = vmatpush1.xpose.msra.mxu0 0.0
    %7175 = vmatprep.subr.mxu0 0.0
    %7176 = vmatpush1.xpose.msra.mxu0 0.0
    %7177 = vmatprep.subr.mxu0 0.0
    %7178 = vmatpush1.xpose.msra.mxu0 0.0
    %7179 = vmatprep.subr.mxu0 0.0
    %7180 = vmatpush1.xpose.msra.mxu0 0.0
    %7181 = vmatprep.subr.mxu0 0.0
    %7182 = vmatpush1.xpose.msra.mxu0 0.0
    %7183 = vmatprep.subr.mxu0 0.0
    %7184 = vmatpush1.xpose.msra.mxu0 0.0
    %7185 = vmatprep.subr.mxu0 0.0
    %7186 = vmatpush1.xpose.msra.mxu0 0.0
    %7187 = vmatprep.subr.mxu0 0.0
    %7188 = vmatpush1.xpose.msra.mxu0 0.0
    %7189 = vmatprep.subr.mxu0 0.0
    %7190 = vmatpush1.xpose.msra.mxu0 0.0
    %7191 = vmatprep.subr.mxu0 0.0
    %7192 = vmatpush1.xpose.msra.mxu0 0.0
    %7193 = vmatprep.subr.mxu0 0.0
    %7194 = vmatpush1.xpose.msra.mxu0 0.0
    %7195 = vmatprep.subr.mxu0 0.0
    %7196 = vmatpush1.xpose.msra.mxu0 0.0
    %7197 = vmatprep.subr.mxu0 0.0
    %7198 = vmatpush1.xpose.msra.mxu0 0.0
    %7199 = vmatprep.subr.mxu0 0.0
    %7200 = vmatpush1.xpose.msra.mxu0 0.0
    %7201 = vmatprep.subr.mxu0 0.0
    %7202 = vmatpush1.xpose.msra.mxu0 0.0
    %7203 = vmatprep.subr.mxu0 0.0
    %7204 = vmatpush1.xpose.msra.mxu0 0.0
    %7205 = vmatprep.subr.mxu0 0.0
    %7206 = vmatpush1.xpose.msra.mxu0 0.0
    %7207 = vmatprep.subr.mxu0 0.0
    %7208 = vmatpush1.xpose.msra.mxu0 0.0
    %7209 = vmatprep.subr.mxu0 0.0
    %7210 = vmatpush1.xpose.msra.mxu0 0.0
    %7211 = vmatprep.subr.mxu0 0.0
    %7212 = vmatpush1.xpose.msra.mxu0 0.0
    %7213 = vmatprep.subr.mxu0 0.0
    %7214 = vmatpush1.xpose.msra.mxu0 0.0
    %7215 = vmatprep.subr.mxu0 0.0
    %7216 = vmatpush1.xpose.msra.mxu0 0.0
    %7217 = vmatprep.subr.mxu0 0.0
    %7218 = vmatpush1.xpose.msra.mxu0 0.0
    %7219 = vmatprep.subr.mxu0 0.0
    %7220 = vmatpush1.xpose.msra.mxu0 0.0
    %7221 = vmatprep.subr.mxu0 0.0
    %7222 = vmatpush1.xpose.msra.mxu0 0.0
    %7223 = vmatprep.subr.mxu0 0.0
    %7224 = vmatpush1.xpose.msra.mxu0 0.0
    %7225 = vmatprep.subr.mxu0 0.0
    %7226 = vmatpush1.xpose.msra.mxu0 0.0
    %7227 = vmatprep.subr.mxu0 0.0
    %7228 = vmatpush1.xpose.msra.mxu0 0.0
    %7229 = vmatprep.subr.mxu0 0.0
    %7230 = vmatpush1.xpose.msra.mxu0 0.0
    %7231 = vmatprep.subr.mxu0 0.0
    %7232 = vmatpush1.xpose.msra.mxu0 0.0
    %7233 = vmatprep.mubr.f32.mxu0 0.0
    %7234 = vmatmul.mubr.f32.gmra.mrb[0].mxu0 %v7161
    %v7235 = vpop.f32.mrb[0].mxu0
    %v7236 = vadd.f32 0.0, %v7235
    %v7237 = vpop.f32.mrb[0].mxu0
    %7238 = vmatprep.mubr.f32.mxu0 0.0
    %7239 = vmatmul.mubr.f32.gmra.mrb[0].mxu0 %v7163
    %v7240 = vpop.f32.mrb[0].mxu0
    %v7241 = vadd.f32 0.0, %v7240
    %v7242 = vpop.f32.mrb[0].mxu0
    %7243 = vdwg.mxu0
    %v7244 = vmul.f32 %v7236, 0.5
    %v7245 = vmul.f32 %v7241, 0.5
    %v7246 = vsel %vm2357, %v7244, -inf
    %7247 = vmax.xlane.f32.xlu0 %v7246
    %v7248 = vpop.xlane.xlu0 %7247
    %v7249 = vsel %vm2361, %v7245, -inf
    %7250 = vmax.xlane.f32.xlu0 %v7249
    %v7251 = vpop.xlane.xlu0 %7250
    %v7252 = vsub.f32 %v7244, %v7248
    %v7253 = vsub.f32 %v7245, %v7251
    %v7254 = vmul.f32 %v7252, 1.442695
    %v7255 = vpow.pop %v7254
    %v7256 = vmul.f32 %v7253, 1.442695
    %v7257 = vpow.pop %v7256
    %v7258 = vsel %vm2357, %v7255, 0.0
    %7259 = vadd.xlane.f32.xlu0 %v7258
    %v7260 = vpop.xlane.xlu0 %7259
    %v7261 = vsel %vm2361, %v7257, 0.0
    %7262 = vadd.xlane.f32.xlu0 %v7261
    %v7263 = vpop.xlane.xlu0 %7262
    %v7264 = vrcp.pop %v7260
    %v7265 = vrcp.pop %v7263
    %v7266 = vmul.f32 %v7255, %v7264
    %v7267 = vmul.f32 %v7257, %v7265
    %7268 = vrot.lane.b32.xlu0 %v6944, 108
    %v7269 = vpop.permute.xlu0 %7268
    %7270 = vrot.lane.b32.xlu0 %v6949, 108
    %v7271 = vpop.permute.xlu0 %7270
    %v7274 = vsel %vm2357, %v7266, 0
    %v7277 = vsel %vm2357, %v7267, 0
    %v7279 = vsel %vm1845, %v7271, 0
    %7281 = vmatprep.subr.mxu0 0.0
    %7282 = vmatpush1.msra.mxu0 %v7269
    %7283 = vmatprep.subr.mxu0 0.0
    %7284 = vmatpush1.msra.mxu0 %v7279
    %7285 = vmatprep.subr.mxu0 0.0
    %7286 = vmatpush1.msra.mxu0 0.0
    %7287 = vmatprep.subr.mxu0 0.0
    %7288 = vmatpush1.msra.mxu0 0.0
    %7289 = vmatprep.subr.mxu0 0.0
    %7290 = vmatpush1.msra.mxu0 0.0
    %7291 = vmatprep.subr.mxu0 0.0
    %7292 = vmatpush1.msra.mxu0 0.0
    %7293 = vmatprep.subr.mxu0 0.0
    %7294 = vmatpush1.msra.mxu0 0.0
    %7295 = vmatprep.subr.mxu0 0.0
    %7296 = vmatpush1.msra.mxu0 0.0
    %7297 = vmatprep.subr.mxu0 0.0
    %7298 = vmatpush1.msra.mxu0 0.0
    %7299 = vmatprep.subr.mxu0 0.0
    %7300 = vmatpush1.msra.mxu0 0.0
    %7301 = vmatprep.subr.mxu0 0.0
    %7302 = vmatpush1.msra.mxu0 0.0
    %7303 = vmatprep.subr.mxu0 0.0
    %7304 = vmatpush1.msra.mxu0 0.0
    %7305 = vmatprep.subr.mxu0 0.0
    %7306 = vmatpush1.msra.mxu0 0.0
    %7307 = vmatprep.subr.mxu0 0.0
    %7308 = vmatpush1.msra.mxu0 0.0
    %7309 = vmatprep.subr.mxu0 0.0
    %7310 = vmatpush1.msra.mxu0 0.0
    %7311 = vmatprep.subr.mxu0 0.0
    %7312 = vmatpush1.msra.mxu0 0.0
    %7313 = vmatprep.subr.mxu0 0.0
    %7314 = vmatpush1.msra.mxu0 0.0
    %7315 = vmatprep.subr.mxu0 0.0
    %7316 = vmatpush1.msra.mxu0 0.0
    %7317 = vmatprep.subr.mxu0 0.0
    %7318 = vmatpush1.msra.mxu0 0.0
    %7319 = vmatprep.subr.mxu0 0.0
    %7320 = vmatpush1.msra.mxu0 0.0
    %7321 = vmatprep.subr.mxu0 0.0
    %7322 = vmatpush1.msra.mxu0 0.0
    %7323 = vmatprep.subr.mxu0 0.0
    %7324 = vmatpush1.msra.mxu0 0.0
    %7325 = vmatprep.subr.mxu0 0.0
    %7326 = vmatpush1.msra.mxu0 0.0
    %7327 = vmatprep.subr.mxu0 0.0
    %7328 = vmatpush1.msra.mxu0 0.0
    %7329 = vmatprep.subr.mxu0 0.0
    %7330 = vmatpush1.msra.mxu0 0.0
    %7331 = vmatprep.subr.mxu0 0.0
    %7332 = vmatpush1.msra.mxu0 0.0
    %7333 = vmatprep.subr.mxu0 0.0
    %7334 = vmatpush1.msra.mxu0 0.0
    %7335 = vmatprep.subr.mxu0 0.0
    %7336 = vmatpush1.msra.mxu0 0.0
    %7337 = vmatprep.subr.mxu0 0.0
    %7338 = vmatpush1.msra.mxu0 0.0
    %7339 = vmatprep.subr.mxu0 0.0
    %7340 = vmatpush1.msra.mxu0 0.0
    %7341 = vmatprep.subr.mxu0 0.0
    %7342 = vmatpush1.msra.mxu0 0.0
    %7343 = vmatprep.subr.mxu0 0.0
    %7344 = vmatpush1.msra.mxu0 0.0
    %7345 = vmatprep.mubr.f32.mxu0 0.0
    %7346 = vmatmul.mubr.f32.gmra.mrb[0].mxu0 %v7274
    %v7347 = vpop.f32.mrb[0].mxu0
    %v7348 = vadd.f32 0.0, %v7347
    %v7349 = vpop.f32.mrb[0].mxu0
    %7350 = vmatprep.mubr.f32.mxu0 0.0
    %7351 = vmatmul.mubr.f32.gmra.mrb[0].mxu0 %v7277
    %v7352 = vpop.f32.mrb[0].mxu0
    %v7353 = vadd.f32 0.0, %v7352
    %v7354 = vpop.f32.mrb[0].mxu0
    %7355 = vdwg.mxu0
    %7358 = vrot.lane.b32.xlu0 %v7348, 4
    %v7359 = vpop.permute.xlu0 %7358
    %7360 = vrot.lane.b32.xlu0 %v7353, 4
    %v7361 = vpop.permute.xlu0 %7360
    %v7364 = vsel %vm2271, %v7145, %v7359
    %v7365 = vsel %vm2271, %v7150, %v7361
    %v7366 = vld [vmem:[%s3551] sm:$0xff]
    %v7367 = vld [vmem:[%s3553] sm:$0x1]
    %v7369 = vlaneseq
    %v7370 = vshrl.u32 %v7369, 7
    %v7371 = vsub.s32 0, %v7370
    %v7372 = vrot.slane %v7367, %v7371
    %v7375 = vsel %vm225, %v7364, 0
    %v7378 = vsel %vm225, %v7365, 0
    %7380 = vmatprep.subr.mxu0 0.0
    %7381 = vmatpush1.msra.mxu0 %v7366
    %7382 = vmatprep.subr.mxu0 0.0
    %7383 = vmatpush1.msra.mxu0 0.0
    %7384 = vmatprep.subr.mxu0 0.0
    %7385 = vmatpush1.msra.mxu0 0.0
    %7386 = vmatprep.subr.mxu0 0.0
    %7387 = vmatpush1.msra.mxu0 0.0
    %7388 = vmatprep.subr.mxu0 0.0
    %7389 = vmatpush1.msra.mxu0 0.0
    %7390 = vmatprep.subr.mxu0 0.0
    %7391 = vmatpush1.msra.mxu0 0.0
    %7392 = vmatprep.subr.mxu0 0.0
    %7393 = vmatpush1.msra.mxu0 0.0
    %7394 = vmatprep.subr.mxu0 0.0
    %7395 = vmatpush1.msra.mxu0 0.0
    %7396 = vmatprep.subr.mxu0 0.0
    %7397 = vmatpush1.msra.mxu0 0.0
    %7398 = vmatprep.subr.mxu0 0.0
    %7399 = vmatpush1.msra.mxu0 0.0
    %7400 = vmatprep.subr.mxu0 0.0
    %7401 = vmatpush1.msra.mxu0 0.0
    %7402 = vmatprep.subr.mxu0 0.0
    %7403 = vmatpush1.msra.mxu0 0.0
    %7404 = vmatprep.subr.mxu0 0.0
    %7405 = vmatpush1.msra.mxu0 0.0
    %7406 = vmatprep.subr.mxu0 0.0
    %7407 = vmatpush1.msra.mxu0 0.0
    %7408 = vmatprep.subr.mxu0 0.0
    %7409 = vmatpush1.msra.mxu0 0.0
    %7410 = vmatprep.subr.mxu0 0.0
    %7411 = vmatpush1.msra.mxu0 0.0
    %7412 = vmatprep.subr.mxu0 0.0
    %7413 = vmatpush1.msra.mxu0 0.0
    %7414 = vmatprep.subr.mxu0 0.0
    %7415 = vmatpush1.msra.mxu0 0.0
    %7416 = vmatprep.subr.mxu0 0.0
    %7417 = vmatpush1.msra.mxu0 0.0
    %7418 = vmatprep.subr.mxu0 0.0
    %7419 = vmatpush1.msra.mxu0 0.0
    %7420 = vmatprep.subr.mxu0 0.0
    %7421 = vmatpush1.msra.mxu0 0.0
    %7422 = vmatprep.subr.mxu0 0.0
    %7423 = vmatpush1.msra.mxu0 0.0
    %7424 = vmatprep.subr.mxu0 0.0
    %7425 = vmatpush1.msra.mxu0 0.0
    %7426 = vmatprep.subr.mxu0 0.0
    %7427 = vmatpush1.msra.mxu0 0.0
    %7428 = vmatprep.subr.mxu0 0.0
    %7429 = vmatpush1.msra.mxu0 0.0
    %7430 = vmatprep.subr.mxu0 0.0
    %7431 = vmatpush1.msra.mxu0 0.0
    %7432 = vmatprep.subr.mxu0 0.0
    %7433 = vmatpush1.msra.mxu0 0.0
    %7434 = vmatprep.subr.mxu0 0.0
    %7435 = vmatpush1.msra.mxu0 0.0
    %7436 = vmatprep.subr.mxu0 0.0
    %7437 = vmatpush1.msra.mxu0 0.0
    %7438 = vmatprep.subr.mxu0 0.0
    %7439 = vmatpush1.msra.mxu0 0.0
    %7440 = vmatprep.subr.mxu0 0.0
    %7441 = vmatpush1.msra.mxu0 0.0
    %7442 = vmatprep.subr.mxu0 0.0
    %7443 = vmatpush1.msra.mxu0 0.0
    %7444 = vmatprep.mubr.f32.mxu0 0.0
    %7445 = vmatmul.mubr.f32.gmra.mrb[0].mxu0 %v7375
    %v7446 = vpop.f32.mrb[0].mxu0
    %v7447 = vadd.f32 %v7372, %v7446
    %v7448 = vpop.f32.mrb[0].mxu0
    %7449 = vmatprep.mubr.f32.mxu0 0.0
    %7450 = vmatmul.mubr.f32.gmra.mrb[0].mxu0 %v7378
    %v7451 = vpop.f32.mrb[0].mxu0
    %v7452 = vadd.f32 %v7372, %v7451
    %v7453 = vpop.f32.mrb[0].mxu0
    %7454 = vdwg.mxu0
    %v7455 = vadd.f32 %v6824, %v7447
    %v7456 = vadd.f32 %v6825, %v7452
    %v7457 = vld [vmem:[%s3644] sm:$0x1]
    %v7458 = vld [vmem:[%s3646] sm:$0x1]
    %v7459 = vsel %vm225, %v7455, 0.0
    %7460 = vadd.xlane.f32.xlu0 %v7459
    %v7461 = vpop.xlane.xlu0 %7460
    %v7462 = vsel %vm2142, %v7456, 0.0
    %7463 = vadd.xlane.f32.xlu0 %v7462
    %v7464 = vpop.xlane.xlu0 %7463
    %v7465 = vmul.f32 %v7461, %v2146
    %v7466 = vmul.f32 %v7464, %v2146
    %v7467 = vsub.f32 %v7455, %v7465
    %v7468 = vsub.f32 %v7456, %v7466
    %v7469 = vmul.f32 %v7467, %v7467
    %v7470 = vmul.f32 %v7468, %v7468
    %v7471 = vsel %vm225, %v7469, 0.0
    %7472 = vadd.xlane.f32.xlu0 %v7471
    %v7473 = vpop.xlane.xlu0 %7472
    %v7474 = vsel %vm2142, %v7470, 0.0
    %7475 = vadd.xlane.f32.xlu0 %v7474
    %v7476 = vpop.xlane.xlu0 %7475
    %v7477 = vmul.f32 %v7473, %v2146
    %v7478 = vmul.f32 %v7476, %v2146
    %v7479 = vadd.f32 %v7477, 1e-05
    %v7480 = vadd.f32 %v7478, 1e-05
    %v7481 = vrsqrt.pop %v7479
    %v7482 = vrsqrt.pop %v7480
    %v7483 = vmul.f32 %v7467, %v7481
    %v7484 = vmul.f32 %v7468, %v7482
    %v7486 = vlaneseq
    %v7487 = vshrl.u32 %v7486, 7
    %v7488 = vsub.s32 0, %v7487
    %v7489 = vrot.slane %v7457, %v7488
    %v7491 = vmul.f32 %v7483, %v7489
    %v7492 = vmul.f32 %v7484, %v7489
    %v7494 = vlaneseq
    %v7495 = vshrl.u32 %v7494, 7
    %v7496 = vsub.s32 0, %v7495
    %v7497 = vrot.slane %v7458, %v7496
    %v7499 = vadd.f32 %v7491, %v7497
    %v7500 = vadd.f32 %v7492, %v7497
    %v7501 = vld [vmem:[%s3690] sm:$0xff]
    %v7502 = vld [vmem:[%s3692] sm:$0x1]
    %v7504 = vlaneseq
    %v7505 = vshrl.u32 %v7504, 7
    %v7506 = vsub.s32 0, %v7505
    %v7507 = vrot.slane %v7502, %v7506
    %v7510 = vsel %vm225, %v7499, 0
    %v7513 = vsel %vm225, %v7500, 0
    %7515 = vmatprep.subr.mxu0 0.0
    %7516 = vmatpush1.msra.mxu0 %v7501
    %7517 = vmatprep.subr.mxu0 0.0
    %7518 = vmatpush1.msra.mxu0 0.0
    %7519 = vmatprep.subr.mxu0 0.0
    %7520 = vmatpush1.msra.mxu0 0.0
    %7521 = vmatprep.subr.mxu0 0.0
    %7522 = vmatpush1.msra.mxu0 0.0
    %7523 = vmatprep.subr.mxu0 0.0
    %7524 = vmatpush1.msra.mxu0 0.0
    %7525 = vmatprep.subr.mxu0 0.0
    %7526 = vmatpush1.msra.mxu0 0.0
    %7527 = vmatprep.subr.mxu0 0.0
    %7528 = vmatpush1.msra.mxu0 0.0
    %7529 = vmatprep.subr.mxu0 0.0
    %7530 = vmatpush1.msra.mxu0 0.0
    %7531 = vmatprep.subr.mxu0 0.0
    %7532 = vmatpush1.msra.mxu0 0.0
    %7533 = vmatprep.subr.mxu0 0.0
    %7534 = vmatpush1.msra.mxu0 0.0
    %7535 = vmatprep.subr.mxu0 0.0
    %7536 = vmatpush1.msra.mxu0 0.0
    %7537 = vmatprep.subr.mxu0 0.0
    %7538 = vmatpush1.msra.mxu0 0.0
    %7539 = vmatprep.subr.mxu0 0.0
    %7540 = vmatpush1.msra.mxu0 0.0
    %7541 = vmatprep.subr.mxu0 0.0
    %7542 = vmatpush1.msra.mxu0 0.0
    %7543 = vmatprep.subr.mxu0 0.0
    %7544 = vmatpush1.msra.mxu0 0.0
    %7545 = vmatprep.subr.mxu0 0.0
    %7546 = vmatpush1.msra.mxu0 0.0
    %7547 = vmatprep.subr.mxu0 0.0
    %7548 = vmatpush1.msra.mxu0 0.0
    %7549 = vmatprep.subr.mxu0 0.0
    %7550 = vmatpush1.msra.mxu0 0.0
    %7551 = vmatprep.subr.mxu0 0.0
    %7552 = vmatpush1.msra.mxu0 0.0
    %7553 = vmatprep.subr.mxu0 0.0
    %7554 = vmatpush1.msra.mxu0 0.0
    %7555 = vmatprep.subr.mxu0 0.0
    %7556 = vmatpush1.msra.mxu0 0.0
    %7557 = vmatprep.subr.mxu0 0.0
    %7558 = vmatpush1.msra.mxu0 0.0
    %7559 = vmatprep.subr.mxu0 0.0
    %7560 = vmatpush1.msra.mxu0 0.0
    %7561 = vmatprep.subr.mxu0 0.0
    %7562 = vmatpush1.msra.mxu0 0.0
    %7563 = vmatprep.subr.mxu0 0.0
    %7564 = vmatpush1.msra.mxu0 0.0
    %7565 = vmatprep.subr.mxu0 0.0
    %7566 = vmatpush1.msra.mxu0 0.0
    %7567 = vmatprep.subr.mxu0 0.0
    %7568 = vmatpush1.msra.mxu0 0.0
    %7569 = vmatprep.subr.mxu0 0.0
    %7570 = vmatpush1.msra.mxu0 0.0
    %7571 = vmatprep.subr.mxu0 0.0
    %7572 = vmatpush1.msra.mxu0 0.0
    %7573 = vmatprep.subr.mxu0 0.0
    %7574 = vmatpush1.msra.mxu0 0.0
    %7575 = vmatprep.subr.mxu0 0.0
    %7576 = vmatpush1.msra.mxu0 0.0
    %7577 = vmatprep.subr.mxu0 0.0
    %7578 = vmatpush1.msra.mxu0 0.0
    %7579 = vmatprep.mubr.f32.mxu0 0.0
    %7580 = vmatmul.mubr.f32.gmra.mrb[0].mxu0 %v7510
    %v7581 = vpop.f32.mrb[0].mxu0
    %v7582 = vadd.f32 %v7507, %v7581
    %v7583 = vpop.f32.mrb[0].mxu0
    %7584 = vmatprep.mubr.f32.mxu0 0.0
    %7585 = vmatmul.mubr.f32.gmra.mrb[0].mxu0 %v7513
    %v7586 = vpop.f32.mrb[0].mxu0
    %v7587 = vadd.f32 %v7507, %v7586
    %v7588 = vpop.f32.mrb[0].mxu0
    %7589 = vdwg.mxu0
    %v7590 = vmul.f32 %v7582, 0.5
    %v7591 = vmul.f32 %v7587, 0.5
    %v7592 = vmul.f32 %v7582, 0.70710677
    %v7593 = vmul.f32 %v7587, 0.70710677
    %v7594 = verf.f32.pop %v7592
    %v7595 = verf.f32.pop %v7593
    %v7596 = vadd.f32 %v7594, 1.0
    %v7597 = vadd.f32 %v7595, 1.0
    %v7598 = vmul.f32 %v7590, %v7596
    %v7599 = vmul.f32 %v7591, %v7597
    %v7600 = vld [vmem:[%s3791] sm:$0xff]
    %v7601 = vld [vmem:[%s3791 + $0x8] sm:$0xff]
    %v7602 = vld [vmem:[%s3794] sm:$0x1]
    %v7604 = vlaneseq
    %v7605 = vshrl.u32 %v7604, 7
    %v7606 = vsub.s32 0, %v7605
    %v7607 = vrot.slane %v7602, %v7606
    %v7610 = vsel %vm1744, %v7598, 0
    %v7613 = vsel %vm1744, %v7599, 0
    %7615 = vmatprep.subr.mxu0 0.0
    %7616 = vmatpush1.msra.mxu0 %v7600
    %7617 = vmatprep.subr.mxu0 0.0
    %7618 = vmatpush1.msra.mxu0 %v7601
    %7619 = vmatprep.subr.mxu0 0.0
    %7620 = vmatpush1.msra.mxu0 0.0
    %7621 = vmatprep.subr.mxu0 0.0
    %7622 = vmatpush1.msra.mxu0 0.0
    %7623 = vmatprep.subr.mxu0 0.0
    %7624 = vmatpush1.msra.mxu0 0.0
    %7625 = vmatprep.subr.mxu0 0.0
    %7626 = vmatpush1.msra.mxu0 0.0
    %7627 = vmatprep.subr.mxu0 0.0
    %7628 = vmatpush1.msra.mxu0 0.0
    %7629 = vmatprep.subr.mxu0 0.0
    %7630 = vmatpush1.msra.mxu0 0.0
    %7631 = vmatprep.subr.mxu0 0.0
    %7632 = vmatpush1.msra.mxu0 0.0
    %7633 = vmatprep.subr.mxu0 0.0
    %7634 = vmatpush1.msra.mxu0 0.0
    %7635 = vmatprep.subr.mxu0 0.0
    %7636 = vmatpush1.msra.mxu0 0.0
    %7637 = vmatprep.subr.mxu0 0.0
    %7638 = vmatpush1.msra.mxu0 0.0
    %7639 = vmatprep.subr.mxu0 0.0
    %7640 = vmatpush1.msra.mxu0 0.0
    %7641 = vmatprep.subr.mxu0 0.0
    %7642 = vmatpush1.msra.mxu0 0.0
    %7643 = vmatprep.subr.mxu0 0.0
    %7644 = vmatpush1.msra.mxu0 0.0
    %7645 = vmatprep.subr.mxu0 0.0
    %7646 = vmatpush1.msra.mxu0 0.0
    %7647 = vmatprep.subr.mxu0 0.0
    %7648 = vmatpush1.msra.mxu0 0.0
    %7649 = vmatprep.subr.mxu0 0.0
    %7650 = vmatpush1.msra.mxu0 0.0
    %7651 = vmatprep.subr.mxu0 0.0
    %7652 = vmatpush1.msra.mxu0 0.0
    %7653 = vmatprep.subr.mxu0 0.0
    %7654 = vmatpush1.msra.mxu0 0.0
    %7655 = vmatprep.subr.mxu0 0.0
    %7656 = vmatpush1.msra.mxu0 0.0
    %7657 = vmatprep.subr.mxu0 0.0
    %7658 = vmatpush1.msra.mxu0 0.0
    %7659 = vmatprep.subr.mxu0 0.0
    %7660 = vmatpush1.msra.mxu0 0.0
    %7661 = vmatprep.subr.mxu0 0.0
    %7662 = vmatpush1.msra.mxu0 0.0
    %7663 = vmatprep.subr.mxu0 0.0
    %7664 = vmatpush1.msra.mxu0 0.0
    %7665 = vmatprep.subr.mxu0 0.0
    %7666 = vmatpush1.msra.mxu0 0.0
    %7667 = vmatprep.subr.mxu0 0.0
    %7668 = vmatpush1.msra.mxu0 0.0
    %7669 = vmatprep.subr.mxu0 0.0
    %7670 = vmatpush1.msra.mxu0 0.0
    %7671 = vmatprep.subr.mxu0 0.0
    %7672 = vmatpush1.msra.mxu0 0.0
    %7673 = vmatprep.subr.mxu0 0.0
    %7674 = vmatpush1.msra.mxu0 0.0
    %7675 = vmatprep.subr.mxu0 0.0
    %7676 = vmatpush1.msra.mxu0 0.0
    %7677 = vmatprep.subr.mxu0 0.0
    %7678 = vmatpush1.msra.mxu0 0.0
    %7679 = vmatprep.mubr.f32.mxu0 0.0
    %7680 = vmatmul.mubr.f32.gmra.mrb[0].mxu0 %v7610
    %v7681 = vpop.f32.mrb[0].mxu0
    %v7682 = vadd.f32 %v7607, %v7681
    %v7683 = vpop.f32.mrb[0].mxu0
    %7684 = vmatprep.mubr.f32.mxu0 0.0
    %7685 = vmatmul.mubr.f32.gmra.mrb[0].mxu0 %v7613
    %v7686 = vpop.f32.mrb[0].mxu0
    %v7687 = vpop.f32.mrb[0].mxu0
    %7688 = vdwg.mxu0
    %v7689 = vadd.f32 %v7455, %v7682
    %s7690 = scalar_lea.vmem [#allocation4], 1
    %7691 = vst.msk [vmem:[%s7690] sm:$0x1] %vm2142, %v7689
    %v7692 = vld [vmem:[%s53] sm:$0x1]
    %v7693 = vld [vmem:[%s55] sm:$0x1]
    %v7694 = vsel %vm2142, %v7689, 0.0
    %7695 = vadd.xlane.f32.xlu0 %v7694
    %v7696 = vpop.xlane.xlu0 %7695
    %v7697 = vmul.f32 %v7696, %v2146
    %v7698 = vsub.f32 %v7689, %v7697
    %v7699 = vmul.f32 %v7698, %v7698
    %v7700 = vsel %vm2142, %v7699, 0.0
    %7701 = vadd.xlane.f32.xlu0 %v7700
    %v7702 = vpop.xlane.xlu0 %7701
    %v7703 = vmul.f32 %v7702, %v2146
    %v7704 = vadd.f32 %v7703, 1e-05
    %v7705 = vrsqrt.pop %v7704
    %v7706 = vmul.f32 %v7698, %v7705
    %v7707 = vmul.f32 %v7706, %v7692
    %v7708 = vadd.f32 %v7707, %v7693
    %v7709 = vld [vmem:[%s57] sm:$0xff]
    %v7710 = vld [vmem:[%s59] sm:$0x1]
    %v7712 = vsel %vm225, %v7708, 0
    %7714 = vmatprep.subr.mxu0 0.0
    %7715 = vmatpush1.msra.mxu0 %v7709
    %7716 = vmatprep.subr.mxu0 0.0
    %7717 = vmatpush1.msra.mxu0 0.0
    %7718 = vmatprep.subr.mxu0 0.0
    %7719 = vmatpush1.msra.mxu0 0.0
    %7720 = vmatprep.subr.mxu0 0.0
    %7721 = vmatpush1.msra.mxu0 0.0
    %7722 = vmatprep.subr.mxu0 0.0
    %7723 = vmatpush1.msra.mxu0 0.0
    %7724 = vmatprep.subr.mxu0 0.0
    %7725 = vmatpush1.msra.mxu0 0.0
    %7726 = vmatprep.subr.mxu0 0.0
    %7727 = vmatpush1.msra.mxu0 0.0
    %7728 = vmatprep.subr.mxu0 0.0
    %7729 = vmatpush1.msra.mxu0 0.0
    %7730 = vmatprep.subr.mxu0 0.0
    %7731 = vmatpush1.msra.mxu0 0.0
    %7732 = vmatprep.subr.mxu0 0.0
    %7733 = vmatpush1.msra.mxu0 0.0
    %7734 = vmatprep.subr.mxu0 0.0
    %7735 = vmatpush1.msra.mxu0 0.0
    %7736 = vmatprep.subr.mxu0 0.0
    %7737 = vmatpush1.msra.mxu0 0.0
    %7738 = vmatprep.subr.mxu0 0.0
    %7739 = vmatpush1.msra.mxu0 0.0
    %7740 = vmatprep.subr.mxu0 0.0
    %7741 = vmatpush1.msra.mxu0 0.0
    %7742 = vmatprep.subr.mxu0 0.0
    %7743 = vmatpush1.msra.mxu0 0.0
    %7744 = vmatprep.subr.mxu0 0.0
    %7745 = vmatpush1.msra.mxu0 0.0
    %7746 = vmatprep.subr.mxu0 0.0
    %7747 = vmatpush1.msra.mxu0 0.0
    %7748 = vmatprep.subr.mxu0 0.0
    %7749 = vmatpush1.msra.mxu0 0.0
    %7750 = vmatprep.subr.mxu0 0.0
    %7751 = vmatpush1.msra.mxu0 0.0
    %7752 = vmatprep.subr.mxu0 0.0
    %7753 = vmatpush1.msra.mxu0 0.0
    %7754 = vmatprep.subr.mxu0 0.0
    %7755 = vmatpush1.msra.mxu0 0.0
    %7756 = vmatprep.subr.mxu0 0.0
    %7757 = vmatpush1.msra.mxu0 0.0
    %7758 = vmatprep.subr.mxu0 0.0
    %7759 = vmatpush1.msra.mxu0 0.0
    %7760 = vmatprep.subr.mxu0 0.0
    %7761 = vmatpush1.msra.mxu0 0.0
    %7762 = vmatprep.subr.mxu0 0.0
    %7763 = vmatpush1.msra.mxu0 0.0
    %7764 = vmatprep.subr.mxu0 0.0
    %7765 = vmatpush1.msra.mxu0 0.0
    %7766 = vmatprep.subr.mxu0 0.0
    %7767 = vmatpush1.msra.mxu0 0.0
    %7768 = vmatprep.subr.mxu0 0.0
    %7769 = vmatpush1.msra.mxu0 0.0
    %7770 = vmatprep.subr.mxu0 0.0
    %7771 = vmatpush1.msra.mxu0 0.0
    %7772 = vmatprep.subr.mxu0 0.0
    %7773 = vmatpush1.msra.mxu0 0.0
    %7774 = vmatprep.subr.mxu0 0.0
    %7775 = vmatpush1.msra.mxu0 0.0
    %7776 = vmatprep.subr.mxu0 0.0
    %7777 = vmatpush1.msra.mxu0 0.0
    %7778 = vmatprep.mubr.f32.mxu0 0.0
    %7779 = vmatmul.mubr.f32.gmra.mrb[0].mxu0 %v7712
    %v7780 = vpop.f32.mrb[0].mxu0
    %v7781 = vadd.f32 %v7710, %v7780
    %v7782 = vpop.f32.mrb[0].mxu0
    %7783 = vdwg.mxu0
    %s7784 = scalar_lea.vmem [#allocation2], 1
    %7785 = vst.msk [vmem:[%s7784] sm:$0x1] %vm3976, %v7781
    // Predicated region
    $region122: #{vit_forward.1} parent=1 // pred_check
      _
    $region123: #{vit_forward.1} parent=1 // pred_check_branch
      %7787 = sbr.rel (0) target = $region125
    $region124: #{vit_forward.1} parent=1 // pred_region
      %s7789 = ssub.s32 32, 32
      %7790 = vsyncadd [#allocation3], %s7789
      %s7791 = sshll.u32 [#allocation2], 4
      %s7792 = int_to_ptr.vmem [resolvable:$true] %s7791
      %7797 = dma.vmem_to_hbm [thread:$0]  %s7792, 32, %s61, [#allocation3], 16, 16, 1
    $region125: #{vit_forward.1} parent=1 // pred_fallthru
      _
    // Predicated region
    $region126: #{vit_forward.1} parent=1 // pred_check
      _
    $region127: #{vit_forward.1} parent=1 // pred_check_branch
      %7799 = sbr.rel (0) target = $region129
    $region128: #{vit_forward.1} parent=1 // pred_region
      %s7801 = ssub.s32 32, 32
      %7802 = vsyncadd [#allocation5], %s7801
      %s7803 = sshll.u32 [#allocation4], 4
      %s7804 = int_to_ptr.vmem [resolvable:$true] %s7803
      %7809 = dma.vmem_to_hbm [thread:$0]  %s7804, 32, %s63, [#allocation5], 16, 16, 1
    $region129: #{vit_forward.1} parent=1 // pred_fallthru
      _
    // Predicated region
    $region130: #{vit_forward.1} parent=1 // pred_check
      _
    $region131: #{vit_forward.1} parent=1 // pred_check_branch
      %7811 = sbr.rel (0) target = $region133
    $region132: #{vit_forward.1} parent=1 // pred_region
      %s7813 = ssub.s32 256, 256
      %7814 = vsyncadd [#allocation5], %s7813
      %s7815 = sshll.u32 [#allocation6], 4
      %s7816 = int_to_ptr.vmem [resolvable:$true] %s7815
      %7821 = dma.vmem_to_hbm [thread:$0]  %s7816, 256, %s65, [#allocation5], 128, 128, 8
    $region133: #{vit_forward.1} parent=1 // pred_fallthru
      _
    // Predicated region
    $region134: #{vit_forward.1} parent=1 // pred_check
      _
    $region135: #{vit_forward.1} parent=1 // pred_check_branch
      %7823 = sbr.rel (0) target = $region137
    $region136: #{vit_forward.1} parent=1 // pred_region
      %7824 = dma.done [#allocation3], 32
    $region137: #{vit_forward.1} parent=1 // pred_fallthru
      _
    // Predicated region
    $region138: #{vit_forward.1} parent=1 // pred_check
      _
    $region139: #{vit_forward.1} parent=1 // pred_check_branch
      %7826 = sbr.rel (0) target = $region141
    $region140: #{vit_forward.1} parent=1 // pred_region
      %7827 = dma.done [#allocation5], 32
    $region141: #{vit_forward.1} parent=1 // pred_fallthru
      _
    // Predicated region
    $region142: #{vit_forward.1} parent=1 // pred_check
      _
    $region143: #{vit_forward.1} parent=1 // pred_check_branch
      %7829 = sbr.rel (0) target = $region145
    $region144: #{vit_forward.1} parent=1 // pred_region
      %7830 = dma.done [#allocation5], 256
    $region145: #{vit_forward.1} parent=1 // pred_fallthru
      _
    %7831 = vsyncpa [#allocation3], 1
    %7832 = vsyncpa [#allocation5], 1

</llo_original>
